<compile_context>
chip_gen: v6e
topology: v6e:2x2x1
jax: 0.10.0
libtpu: 0.0.40
codegen_flags: <defaults>
</compile_context>

<pallas_src>
import functools

import jax
import jax.numpy as jnp
from jax.experimental import pallas as pl
from jax.experimental.pallas import tpu as pltpu

LANE = 128  # conv channel padding target: lane-dense stores + full MXU contraction


def _round_up(x, m):
    return ((x + m - 1) // m) * m


def conv_out_len(l, k, s, p):
    return (l + 2 * p - k) // s + 1


@functools.lru_cache(maxsize=None)
def _vmem_limit():
    # Generation-aware scoped-VMEM budget: ~48 MiB on v7x (64 MiB physical),
    # ~96 MiB on v5e/v6e (128 MiB physical).
    try:
        cap = int(pltpu.get_tpu_info().vmem_capacity_bytes)
    except Exception:
        cap = 64 * 1024 * 1024
    return min(cap * 3 // 4, 100 * 1024 * 1024)


def _params(n_axes=0):
    if n_axes:
        return pltpu.CompilerParams(
            dimension_semantics=("parallel",) * n_axes,
            vmem_limit_bytes=_vmem_limit())
    return pltpu.CompilerParams(vmem_limit_bytes=_vmem_limit())


# --------------------------------------------------------------------------
# Beat conv (C_in = 1): in-kernel im2col, VPU broadcast taps, relu epilogue
# --------------------------------------------------------------------------

def _beat_conv_kernel(x_ref, w_ref, b_ref, o_ref, *, k_size, l_out):
    # x_ref: (Lp, 1) f32 ; w_ref: (K, Cout) bf16 ; b_ref: (1, Cout) f32
    x = x_ref[...].astype(jnp.float32)
    w = w_ref[...].astype(jnp.float32)
    acc = jnp.zeros((l_out, o_ref.shape[-1]), jnp.float32)
    for k in range(k_size):  # K shifted views, no HBM im2col
        acc = acc + x[k:k + l_out, :] * w[k:k + 1, :]
    o_ref[...] = jnp.maximum(acc + b_ref[...], 0.0).astype(o_ref.dtype)


def beat_conv(x, w_k, bias, l_out, k_size):
    n, lp, _ = x.shape
    cout = w_k.shape[-1]
    flops = 2 * n * l_out * k_size * cout
    bytes_acc = int(x.size) * 4 + int(w_k.size) * 2 + int(bias.size) * 4 + n * l_out * cout * 2
    return pl.pallas_call(
        functools.partial(_beat_conv_kernel, k_size=k_size, l_out=l_out),
        out_shape=jax.ShapeDtypeStruct((n, l_out, cout), jnp.bfloat16),
        grid=(n,),
        in_specs=[pl.BlockSpec((None, lp, 1), lambda i: (i, 0, 0)),
                  pl.BlockSpec((k_size, cout), lambda i: (0, 0)),
                  pl.BlockSpec((1, cout), lambda i: (0, 0))],
        out_specs=pl.BlockSpec((None, l_out, cout), lambda i: (i, 0, 0)),
        compiler_params=_params(1),
        cost_estimate=pl.CostEstimate(flops=int(flops), transcendentals=0,
                                      bytes_accessed=int(bytes_acc)),
    )(x, w_k, bias)


# --------------------------------------------------------------------------
# Fused residual block kernel: conv1 -> relu -> bn1 -> conv2 (+shortcut) -> relu -> bn2
# --------------------------------------------------------------------------

def _res_block_kernel(xph_ref, w1_ref, b1_ref, s1_ref, t1_ref,
                      w2_ref, b2_ref, s2_ref, t2_ref, *rest,
                      k_size, stride, l1, l2, pad2, sc_r, sc_q, has_proj):
    if has_proj:
        wsc_ref, bsc_ref, o_ref = rest
    else:
        (o_ref,) = rest
    cout = o_ref.shape[-1]

    # load each stride-phase of the spatially pre-padded input once
    phases = [xph_ref[s].astype(jnp.float32) for s in range(stride)]

    # conv1 -> relu -> (dropout = id) -> bn1  (in-kernel im2col over K taps)
    acc1 = jnp.zeros((l1, cout), jnp.float32)
    for k in range(k_size):
        xk = phases[k % stride][(k // stride):(k // stride) + l1, :]
        acc1 = acc1 + jnp.dot(xk.astype(jnp.bfloat16), w1_ref[k],
                              preferred_element_type=jnp.float32)
    y1 = jnp.maximum(acc1 + b1_ref[...], 0.0) * s1_ref[...] + t1_ref[...]

    # spatially zero-pad y1 for conv2; stays in VMEM values (no HBM round trip)
    zpad = jnp.zeros((pad2, cout), jnp.float32)
    y1p = jnp.concatenate([zpad, y1, zpad], axis=0)

    # conv2
    acc2 = jnp.zeros((l2, cout), jnp.float32)
    for k in range(k_size):
        acc2 = acc2 + jnp.dot(y1p[k:k + l2, :].astype(jnp.bfloat16), w2_ref[k],
                              preferred_element_type=jnp.float32)
    y2 = acc2 + b2_ref[...]

    # shortcut (identity, or 1x1 strided conv with its BatchNorm folded in)
    xs = phases[sc_r][sc_q:sc_q + l2, :]
    if has_proj:
        sc = jnp.dot(xs.astype(jnp.bfloat16), wsc_ref[...],
                     preferred_element_type=jnp.float32) + bsc_ref[...]
    else:
        sc = xs
    y2 = jnp.maximum(y2 + sc, 0.0) * s2_ref[...] + t2_ref[...]
    o_ref[...] = y2.astype(o_ref.dtype)


def residual_block(x, bp, k_size):
    # x: (N, L_in, Cpad) bf16, channels-last, channel dim padded to LANE
    n, l_in, cpad = x.shape
    stride = 2 if bp['downsample'] else 1
    has_proj = bp['downsample'] or (bp['cin'] != bp['cout'])
    pad1 = (stride - 1 + k_size - stride) // 2
    pad2 = k_size // 2
    l1 = conv_out_len(l_in, k_size, stride, pad1)
    l2 = conv_out_len(l1, k_size, 1, pad2)
    l_sc = (l_in - 1) // stride + 1 if has_proj else l_in
    assert l_sc == l2, f"shortcut / conv2 length mismatch ({l_sc} vs {l2})"

    # spatially pad and split the input into `stride` phases (JAX glue, 1x traffic)
    xp = jnp.pad(x, ((0, 0), (pad1, pad1), (0, 0)))
    lp = xp.shape[1]
    lph = -(-lp // stride)
    xp = jnp.pad(xp, ((0, 0), (0, lph * stride - lp), (0, 0)))
    xph = jnp.stack([xp[:, r::stride, :] for r in range(stride)], axis=1)

    sc_r, sc_q = pad1 % stride, pad1 // stride
    assert sc_q + l2 <= lph and (k_size - 1) // stride + l1 <= lph

    operands = [xph, bp['w1'], bp['b1'], bp['s1'], bp['t1'],
                bp['w2'], bp['b2'], bp['s2'], bp['t2']]
    vec = lambda: pl.BlockSpec((1, cpad), lambda i: (0, 0))
    in_specs = [pl.BlockSpec((None, stride, lph, cpad), lambda i: (i, 0, 0, 0)),
                pl.BlockSpec(bp['w1'].shape, lambda i: (0, 0, 0)),
                vec(), vec(), vec(),
                pl.BlockSpec(bp['w2'].shape, lambda i: (0, 0, 0)),
                vec(), vec(), vec()]
    if has_proj:
        operands += [bp['wsc'], bp['bsc']]
        in_specs += [pl.BlockSpec((cpad, cpad), lambda i: (0, 0)), vec()]

    flops = 2 * n * cpad * cpad * (k_size * (l1 + l2) + (l2 if has_proj else 0))
    bytes_acc = sum(int(o.size) * o.dtype.itemsize for o in operands) + n * l2 * cpad * 2

    return pl.pallas_call(
        functools.partial(_res_block_kernel, k_size=k_size, stride=stride,
                          l1=l1, l2=l2, pad2=pad2, sc_r=sc_r, sc_q=sc_q,
                          has_proj=has_proj),
        out_shape=jax.ShapeDtypeStruct((n, l2, cpad), jnp.bfloat16),
        grid=(n,),
        in_specs=in_specs,
        out_specs=pl.BlockSpec((None, l2, cpad), lambda i: (i, 0, 0)),
        compiler_params=_params(1),
        cost_estimate=pl.CostEstimate(flops=int(flops), transcendentals=0,
                                      bytes_accessed=int(bytes_acc)),
    )(*operands)


# --------------------------------------------------------------------------
# Beat-level attention (bf16 matmuls, f32 softmax; V^T e via VPU reduce)
# --------------------------------------------------------------------------

def _beat_att_kernel(x_ref, w_ref, b_ref, v_ref, o_ref, *, seq_len):
    xb = x_ref[...].astype(jnp.float32)       # (tn, L, C)
    w = w_ref[...]                            # (C, D) bf16
    b = b_ref[...]                            # (L, D) f32
    v = v_ref[...]                            # (1, D) f32
    scores = []
    for t in range(seq_len):
        e = jnp.dot(xb[:, t, :].astype(jnp.bfloat16), w,
                    preferred_element_type=jnp.float32)
        e = jnp.tanh(e + b[t:t + 1, :])
        scores.append(jnp.sum(e * v, axis=-1, keepdims=True))   # (tn, 1)
    s = jnp.concatenate(scores, axis=1)                          # (tn, L)
    m = jnp.max(s, axis=1, keepdims=True)
    p = jnp.exp(s - m)
    a = p * pl.reciprocal(jnp.sum(p, axis=1, keepdims=True), approx=True)
    acc = jnp.zeros((xb.shape[0], xb.shape[2]), jnp.float32)
    for t in range(seq_len):
        acc = acc + xb[:, t, :] * a[:, t:t + 1]
    o_ref[...] = acc.astype(o_ref.dtype)


def beat_attention(x, w, b, v, out_dtype=jnp.bfloat16):
    n, l, c = x.shape
    d = w.shape[-1]
    tn = min(256, max(8, _round_up(-(-n // 2), 8)))
    tn = min(tn, _round_up(n, 8))
    grid = (pl.cdiv(n, tn),)
    return pl.pallas_call(
        functools.partial(_beat_att_kernel, seq_len=l),
        out_shape=jax.ShapeDtypeStruct((n, c), out_dtype),
        grid=grid,
        in_specs=[pl.BlockSpec((tn, l, c), lambda i: (i, 0, 0)),
                  pl.BlockSpec((c, d), lambda i: (0, 0)),
                  pl.BlockSpec((l, d), lambda i: (0, 0)),
                  pl.BlockSpec((1, d), lambda i: (0, 0))],
        out_specs=pl.BlockSpec((tn, c), lambda i: (i, 0)),
        compiler_params=_params(1),
        cost_estimate=pl.CostEstimate(flops=int(2 * n * l * c * d + 4 * n * l * c),
                                      transcendentals=int(2 * n * l * d),
                                      bytes_accessed=int(x.size * 2 + n * c * 2)),
    )(x, w, b, v)


# --------------------------------------------------------------------------
# Generic fused GEMM + bias (used for the hoisted LSTM input projection)
# --------------------------------------------------------------------------

def _gemm_bias_kernel(x_ref, w_ref, b_ref, o_ref):
    o_ref[...] = (jnp.dot(x_ref[...], w_ref[...],
                          preferred_element_type=jnp.float32)
                  + b_ref[...]).astype(o_ref.dtype)


def gemm_bias(x, w, b, out_dtype=jnp.float32, tm_max=512):
    m, k = x.shape
    n = w.shape[1]
    tm = min(tm_max, max(8, _round_up(-(-m // 2), 8)))   # >= 2 grid steps (megacore)
    tm = min(tm, _round_up(m, 8))
    grid = (pl.cdiv(m, tm),)
    return pl.pallas_call(
        _gemm_bias_kernel,
        out_shape=jax.ShapeDtypeStruct((m, n), out_dtype),
        grid=grid,
        in_specs=[pl.BlockSpec((tm, k), lambda i: (i, 0)),
                  pl.BlockSpec((k, n), lambda i: (0, 0)),
                  pl.BlockSpec((1, n), lambda i: (0, 0))],
        out_specs=pl.BlockSpec((tm, n), lambda i: (i, 0)),
        compiler_params=_params(1),
        cost_estimate=pl.CostEstimate(
            flops=int(2 * m * k * n), transcendentals=0,
            bytes_accessed=int(2 * m * k + 2 * k * n + 4 * n + 4 * m * n)),
    )(x.astype(jnp.bfloat16), w, b)


# --------------------------------------------------------------------------
# Bidirectional LSTM recurrence (input projection hoisted; batch-major gx)
# --------------------------------------------------------------------------

def _bilstm_kernel(gx_ref, whh_f_ref, whh_b_ref, o_ref, *, hidden, t_len):
    h = hidden
    g4, gw = 4 * h, 8 * h
    gx = gx_ref[...]                          # (tn, T*8H) f32, batch-major
    whh_f = whh_f_ref[...]
    whh_b = whh_b_ref[...]
    nb = gx.shape[0]

    def cell(gates, c_prev):
        i_g = jax.nn.sigmoid(gates[:, 0:h])
        f_g = jax.nn.sigmoid(gates[:, h:2 * h])
        g_g = jnp.tanh(gates[:, 2 * h:3 * h])
        o_g = jax.nn.sigmoid(gates[:, 3 * h:4 * h])
        c_new = f_g * c_prev + i_g * g_g
        return o_g * jnp.tanh(c_new), c_new

    h_f = c_f = h_b = c_b = jnp.zeros((nb, h), jnp.float32)
    # Both directions advance in one statically-unrolled loop; each step stores
    # its hidden state straight into o_ref (no Python lists keeping 2T arrays live).
    # TODO(synk): switch to lax.fori_loop with a (h_f,c_f,h_b,c_b) carry for large T.
    for t in range(t_len):
        tb = t_len - 1 - t
        g_f = gx[:, t * gw:t * gw + g4] + jnp.dot(h_f, whh_f,
                                                  preferred_element_type=jnp.float32)
        g_b = gx[:, tb * gw + g4:(tb + 1) * gw] + jnp.dot(h_b, whh_b,
                                                          preferred_element_type=jnp.float32)
        h_f, c_f = cell(g_f, c_f)
        h_b, c_b = cell(g_b, c_b)
        o_ref[:, t * 2 * h:t * 2 * h + h] = h_f
        o_ref[:, tb * 2 * h + h:(tb + 1) * 2 * h] = h_b


def bilstm(x, lstm_p):
    # x: (NBC, T, F) bf16  ->  (NBC, T, 2H) f32 ; no HBM transposes
    nbc, t_len, f = x.shape
    hdim = lstm_p['hidden']
    gw = 8 * hdim
    gx = gemm_bias(x.reshape(nbc * t_len, f), lstm_p['wih'], lstm_p['bih'])
    gx = gx.reshape(nbc, t_len * gw)          # batch-major flatten (free)
    tn = nbc if nbc <= 8 else min(max(8, _round_up(-(-nbc // 2), 8)),
                                  _round_up(nbc, 8))
    grid = (pl.cdiv(nbc, tn),)
    out = pl.pallas_call(
        functools.partial(_bilstm_kernel, hidden=hdim, t_len=t_len),
        out_shape=jax.ShapeDtypeStruct((nbc, t_len * 2 * hdim), jnp.float32),
        grid=grid,
        in_specs=[pl.BlockSpec((tn, t_len * gw), lambda i: (i, 0)),
                  pl.BlockSpec((hdim, 4 * hdim), lambda i: (0, 0)),
                  pl.BlockSpec((hdim, 4 * hdim), lambda i: (0, 0))],
        out_specs=pl.BlockSpec((tn, t_len * 2 * hdim), lambda i: (i, 0)),
        compiler_params=_params(1),
        cost_estimate=pl.CostEstimate(
            flops=int(4 * nbc * t_len * 2 * hdim * 4 * hdim),
            transcendentals=int(8 * nbc * t_len * hdim),
            bytes_accessed=int(gx.size * 4 + nbc * t_len * 2 * hdim * 4)),
    )(gx, lstm_p['whh_f'], lstm_p['whh_b'])
    return out.reshape(nbc, t_len, 2 * hdim)


# --------------------------------------------------------------------------
# Fused head: rhythm attention -> channel attention -> FC classifier
# --------------------------------------------------------------------------

def _att_single(x2, w, b, v):
    # x2: (L, F); softmax over the L rows (PyTorch softmax dim=1 of (N, L, F))
    e = jnp.dot(x2.astype(jnp.bfloat16), w, preferred_element_type=jnp.float32)
    e = jnp.tanh(e + b)
    s = jnp.sum(e * v, axis=-1, keepdims=True)                  # (L, 1)
    m = jnp.max(s, axis=0, keepdims=True)
    p = jnp.exp(s - m)
    a = p * pl.reciprocal(jnp.sum(p, axis=0, keepdims=True), approx=True)
    return jnp.sum(x2.astype(jnp.float32) * a, axis=0, keepdims=True)   # (1, F)


def _head_kernel(x_ref, wr_ref, br_ref, vr_ref, wc_ref, bc_ref, vc_ref,
                 wf_ref, bf_ref, o_ref, *, batch, chans):
    wr, br, vr = wr_ref[...], br_ref[...], vr_ref[...]
    wc, bc, vc = wc_ref[...], bc_ref[...], vc_ref[...]
    rows = [_att_single(x_ref[i], wr, br, vr) for i in range(batch * chans)]
    xr = jnp.concatenate(rows, axis=0)                          # (B*C, 2H)
    outs = [_att_single(xr[bi * chans:(bi + 1) * chans, :], wc, bc, vc)
            for bi in range(batch)]
    xo = jnp.concatenate(outs, axis=0)                          # (B, 2H)
    o_ref[...] = (jnp.dot(xo, wf_ref[...], preferred_element_type=jnp.float32)
                  + bf_ref[...])


def attention_head(x, hp, batch, chans):
    classes = hp['fc_w'].shape[-1]
    d = hp['r_W'].shape[-1]
    return pl.pallas_call(
        functools.partial(_head_kernel, batch=batch, chans=chans),
        out_shape=jax.ShapeDtypeStruct((batch, classes), jnp.float32),
        compiler_params=_params(0),
        cost_estimate=pl.CostEstimate(flops=int(4 * x.size * d),
                                      transcendentals=int(2 * x.size * d),
                                      bytes_accessed=int(x.size * 4)),
    )(x, hp['r_W'], hp['r_b'], hp['r_V'], hp['c_W'], hp['c_b'], hp['c_V'],
      hp['fc_w'], hp['fc_b'])


# --------------------------------------------------------------------------
# Parameter preparation (kernel layouts, lane padding, BN folding)
# --------------------------------------------------------------------------

def _pad_to(a, axis, size):
    extra = size - a.shape[axis]
    if extra <= 0:
        return a
    widths = [(0, 0)] * a.ndim
    widths[axis] = (0, extra)
    return jnp.pad(a, widths)


def prepare_params(p, cfg):
    kp = {}
    kp['beat_w'] = _pad_to(jnp.transpose(p['beat_conv_w'][:, 0, :]), 1,
                           LANE).astype(jnp.bfloat16)
    kp['beat_b'] = _pad_to(p['beat_conv_b'], 0, LANE).reshape(1, LANE)

    blocks = []
    for bp in p['blocks']:
        cout, cin, _ = bp['conv1_w'].shape
        nb = {'downsample': bp['downsample'], 'cin': cin, 'cout': cout}
        nb['w1'] = _pad_to(_pad_to(jnp.transpose(bp['conv1_w'], (2, 1, 0)), 1, LANE),
                           2, LANE).astype(jnp.bfloat16)
        nb['b1'] = _pad_to(bp['conv1_b'], 0, LANE).reshape(1, LANE)
        nb['s1'] = _pad_to(bp['bn1_scale'], 0, LANE).reshape(1, LANE)
        nb['t1'] = _pad_to(bp['bn1_shift'], 0, LANE).reshape(1, LANE)
        nb['w2'] = _pad_to(_pad_to(jnp.transpose(bp['conv2_w'], (2, 1, 0)), 1, LANE),
                           2, LANE).astype(jnp.bfloat16)
        nb['b2'] = _pad_to(bp['conv2_b'], 0, LANE).reshape(1, LANE)
        nb['s2'] = _pad_to(bp['bn2_scale'], 0, LANE).reshape(1, LANE)
        nb['t2'] = _pad_to(bp['bn2_shift'], 0, LANE).reshape(1, LANE)
        if bp['downsample'] or cin != cout:
            wsc = jnp.transpose(bp['sc_w'][:, :, 0]) * bp['sc_bn_scale'][None, :]
            bsc = bp['sc_b'] * bp['sc_bn_scale'] + bp['sc_bn_shift']
            nb['wsc'] = _pad_to(_pad_to(wsc, 0, LANE), 1, LANE).astype(jnp.bfloat16)
            nb['bsc'] = _pad_to(bsc, 0, LANE).reshape(1, LANE)
        blocks.append(nb)
    kp['blocks'] = blocks

    kp['beat_att_W'] = _pad_to(p['beat_att']['W'], 0, LANE).astype(jnp.bfloat16)
    kp['beat_att_b'] = p['beat_att']['b']
    kp['beat_att_V'] = jnp.transpose(p['beat_att']['V'])          # (1, D)

    hdim = cfg['lstm_units']
    wih = jnp.concatenate([jnp.transpose(p['lstm']['f']['wih']),
                           jnp.transpose(p['lstm']['b']['wih'])], axis=1)
    kp['lstm'] = {
        'hidden': hdim,
        'wih': _pad_to(wih, 0, LANE).astype(jnp.bfloat16),
        'bih': jnp.concatenate([p['lstm']['f']['bias'],
                                p['lstm']['b']['bias']]).reshape(1, 8 * hdim),
        'whh_f': jnp.transpose(p['lstm']['f']['whh']),
        'whh_b': jnp.transpose(p['lstm']['b']['whh']),
    }

    kp['head'] = {
        'r_W': p['rhythm_att']['W'].astype(jnp.bfloat16),
        'r_b': p['rhythm_att']['b'],
        'r_V': jnp.transpose(p['rhythm_att']['V']),
        'c_W': p['channel_att']['W'].astype(jnp.bfloat16),
        'c_b': p['channel_att']['b'],
        'c_V': jnp.transpose(p['channel_att']['V']),
        'fc_w': jnp.transpose(p['fc_w']),
        'fc_b': p['fc_b'].reshape(1, -1),
    }
    return kp


# --------------------------------------------------------------------------
# Forward pass
# --------------------------------------------------------------------------

def imlenet_forward(x, p, cfg):
    b, c, s, _ = x.shape
    beat_len = cfg['beat_len']
    k_size = cfg['kernel_size']
    num_beats = s // beat_len
    n = b * c * num_beats

    kp = prepare_params(p, cfg)

    # squeeze(-1) + view(-1, 1, beat_len), kept channels-LAST: (N, beat_len, 1)
    xb = x.reshape(n, beat_len, 1)

    # beat conv + relu
    pad0 = (k_size - 1) // 2
    l0 = conv_out_len(beat_len, k_size, 1, pad0)
    xp = jnp.pad(xb, ((0, 0), (pad0, pad0), (0, 0)))
    h = beat_conv(xp, kp['beat_w'], kp['beat_b'], l0, k_size)    # (N, L0, 128) bf16

    # residual CNN stack (one fused Pallas kernel per block)
    for blk in kp['blocks']:
        h = residual_block(h, blk, k_size)

    # beat-level attention (already channels-last; no transpose needed)
    h = beat_attention(h, kp['beat_att_W'], kp['beat_att_b'], kp['beat_att_V'])

    # beats -> rhythm (bi-LSTM over beats per lead), batch-major throughout
    h = h.reshape(b * c, num_beats, h.shape[-1])
    h = bilstm(h, kp['lstm'])                                    # (B*C, T, 2H) f32

    # fused rhythm attention -> channel attention -> FC head
    return attention_head(h, kp['head'], b, c)


# --------------------------------------------------------------------------
# Deterministic parameter initialization (shapes from IMLENet.__init__)
# --------------------------------------------------------------------------

def init_params(key, cfg):
    k_size = cfg['kernel_size']
    dim = cfg['att_dim']
    keys = iter(jax.random.split(key, 64))

    def nrm(shape, scale=0.1):
        return scale * jax.random.normal(next(keys), shape, jnp.float32)

    eps = 1e-5

    def bn(c):
        gamma = 1.0 + nrm((c,))
        beta = nrm((c,))
        running_mean = jnp.zeros((c,), jnp.float32)
        running_var = jnp.ones((c,), jnp.float32)
        scale = gamma / jnp.sqrt(running_var + eps)
        shift = beta - running_mean * scale
        return scale, shift

    p = {}
    sf = cfg['start_filters']
    p['beat_conv_w'] = nrm((sf, 1, k_size))
    p['beat_conv_b'] = nrm((sf,))

    blocks = []
    nf = sf
    l = conv_out_len(cfg['beat_len'], k_size, 1, (k_size - 1) // 2)
    for i, num_blocks in enumerate(cfg['num_blocks_list']):
        for j in range(num_blocks):
            downsample = (j == 0 and i != 0)
            c_out = nf * (2 if downsample else 1)
            stride = 2 if downsample else 1
            blk = {'downsample': downsample}
            blk['conv1_w'] = nrm((c_out, nf, k_size))
            blk['conv1_b'] = nrm((c_out,))
            blk['bn1_scale'], blk['bn1_shift'] = bn(c_out)
            blk['conv2_w'] = nrm((c_out, c_out, k_size))
            blk['conv2_b'] = nrm((c_out,))
            blk['bn2_scale'], blk['bn2_shift'] = bn(c_out)
            if downsample or nf != c_out:
                blk['sc_w'] = nrm((c_out, nf, 1))
                blk['sc_b'] = nrm((c_out,))
                blk['sc_bn_scale'], blk['sc_bn_shift'] = bn(c_out)
            blocks.append(blk)
            pad1 = (stride - 1 + k_size - stride) // 2
            l1 = conv_out_len(l, k_size, stride, pad1)
            l = conv_out_len(l1, k_size, 1, k_size // 2)
            nf = c_out
    p['blocks'] = blocks

    def att(feat, seq):
        return {'W': nrm((feat, dim), 1.0),
                'b': jnp.zeros((seq, dim), jnp.float32),
                'V': nrm((dim, 1), 1.0)}

    num_beats = cfg['signal_len'] // cfg['beat_len']
    hdim = cfg['lstm_units']
    p['beat_att'] = att(nf, l)
    p['rhythm_att'] = att(2 * hdim, num_beats)
    p['channel_att'] = att(2 * hdim, cfg['input_channels'])

    def lstm_dir(f_in):
        return {'wih': nrm((4 * hdim, f_in)),
                'whh': nrm((4 * hdim, hdim)),
                'bias': nrm((4 * hdim,)) + nrm((4 * hdim,))}

    p['lstm'] = {'f': lstm_dir(nf), 'b': lstm_dir(nf)}
    p['fc_w'] = nrm((cfg['classes'], 2 * hdim))
    p['fc_b'] = nrm((cfg['classes'],))
    return p


# --------------------------------------------------------------------------

if __name__ == "__main__":
    cfg = dict(
        input_channels=4,     # ECG leads (small)
        signal_len=64,        # samples per lead
        beat_len=16,          # samples per beat -> 4 beats
        start_filters=8,
        kernel_size=8,
        num_blocks_list=[1, 1],
        lstm_units=8,
        classes=5,
        att_dim=64,
    )
    key = jax.random.PRNGKey(0)
    kx, kparam = jax.random.split(key)
    x = jax.random.normal(
        kx, (2, cfg['input_channels'], cfg['signal_len'], 1), jnp.float32)
    params = init_params(kparam, cfg)

    fwd = jax.jit(lambda inp: imlenet_forward(inp, params, cfg))
    out = jax.block_until_ready(fwd(x))
    assert out.shape == (2, cfg['classes']), out.shape
    assert bool(jnp.all(jnp.isfinite(out)))
    print("KERNEL_OK")
</pallas_src>

<mosaic_0001>
module attributes {stable_mosaic.version = 11 : i64} {
  func.func @_beat_conv_kernel(%arg0: i32, %arg1: memref<1x22x1xf32, #tpu.memory_space<vmem>>, %arg2: memref<8x128xbf16, #tpu.memory_space<vmem>>, %arg3: memref<1x128xf32, #tpu.memory_space<vmem>>, %arg4: memref<1x15x128xbf16, #tpu.memory_space<vmem>>) attributes {dimension_semantics = [#tpu.dimension_semantics<parallel>], iteration_bounds = array<i64: 32>, scalar_prefetch = 0 : i64, scratch_operands = 0 : i64, tpu.core_type = #tpu.core_type<tc>, window_params = [{transform_indices = @transform_0, window_bounds = array<i64: 1, 22, 1>}, {pipeline_mode = #tpu.pipeline_mode<synchronous>, transform_indices = @transform_1, window_bounds = array<i64: 8, 128>}, {pipeline_mode = #tpu.pipeline_mode<synchronous>, transform_indices = @transform_2, window_bounds = array<i64: 1, 128>}, {transform_indices = @transform_3, window_bounds = array<i64: 1, 15, 128>}]} {
    %c0 = arith.constant 0 : index
    %c0_0 = arith.constant 0 : index
    %c0_1 = arith.constant 0 : index
    %0 = vector.load %arg1[%c0, %c0_0, %c0_1] : memref<1x22x1xf32, #tpu.memory_space<vmem>>, vector<1x22x1xf32>
    %1 = vector.shape_cast %0 : vector<1x22x1xf32> to vector<22x1xf32>
    %c0_2 = arith.constant 0 : index
    %c0_3 = arith.constant 0 : index
    %2 = vector.load %arg2[%c0_2, %c0_3] : memref<8x128xbf16, #tpu.memory_space<vmem>>, vector<8x128xbf16>
    %3 = arith.extf %2 : vector<8x128xbf16> to vector<8x128xf32>
    %cst = arith.constant 0.000000e+00 : f32
    %4 = vector.broadcast %cst : f32 to vector<15x128xf32>
    %5 = vector.extract_strided_slice %1 {offsets = [0, 0], sizes = [15, 1], strides = [1, 1]} : vector<22x1xf32> to vector<15x1xf32>
    %6 = vector.extract_strided_slice %3 {offsets = [0, 0], sizes = [1, 128], strides = [1, 1]} : vector<8x128xf32> to vector<1x128xf32>
    %7 = vector.broadcast %5 : vector<15x1xf32> to vector<15x128xf32>
    %8 = vector.broadcast %6 : vector<1x128xf32> to vector<15x128xf32>
    %9 = arith.mulf %7, %8 : vector<15x128xf32>
    %10 = arith.addf %4, %9 : vector<15x128xf32>
    %11 = vector.extract_strided_slice %1 {offsets = [1, 0], sizes = [15, 1], strides = [1, 1]} : vector<22x1xf32> to vector<15x1xf32>
    %12 = vector.extract_strided_slice %3 {offsets = [1, 0], sizes = [1, 128], strides = [1, 1]} : vector<8x128xf32> to vector<1x128xf32>
    %13 = vector.broadcast %11 : vector<15x1xf32> to vector<15x128xf32>
    %14 = vector.broadcast %12 : vector<1x128xf32> to vector<15x128xf32>
    %15 = arith.mulf %13, %14 : vector<15x128xf32>
    %16 = arith.addf %10, %15 : vector<15x128xf32>
    %17 = vector.extract_strided_slice %1 {offsets = [2, 0], sizes = [15, 1], strides = [1, 1]} : vector<22x1xf32> to vector<15x1xf32>
    %18 = vector.extract_strided_slice %3 {offsets = [2, 0], sizes = [1, 128], strides = [1, 1]} : vector<8x128xf32> to vector<1x128xf32>
    %19 = vector.broadcast %17 : vector<15x1xf32> to vector<15x128xf32>
    %20 = vector.broadcast %18 : vector<1x128xf32> to vector<15x128xf32>
    %21 = arith.mulf %19, %20 : vector<15x128xf32>
    %22 = arith.addf %16, %21 : vector<15x128xf32>
    %23 = vector.extract_strided_slice %1 {offsets = [3, 0], sizes = [15, 1], strides = [1, 1]} : vector<22x1xf32> to vector<15x1xf32>
    %24 = vector.extract_strided_slice %3 {offsets = [3, 0], sizes = [1, 128], strides = [1, 1]} : vector<8x128xf32> to vector<1x128xf32>
    %25 = vector.broadcast %23 : vector<15x1xf32> to vector<15x128xf32>
    %26 = vector.broadcast %24 : vector<1x128xf32> to vector<15x128xf32>
    %27 = arith.mulf %25, %26 : vector<15x128xf32>
    %28 = arith.addf %22, %27 : vector<15x128xf32>
    %29 = vector.extract_strided_slice %1 {offsets = [4, 0], sizes = [15, 1], strides = [1, 1]} : vector<22x1xf32> to vector<15x1xf32>
    %30 = vector.extract_strided_slice %3 {offsets = [4, 0], sizes = [1, 128], strides = [1, 1]} : vector<8x128xf32> to vector<1x128xf32>
    %31 = vector.broadcast %29 : vector<15x1xf32> to vector<15x128xf32>
    %32 = vector.broadcast %30 : vector<1x128xf32> to vector<15x128xf32>
    %33 = arith.mulf %31, %32 : vector<15x128xf32>
    %34 = arith.addf %28, %33 : vector<15x128xf32>
    %35 = vector.extract_strided_slice %1 {offsets = [5, 0], sizes = [15, 1], strides = [1, 1]} : vector<22x1xf32> to vector<15x1xf32>
    %36 = vector.extract_strided_slice %3 {offsets = [5, 0], sizes = [1, 128], strides = [1, 1]} : vector<8x128xf32> to vector<1x128xf32>
    %37 = vector.broadcast %35 : vector<15x1xf32> to vector<15x128xf32>
    %38 = vector.broadcast %36 : vector<1x128xf32> to vector<15x128xf32>
    %39 = arith.mulf %37, %38 : vector<15x128xf32>
    %40 = arith.addf %34, %39 : vector<15x128xf32>
    %41 = vector.extract_strided_slice %1 {offsets = [6, 0], sizes = [15, 1], strides = [1, 1]} : vector<22x1xf32> to vector<15x1xf32>
    %42 = vector.extract_strided_slice %3 {offsets = [6, 0], sizes = [1, 128], strides = [1, 1]} : vector<8x128xf32> to vector<1x128xf32>
    %43 = vector.broadcast %41 : vector<15x1xf32> to vector<15x128xf32>
    %44 = vector.broadcast %42 : vector<1x128xf32> to vector<15x128xf32>
    %45 = arith.mulf %43, %44 : vector<15x128xf32>
    %46 = arith.addf %40, %45 : vector<15x128xf32>
    %47 = vector.extract_strided_slice %1 {offsets = [7, 0], sizes = [15, 1], strides = [1, 1]} : vector<22x1xf32> to vector<15x1xf32>
    %48 = vector.extract_strided_slice %3 {offsets = [7, 0], sizes = [1, 128], strides = [1, 1]} : vector<8x128xf32> to vector<1x128xf32>
    %49 = vector.broadcast %47 : vector<15x1xf32> to vector<15x128xf32>
    %50 = vector.broadcast %48 : vector<1x128xf32> to vector<15x128xf32>
    %51 = arith.mulf %49, %50 : vector<15x128xf32>
    %52 = arith.addf %46, %51 : vector<15x128xf32>
    %c0_4 = arith.constant 0 : index
    %c0_5 = arith.constant 0 : index
    %53 = vector.load %arg3[%c0_4, %c0_5] : memref<1x128xf32, #tpu.memory_space<vmem>>, vector<1x128xf32>
    %54 = vector.broadcast %53 : vector<1x128xf32> to vector<15x128xf32>
    %55 = arith.addf %52, %54 : vector<15x128xf32>
    %cst_6 = arith.constant 0.000000e+00 : f32
    %56 = vector.broadcast %cst_6 : f32 to vector<15x128xf32>
    %57 = arith.maximumf %55, %56 : vector<15x128xf32>
    %58 = arith.truncf %57 : vector<15x128xf32> to vector<15x128xbf16>
    %c0_7 = arith.constant 0 : index
    %c0_8 = arith.constant 0 : index
    %c0_9 = arith.constant 0 : index
    %59 = vector.load %arg4[%c0_7, %c0_8, %c0_9] : memref<1x15x128xbf16, #tpu.memory_space<vmem>>, vector<1x15x128xbf16>
    %60 = vector.shape_cast %59 : vector<1x15x128xbf16> to vector<15x128xbf16>
    %61 = vector.shape_cast %58 : vector<15x128xbf16> to vector<1x15x128xbf16>
    tpu.vector_store %arg4[%c0_7, %c0_8, %c0_9], %61 {strides = array<i32>} : memref<1x15x128xbf16, #tpu.memory_space<vmem>>, vector<1x15x128xbf16>,
    return
  }
  func.func @transform_0(%arg0: i32) -> (i32, i32, i32) {
    %c0_i32 = arith.constant 0 : i32
    %c0_i32_0 = arith.constant 0 : i32
    %c0_i32_1 = arith.constant 0 : i32
    return %arg0, %c0_i32, %c0_i32_0 : i32, i32, i32
  }
  func.func @transform_1(%arg0: i32) -> (i32, i32) {
    %c0_i32 = arith.constant 0 : i32
    %c0_i32_0 = arith.constant 0 : i32
    %c0_i32_1 = arith.constant 0 : i32
    return %c0_i32, %c0_i32_0 : i32, i32
  }
  func.func @transform_2(%arg0: i32) -> (i32, i32) {
    %c0_i32 = arith.constant 0 : i32
    %c0_i32_0 = arith.constant 0 : i32
    %c0_i32_1 = arith.constant 0 : i32
    return %c0_i32, %c0_i32_0 : i32, i32
  }
  func.func @transform_3(%arg0: i32) -> (i32, i32, i32) {
    %c0_i32 = arith.constant 0 : i32
    %c0_i32_0 = arith.constant 0 : i32
    %c0_i32_1 = arith.constant 0 : i32
    return %arg0, %c0_i32, %c0_i32_0 : i32, i32, i32
  }
}

module attributes {stable_mosaic.version = 11 : i64} {
  func.func @_res_block_kernel(%arg0: i32, %arg1: memref<1x1x21x128xbf16, #tpu.memory_space<vmem>>, %arg2: memref<8x128x128xbf16, #tpu.memory_space<vmem>>, %arg3: memref<1x128xf32, #tpu.memory_space<vmem>>, %arg4: memref<1x128xf32, #tpu.memory_space<vmem>>, %arg5: memref<1x128xf32, #tpu.memory_space<vmem>>, %arg6: memref<8x128x128xbf16, #tpu.memory_space<vmem>>, %arg7: memref<1x128xf32, #tpu.memory_space<vmem>>, %arg8: memref<1x128xf32, #tpu.memory_space<vmem>>, %arg9: memref<1x128xf32, #tpu.memory_space<vmem>>, %arg10: memref<1x15x128xbf16, #tpu.memory_space<vmem>>) attributes {dimension_semantics = [#tpu.dimension_semantics<parallel>], iteration_bounds = array<i64: 32>, scalar_prefetch = 0 : i64, scratch_operands = 0 : i64, tpu.core_type = #tpu.core_type<tc>, window_params = [{transform_indices = @transform_0, window_bounds = array<i64: 1, 1, 21, 128>}, {pipeline_mode = #tpu.pipeline_mode<synchronous>, transform_indices = @transform_1, window_bounds = array<i64: 8, 128, 128>}, {pipeline_mode = #tpu.pipeline_mode<synchronous>, transform_indices = @transform_2, window_bounds = array<i64: 1, 128>}, {pipeline_mode = #tpu.pipeline_mode<synchronous>, transform_indices = @transform_3, window_bounds = array<i64: 1, 128>}, {pipeline_mode = #tpu.pipeline_mode<synchronous>, transform_indices = @transform_4, window_bounds = array<i64: 1, 128>}, {pipeline_mode = #tpu.pipeline_mode<synchronous>, transform_indices = @transform_5, window_bounds = array<i64: 8, 128, 128>}, {pipeline_mode = #tpu.pipeline_mode<synchronous>, transform_indices = @transform_6, window_bounds = array<i64: 1, 128>}, {pipeline_mode = #tpu.pipeline_mode<synchronous>, transform_indices = @transform_7, window_bounds = array<i64: 1, 128>}, {pipeline_mode = #tpu.pipeline_mode<synchronous>, transform_indices = @transform_8, window_bounds = array<i64: 1, 128>}, {transform_indices = @transform_9, window_bounds = array<i64: 1, 15, 128>}]} {
    %c0 = arith.constant 0 : index
    %c0_0 = arith.constant 0 : index
    %c0_1 = arith.constant 0 : index
    %c0_2 = arith.constant 0 : index
    %0 = vector.load %arg1[%c0, %c0_0, %c0_1, %c0_2] : memref<1x1x21x128xbf16, #tpu.memory_space<vmem>>, vector<1x1x21x128xbf16>
    %1 = vector.shape_cast %0 : vector<1x1x21x128xbf16> to vector<21x128xbf16>
    %2 = arith.extf %1 : vector<21x128xbf16> to vector<21x128xf32>
    %cst = arith.constant 0.000000e+00 : f32
    %3 = vector.broadcast %cst : f32 to vector<14x128xf32>
    %4 = vector.extract_strided_slice %2 {offsets = [0, 0], sizes = [14, 128], strides = [1, 1]} : vector<21x128xf32> to vector<14x128xf32>
    %5 = arith.truncf %4 : vector<14x128xf32> to vector<14x128xbf16>
    %c0_3 = arith.constant 0 : index
    %c0_4 = arith.constant 0 : index
    %c0_5 = arith.constant 0 : index
    %6 = vector.load %arg2[%c0_3, %c0_4, %c0_5] : memref<8x128x128xbf16, #tpu.memory_space<vmem>>, vector<1x128x128xbf16>
    %7 = vector.shape_cast %6 : vector<1x128x128xbf16> to vector<128x128xbf16>
    %cst_6 = arith.constant dense<0.000000e+00> : vector<14x128xf32>
    %8 = tpu.matmul %5, %7, %cst_6 {dimension_numbers = #tpu.dot_dimension_numbers<[1], [0], [0], [1], [0, 0, 1, 1], [], []>} : vector<14x128xbf16>, vector<128x128xbf16>, vector<14x128xf32> -> vector<14x128xf32>
    %9 = arith.addf %3, %8 : vector<14x128xf32>
    %10 = vector.extract_strided_slice %2 {offsets = [1, 0], sizes = [14, 128], strides = [1, 1]} : vector<21x128xf32> to vector<14x128xf32>
    %11 = arith.truncf %10 : vector<14x128xf32> to vector<14x128xbf16>
    %c1 = arith.constant 1 : index
    %c0_7 = arith.constant 0 : index
    %c0_8 = arith.constant 0 : index
    %12 = vector.load %arg2[%c1, %c0_7, %c0_8] : memref<8x128x128xbf16, #tpu.memory_space<vmem>>, vector<1x128x128xbf16>
    %13 = vector.shape_cast %12 : vector<1x128x128xbf16> to vector<128x128xbf16>
    %cst_9 = arith.constant dense<0.000000e+00> : vector<14x128xf32>
    %14 = tpu.matmul %11, %13, %cst_9 {dimension_numbers = #tpu.dot_dimension_numbers<[1], [0], [0], [1], [0, 0, 1, 1], [], []>} : vector<14x128xbf16>, vector<128x128xbf16>, vector<14x128xf32> -> vector<14x128xf32>
    %15 = arith.addf %9, %14 : vector<14x128xf32>
    %16 = vector.extract_strided_slice %2 {offsets = [2, 0], sizes = [14, 128], strides = [1, 1]} : vector<21x128xf32> to vector<14x128xf32>
    %17 = arith.truncf %16 : vector<14x128xf32> to vector<14x128xbf16>
    %c2 = arith.constant 2 : index
    %c0_10 = arith.constant 0 : index
    %c0_11 = arith.constant 0 : index
    %18 = vector.load %arg2[%c2, %c0_10, %c0_11] : memref<8x128x128xbf16, #tpu.memory_space<vmem>>, vector<1x128x128xbf16>
    %19 = vector.shape_cast %18 : vector<1x128x128xbf16> to vector<128x128xbf16>
    %cst_12 = arith.constant dense<0.000000e+00> : vector<14x128xf32>
    %20 = tpu.matmul %17, %19, %cst_12 {dimension_numbers = #tpu.dot_dimension_numbers<[1], [0], [0], [1], [0, 0, 1, 1], [], []>} : vector<14x128xbf16>, vector<128x128xbf16>, vector<14x128xf32> -> vector<14x128xf32>
    %21 = arith.addf %15, %20 : vector<14x128xf32>
    %22 = vector.extract_strided_slice %2 {offsets = [3, 0], sizes = [14, 128], strides = [1, 1]} : vector<21x128xf32> to vector<14x128xf32>
    %23 = arith.truncf %22 : vector<14x128xf32> to vector<14x128xbf16>
    %c3 = arith.constant 3 : index
    %c0_13 = arith.constant 0 : index
    %c0_14 = arith.constant 0 : index
    %24 = vector.load %arg2[%c3, %c0_13, %c0_14] : memref<8x128x128xbf16, #tpu.memory_space<vmem>>, vector<1x128x128xbf16>
    %25 = vector.shape_cast %24 : vector<1x128x128xbf16> to vector<128x128xbf16>
    %cst_15 = arith.constant dense<0.000000e+00> : vector<14x128xf32>
    %26 = tpu.matmul %23, %25, %cst_15 {dimension_numbers = #tpu.dot_dimension_numbers<[1], [0], [0], [1], [0, 0, 1, 1], [], []>} : vector<14x128xbf16>, vector<128x128xbf16>, vector<14x128xf32> -> vector<14x128xf32>
    %27 = arith.addf %21, %26 : vector<14x128xf32>
    %28 = vector.extract_strided_slice %2 {offsets = [4, 0], sizes = [14, 128], strides = [1, 1]} : vector<21x128xf32> to vector<14x128xf32>
    %29 = arith.truncf %28 : vector<14x128xf32> to vector<14x128xbf16>
    %c4 = arith.constant 4 : index
    %c0_16 = arith.constant 0 : index
    %c0_17 = arith.constant 0 : index
    %30 = vector.load %arg2[%c4, %c0_16, %c0_17] : memref<8x128x128xbf16, #tpu.memory_space<vmem>>, vector<1x128x128xbf16>
    %31 = vector.shape_cast %30 : vector<1x128x128xbf16> to vector<128x128xbf16>
    %cst_18 = arith.constant dense<0.000000e+00> : vector<14x128xf32>
    %32 = tpu.matmul %29, %31, %cst_18 {dimension_numbers = #tpu.dot_dimension_numbers<[1], [0], [0], [1], [0, 0, 1, 1], [], []>} : vector<14x128xbf16>, vector<128x128xbf16>, vector<14x128xf32> -> vector<14x128xf32>
    %33 = arith.addf %27, %32 : vector<14x128xf32>
    %34 = vector.extract_strided_slice %2 {offsets = [5, 0], sizes = [14, 128], strides = [1, 1]} : vector<21x128xf32> to vector<14x128xf32>
    %35 = arith.truncf %34 : vector<14x128xf32> to vector<14x128xbf16>
    %c5 = arith.constant 5 : index
    %c0_19 = arith.constant 0 : index
    %c0_20 = arith.constant 0 : index
    %36 = vector.load %arg2[%c5, %c0_19, %c0_20] : memref<8x128x128xbf16, #tpu.memory_space<vmem>>, vector<1x128x128xbf16>
    %37 = vector.shape_cast %36 : vector<1x128x128xbf16> to vector<128x128xbf16>
    %cst_21 = arith.constant dense<0.000000e+00> : vector<14x128xf32>
    %38 = tpu.matmul %35, %37, %cst_21 {dimension_numbers = #tpu.dot_dimension_numbers<[1], [0], [0], [1], [0, 0, 1, 1], [], []>} : vector<14x128xbf16>, vector<128x128xbf16>, vector<14x128xf32> -> vector<14x128xf32>
    %39 = arith.addf %33, %38 : vector<14x128xf32>
    %40 = vector.extract_strided_slice %2 {offsets = [6, 0], sizes = [14, 128], strides = [1, 1]} : vector<21x128xf32> to vector<14x128xf32>
    %41 = arith.truncf %40 : vector<14x128xf32> to vector<14x128xbf16>
    %c6 = arith.constant 6 : index
    %c0_22 = arith.constant 0 : index
    %c0_23 = arith.constant 0 : index
    %42 = vector.load %arg2[%c6, %c0_22, %c0_23] : memref<8x128x128xbf16, #tpu.memory_space<vmem>>, vector<1x128x128xbf16>
    %43 = vector.shape_cast %42 : vector<1x128x128xbf16> to vector<128x128xbf16>
    %cst_24 = arith.constant dense<0.000000e+00> : vector<14x128xf32>
    %44 = tpu.matmul %41, %43, %cst_24 {dimension_numbers = #tpu.dot_dimension_numbers<[1], [0], [0], [1], [0, 0, 1, 1], [], []>} : vector<14x128xbf16>, vector<128x128xbf16>, vector<14x128xf32> -> vector<14x128xf32>
    %45 = arith.addf %39, %44 : vector<14x128xf32>
    %46 = vector.extract_strided_slice %2 {offsets = [7, 0], sizes = [14, 128], strides = [1, 1]} : vector<21x128xf32> to vector<14x128xf32>
    %47 = arith.truncf %46 : vector<14x128xf32> to vector<14x128xbf16>
    %c7 = arith.constant 7 : index
    %c0_25 = arith.constant 0 : index
    %c0_26 = arith.constant 0 : index
    %48 = vector.load %arg2[%c7, %c0_25, %c0_26] : memref<8x128x128xbf16, #tpu.memory_space<vmem>>, vector<1x128x128xbf16>
    %49 = vector.shape_cast %48 : vector<1x128x128xbf16> to vector<128x128xbf16>
    %cst_27 = arith.constant dense<0.000000e+00> : vector<14x128xf32>
    %50 = tpu.matmul %47, %49, %cst_27 {dimension_numbers = #tpu.dot_dimension_numbers<[1], [0], [0], [1], [0, 0, 1, 1], [], []>} : vector<14x128xbf16>, vector<128x128xbf16>, vector<14x128xf32> -> vector<14x128xf32>
    %51 = arith.addf %45, %50 : vector<14x128xf32>
    %c0_28 = arith.constant 0 : index
    %c0_29 = arith.constant 0 : index
    %52 = vector.load %arg3[%c0_28, %c0_29] : memref<1x128xf32, #tpu.memory_space<vmem>>, vector<1x128xf32>
    %53 = vector.broadcast %52 : vector<1x128xf32> to vector<14x128xf32>
    %54 = arith.addf %51, %53 : vector<14x128xf32>
    %cst_30 = arith.constant 0.000000e+00 : f32
    %55 = vector.broadcast %cst_30 : f32 to vector<14x128xf32>
    %56 = arith.maximumf %54, %55 : vector<14x128xf32>
    %c0_31 = arith.constant 0 : index
    %c0_32 = arith.constant 0 : index
    %57 = vector.load %arg4[%c0_31, %c0_32] : memref<1x128xf32, #tpu.memory_space<vmem>>, vector<1x128xf32>
    %58 = vector.broadcast %57 : vector<1x128xf32> to vector<14x128xf32>
    %59 = arith.mulf %56, %58 : vector<14x128xf32>
    %c0_33 = arith.constant 0 : index
    %c0_34 = arith.constant 0 : index
    %60 = vector.load %arg5[%c0_33, %c0_34] : memref<1x128xf32, #tpu.memory_space<vmem>>, vector<1x128xf32>
    %61 = vector.broadcast %60 : vector<1x128xf32> to vector<14x128xf32>
    %62 = arith.addf %59, %61 : vector<14x128xf32>
    %cst_35 = arith.constant 0.000000e+00 : f32
    %63 = vector.broadcast %cst_35 : f32 to vector<4x128xf32>
    %64 = tpu.concatenate %63, %62, %63 in 0 : vector<4x128xf32>, vector<14x128xf32>, vector<4x128xf32> -> vector<22x128xf32>
    %cst_36 = arith.constant 0.000000e+00 : f32
    %65 = vector.broadcast %cst_36 : f32 to vector<15x128xf32>
    %66 = vector.extract_strided_slice %64 {offsets = [0, 0], sizes = [15, 128], strides = [1, 1]} : vector<22x128xf32> to vector<15x128xf32>
    %67 = arith.truncf %66 : vector<15x128xf32> to vector<15x128xbf16>
    %c0_37 = arith.constant 0 : index
    %c0_38 = arith.constant 0 : index
    %c0_39 = arith.constant 0 : index
    %68 = vector.load %arg6[%c0_37, %c0_38, %c0_39] : memref<8x128x128xbf16, #tpu.memory_space<vmem>>, vector<1x128x128xbf16>
    %69 = vector.shape_cast %68 : vector<1x128x128xbf16> to vector<128x128xbf16>
    %cst_40 = arith.constant dense<0.000000e+00> : vector<15x128xf32>
    %70 = tpu.matmul %67, %69, %cst_40 {dimension_numbers = #tpu.dot_dimension_numbers<[1], [0], [0], [1], [0, 0, 1, 1], [], []>} : vector<15x128xbf16>, vector<128x128xbf16>, vector<15x128xf32> -> vector<15x128xf32>
    %71 = arith.addf %65, %70 : vector<15x128xf32>
    %72 = vector.extract_strided_slice %64 {offsets = [1, 0], sizes = [15, 128], strides = [1, 1]} : vector<22x128xf32> to vector<15x128xf32>
    %73 = arith.truncf %72 : vector<15x128xf32> to vector<15x128xbf16>
    %c1_41 = arith.constant 1 : index
    %c0_42 = arith.constant 0 : index
    %c0_43 = arith.constant 0 : index
    %74 = vector.load %arg6[%c1_41, %c0_42, %c0_43] : memref<8x128x128xbf16, #tpu.memory_space<vmem>>, vector<1x128x128xbf16>
    %75 = vector.shape_cast %74 : vector<1x128x128xbf16> to vector<128x128xbf16>
    %cst_44 = arith.constant dense<0.000000e+00> : vector<15x128xf32>
    %76 = tpu.matmul %73, %75, %cst_44 {dimension_numbers = #tpu.dot_dimension_numbers<[1], [0], [0], [1], [0, 0, 1, 1], [], []>} : vector<15x128xbf16>, vector<128x128xbf16>, vector<15x128xf32> -> vector<15x128xf32>
    %77 = arith.addf %71, %76 : vector<15x128xf32>
    %78 = vector.extract_strided_slice %64 {offsets = [2, 0], sizes = [15, 128], strides = [1, 1]} : vector<22x128xf32> to vector<15x128xf32>
    %79 = arith.truncf %78 : vector<15x128xf32> to vector<15x128xbf16>
    %c2_45 = arith.constant 2 : index
    %c0_46 = arith.constant 0 : index
    %c0_47 = arith.constant 0 : index
    %80 = vector.load %arg6[%c2_45, %c0_46, %c0_47] : memref<8x128x128xbf16, #tpu.memory_space<vmem>>, vector<1x128x128xbf16>
    %81 = vector.shape_cast %80 : vector<1x128x128xbf16> to vector<128x128xbf16>
    %cst_48 = arith.constant dense<0.000000e+00> : vector<15x128xf32>
    %82 = tpu.matmul %79, %81, %cst_48 {dimension_numbers = #tpu.dot_dimension_numbers<[1], [0], [0], [1], [0, 0, 1, 1], [], []>} : vector<15x128xbf16>, vector<128x128xbf16>, vector<15x128xf32> -> vector<15x128xf32>
    %83 = arith.addf %77, %82 : vector<15x128xf32>
    %84 = vector.extract_strided_slice %64 {offsets = [3, 0], sizes = [15, 128], strides = [1, 1]} : vector<22x128xf32> to vector<15x128xf32>
    %85 = arith.truncf %84 : vector<15x128xf32> to vector<15x128xbf16>
    %c3_49 = arith.constant 3 : index
    %c0_50 = arith.constant 0 : index
    %c0_51 = arith.constant 0 : index
    %86 = vector.load %arg6[%c3_49, %c0_50, %c0_51] : memref<8x128x128xbf16, #tpu.memory_space<vmem>>, vector<1x128x128xbf16>
    %87 = vector.shape_cast %86 : vector<1x128x128xbf16> to vector<128x128xbf16>
    %cst_52 = arith.constant dense<0.000000e+00> : vector<15x128xf32>
    %88 = tpu.matmul %85, %87, %cst_52 {dimension_numbers = #tpu.dot_dimension_numbers<[1], [0], [0], [1], [0, 0, 1, 1], [], []>} : vector<15x128xbf16>, vector<128x128xbf16>, vector<15x128xf32> -> vector<15x128xf32>
    %89 = arith.addf %83, %88 : vector<15x128xf32>
    %90 = vector.extract_strided_slice %64 {offsets = [4, 0], sizes = [15, 128], strides = [1, 1]} : vector<22x128xf32> to vector<15x128xf32>
    %91 = arith.truncf %90 : vector<15x128xf32> to vector<15x128xbf16>
    %c4_53 = arith.constant 4 : index
    %c0_54 = arith.constant 0 : index
    %c0_55 = arith.constant 0 : index
    %92 = vector.load %arg6[%c4_53, %c0_54, %c0_55] : memref<8x128x128xbf16, #tpu.memory_space<vmem>>, vector<1x128x128xbf16>
    %93 = vector.shape_cast %92 : vector<1x128x128xbf16> to vector<128x128xbf16>
    %cst_56 = arith.constant dense<0.000000e+00> : vector<15x128xf32>
    %94 = tpu.matmul %91, %93, %cst_56 {dimension_numbers = #tpu.dot_dimension_numbers<[1], [0], [0], [1], [0, 0, 1, 1], [], []>} : vector<15x128xbf16>, vector<128x128xbf16>, vector<15x128xf32> -> vector<15x128xf32>
    %95 = arith.addf %89, %94 : vector<15x128xf32>
    %96 = vector.extract_strided_slice %64 {offsets = [5, 0], sizes = [15, 128], strides = [1, 1]} : vector<22x128xf32> to vector<15x128xf32>
    %97 = arith.truncf %96 : vector<15x128xf32> to vector<15x128xbf16>
    %c5_57 = arith.constant 5 : index
    %c0_58 = arith.constant 0 : index
    %c0_59 = arith.constant 0 : index
    %98 = vector.load %arg6[%c5_57, %c0_58, %c0_59] : memref<8x128x128xbf16, #tpu.memory_space<vmem>>, vector<1x128x128xbf16>
    %99 = vector.shape_cast %98 : vector<1x128x128xbf16> to vector<128x128xbf16>
    %cst_60 = arith.constant dense<0.000000e+00> : vector<15x128xf32>
    %100 = tpu.matmul %97, %99, %cst_60 {dimension_numbers = #tpu.dot_dimension_numbers<[1], [0], [0], [1], [0, 0, 1, 1], [], []>} : vector<15x128xbf16>, vector<128x128xbf16>, vector<15x128xf32> -> vector<15x128xf32>
    %101 = arith.addf %95, %100 : vector<15x128xf32>
    %102 = vector.extract_strided_slice %64 {offsets = [6, 0], sizes = [15, 128], strides = [1, 1]} : vector<22x128xf32> to vector<15x128xf32>
    %103 = arith.truncf %102 : vector<15x128xf32> to vector<15x128xbf16>
    %c6_61 = arith.constant 6 : index
    %c0_62 = arith.constant 0 : index
    %c0_63 = arith.constant 0 : index
    %104 = vector.load %arg6[%c6_61, %c0_62, %c0_63] : memref<8x128x128xbf16, #tpu.memory_space<vmem>>, vector<1x128x128xbf16>
    %105 = vector.shape_cast %104 : vector<1x128x128xbf16> to vector<128x128xbf16>
    %cst_64 = arith.constant dense<0.000000e+00> : vector<15x128xf32>
    %106 = tpu.matmul %103, %105, %cst_64 {dimension_numbers = #tpu.dot_dimension_numbers<[1], [0], [0], [1], [0, 0, 1, 1], [], []>} : vector<15x128xbf16>, vector<128x128xbf16>, vector<15x128xf32> -> vector<15x128xf32>
    %107 = arith.addf %101, %106 : vector<15x128xf32>
    %108 = vector.extract_strided_slice %64 {offsets = [7, 0], sizes = [15, 128], strides = [1, 1]} : vector<22x128xf32> to vector<15x128xf32>
    %109 = arith.truncf %108 : vector<15x128xf32> to vector<15x128xbf16>
    %c7_65 = arith.constant 7 : index
    %c0_66 = arith.constant 0 : index
    %c0_67 = arith.constant 0 : index
    %110 = vector.load %arg6[%c7_65, %c0_66, %c0_67] : memref<8x128x128xbf16, #tpu.memory_space<vmem>>, vector<1x128x128xbf16>
    %111 = vector.shape_cast %110 : vector<1x128x128xbf16> to vector<128x128xbf16>
    %cst_68 = arith.constant dense<0.000000e+00> : vector<15x128xf32>
    %112 = tpu.matmul %109, %111, %cst_68 {dimension_numbers = #tpu.dot_dimension_numbers<[1], [0], [0], [1], [0, 0, 1, 1], [], []>} : vector<15x128xbf16>, vector<128x128xbf16>, vector<15x128xf32> -> vector<15x128xf32>
    %113 = arith.addf %107, %112 : vector<15x128xf32>
    %c0_69 = arith.constant 0 : index
    %c0_70 = arith.constant 0 : index
    %114 = vector.load %arg7[%c0_69, %c0_70] : memref<1x128xf32, #tpu.memory_space<vmem>>, vector<1x128xf32>
    %115 = vector.broadcast %114 : vector<1x128xf32> to vector<15x128xf32>
    %116 = arith.addf %113, %115 : vector<15x128xf32>
    %117 = vector.extract_strided_slice %2 {offsets = [3, 0], sizes = [15, 128], strides = [1, 1]} : vector<21x128xf32> to vector<15x128xf32>
    %118 = arith.addf %116, %117 : vector<15x128xf32>
    %cst_71 = arith.constant 0.000000e+00 : f32
    %119 = vector.broadcast %cst_71 : f32 to vector<15x128xf32>
    %120 = arith.maximumf %118, %119 : vector<15x128xf32>
    %c0_72 = arith.constant 0 : index
    %c0_73 = arith.constant 0 : index
    %121 = vector.load %arg8[%c0_72, %c0_73] : memref<1x128xf32, #tpu.memory_space<vmem>>, vector<1x128xf32>
    %122 = vector.broadcast %121 : vector<1x128xf32> to vector<15x128xf32>
    %123 = arith.mulf %120, %122 : vector<15x128xf32>
    %c0_74 = arith.constant 0 : index
    %c0_75 = arith.constant 0 : index
    %124 = vector.load %arg9[%c0_74, %c0_75] : memref<1x128xf32, #tpu.memory_space<vmem>>, vector<1x128xf32>
    %125 = vector.broadcast %124 : vector<1x128xf32> to vector<15x128xf32>
    %126 = arith.addf %123, %125 : vector<15x128xf32>
    %127 = arith.truncf %126 : vector<15x128xf32> to vector<15x128xbf16>
    %c0_76 = arith.constant 0 : index
    %c0_77 = arith.constant 0 : index
    %c0_78 = arith.constant 0 : index
    %128 = vector.load %arg10[%c0_76, %c0_77, %c0_78] : memref<1x15x128xbf16, #tpu.memory_space<vmem>>, vector<1x15x128xbf16>
    %129 = vector.shape_cast %128 : vector<1x15x128xbf16> to vector<15x128xbf16>
    %130 = vector.shape_cast %127 : vector<15x128xbf16> to vector<1x15x128xbf16>
    tpu.vector_store %arg10[%c0_76, %c0_77, %c0_78], %130 {strides = array<i32>} : memref<1x15x128xbf16, #tpu.memory_space<vmem>>, vector<1x15x128xbf16>,
    return
  }
  func.func @transform_0(%arg0: i32) -> (i32, i32, i32, i32) {
    %c0_i32 = arith.constant 0 : i32
    %c0_i32_0 = arith.constant 0 : i32
    %c0_i32_1 = arith.constant 0 : i32
    %c0_i32_2 = arith.constant 0 : i32
    return %arg0, %c0_i32, %c0_i32_0, %c0_i32_1 : i32, i32, i32, i32
  }
  func.func @transform_1(%arg0: i32) -> (i32, i32, i32) {
    %c0_i32 = arith.constant 0 : i32
    %c0_i32_0 = arith.constant 0 : i32
    %c0_i32_1 = arith.constant 0 : i32
    %c0_i32_2 = arith.constant 0 : i32
    return %c0_i32, %c0_i32_0, %c0_i32_1 : i32, i32, i32
  }
  func.func @transform_2(%arg0: i32) -> (i32, i32) {
    %c0_i32 = arith.constant 0 : i32
    %c0_i32_0 = arith.constant 0 : i32
    %c0_i32_1 = arith.constant 0 : i32
    return %c0_i32, %c0_i32_0 : i32, i32
  }
  func.func @transform_3(%arg0: i32) -> (i32, i32) {
    %c0_i32 = arith.constant 0 : i32
    %c0_i32_0 = arith.constant 0 : i32
    %c0_i32_1 = arith.constant 0 : i32
    return %c0_i32, %c0_i32_0 : i32, i32
  }
  func.func @transform_4(%arg0: i32) -> (i32, i32) {
    %c0_i32 = arith.constant 0 : i32
    %c0_i32_0 = arith.constant 0 : i32
    %c0_i32_1 = arith.constant 0 : i32
    return %c0_i32, %c0_i32_0 : i32, i32
  }
  func.func @transform_5(%arg0: i32) -> (i32, i32, i32) {
    %c0_i32 = arith.constant 0 : i32
    %c0_i32_0 = arith.constant 0 : i32
    %c0_i32_1 = arith.constant 0 : i32
    %c0_i32_2 = arith.constant 0 : i32
    return %c0_i32, %c0_i32_0, %c0_i32_1 : i32, i32, i32
  }
  func.func @transform_6(%arg0: i32) -> (i32, i32) {
    %c0_i32 = arith.constant 0 : i32
    %c0_i32_0 = arith.constant 0 : i32
    %c0_i32_1 = arith.constant 0 : i32
    return %c0_i32, %c0_i32_0 : i32, i32
  }
  func.func @transform_7(%arg0: i32) -> (i32, i32) {
    %c0_i32 = arith.constant 0 : i32
    %c0_i32_0 = arith.constant 0 : i32
    %c0_i32_1 = arith.constant 0 : i32
    return %c0_i32, %c0_i32_0 : i32, i32
  }
  func.func @transform_8(%arg0: i32) -> (i32, i32) {
    %c0_i32 = arith.constant 0 : i32
    %c0_i32_0 = arith.constant 0 : i32
    %c0_i32_1 = arith.constant 0 : i32
    return %c0_i32, %c0_i32_0 : i32, i32
  }
  func.func @transform_9(%arg0: i32) -> (i32, i32, i32) {
    %c0_i32 = arith.constant 0 : i32
    %c0_i32_0 = arith.constant 0 : i32
    %c0_i32_1 = arith.constant 0 : i32
    return %arg0, %c0_i32, %c0_i32_0 : i32, i32, i32
  }
}

module attributes {stable_mosaic.version = 11 : i64} {
  func.func @_res_block_kernel(%arg0: i32, %arg1: memref<1x2x11x128xbf16, #tpu.memory_space<vmem>>, %arg2: memref<8x128x128xbf16, #tpu.memory_space<vmem>>, %arg3: memref<1x128xf32, #tpu.memory_space<vmem>>, %arg4: memref<1x128xf32, #tpu.memory_space<vmem>>, %arg5: memref<1x128xf32, #tpu.memory_space<vmem>>, %arg6: memref<8x128x128xbf16, #tpu.memory_space<vmem>>, %arg7: memref<1x128xf32, #tpu.memory_space<vmem>>, %arg8: memref<1x128xf32, #tpu.memory_space<vmem>>, %arg9: memref<1x128xf32, #tpu.memory_space<vmem>>, %arg10: memref<128x128xbf16, #tpu.memory_space<vmem>>, %arg11: memref<1x128xf32, #tpu.memory_space<vmem>>, %arg12: memref<1x8x128xbf16, #tpu.memory_space<vmem>>) attributes {dimension_semantics = [#tpu.dimension_semantics<parallel>], iteration_bounds = array<i64: 32>, scalar_prefetch = 0 : i64, scratch_operands = 0 : i64, tpu.core_type = #tpu.core_type<tc>, window_params = [{transform_indices = @transform_0, window_bounds = array<i64: 1, 2, 11, 128>}, {pipeline_mode = #tpu.pipeline_mode<synchronous>, transform_indices = @transform_1, window_bounds = array<i64: 8, 128, 128>}, {pipeline_mode = #tpu.pipeline_mode<synchronous>, transform_indices = @transform_2, window_bounds = array<i64: 1, 128>}, {pipeline_mode = #tpu.pipeline_mode<synchronous>, transform_indices = @transform_3, window_bounds = array<i64: 1, 128>}, {pipeline_mode = #tpu.pipeline_mode<synchronous>, transform_indices = @transform_4, window_bounds = array<i64: 1, 128>}, {pipeline_mode = #tpu.pipeline_mode<synchronous>, transform_indices = @transform_5, window_bounds = array<i64: 8, 128, 128>}, {pipeline_mode = #tpu.pipeline_mode<synchronous>, transform_indices = @transform_6, window_bounds = array<i64: 1, 128>}, {pipeline_mode = #tpu.pipeline_mode<synchronous>, transform_indices = @transform_7, window_bounds = array<i64: 1, 128>}, {pipeline_mode = #tpu.pipeline_mode<synchronous>, transform_indices = @transform_8, window_bounds = array<i64: 1, 128>}, {pipeline_mode = #tpu.pipeline_mode<synchronous>, transform_indices = @transform_9, window_bounds = array<i64: 128, 128>}, {pipeline_mode = #tpu.pipeline_mode<synchronous>, transform_indices = @transform_10, window_bounds = array<i64: 1, 128>}, {transform_indices = @transform_11, window_bounds = array<i64: 1, 8, 128>}]} {
    %c0 = arith.constant 0 : index
    %c0_0 = arith.constant 0 : index
    %c0_1 = arith.constant 0 : index
    %c0_2 = arith.constant 0 : index
    %0 = vector.load %arg1[%c0, %c0_0, %c0_1, %c0_2] : memref<1x2x11x128xbf16, #tpu.memory_space<vmem>>, vector<1x1x11x128xbf16>
    %1 = vector.shape_cast %0 : vector<1x1x11x128xbf16> to vector<11x128xbf16>
    %2 = arith.extf %1 : vector<11x128xbf16> to vector<11x128xf32>
    %c0_3 = arith.constant 0 : index
    %c1 = arith.constant 1 : index
    %c0_4 = arith.constant 0 : index
    %c0_5 = arith.constant 0 : index
    %3 = vector.load %arg1[%c0_3, %c1, %c0_4, %c0_5] : memref<1x2x11x128xbf16, #tpu.memory_space<vmem>>, vector<1x1x11x128xbf16>
    %4 = vector.shape_cast %3 : vector<1x1x11x128xbf16> to vector<11x128xbf16>
    %5 = arith.extf %4 : vector<11x128xbf16> to vector<11x128xf32>
    %cst = arith.constant 0.000000e+00 : f32
    %6 = vector.broadcast %cst : f32 to vector<7x128xf32>
    %7 = vector.extract_strided_slice %2 {offsets = [0, 0], sizes = [7, 128], strides = [1, 1]} : vector<11x128xf32> to vector<7x128xf32>
    %8 = arith.truncf %7 : vector<7x128xf32> to vector<7x128xbf16>
    %c0_6 = arith.constant 0 : index
    %c0_7 = arith.constant 0 : index
    %c0_8 = arith.constant 0 : index
    %9 = vector.load %arg2[%c0_6, %c0_7, %c0_8] : memref<8x128x128xbf16, #tpu.memory_space<vmem>>, vector<1x128x128xbf16>
    %10 = vector.shape_cast %9 : vector<1x128x128xbf16> to vector<128x128xbf16>
    %cst_9 = arith.constant dense<0.000000e+00> : vector<7x128xf32>
    %11 = tpu.matmul %8, %10, %cst_9 {dimension_numbers = #tpu.dot_dimension_numbers<[1], [0], [0], [1], [0, 0, 1, 1], [], []>} : vector<7x128xbf16>, vector<128x128xbf16>, vector<7x128xf32> -> vector<7x128xf32>
    %12 = arith.addf %6, %11 : vector<7x128xf32>
    %13 = vector.extract_strided_slice %5 {offsets = [0, 0], sizes = [7, 128], strides = [1, 1]} : vector<11x128xf32> to vector<7x128xf32>
    %14 = arith.truncf %13 : vector<7x128xf32> to vector<7x128xbf16>
    %c1_10 = arith.constant 1 : index
    %c0_11 = arith.constant 0 : index
    %c0_12 = arith.constant 0 : index
    %15 = vector.load %arg2[%c1_10, %c0_11, %c0_12] : memref<8x128x128xbf16, #tpu.memory_space<vmem>>, vector<1x128x128xbf16>
    %16 = vector.shape_cast %15 : vector<1x128x128xbf16> to vector<128x128xbf16>
    %cst_13 = arith.constant dense<0.000000e+00> : vector<7x128xf32>
    %17 = tpu.matmul %14, %16, %cst_13 {dimension_numbers = #tpu.dot_dimension_numbers<[1], [0], [0], [1], [0, 0, 1, 1], [], []>} : vector<7x128xbf16>, vector<128x128xbf16>, vector<7x128xf32> -> vector<7x128xf32>
    %18 = arith.addf %12, %17 : vector<7x128xf32>
    %19 = vector.extract_strided_slice %2 {offsets = [1, 0], sizes = [7, 128], strides = [1, 1]} : vector<11x128xf32> to vector<7x128xf32>
    %20 = arith.truncf %19 : vector<7x128xf32> to vector<7x128xbf16>
    %c2 = arith.constant 2 : index
    %c0_14 = arith.constant 0 : index
    %c0_15 = arith.constant 0 : index
    %21 = vector.load %arg2[%c2, %c0_14, %c0_15] : memref<8x128x128xbf16, #tpu.memory_space<vmem>>, vector<1x128x128xbf16>
    %22 = vector.shape_cast %21 : vector<1x128x128xbf16> to vector<128x128xbf16>
    %cst_16 = arith.constant dense<0.000000e+00> : vector<7x128xf32>
    %23 = tpu.matmul %20, %22, %cst_16 {dimension_numbers = #tpu.dot_dimension_numbers<[1], [0], [0], [1], [0, 0, 1, 1], [], []>} : vector<7x128xbf16>, vector<128x128xbf16>, vector<7x128xf32> -> vector<7x128xf32>
    %24 = arith.addf %18, %23 : vector<7x128xf32>
    %25 = vector.extract_strided_slice %5 {offsets = [1, 0], sizes = [7, 128], strides = [1, 1]} : vector<11x128xf32> to vector<7x128xf32>
    %26 = arith.truncf %25 : vector<7x128xf32> to vector<7x128xbf16>
    %c3 = arith.constant 3 : index
    %c0_17 = arith.constant 0 : index
    %c0_18 = arith.constant 0 : index
    %27 = vector.load %arg2[%c3, %c0_17, %c0_18] : memref<8x128x128xbf16, #tpu.memory_space<vmem>>, vector<1x128x128xbf16>
    %28 = vector.shape_cast %27 : vector<1x128x128xbf16> to vector<128x128xbf16>
    %cst_19 = arith.constant dense<0.000000e+00> : vector<7x128xf32>
    %29 = tpu.matmul %26, %28, %cst_19 {dimension_numbers = #tpu.dot_dimension_numbers<[1], [0], [0], [1], [0, 0, 1, 1], [], []>} : vector<7x128xbf16>, vector<128x128xbf16>, vector<7x128xf32> -> vector<7x128xf32>
    %30 = arith.addf %24, %29 : vector<7x128xf32>
    %31 = vector.extract_strided_slice %2 {offsets = [2, 0], sizes = [7, 128], strides = [1, 1]} : vector<11x128xf32> to vector<7x128xf32>
    %32 = arith.truncf %31 : vector<7x128xf32> to vector<7x128xbf16>
    %c4 = arith.constant 4 : index
    %c0_20 = arith.constant 0 : index
    %c0_21 = arith.constant 0 : index
    %33 = vector.load %arg2[%c4, %c0_20, %c0_21] : memref<8x128x128xbf16, #tpu.memory_space<vmem>>, vector<1x128x128xbf16>
    %34 = vector.shape_cast %33 : vector<1x128x128xbf16> to vector<128x128xbf16>
    %cst_22 = arith.constant dense<0.000000e+00> : vector<7x128xf32>
    %35 = tpu.matmul %32, %34, %cst_22 {dimension_numbers = #tpu.dot_dimension_numbers<[1], [0], [0], [1], [0, 0, 1, 1], [], []>} : vector<7x128xbf16>, vector<128x128xbf16>, vector<7x128xf32> -> vector<7x128xf32>
    %36 = arith.addf %30, %35 : vector<7x128xf32>
    %37 = vector.extract_strided_slice %5 {offsets = [2, 0], sizes = [7, 128], strides = [1, 1]} : vector<11x128xf32> to vector<7x128xf32>
    %38 = arith.truncf %37 : vector<7x128xf32> to vector<7x128xbf16>
    %c5 = arith.constant 5 : index
    %c0_23 = arith.constant 0 : index
    %c0_24 = arith.constant 0 : index
    %39 = vector.load %arg2[%c5, %c0_23, %c0_24] : memref<8x128x128xbf16, #tpu.memory_space<vmem>>, vector<1x128x128xbf16>
    %40 = vector.shape_cast %39 : vector<1x128x128xbf16> to vector<128x128xbf16>
    %cst_25 = arith.constant dense<0.000000e+00> : vector<7x128xf32>
    %41 = tpu.matmul %38, %40, %cst_25 {dimension_numbers = #tpu.dot_dimension_numbers<[1], [0], [0], [1], [0, 0, 1, 1], [], []>} : vector<7x128xbf16>, vector<128x128xbf16>, vector<7x128xf32> -> vector<7x128xf32>
    %42 = arith.addf %36, %41 : vector<7x128xf32>
    %43 = vector.extract_strided_slice %2 {offsets = [3, 0], sizes = [7, 128], strides = [1, 1]} : vector<11x128xf32> to vector<7x128xf32>
    %44 = arith.truncf %43 : vector<7x128xf32> to vector<7x128xbf16>
    %c6 = arith.constant 6 : index
    %c0_26 = arith.constant 0 : index
    %c0_27 = arith.constant 0 : index
    %45 = vector.load %arg2[%c6, %c0_26, %c0_27] : memref<8x128x128xbf16, #tpu.memory_space<vmem>>, vector<1x128x128xbf16>
    %46 = vector.shape_cast %45 : vector<1x128x128xbf16> to vector<128x128xbf16>
    %cst_28 = arith.constant dense<0.000000e+00> : vector<7x128xf32>
    %47 = tpu.matmul %44, %46, %cst_28 {dimension_numbers = #tpu.dot_dimension_numbers<[1], [0], [0], [1], [0, 0, 1, 1], [], []>} : vector<7x128xbf16>, vector<128x128xbf16>, vector<7x128xf32> -> vector<7x128xf32>
    %48 = arith.addf %42, %47 : vector<7x128xf32>
    %49 = vector.extract_strided_slice %5 {offsets = [3, 0], sizes = [7, 128], strides = [1, 1]} : vector<11x128xf32> to vector<7x128xf32>
    %50 = arith.truncf %49 : vector<7x128xf32> to vector<7x128xbf16>
    %c7 = arith.constant 7 : index
    %c0_29 = arith.constant 0 : index
    %c0_30 = arith.constant 0 : index
    %51 = vector.load %arg2[%c7, %c0_29, %c0_30] : memref<8x128x128xbf16, #tpu.memory_space<vmem>>, vector<1x128x128xbf16>
    %52 = vector.shape_cast %51 : vector<1x128x128xbf16> to vector<128x128xbf16>
    %cst_31 = arith.constant dense<0.000000e+00> : vector<7x128xf32>
    %53 = tpu.matmul %50, %52, %cst_31 {dimension_numbers = #tpu.dot_dimension_numbers<[1], [0], [0], [1], [0, 0, 1, 1], [], []>} : vector<7x128xbf16>, vector<128x128xbf16>, vector<7x128xf32> -> vector<7x128xf32>
    %54 = arith.addf %48, %53 : vector<7x128xf32>
    %c0_32 = arith.constant 0 : index
    %c0_33 = arith.constant 0 : index
    %55 = vector.load %arg3[%c0_32, %c0_33] : memref<1x128xf32, #tpu.memory_space<vmem>>, vector<1x128xf32>
    %56 = vector.broadcast %55 : vector<1x128xf32> to vector<7x128xf32>
    %57 = arith.addf %54, %56 : vector<7x128xf32>
    %cst_34 = arith.constant 0.000000e+00 : f32
    %58 = vector.broadcast %cst_34 : f32 to vector<7x128xf32>
    %59 = arith.maximumf %57, %58 : vector<7x128xf32>
    %c0_35 = arith.constant 0 : index
    %c0_36 = arith.constant 0 : index
    %60 = vector.load %arg4[%c0_35, %c0_36] : memref<1x128xf32, #tpu.memory_space<vmem>>, vector<1x128xf32>
    %61 = vector.broadcast %60 : vector<1x128xf32> to vector<7x128xf32>
    %62 = arith.mulf %59, %61 : vector<7x128xf32>
    %c0_37 = arith.constant 0 : index
    %c0_38 = arith.constant 0 : index
    %63 = vector.load %arg5[%c0_37, %c0_38] : memref<1x128xf32, #tpu.memory_space<vmem>>, vector<1x128xf32>
    %64 = vector.broadcast %63 : vector<1x128xf32> to vector<7x128xf32>
    %65 = arith.addf %62, %64 : vector<7x128xf32>
    %cst_39 = arith.constant 0.000000e+00 : f32
    %66 = vector.broadcast %cst_39 : f32 to vector<4x128xf32>
    %67 = tpu.concatenate %66, %65, %66 in 0 : vector<4x128xf32>, vector<7x128xf32>, vector<4x128xf32> -> vector<15x128xf32>
    %cst_40 = arith.constant 0.000000e+00 : f32
    %68 = vector.broadcast %cst_40 : f32 to vector<8x128xf32>
    %69 = vector.extract_strided_slice %67 {offsets = [0, 0], sizes = [8, 128], strides = [1, 1]} : vector<15x128xf32> to vector<8x128xf32>
    %70 = arith.truncf %69 : vector<8x128xf32> to vector<8x128xbf16>
    %c0_41 = arith.constant 0 : index
    %c0_42 = arith.constant 0 : index
    %c0_43 = arith.constant 0 : index
    %71 = vector.load %arg6[%c0_41, %c0_42, %c0_43] : memref<8x128x128xbf16, #tpu.memory_space<vmem>>, vector<1x128x128xbf16>
    %72 = vector.shape_cast %71 : vector<1x128x128xbf16> to vector<128x128xbf16>
    %cst_44 = arith.constant dense<0.000000e+00> : vector<8x128xf32>
    %73 = tpu.matmul %70, %72, %cst_44 {dimension_numbers = #tpu.dot_dimension_numbers<[1], [0], [0], [1], [0, 0, 1, 1], [], []>} : vector<8x128xbf16>, vector<128x128xbf16>, vector<8x128xf32> -> vector<8x128xf32>
    %74 = arith.addf %68, %73 : vector<8x128xf32>
    %75 = vector.extract_strided_slice %67 {offsets = [1, 0], sizes = [8, 128], strides = [1, 1]} : vector<15x128xf32> to vector<8x128xf32>
    %76 = arith.truncf %75 : vector<8x128xf32> to vector<8x128xbf16>
    %c1_45 = arith.constant 1 : index
    %c0_46 = arith.constant 0 : index
    %c0_47 = arith.constant 0 : index
    %77 = vector.load %arg6[%c1_45, %c0_46, %c0_47] : memref<8x128x128xbf16, #tpu.memory_space<vmem>>, vector<1x128x128xbf16>
    %78 = vector.shape_cast %77 : vector<1x128x128xbf16> to vector<128x128xbf16>
    %cst_48 = arith.constant dense<0.000000e+00> : vector<8x128xf32>
    %79 = tpu.matmul %76, %78, %cst_48 {dimension_numbers = #tpu.dot_dimension_numbers<[1], [0], [0], [1], [0, 0, 1, 1], [], []>} : vector<8x128xbf16>, vector<128x128xbf16>, vector<8x128xf32> -> vector<8x128xf32>
    %80 = arith.addf %74, %79 : vector<8x128xf32>
    %81 = vector.extract_strided_slice %67 {offsets = [2, 0], sizes = [8, 128], strides = [1, 1]} : vector<15x128xf32> to vector<8x128xf32>
    %82 = arith.truncf %81 : vector<8x128xf32> to vector<8x128xbf16>
    %c2_49 = arith.constant 2 : index
    %c0_50 = arith.constant 0 : index
    %c0_51 = arith.constant 0 : index
    %83 = vector.load %arg6[%c2_49, %c0_50, %c0_51] : memref<8x128x128xbf16, #tpu.memory_space<vmem>>, vector<1x128x128xbf16>
    %84 = vector.shape_cast %83 : vector<1x128x128xbf16> to vector<128x128xbf16>
    %cst_52 = arith.constant dense<0.000000e+00> : vector<8x128xf32>
    %85 = tpu.matmul %82, %84, %cst_52 {dimension_numbers = #tpu.dot_dimension_numbers<[1], [0], [0], [1], [0, 0, 1, 1], [], []>} : vector<8x128xbf16>, vector<128x128xbf16>, vector<8x128xf32> -> vector<8x128xf32>
    %86 = arith.addf %80, %85 : vector<8x128xf32>
    %87 = vector.extract_strided_slice %67 {offsets = [3, 0], sizes = [8, 128], strides = [1, 1]} : vector<15x128xf32> to vector<8x128xf32>
    %88 = arith.truncf %87 : vector<8x128xf32> to vector<8x128xbf16>
    %c3_53 = arith.constant 3 : index
    %c0_54 = arith.constant 0 : index
    %c0_55 = arith.constant 0 : index
    %89 = vector.load %arg6[%c3_53, %c0_54, %c0_55] : memref<8x128x128xbf16, #tpu.memory_space<vmem>>, vector<1x128x128xbf16>
    %90 = vector.shape_cast %89 : vector<1x128x128xbf16> to vector<128x128xbf16>
    %cst_56 = arith.constant dense<0.000000e+00> : vector<8x128xf32>
    %91 = tpu.matmul %88, %90, %cst_56 {dimension_numbers = #tpu.dot_dimension_numbers<[1], [0], [0], [1], [0, 0, 1, 1], [], []>} : vector<8x128xbf16>, vector<128x128xbf16>, vector<8x128xf32> -> vector<8x128xf32>
    %92 = arith.addf %86, %91 : vector<8x128xf32>
    %93 = vector.extract_strided_slice %67 {offsets = [4, 0], sizes = [8, 128], strides = [1, 1]} : vector<15x128xf32> to vector<8x128xf32>
    %94 = arith.truncf %93 : vector<8x128xf32> to vector<8x128xbf16>
    %c4_57 = arith.constant 4 : index
    %c0_58 = arith.constant 0 : index
    %c0_59 = arith.constant 0 : index
    %95 = vector.load %arg6[%c4_57, %c0_58, %c0_59] : memref<8x128x128xbf16, #tpu.memory_space<vmem>>, vector<1x128x128xbf16>
    %96 = vector.shape_cast %95 : vector<1x128x128xbf16> to vector<128x128xbf16>
    %cst_60 = arith.constant dense<0.000000e+00> : vector<8x128xf32>
    %97 = tpu.matmul %94, %96, %cst_60 {dimension_numbers = #tpu.dot_dimension_numbers<[1], [0], [0], [1], [0, 0, 1, 1], [], []>} : vector<8x128xbf16>, vector<128x128xbf16>, vector<8x128xf32> -> vector<8x128xf32>
    %98 = arith.addf %92, %97 : vector<8x128xf32>
    %99 = vector.extract_strided_slice %67 {offsets = [5, 0], sizes = [8, 128], strides = [1, 1]} : vector<15x128xf32> to vector<8x128xf32>
    %100 = arith.truncf %99 : vector<8x128xf32> to vector<8x128xbf16>
    %c5_61 = arith.constant 5 : index
    %c0_62 = arith.constant 0 : index
    %c0_63 = arith.constant 0 : index
    %101 = vector.load %arg6[%c5_61, %c0_62, %c0_63] : memref<8x128x128xbf16, #tpu.memory_space<vmem>>, vector<1x128x128xbf16>
    %102 = vector.shape_cast %101 : vector<1x128x128xbf16> to vector<128x128xbf16>
    %cst_64 = arith.constant dense<0.000000e+00> : vector<8x128xf32>
    %103 = tpu.matmul %100, %102, %cst_64 {dimension_numbers = #tpu.dot_dimension_numbers<[1], [0], [0], [1], [0, 0, 1, 1], [], []>} : vector<8x128xbf16>, vector<128x128xbf16>, vector<8x128xf32> -> vector<8x128xf32>
    %104 = arith.addf %98, %103 : vector<8x128xf32>
    %105 = vector.extract_strided_slice %67 {offsets = [6, 0], sizes = [8, 128], strides = [1, 1]} : vector<15x128xf32> to vector<8x128xf32>
    %106 = arith.truncf %105 : vector<8x128xf32> to vector<8x128xbf16>
    %c6_65 = arith.constant 6 : index
    %c0_66 = arith.constant 0 : index
    %c0_67 = arith.constant 0 : index
    %107 = vector.load %arg6[%c6_65, %c0_66, %c0_67] : memref<8x128x128xbf16, #tpu.memory_space<vmem>>, vector<1x128x128xbf16>
    %108 = vector.shape_cast %107 : vector<1x128x128xbf16> to vector<128x128xbf16>
    %cst_68 = arith.constant dense<0.000000e+00> : vector<8x128xf32>
    %109 = tpu.matmul %106, %108, %cst_68 {dimension_numbers = #tpu.dot_dimension_numbers<[1], [0], [0], [1], [0, 0, 1, 1], [], []>} : vector<8x128xbf16>, vector<128x128xbf16>, vector<8x128xf32> -> vector<8x128xf32>
    %110 = arith.addf %104, %109 : vector<8x128xf32>
    %111 = vector.extract_strided_slice %67 {offsets = [7, 0], sizes = [8, 128], strides = [1, 1]} : vector<15x128xf32> to vector<8x128xf32>
    %112 = arith.truncf %111 : vector<8x128xf32> to vector<8x128xbf16>
    %c7_69 = arith.constant 7 : index
    %c0_70 = arith.constant 0 : index
    %c0_71 = arith.constant 0 : index
    %113 = vector.load %arg6[%c7_69, %c0_70, %c0_71] : memref<8x128x128xbf16, #tpu.memory_space<vmem>>, vector<1x128x128xbf16>
    %114 = vector.shape_cast %113 : vector<1x128x128xbf16> to vector<128x128xbf16>
    %cst_72 = arith.constant dense<0.000000e+00> : vector<8x128xf32>
    %115 = tpu.matmul %112, %114, %cst_72 {dimension_numbers = #tpu.dot_dimension_numbers<[1], [0], [0], [1], [0, 0, 1, 1], [], []>} : vector<8x128xbf16>, vector<128x128xbf16>, vector<8x128xf32> -> vector<8x128xf32>
    %116 = arith.addf %110, %115 : vector<8x128xf32>
    %c0_73 = arith.constant 0 : index
    %c0_74 = arith.constant 0 : index
    %117 = vector.load %arg7[%c0_73, %c0_74] : memref<1x128xf32, #tpu.memory_space<vmem>>, vector<1x128xf32>
    %118 = vector.broadcast %117 : vector<1x128xf32> to vector<8x128xf32>
    %119 = arith.addf %116, %118 : vector<8x128xf32>
    %120 = vector.extract_strided_slice %5 {offsets = [1, 0], sizes = [8, 128], strides = [1, 1]} : vector<11x128xf32> to vector<8x128xf32>
    %121 = arith.truncf %120 : vector<8x128xf32> to vector<8x128xbf16>
    %c0_75 = arith.constant 0 : index
    %c0_76 = arith.constant 0 : index
    %122 = vector.load %arg10[%c0_75, %c0_76] : memref<128x128xbf16, #tpu.memory_space<vmem>>, vector<128x128xbf16>
    %cst_77 = arith.constant dense<0.000000e+00> : vector<8x128xf32>
    %123 = tpu.matmul %121, %122, %cst_77 {dimension_numbers = #tpu.dot_dimension_numbers<[1], [0], [0], [1], [0, 0, 1, 1], [], []>} : vector<8x128xbf16>, vector<128x128xbf16>, vector<8x128xf32> -> vector<8x128xf32>
    %c0_78 = arith.constant 0 : index
    %c0_79 = arith.constant 0 : index
    %124 = vector.load %arg11[%c0_78, %c0_79] : memref<1x128xf32, #tpu.memory_space<vmem>>, vector<1x128xf32>
    %125 = vector.broadcast %124 : vector<1x128xf32> to vector<8x128xf32>
    %126 = arith.addf %123, %125 : vector<8x128xf32>
    %127 = arith.addf %119, %126 : vector<8x128xf32>
    %cst_80 = arith.constant 0.000000e+00 : f32
    %128 = vector.broadcast %cst_80 : f32 to vector<8x128xf32>
    %129 = arith.maximumf %127, %128 : vector<8x128xf32>
    %c0_81 = arith.constant 0 : index
    %c0_82 = arith.constant 0 : index
    %130 = vector.load %arg8[%c0_81, %c0_82] : memref<1x128xf32, #tpu.memory_space<vmem>>, vector<1x128xf32>
    %131 = vector.broadcast %130 : vector<1x128xf32> to vector<8x128xf32>
    %132 = arith.mulf %129, %131 : vector<8x128xf32>
    %c0_83 = arith.constant 0 : index
    %c0_84 = arith.constant 0 : index
    %133 = vector.load %arg9[%c0_83, %c0_84] : memref<1x128xf32, #tpu.memory_space<vmem>>, vector<1x128xf32>
    %134 = vector.broadcast %133 : vector<1x128xf32> to vector<8x128xf32>
    %135 = arith.addf %132, %134 : vector<8x128xf32>
    %136 = arith.truncf %135 : vector<8x128xf32> to vector<8x128xbf16>
    %c0_85 = arith.constant 0 : index
    %c0_86 = arith.constant 0 : index
    %c0_87 = arith.constant 0 : index
    %137 = vector.load %arg12[%c0_85, %c0_86, %c0_87] : memref<1x8x128xbf16, #tpu.memory_space<vmem>>, vector<1x8x128xbf16>
    %138 = vector.shape_cast %137 : vector<1x8x128xbf16> to vector<8x128xbf16>
    %139 = vector.shape_cast %136 : vector<8x128xbf16> to vector<1x8x128xbf16>
    tpu.vector_store %arg12[%c0_85, %c0_86, %c0_87], %139 {strides = array<i32>} : memref<1x8x128xbf16, #tpu.memory_space<vmem>>, vector<1x8x128xbf16>,
    return
  }
  func.func @transform_0(%arg0: i32) -> (i32, i32, i32, i32) {
    %c0_i32 = arith.constant 0 : i32
    %c0_i32_0 = arith.constant 0 : i32
    %c0_i32_1 = arith.constant 0 : i32
    %c0_i32_2 = arith.constant 0 : i32
    return %arg0, %c0_i32, %c0_i32_0, %c0_i32_1 : i32, i32, i32, i32
  }
  func.func @transform_1(%arg0: i32) -> (i32, i32, i32) {
    %c0_i32 = arith.constant 0 : i32
    %c0_i32_0 = arith.constant 0 : i32
    %c0_i32_1 = arith.constant 0 : i32
    %c0_i32_2 = arith.constant 0 : i32
    return %c0_i32, %c0_i32_0, %c0_i32_1 : i32, i32, i32
  }
  func.func @transform_2(%arg0: i32) -> (i32, i32) {
    %c0_i32 = arith.constant 0 : i32
    %c0_i32_0 = arith.constant 0 : i32
    %c0_i32_1 = arith.constant 0 : i32
    return %c0_i32, %c0_i32_0 : i32, i32
  }
  func.func @transform_3(%arg0: i32) -> (i32, i32) {
    %c0_i32 = arith.constant 0 : i32
    %c0_i32_0 = arith.constant 0 : i32
    %c0_i32_1 = arith.constant 0 : i32
    return %c0_i32, %c0_i32_0 : i32, i32
  }
  func.func @transform_4(%arg0: i32) -> (i32, i32) {
    %c0_i32 = arith.constant 0 : i32
    %c0_i32_0 = arith.constant 0 : i32
    %c0_i32_1 = arith.constant 0 : i32
    return %c0_i32, %c0_i32_0 : i32, i32
  }
  func.func @transform_5(%arg0: i32) -> (i32, i32, i32) {
    %c0_i32 = arith.constant 0 : i32
    %c0_i32_0 = arith.constant 0 : i32
    %c0_i32_1 = arith.constant 0 : i32
    %c0_i32_2 = arith.constant 0 : i32
    return %c0_i32, %c0_i32_0, %c0_i32_1 : i32, i32, i32
  }
  func.func @transform_6(%arg0: i32) -> (i32, i32) {
    %c0_i32 = arith.constant 0 : i32
    %c0_i32_0 = arith.constant 0 : i32
    %c0_i32_1 = arith.constant 0 : i32
    return %c0_i32, %c0_i32_0 : i32, i32
  }
  func.func @transform_7(%arg0: i32) -> (i32, i32) {
    %c0_i32 = arith.constant 0 : i32
    %c0_i32_0 = arith.constant 0 : i32
    %c0_i32_1 = arith.constant 0 : i32
    return %c0_i32, %c0_i32_0 : i32, i32
  }
  func.func @transform_8(%arg0: i32) -> (i32, i32) {
    %c0_i32 = arith.constant 0 : i32
    %c0_i32_0 = arith.constant 0 : i32
    %c0_i32_1 = arith.constant 0 : i32
    return %c0_i32, %c0_i32_0 : i32, i32
  }
  func.func @transform_9(%arg0: i32) -> (i32, i32) {
    %c0_i32 = arith.constant 0 : i32
    %c0_i32_0 = arith.constant 0 : i32
    %c0_i32_1 = arith.constant 0 : i32
    return %c0_i32, %c0_i32_0 : i32, i32
  }
  func.func @transform_10(%arg0: i32) -> (i32, i32) {
    %c0_i32 = arith.constant 0 : i32
    %c0_i32_0 = arith.constant 0 : i32
    %c0_i32_1 = arith.constant 0 : i32
    return %c0_i32, %c0_i32_0 : i32, i32
  }
  func.func @transform_11(%arg0: i32) -> (i32, i32, i32) {
    %c0_i32 = arith.constant 0 : i32
    %c0_i32_0 = arith.constant 0 : i32
    %c0_i32_1 = arith.constant 0 : i32
    return %arg0, %c0_i32, %c0_i32_0 : i32, i32, i32
  }
}

module attributes {stable_mosaic.version = 11 : i64} {
  func.func @_beat_att_kernel(%arg0: i32, %arg1: memref<16x8x128xbf16, #tpu.memory_space<vmem>>, %arg2: memref<128x64xbf16, #tpu.memory_space<vmem>>, %arg3: memref<8x64xf32, #tpu.memory_space<vmem>>, %arg4: memref<1x64xf32, #tpu.memory_space<vmem>>, %arg5: memref<16x128xbf16, #tpu.memory_space<vmem>>) attributes {dimension_semantics = [#tpu.dimension_semantics<parallel>], iteration_bounds = array<i64: 2>, scalar_prefetch = 0 : i64, scratch_operands = 0 : i64, tpu.core_type = #tpu.core_type<tc>, window_params = [{transform_indices = @transform_0, window_bounds = array<i64: 16, 8, 128>}, {pipeline_mode = #tpu.pipeline_mode<synchronous>, transform_indices = @transform_1, window_bounds = array<i64: 128, 64>}, {pipeline_mode = #tpu.pipeline_mode<synchronous>, transform_indices = @transform_2, window_bounds = array<i64: 8, 64>}, {pipeline_mode = #tpu.pipeline_mode<synchronous>, transform_indices = @transform_3, window_bounds = array<i64: 1, 64>}, {transform_indices = @transform_4, window_bounds = array<i64: 16, 128>}]} {
    %c0 = arith.constant 0 : index
    %c0_0 = arith.constant 0 : index
    %c0_1 = arith.constant 0 : index
    %0 = vector.load %arg1[%c0, %c0_0, %c0_1] : memref<16x8x128xbf16, #tpu.memory_space<vmem>>, vector<16x8x128xbf16>
    %1 = arith.extf %0 : vector<16x8x128xbf16> to vector<16x8x128xf32>
    %c0_2 = arith.constant 0 : index
    %c0_3 = arith.constant 0 : index
    %2 = vector.load %arg2[%c0_2, %c0_3] : memref<128x64xbf16, #tpu.memory_space<vmem>>, vector<128x64xbf16>
    %c0_4 = arith.constant 0 : index
    %c0_5 = arith.constant 0 : index
    %3 = vector.load %arg3[%c0_4, %c0_5] : memref<8x64xf32, #tpu.memory_space<vmem>>, vector<8x64xf32>
    %c0_6 = arith.constant 0 : index
    %c0_7 = arith.constant 0 : index
    %4 = vector.load %arg4[%c0_6, %c0_7] : memref<1x64xf32, #tpu.memory_space<vmem>>, vector<1x64xf32>
    %5 = vector.extract_strided_slice %1 {offsets = [0, 0, 0], sizes = [16, 1, 128], strides = [1, 1, 1]} : vector<16x8x128xf32> to vector<16x1x128xf32>
    %6 = vector.shape_cast %5 : vector<16x1x128xf32> to vector<16x128xf32>
    %7 = arith.truncf %6 : vector<16x128xf32> to vector<16x128xbf16>
    %cst = arith.constant dense<0.000000e+00> : vector<16x64xf32>
    %8 = tpu.matmul %7, %2, %cst {dimension_numbers = #tpu.dot_dimension_numbers<[1], [0], [0], [1], [0, 0, 1, 1], [], []>} : vector<16x128xbf16>, vector<128x64xbf16>, vector<16x64xf32> -> vector<16x64xf32>
    %9 = vector.extract_strided_slice %3 {offsets = [0, 0], sizes = [1, 64], strides = [1, 1]} : vector<8x64xf32> to vector<1x64xf32>
    %10 = vector.broadcast %9 : vector<1x64xf32> to vector<16x64xf32>
    %11 = arith.addf %8, %10 : vector<16x64xf32>
    %12 = math.tanh %11 : vector<16x64xf32>
    %13 = vector.broadcast %4 : vector<1x64xf32> to vector<16x64xf32>
    %14 = arith.mulf %12, %13 : vector<16x64xf32>
    %cst_8 = arith.constant dense<0.000000e+00> : vector<16xf32>
    %15 = vector.multi_reduction <add>, %14, %cst_8 [1] : vector<16x64xf32> to vector<16xf32>
    %16 = vector.shape_cast %15 : vector<16xf32> to vector<16x1xf32>
    %17 = vector.extract_strided_slice %1 {offsets = [0, 1, 0], sizes = [16, 1, 128], strides = [1, 1, 1]} : vector<16x8x128xf32> to vector<16x1x128xf32>
    %18 = vector.shape_cast %17 : vector<16x1x128xf32> to vector<16x128xf32>
    %19 = arith.truncf %18 : vector<16x128xf32> to vector<16x128xbf16>
    %cst_9 = arith.constant dense<0.000000e+00> : vector<16x64xf32>
    %20 = tpu.matmul %19, %2, %cst_9 {dimension_numbers = #tpu.dot_dimension_numbers<[1], [0], [0], [1], [0, 0, 1, 1], [], []>} : vector<16x128xbf16>, vector<128x64xbf16>, vector<16x64xf32> -> vector<16x64xf32>
    %21 = vector.extract_strided_slice %3 {offsets = [1, 0], sizes = [1, 64], strides = [1, 1]} : vector<8x64xf32> to vector<1x64xf32>
    %22 = vector.broadcast %21 : vector<1x64xf32> to vector<16x64xf32>
    %23 = arith.addf %20, %22 : vector<16x64xf32>
    %24 = math.tanh %23 : vector<16x64xf32>
    %25 = vector.broadcast %4 : vector<1x64xf32> to vector<16x64xf32>
    %26 = arith.mulf %24, %25 : vector<16x64xf32>
    %cst_10 = arith.constant dense<0.000000e+00> : vector<16xf32>
    %27 = vector.multi_reduction <add>, %26, %cst_10 [1] : vector<16x64xf32> to vector<16xf32>
    %28 = vector.shape_cast %27 : vector<16xf32> to vector<16x1xf32>
    %29 = vector.extract_strided_slice %1 {offsets = [0, 2, 0], sizes = [16, 1, 128], strides = [1, 1, 1]} : vector<16x8x128xf32> to vector<16x1x128xf32>
    %30 = vector.shape_cast %29 : vector<16x1x128xf32> to vector<16x128xf32>
    %31 = arith.truncf %30 : vector<16x128xf32> to vector<16x128xbf16>
    %cst_11 = arith.constant dense<0.000000e+00> : vector<16x64xf32>
    %32 = tpu.matmul %31, %2, %cst_11 {dimension_numbers = #tpu.dot_dimension_numbers<[1], [0], [0], [1], [0, 0, 1, 1], [], []>} : vector<16x128xbf16>, vector<128x64xbf16>, vector<16x64xf32> -> vector<16x64xf32>
    %33 = vector.extract_strided_slice %3 {offsets = [2, 0], sizes = [1, 64], strides = [1, 1]} : vector<8x64xf32> to vector<1x64xf32>
    %34 = vector.broadcast %33 : vector<1x64xf32> to vector<16x64xf32>
    %35 = arith.addf %32, %34 : vector<16x64xf32>
    %36 = math.tanh %35 : vector<16x64xf32>
    %37 = vector.broadcast %4 : vector<1x64xf32> to vector<16x64xf32>
    %38 = arith.mulf %36, %37 : vector<16x64xf32>
    %cst_12 = arith.constant dense<0.000000e+00> : vector<16xf32>
    %39 = vector.multi_reduction <add>, %38, %cst_12 [1] : vector<16x64xf32> to vector<16xf32>
    %40 = vector.shape_cast %39 : vector<16xf32> to vector<16x1xf32>
    %41 = vector.extract_strided_slice %1 {offsets = [0, 3, 0], sizes = [16, 1, 128], strides = [1, 1, 1]} : vector<16x8x128xf32> to vector<16x1x128xf32>
    %42 = vector.shape_cast %41 : vector<16x1x128xf32> to vector<16x128xf32>
    %43 = arith.truncf %42 : vector<16x128xf32> to vector<16x128xbf16>
    %cst_13 = arith.constant dense<0.000000e+00> : vector<16x64xf32>
    %44 = tpu.matmul %43, %2, %cst_13 {dimension_numbers = #tpu.dot_dimension_numbers<[1], [0], [0], [1], [0, 0, 1, 1], [], []>} : vector<16x128xbf16>, vector<128x64xbf16>, vector<16x64xf32> -> vector<16x64xf32>
    %45 = vector.extract_strided_slice %3 {offsets = [3, 0], sizes = [1, 64], strides = [1, 1]} : vector<8x64xf32> to vector<1x64xf32>
    %46 = vector.broadcast %45 : vector<1x64xf32> to vector<16x64xf32>
    %47 = arith.addf %44, %46 : vector<16x64xf32>
    %48 = math.tanh %47 : vector<16x64xf32>
    %49 = vector.broadcast %4 : vector<1x64xf32> to vector<16x64xf32>
    %50 = arith.mulf %48, %49 : vector<16x64xf32>
    %cst_14 = arith.constant dense<0.000000e+00> : vector<16xf32>
    %51 = vector.multi_reduction <add>, %50, %cst_14 [1] : vector<16x64xf32> to vector<16xf32>
    %52 = vector.shape_cast %51 : vector<16xf32> to vector<16x1xf32>
    %53 = vector.extract_strided_slice %1 {offsets = [0, 4, 0], sizes = [16, 1, 128], strides = [1, 1, 1]} : vector<16x8x128xf32> to vector<16x1x128xf32>
    %54 = vector.shape_cast %53 : vector<16x1x128xf32> to vector<16x128xf32>
    %55 = arith.truncf %54 : vector<16x128xf32> to vector<16x128xbf16>
    %cst_15 = arith.constant dense<0.000000e+00> : vector<16x64xf32>
    %56 = tpu.matmul %55, %2, %cst_15 {dimension_numbers = #tpu.dot_dimension_numbers<[1], [0], [0], [1], [0, 0, 1, 1], [], []>} : vector<16x128xbf16>, vector<128x64xbf16>, vector<16x64xf32> -> vector<16x64xf32>
    %57 = vector.extract_strided_slice %3 {offsets = [4, 0], sizes = [1, 64], strides = [1, 1]} : vector<8x64xf32> to vector<1x64xf32>
    %58 = vector.broadcast %57 : vector<1x64xf32> to vector<16x64xf32>
    %59 = arith.addf %56, %58 : vector<16x64xf32>
    %60 = math.tanh %59 : vector<16x64xf32>
    %61 = vector.broadcast %4 : vector<1x64xf32> to vector<16x64xf32>
    %62 = arith.mulf %60, %61 : vector<16x64xf32>
    %cst_16 = arith.constant dense<0.000000e+00> : vector<16xf32>
    %63 = vector.multi_reduction <add>, %62, %cst_16 [1] : vector<16x64xf32> to vector<16xf32>
    %64 = vector.shape_cast %63 : vector<16xf32> to vector<16x1xf32>
    %65 = vector.extract_strided_slice %1 {offsets = [0, 5, 0], sizes = [16, 1, 128], strides = [1, 1, 1]} : vector<16x8x128xf32> to vector<16x1x128xf32>
    %66 = vector.shape_cast %65 : vector<16x1x128xf32> to vector<16x128xf32>
    %67 = arith.truncf %66 : vector<16x128xf32> to vector<16x128xbf16>
    %cst_17 = arith.constant dense<0.000000e+00> : vector<16x64xf32>
    %68 = tpu.matmul %67, %2, %cst_17 {dimension_numbers = #tpu.dot_dimension_numbers<[1], [0], [0], [1], [0, 0, 1, 1], [], []>} : vector<16x128xbf16>, vector<128x64xbf16>, vector<16x64xf32> -> vector<16x64xf32>
    %69 = vector.extract_strided_slice %3 {offsets = [5, 0], sizes = [1, 64], strides = [1, 1]} : vector<8x64xf32> to vector<1x64xf32>
    %70 = vector.broadcast %69 : vector<1x64xf32> to vector<16x64xf32>
    %71 = arith.addf %68, %70 : vector<16x64xf32>
    %72 = math.tanh %71 : vector<16x64xf32>
    %73 = vector.broadcast %4 : vector<1x64xf32> to vector<16x64xf32>
    %74 = arith.mulf %72, %73 : vector<16x64xf32>
    %cst_18 = arith.constant dense<0.000000e+00> : vector<16xf32>
    %75 = vector.multi_reduction <add>, %74, %cst_18 [1] : vector<16x64xf32> to vector<16xf32>
    %76 = vector.shape_cast %75 : vector<16xf32> to vector<16x1xf32>
    %77 = vector.extract_strided_slice %1 {offsets = [0, 6, 0], sizes = [16, 1, 128], strides = [1, 1, 1]} : vector<16x8x128xf32> to vector<16x1x128xf32>
    %78 = vector.shape_cast %77 : vector<16x1x128xf32> to vector<16x128xf32>
    %79 = arith.truncf %78 : vector<16x128xf32> to vector<16x128xbf16>
    %cst_19 = arith.constant dense<0.000000e+00> : vector<16x64xf32>
    %80 = tpu.matmul %79, %2, %cst_19 {dimension_numbers = #tpu.dot_dimension_numbers<[1], [0], [0], [1], [0, 0, 1, 1], [], []>} : vector<16x128xbf16>, vector<128x64xbf16>, vector<16x64xf32> -> vector<16x64xf32>
    %81 = vector.extract_strided_slice %3 {offsets = [6, 0], sizes = [1, 64], strides = [1, 1]} : vector<8x64xf32> to vector<1x64xf32>
    %82 = vector.broadcast %81 : vector<1x64xf32> to vector<16x64xf32>
    %83 = arith.addf %80, %82 : vector<16x64xf32>
    %84 = math.tanh %83 : vector<16x64xf32>
    %85 = vector.broadcast %4 : vector<1x64xf32> to vector<16x64xf32>
    %86 = arith.mulf %84, %85 : vector<16x64xf32>
    %cst_20 = arith.constant dense<0.000000e+00> : vector<16xf32>
    %87 = vector.multi_reduction <add>, %86, %cst_20 [1] : vector<16x64xf32> to vector<16xf32>
    %88 = vector.shape_cast %87 : vector<16xf32> to vector<16x1xf32>
    %89 = vector.extract_strided_slice %1 {offsets = [0, 7, 0], sizes = [16, 1, 128], strides = [1, 1, 1]} : vector<16x8x128xf32> to vector<16x1x128xf32>
    %90 = vector.shape_cast %89 : vector<16x1x128xf32> to vector<16x128xf32>
    %91 = arith.truncf %90 : vector<16x128xf32> to vector<16x128xbf16>
    %cst_21 = arith.constant dense<0.000000e+00> : vector<16x64xf32>
    %92 = tpu.matmul %91, %2, %cst_21 {dimension_numbers = #tpu.dot_dimension_numbers<[1], [0], [0], [1], [0, 0, 1, 1], [], []>} : vector<16x128xbf16>, vector<128x64xbf16>, vector<16x64xf32> -> vector<16x64xf32>
    %93 = vector.extract_strided_slice %3 {offsets = [7, 0], sizes = [1, 64], strides = [1, 1]} : vector<8x64xf32> to vector<1x64xf32>
    %94 = vector.broadcast %93 : vector<1x64xf32> to vector<16x64xf32>
    %95 = arith.addf %92, %94 : vector<16x64xf32>
    %96 = math.tanh %95 : vector<16x64xf32>
    %97 = vector.broadcast %4 : vector<1x64xf32> to vector<16x64xf32>
    %98 = arith.mulf %96, %97 : vector<16x64xf32>
    %cst_22 = arith.constant dense<0.000000e+00> : vector<16xf32>
    %99 = vector.multi_reduction <add>, %98, %cst_22 [1] : vector<16x64xf32> to vector<16xf32>
    %100 = vector.shape_cast %99 : vector<16xf32> to vector<16x1xf32>
    %101 = tpu.concatenate %16, %28, %40, %52, %64, %76, %88, %100 in 1 : vector<16x1xf32>, vector<16x1xf32>, vector<16x1xf32>, vector<16x1xf32>, vector<16x1xf32>, vector<16x1xf32>, vector<16x1xf32>, vector<16x1xf32> -> vector<16x8xf32>
    %cst_23 = arith.constant dense<0xFF800000> : vector<16xf32>
    %102 = vector.multi_reduction <maximumf>, %101, %cst_23 [1] : vector<16x8xf32> to vector<16xf32>
    %103 = vector.shape_cast %102 : vector<16xf32> to vector<16x1xf32>
    %104 = vector.broadcast %103 : vector<16x1xf32> to vector<16x8xf32>
    %105 = arith.subf %101, %104 : vector<16x8xf32>
    %106 = math.exp %105 : vector<16x8xf32>
    %cst_24 = arith.constant dense<0.000000e+00> : vector<16xf32>
    %107 = vector.multi_reduction <add>, %106, %cst_24 [1] : vector<16x8xf32> to vector<16xf32>
    %108 = vector.shape_cast %107 : vector<16xf32> to vector<16x1xf32>
    %109 = tpu.reciprocal %108 {approx = true} : vector<16x1xf32> -> vector<16x1xf32>
    %110 = vector.broadcast %109 : vector<16x1xf32> to vector<16x8xf32>
    %111 = arith.mulf %106, %110 : vector<16x8xf32>
    %cst_25 = arith.constant 0.000000e+00 : f32
    %112 = vector.broadcast %cst_25 : f32 to vector<16x128xf32>
    %113 = vector.extract_strided_slice %1 {offsets = [0, 0, 0], sizes = [16, 1, 128], strides = [1, 1, 1]} : vector<16x8x128xf32> to vector<16x1x128xf32>
    %114 = vector.shape_cast %113 : vector<16x1x128xf32> to vector<16x128xf32>
    %115 = vector.extract_strided_slice %111 {offsets = [0, 0], sizes = [16, 1], strides = [1, 1]} : vector<16x8xf32> to vector<16x1xf32>
    %116 = vector.broadcast %115 : vector<16x1xf32> to vector<16x128xf32>
    %117 = arith.mulf %114, %116 : vector<16x128xf32>
    %118 = arith.addf %112, %117 : vector<16x128xf32>
    %119 = vector.extract_strided_slice %1 {offsets = [0, 1, 0], sizes = [16, 1, 128], strides = [1, 1, 1]} : vector<16x8x128xf32> to vector<16x1x128xf32>
    %120 = vector.shape_cast %119 : vector<16x1x128xf32> to vector<16x128xf32>
    %121 = vector.extract_strided_slice %111 {offsets = [0, 1], sizes = [16, 1], strides = [1, 1]} : vector<16x8xf32> to vector<16x1xf32>
    %122 = vector.broadcast %121 : vector<16x1xf32> to vector<16x128xf32>
    %123 = arith.mulf %120, %122 : vector<16x128xf32>
    %124 = arith.addf %118, %123 : vector<16x128xf32>
    %125 = vector.extract_strided_slice %1 {offsets = [0, 2, 0], sizes = [16, 1, 128], strides = [1, 1, 1]} : vector<16x8x128xf32> to vector<16x1x128xf32>
    %126 = vector.shape_cast %125 : vector<16x1x128xf32> to vector<16x128xf32>
    %127 = vector.extract_strided_slice %111 {offsets = [0, 2], sizes = [16, 1], strides = [1, 1]} : vector<16x8xf32> to vector<16x1xf32>
    %128 = vector.broadcast %127 : vector<16x1xf32> to vector<16x128xf32>
    %129 = arith.mulf %126, %128 : vector<16x128xf32>
    %130 = arith.addf %124, %129 : vector<16x128xf32>
    %131 = vector.extract_strided_slice %1 {offsets = [0, 3, 0], sizes = [16, 1, 128], strides = [1, 1, 1]} : vector<16x8x128xf32> to vector<16x1x128xf32>
    %132 = vector.shape_cast %131 : vector<16x1x128xf32> to vector<16x128xf32>
    %133 = vector.extract_strided_slice %111 {offsets = [0, 3], sizes = [16, 1], strides = [1, 1]} : vector<16x8xf32> to vector<16x1xf32>
    %134 = vector.broadcast %133 : vector<16x1xf32> to vector<16x128xf32>
    %135 = arith.mulf %132, %134 : vector<16x128xf32>
    %136 = arith.addf %130, %135 : vector<16x128xf32>
    %137 = vector.extract_strided_slice %1 {offsets = [0, 4, 0], sizes = [16, 1, 128], strides = [1, 1, 1]} : vector<16x8x128xf32> to vector<16x1x128xf32>
    %138 = vector.shape_cast %137 : vector<16x1x128xf32> to vector<16x128xf32>
    %139 = vector.extract_strided_slice %111 {offsets = [0, 4], sizes = [16, 1], strides = [1, 1]} : vector<16x8xf32> to vector<16x1xf32>
    %140 = vector.broadcast %139 : vector<16x1xf32> to vector<16x128xf32>
    %141 = arith.mulf %138, %140 : vector<16x128xf32>
    %142 = arith.addf %136, %141 : vector<16x128xf32>
    %143 = vector.extract_strided_slice %1 {offsets = [0, 5, 0], sizes = [16, 1, 128], strides = [1, 1, 1]} : vector<16x8x128xf32> to vector<16x1x128xf32>
    %144 = vector.shape_cast %143 : vector<16x1x128xf32> to vector<16x128xf32>
    %145 = vector.extract_strided_slice %111 {offsets = [0, 5], sizes = [16, 1], strides = [1, 1]} : vector<16x8xf32> to vector<16x1xf32>
    %146 = vector.broadcast %145 : vector<16x1xf32> to vector<16x128xf32>
    %147 = arith.mulf %144, %146 : vector<16x128xf32>
    %148 = arith.addf %142, %147 : vector<16x128xf32>
    %149 = vector.extract_strided_slice %1 {offsets = [0, 6, 0], sizes = [16, 1, 128], strides = [1, 1, 1]} : vector<16x8x128xf32> to vector<16x1x128xf32>
    %150 = vector.shape_cast %149 : vector<16x1x128xf32> to vector<16x128xf32>
    %151 = vector.extract_strided_slice %111 {offsets = [0, 6], sizes = [16, 1], strides = [1, 1]} : vector<16x8xf32> to vector<16x1xf32>
    %152 = vector.broadcast %151 : vector<16x1xf32> to vector<16x128xf32>
    %153 = arith.mulf %150, %152 : vector<16x128xf32>
    %154 = arith.addf %148, %153 : vector<16x128xf32>
    %155 = vector.extract_strided_slice %1 {offsets = [0, 7, 0], sizes = [16, 1, 128], strides = [1, 1, 1]} : vector<16x8x128xf32> to vector<16x1x128xf32>
    %156 = vector.shape_cast %155 : vector<16x1x128xf32> to vector<16x128xf32>
    %157 = vector.extract_strided_slice %111 {offsets = [0, 7], sizes = [16, 1], strides = [1, 1]} : vector<16x8xf32> to vector<16x1xf32>
    %158 = vector.broadcast %157 : vector<16x1xf32> to vector<16x128xf32>
    %159 = arith.mulf %156, %158 : vector<16x128xf32>
    %160 = arith.addf %154, %159 : vector<16x128xf32>
    %161 = arith.truncf %160 : vector<16x128xf32> to vector<16x128xbf16>
    %c0_26 = arith.constant 0 : index
    %c0_27 = arith.constant 0 : index
    %162 = vector.load %arg5[%c0_26, %c0_27] : memref<16x128xbf16, #tpu.memory_space<vmem>>, vector<16x128xbf16>
    tpu.vector_store %arg5[%c0_26, %c0_27], %161 {strides = array<i32>} : memref<16x128xbf16, #tpu.memory_space<vmem>>, vector<16x128xbf16>,
    return
  }
  func.func @transform_0(%arg0: i32) -> (i32, i32, i32) {
    %c0_i32 = arith.constant 0 : i32
    %c0_i32_0 = arith.constant 0 : i32
    %c0_i32_1 = arith.constant 0 : i32
    return %arg0, %c0_i32, %c0_i32_0 : i32, i32, i32
  }
  func.func @transform_1(%arg0: i32) -> (i32, i32) {
    %c0_i32 = arith.constant 0 : i32
    %c0_i32_0 = arith.constant 0 : i32
    %c0_i32_1 = arith.constant 0 : i32
    return %c0_i32, %c0_i32_0 : i32, i32
  }
  func.func @transform_2(%arg0: i32) -> (i32, i32) {
    %c0_i32 = arith.constant 0 : i32
    %c0_i32_0 = arith.constant 0 : i32
    %c0_i32_1 = arith.constant 0 : i32
    return %c0_i32, %c0_i32_0 : i32, i32
  }
  func.func @transform_3(%arg0: i32) -> (i32, i32) {
    %c0_i32 = arith.constant 0 : i32
    %c0_i32_0 = arith.constant 0 : i32
    %c0_i32_1 = arith.constant 0 : i32
    return %c0_i32, %c0_i32_0 : i32, i32
  }
  func.func @transform_4(%arg0: i32) -> (i32, i32) {
    %c0_i32 = arith.constant 0 : i32
    %c0_i32_0 = arith.constant 0 : i32
    return %arg0, %c0_i32 : i32, i32
  }
}

module attributes {stable_mosaic.version = 11 : i64} {
  func.func @_gemm_bias_kernel(%arg0: i32, %arg1: memref<16x128xbf16, #tpu.memory_space<vmem>>, %arg2: memref<128x64xbf16, #tpu.memory_space<vmem>>, %arg3: memref<1x64xf32, #tpu.memory_space<vmem>>, %arg4: memref<16x64xf32, #tpu.memory_space<vmem>>) attributes {dimension_semantics = [#tpu.dimension_semantics<parallel>], iteration_bounds = array<i64: 2>, scalar_prefetch = 0 : i64, scratch_operands = 0 : i64, tpu.core_type = #tpu.core_type<tc>, window_params = [{transform_indices = @transform_0, window_bounds = array<i64: 16, 128>}, {pipeline_mode = #tpu.pipeline_mode<synchronous>, transform_indices = @transform_1, window_bounds = array<i64: 128, 64>}, {pipeline_mode = #tpu.pipeline_mode<synchronous>, transform_indices = @transform_2, window_bounds = array<i64: 1, 64>}, {transform_indices = @transform_3, window_bounds = array<i64: 16, 64>}]} {
    %c0 = arith.constant 0 : index
    %c0_0 = arith.constant 0 : index
    %0 = vector.load %arg1[%c0, %c0_0] : memref<16x128xbf16, #tpu.memory_space<vmem>>, vector<16x128xbf16>
    %c0_1 = arith.constant 0 : index
    %c0_2 = arith.constant 0 : index
    %1 = vector.load %arg2[%c0_1, %c0_2] : memref<128x64xbf16, #tpu.memory_space<vmem>>, vector<128x64xbf16>
    %cst = arith.constant dense<0.000000e+00> : vector<16x64xf32>
    %2 = tpu.matmul %0, %1, %cst {dimension_numbers = #tpu.dot_dimension_numbers<[1], [0], [0], [1], [0, 0, 1, 1], [], []>} : vector<16x128xbf16>, vector<128x64xbf16>, vector<16x64xf32> -> vector<16x64xf32>
    %c0_3 = arith.constant 0 : index
    %c0_4 = arith.constant 0 : index
    %3 = vector.load %arg3[%c0_3, %c0_4] : memref<1x64xf32, #tpu.memory_space<vmem>>, vector<1x64xf32>
    %4 = vector.broadcast %3 : vector<1x64xf32> to vector<16x64xf32>
    %5 = arith.addf %2, %4 : vector<16x64xf32>
    %c0_5 = arith.constant 0 : index
    %c0_6 = arith.constant 0 : index
    %6 = vector.load %arg4[%c0_5, %c0_6] : memref<16x64xf32, #tpu.memory_space<vmem>>, vector<16x64xf32>
    tpu.vector_store %arg4[%c0_5, %c0_6], %5 {strides = array<i32>} : memref<16x64xf32, #tpu.memory_space<vmem>>, vector<16x64xf32>,
    return
  }
  func.func @transform_0(%arg0: i32) -> (i32, i32) {
    %c0_i32 = arith.constant 0 : i32
    %c0_i32_0 = arith.constant 0 : i32
    return %arg0, %c0_i32 : i32, i32
  }
  func.func @transform_1(%arg0: i32) -> (i32, i32) {
    %c0_i32 = arith.constant 0 : i32
    %c0_i32_0 = arith.constant 0 : i32
    %c0_i32_1 = arith.constant 0 : i32
    return %c0_i32, %c0_i32_0 : i32, i32
  }
  func.func @transform_2(%arg0: i32) -> (i32, i32) {
    %c0_i32 = arith.constant 0 : i32
    %c0_i32_0 = arith.constant 0 : i32
    %c0_i32_1 = arith.constant 0 : i32
    return %c0_i32, %c0_i32_0 : i32, i32
  }
  func.func @transform_3(%arg0: i32) -> (i32, i32) {
    %c0_i32 = arith.constant 0 : i32
    %c0_i32_0 = arith.constant 0 : i32
    return %arg0, %c0_i32 : i32, i32
  }
}

module attributes {stable_mosaic.version = 11 : i64} {
  func.func @_head_kernel(%arg0: memref<8x4x16xf32, #tpu.memory_space<vmem>>, %arg1: memref<16x64xbf16, #tpu.memory_space<vmem>>, %arg2: memref<4x64xf32, #tpu.memory_space<vmem>>, %arg3: memref<1x64xf32, #tpu.memory_space<vmem>>, %arg4: memref<16x64xbf16, #tpu.memory_space<vmem>>, %arg5: memref<4x64xf32, #tpu.memory_space<vmem>>, %arg6: memref<1x64xf32, #tpu.memory_space<vmem>>, %arg7: memref<16x5xf32, #tpu.memory_space<vmem>>, %arg8: memref<1x5xf32, #tpu.memory_space<vmem>>, %arg9: memref<2x5xf32, #tpu.memory_space<vmem>>) attributes {dimension_semantics = [], scalar_prefetch = 0 : i64, scratch_operands = 0 : i64, tpu.core_type = #tpu.core_type<tc>} {
    %c0 = arith.constant 0 : index
    %c0_0 = arith.constant 0 : index
    %0 = vector.load %arg1[%c0, %c0_0] : memref<16x64xbf16, #tpu.memory_space<vmem>>, vector<16x64xbf16>
    %c0_1 = arith.constant 0 : index
    %c0_2 = arith.constant 0 : index
    %1 = vector.load %arg2[%c0_1, %c0_2] : memref<4x64xf32, #tpu.memory_space<vmem>>, vector<4x64xf32>
    %c0_3 = arith.constant 0 : index
    %c0_4 = arith.constant 0 : index
    %2 = vector.load %arg3[%c0_3, %c0_4] : memref<1x64xf32, #tpu.memory_space<vmem>>, vector<1x64xf32>
    %c0_5 = arith.constant 0 : index
    %c0_6 = arith.constant 0 : index
    %3 = vector.load %arg4[%c0_5, %c0_6] : memref<16x64xbf16, #tpu.memory_space<vmem>>, vector<16x64xbf16>
    %c0_7 = arith.constant 0 : index
    %c0_8 = arith.constant 0 : index
    %4 = vector.load %arg5[%c0_7, %c0_8] : memref<4x64xf32, #tpu.memory_space<vmem>>, vector<4x64xf32>
    %c0_9 = arith.constant 0 : index
    %c0_10 = arith.constant 0 : index
    %5 = vector.load %arg6[%c0_9, %c0_10] : memref<1x64xf32, #tpu.memory_space<vmem>>, vector<1x64xf32>
    %c0_11 = arith.constant 0 : index
    %c0_12 = arith.constant 0 : index
    %c0_13 = arith.constant 0 : index
    %6 = vector.load %arg0[%c0_11, %c0_12, %c0_13] : memref<8x4x16xf32, #tpu.memory_space<vmem>>, vector<1x4x16xf32>
    %7 = vector.shape_cast %6 : vector<1x4x16xf32> to vector<4x16xf32>
    %8 = arith.truncf %7 : vector<4x16xf32> to vector<4x16xbf16>
    %cst = arith.constant dense<0.000000e+00> : vector<4x64xf32>
    %9 = tpu.matmul %8, %0, %cst {dimension_numbers = #tpu.dot_dimension_numbers<[1], [0], [0], [1], [0, 0, 1, 1], [], []>} : vector<4x16xbf16>, vector<16x64xbf16>, vector<4x64xf32> -> vector<4x64xf32>
    %10 = arith.addf %9, %1 : vector<4x64xf32>
    %11 = math.tanh %10 : vector<4x64xf32>
    %12 = vector.broadcast %2 : vector<1x64xf32> to vector<4x64xf32>
    %13 = arith.mulf %11, %12 : vector<4x64xf32>
    %cst_14 = arith.constant dense<0.000000e+00> : vector<4xf32>
    %14 = vector.multi_reduction <add>, %13, %cst_14 [1] : vector<4x64xf32> to vector<4xf32>
    %15 = vector.shape_cast %14 : vector<4xf32> to vector<4x1xf32>
    %cst_15 = arith.constant dense<0xFF800000> : vector<1xf32>
    %16 = vector.multi_reduction <maximumf>, %15, %cst_15 [0] : vector<4x1xf32> to vector<1xf32>
    %17 = vector.shape_cast %16 : vector<1xf32> to vector<1x1xf32>
    %18 = vector.broadcast %17 : vector<1x1xf32> to vector<4x1xf32>
    %19 = arith.subf %15, %18 : vector<4x1xf32>
    %20 = math.exp %19 : vector<4x1xf32>
    %cst_16 = arith.constant dense<0.000000e+00> : vector<1xf32>
    %21 = vector.multi_reduction <add>, %20, %cst_16 [0] : vector<4x1xf32> to vector<1xf32>
    %22 = vector.shape_cast %21 : vector<1xf32> to vector<1x1xf32>
    %23 = tpu.reciprocal %22 {approx = true} : vector<1x1xf32> -> vector<1x1xf32>
    %24 = vector.broadcast %23 : vector<1x1xf32> to vector<4x1xf32>
    %25 = arith.mulf %20, %24 : vector<4x1xf32>
    %26 = vector.broadcast %25 : vector<4x1xf32> to vector<4x16xf32>
    %27 = arith.mulf %7, %26 : vector<4x16xf32>
    %cst_17 = arith.constant dense<0.000000e+00> : vector<16xf32>
    %28 = vector.multi_reduction <add>, %27, %cst_17 [0] : vector<4x16xf32> to vector<16xf32>
    %29 = vector.shape_cast %28 : vector<16xf32> to vector<1x16xf32>
    %c1 = arith.constant 1 : index
    %c0_18 = arith.constant 0 : index
    %c0_19 = arith.constant 0 : index
    %30 = vector.load %arg0[%c1, %c0_18, %c0_19] : memref<8x4x16xf32, #tpu.memory_space<vmem>>, vector<1x4x16xf32>
    %31 = vector.shape_cast %30 : vector<1x4x16xf32> to vector<4x16xf32>
    %32 = arith.truncf %31 : vector<4x16xf32> to vector<4x16xbf16>
    %cst_20 = arith.constant dense<0.000000e+00> : vector<4x64xf32>
    %33 = tpu.matmul %32, %0, %cst_20 {dimension_numbers = #tpu.dot_dimension_numbers<[1], [0], [0], [1], [0, 0, 1, 1], [], []>} : vector<4x16xbf16>, vector<16x64xbf16>, vector<4x64xf32> -> vector<4x64xf32>
    %34 = arith.addf %33, %1 : vector<4x64xf32>
    %35 = math.tanh %34 : vector<4x64xf32>
    %36 = vector.broadcast %2 : vector<1x64xf32> to vector<4x64xf32>
    %37 = arith.mulf %35, %36 : vector<4x64xf32>
    %cst_21 = arith.constant dense<0.000000e+00> : vector<4xf32>
    %38 = vector.multi_reduction <add>, %37, %cst_21 [1] : vector<4x64xf32> to vector<4xf32>
    %39 = vector.shape_cast %38 : vector<4xf32> to vector<4x1xf32>
    %cst_22 = arith.constant dense<0xFF800000> : vector<1xf32>
    %40 = vector.multi_reduction <maximumf>, %39, %cst_22 [0] : vector<4x1xf32> to vector<1xf32>
    %41 = vector.shape_cast %40 : vector<1xf32> to vector<1x1xf32>
    %42 = vector.broadcast %41 : vector<1x1xf32> to vector<4x1xf32>
    %43 = arith.subf %39, %42 : vector<4x1xf32>
    %44 = math.exp %43 : vector<4x1xf32>
    %cst_23 = arith.constant dense<0.000000e+00> : vector<1xf32>
    %45 = vector.multi_reduction <add>, %44, %cst_23 [0] : vector<4x1xf32> to vector<1xf32>
    %46 = vector.shape_cast %45 : vector<1xf32> to vector<1x1xf32>
    %47 = tpu.reciprocal %46 {approx = true} : vector<1x1xf32> -> vector<1x1xf32>
    %48 = vector.broadcast %47 : vector<1x1xf32> to vector<4x1xf32>
    %49 = arith.mulf %44, %48 : vector<4x1xf32>
    %50 = vector.broadcast %49 : vector<4x1xf32> to vector<4x16xf32>
    %51 = arith.mulf %31, %50 : vector<4x16xf32>
    %cst_24 = arith.constant dense<0.000000e+00> : vector<16xf32>
    %52 = vector.multi_reduction <add>, %51, %cst_24 [0] : vector<4x16xf32> to vector<16xf32>
    %53 = vector.shape_cast %52 : vector<16xf32> to vector<1x16xf32>
    %c2 = arith.constant 2 : index
    %c0_25 = arith.constant 0 : index
    %c0_26 = arith.constant 0 : index
    %54 = vector.load %arg0[%c2, %c0_25, %c0_26] : memref<8x4x16xf32, #tpu.memory_space<vmem>>, vector<1x4x16xf32>
    %55 = vector.shape_cast %54 : vector<1x4x16xf32> to vector<4x16xf32>
    %56 = arith.truncf %55 : vector<4x16xf32> to vector<4x16xbf16>
    %cst_27 = arith.constant dense<0.000000e+00> : vector<4x64xf32>
    %57 = tpu.matmul %56, %0, %cst_27 {dimension_numbers = #tpu.dot_dimension_numbers<[1], [0], [0], [1], [0, 0, 1, 1], [], []>} : vector<4x16xbf16>, vector<16x64xbf16>, vector<4x64xf32> -> vector<4x64xf32>
    %58 = arith.addf %57, %1 : vector<4x64xf32>
    %59 = math.tanh %58 : vector<4x64xf32>
    %60 = vector.broadcast %2 : vector<1x64xf32> to vector<4x64xf32>
    %61 = arith.mulf %59, %60 : vector<4x64xf32>
    %cst_28 = arith.constant dense<0.000000e+00> : vector<4xf32>
    %62 = vector.multi_reduction <add>, %61, %cst_28 [1] : vector<4x64xf32> to vector<4xf32>
    %63 = vector.shape_cast %62 : vector<4xf32> to vector<4x1xf32>
    %cst_29 = arith.constant dense<0xFF800000> : vector<1xf32>
    %64 = vector.multi_reduction <maximumf>, %63, %cst_29 [0] : vector<4x1xf32> to vector<1xf32>
    %65 = vector.shape_cast %64 : vector<1xf32> to vector<1x1xf32>
    %66 = vector.broadcast %65 : vector<1x1xf32> to vector<4x1xf32>
    %67 = arith.subf %63, %66 : vector<4x1xf32>
    %68 = math.exp %67 : vector<4x1xf32>
    %cst_30 = arith.constant dense<0.000000e+00> : vector<1xf32>
    %69 = vector.multi_reduction <add>, %68, %cst_30 [0] : vector<4x1xf32> to vector<1xf32>
    %70 = vector.shape_cast %69 : vector<1xf32> to vector<1x1xf32>
    %71 = tpu.reciprocal %70 {approx = true} : vector<1x1xf32> -> vector<1x1xf32>
    %72 = vector.broadcast %71 : vector<1x1xf32> to vector<4x1xf32>
    %73 = arith.mulf %68, %72 : vector<4x1xf32>
    %74 = vector.broadcast %73 : vector<4x1xf32> to vector<4x16xf32>
    %75 = arith.mulf %55, %74 : vector<4x16xf32>
    %cst_31 = arith.constant dense<0.000000e+00> : vector<16xf32>
    %76 = vector.multi_reduction <add>, %75, %cst_31 [0] : vector<4x16xf32> to vector<16xf32>
    %77 = vector.shape_cast %76 : vector<16xf32> to vector<1x16xf32>
    %c3 = arith.constant 3 : index
    %c0_32 = arith.constant 0 : index
    %c0_33 = arith.constant 0 : index
    %78 = vector.load %arg0[%c3, %c0_32, %c0_33] : memref<8x4x16xf32, #tpu.memory_space<vmem>>, vector<1x4x16xf32>
    %79 = vector.shape_cast %78 : vector<1x4x16xf32> to vector<4x16xf32>
    %80 = arith.truncf %79 : vector<4x16xf32> to vector<4x16xbf16>
    %cst_34 = arith.constant dense<0.000000e+00> : vector<4x64xf32>
    %81 = tpu.matmul %80, %0, %cst_34 {dimension_numbers = #tpu.dot_dimension_numbers<[1], [0], [0], [1], [0, 0, 1, 1], [], []>} : vector<4x16xbf16>, vector<16x64xbf16>, vector<4x64xf32> -> vector<4x64xf32>
    %82 = arith.addf %81, %1 : vector<4x64xf32>
    %83 = math.tanh %82 : vector<4x64xf32>
    %84 = vector.broadcast %2 : vector<1x64xf32> to vector<4x64xf32>
    %85 = arith.mulf %83, %84 : vector<4x64xf32>
    %cst_35 = arith.constant dense<0.000000e+00> : vector<4xf32>
    %86 = vector.multi_reduction <add>, %85, %cst_35 [1] : vector<4x64xf32> to vector<4xf32>
    %87 = vector.shape_cast %86 : vector<4xf32> to vector<4x1xf32>
    %cst_36 = arith.constant dense<0xFF800000> : vector<1xf32>
    %88 = vector.multi_reduction <maximumf>, %87, %cst_36 [0] : vector<4x1xf32> to vector<1xf32>
    %89 = vector.shape_cast %88 : vector<1xf32> to vector<1x1xf32>
    %90 = vector.broadcast %89 : vector<1x1xf32> to vector<4x1xf32>
    %91 = arith.subf %87, %90 : vector<4x1xf32>
    %92 = math.exp %91 : vector<4x1xf32>
    %cst_37 = arith.constant dense<0.000000e+00> : vector<1xf32>
    %93 = vector.multi_reduction <add>, %92, %cst_37 [0] : vector<4x1xf32> to vector<1xf32>
    %94 = vector.shape_cast %93 : vector<1xf32> to vector<1x1xf32>
    %95 = tpu.reciprocal %94 {approx = true} : vector<1x1xf32> -> vector<1x1xf32>
    %96 = vector.broadcast %95 : vector<1x1xf32> to vector<4x1xf32>
    %97 = arith.mulf %92, %96 : vector<4x1xf32>
    %98 = vector.broadcast %97 : vector<4x1xf32> to vector<4x16xf32>
    %99 = arith.mulf %79, %98 : vector<4x16xf32>
    %cst_38 = arith.constant dense<0.000000e+00> : vector<16xf32>
    %100 = vector.multi_reduction <add>, %99, %cst_38 [0] : vector<4x16xf32> to vector<16xf32>
    %101 = vector.shape_cast %100 : vector<16xf32> to vector<1x16xf32>
    %c4 = arith.constant 4 : index
    %c0_39 = arith.constant 0 : index
    %c0_40 = arith.constant 0 : index
    %102 = vector.load %arg0[%c4, %c0_39, %c0_40] : memref<8x4x16xf32, #tpu.memory_space<vmem>>, vector<1x4x16xf32>
    %103 = vector.shape_cast %102 : vector<1x4x16xf32> to vector<4x16xf32>
    %104 = arith.truncf %103 : vector<4x16xf32> to vector<4x16xbf16>
    %cst_41 = arith.constant dense<0.000000e+00> : vector<4x64xf32>
    %105 = tpu.matmul %104, %0, %cst_41 {dimension_numbers = #tpu.dot_dimension_numbers<[1], [0], [0], [1], [0, 0, 1, 1], [], []>} : vector<4x16xbf16>, vector<16x64xbf16>, vector<4x64xf32> -> vector<4x64xf32>
    %106 = arith.addf %105, %1 : vector<4x64xf32>
    %107 = math.tanh %106 : vector<4x64xf32>
    %108 = vector.broadcast %2 : vector<1x64xf32> to vector<4x64xf32>
    %109 = arith.mulf %107, %108 : vector<4x64xf32>
    %cst_42 = arith.constant dense<0.000000e+00> : vector<4xf32>
    %110 = vector.multi_reduction <add>, %109, %cst_42 [1] : vector<4x64xf32> to vector<4xf32>
    %111 = vector.shape_cast %110 : vector<4xf32> to vector<4x1xf32>
    %cst_43 = arith.constant dense<0xFF800000> : vector<1xf32>
    %112 = vector.multi_reduction <maximumf>, %111, %cst_43 [0] : vector<4x1xf32> to vector<1xf32>
    %113 = vector.shape_cast %112 : vector<1xf32> to vector<1x1xf32>
    %114 = vector.broadcast %113 : vector<1x1xf32> to vector<4x1xf32>
    %115 = arith.subf %111, %114 : vector<4x1xf32>
    %116 = math.exp %115 : vector<4x1xf32>
    %cst_44 = arith.constant dense<0.000000e+00> : vector<1xf32>
    %117 = vector.multi_reduction <add>, %116, %cst_44 [0] : vector<4x1xf32> to vector<1xf32>
    %118 = vector.shape_cast %117 : vector<1xf32> to vector<1x1xf32>
    %119 = tpu.reciprocal %118 {approx = true} : vector<1x1xf32> -> vector<1x1xf32>
    %120 = vector.broadcast %119 : vector<1x1xf32> to vector<4x1xf32>
    %121 = arith.mulf %116, %120 : vector<4x1xf32>
    %122 = vector.broadcast %121 : vector<4x1xf32> to vector<4x16xf32>
    %123 = arith.mulf %103, %122 : vector<4x16xf32>
    %cst_45 = arith.constant dense<0.000000e+00> : vector<16xf32>
    %124 = vector.multi_reduction <add>, %123, %cst_45 [0] : vector<4x16xf32> to vector<16xf32>
    %125 = vector.shape_cast %124 : vector<16xf32> to vector<1x16xf32>
    %c5 = arith.constant 5 : index
    %c0_46 = arith.constant 0 : index
    %c0_47 = arith.constant 0 : index
    %126 = vector.load %arg0[%c5, %c0_46, %c0_47] : memref<8x4x16xf32, #tpu.memory_space<vmem>>, vector<1x4x16xf32>
    %127 = vector.shape_cast %126 : vector<1x4x16xf32> to vector<4x16xf32>
    %128 = arith.truncf %127 : vector<4x16xf32> to vector<4x16xbf16>
    %cst_48 = arith.constant dense<0.000000e+00> : vector<4x64xf32>
    %129 = tpu.matmul %128, %0, %cst_48 {dimension_numbers = #tpu.dot_dimension_numbers<[1], [0], [0], [1], [0, 0, 1, 1], [], []>} : vector<4x16xbf16>, vector<16x64xbf16>, vector<4x64xf32> -> vector<4x64xf32>
    %130 = arith.addf %129, %1 : vector<4x64xf32>
    %131 = math.tanh %130 : vector<4x64xf32>
    %132 = vector.broadcast %2 : vector<1x64xf32> to vector<4x64xf32>
    %133 = arith.mulf %131, %132 : vector<4x64xf32>
    %cst_49 = arith.constant dense<0.000000e+00> : vector<4xf32>
    %134 = vector.multi_reduction <add>, %133, %cst_49 [1] : vector<4x64xf32> to vector<4xf32>
    %135 = vector.shape_cast %134 : vector<4xf32> to vector<4x1xf32>
    %cst_50 = arith.constant dense<0xFF800000> : vector<1xf32>
    %136 = vector.multi_reduction <maximumf>, %135, %cst_50 [0] : vector<4x1xf32> to vector<1xf32>
    %137 = vector.shape_cast %136 : vector<1xf32> to vector<1x1xf32>
    %138 = vector.broadcast %137 : vector<1x1xf32> to vector<4x1xf32>
    %139 = arith.subf %135, %138 : vector<4x1xf32>
    %140 = math.exp %139 : vector<4x1xf32>
    %cst_51 = arith.constant dense<0.000000e+00> : vector<1xf32>
    %141 = vector.multi_reduction <add>, %140, %cst_51 [0] : vector<4x1xf32> to vector<1xf32>
    %142 = vector.shape_cast %141 : vector<1xf32> to vector<1x1xf32>
    %143 = tpu.reciprocal %142 {approx = true} : vector<1x1xf32> -> vector<1x1xf32>
    %144 = vector.broadcast %143 : vector<1x1xf32> to vector<4x1xf32>
    %145 = arith.mulf %140, %144 : vector<4x1xf32>
    %146 = vector.broadcast %145 : vector<4x1xf32> to vector<4x16xf32>
    %147 = arith.mulf %127, %146 : vector<4x16xf32>
    %cst_52 = arith.constant dense<0.000000e+00> : vector<16xf32>
    %148 = vector.multi_reduction <add>, %147, %cst_52 [0] : vector<4x16xf32> to vector<16xf32>
    %149 = vector.shape_cast %148 : vector<16xf32> to vector<1x16xf32>
    %c6 = arith.constant 6 : index
    %c0_53 = arith.constant 0 : index
    %c0_54 = arith.constant 0 : index
    %150 = vector.load %arg0[%c6, %c0_53, %c0_54] : memref<8x4x16xf32, #tpu.memory_space<vmem>>, vector<1x4x16xf32>
    %151 = vector.shape_cast %150 : vector<1x4x16xf32> to vector<4x16xf32>
    %152 = arith.truncf %151 : vector<4x16xf32> to vector<4x16xbf16>
    %cst_55 = arith.constant dense<0.000000e+00> : vector<4x64xf32>
    %153 = tpu.matmul %152, %0, %cst_55 {dimension_numbers = #tpu.dot_dimension_numbers<[1], [0], [0], [1], [0, 0, 1, 1], [], []>} : vector<4x16xbf16>, vector<16x64xbf16>, vector<4x64xf32> -> vector<4x64xf32>
    %154 = arith.addf %153, %1 : vector<4x64xf32>
    %155 = math.tanh %154 : vector<4x64xf32>
    %156 = vector.broadcast %2 : vector<1x64xf32> to vector<4x64xf32>
    %157 = arith.mulf %155, %156 : vector<4x64xf32>
    %cst_56 = arith.constant dense<0.000000e+00> : vector<4xf32>
    %158 = vector.multi_reduction <add>, %157, %cst_56 [1] : vector<4x64xf32> to vector<4xf32>
    %159 = vector.shape_cast %158 : vector<4xf32> to vector<4x1xf32>
    %cst_57 = arith.constant dense<0xFF800000> : vector<1xf32>
    %160 = vector.multi_reduction <maximumf>, %159, %cst_57 [0] : vector<4x1xf32> to vector<1xf32>
    %161 = vector.shape_cast %160 : vector<1xf32> to vector<1x1xf32>
    %162 = vector.broadcast %161 : vector<1x1xf32> to vector<4x1xf32>
    %163 = arith.subf %159, %162 : vector<4x1xf32>
    %164 = math.exp %163 : vector<4x1xf32>
    %cst_58 = arith.constant dense<0.000000e+00> : vector<1xf32>
    %165 = vector.multi_reduction <add>, %164, %cst_58 [0] : vector<4x1xf32> to vector<1xf32>
    %166 = vector.shape_cast %165 : vector<1xf32> to vector<1x1xf32>
    %167 = tpu.reciprocal %166 {approx = true} : vector<1x1xf32> -> vector<1x1xf32>
    %168 = vector.broadcast %167 : vector<1x1xf32> to vector<4x1xf32>
    %169 = arith.mulf %164, %168 : vector<4x1xf32>
    %170 = vector.broadcast %169 : vector<4x1xf32> to vector<4x16xf32>
    %171 = arith.mulf %151, %170 : vector<4x16xf32>
    %cst_59 = arith.constant dense<0.000000e+00> : vector<16xf32>
    %172 = vector.multi_reduction <add>, %171, %cst_59 [0] : vector<4x16xf32> to vector<16xf32>
    %173 = vector.shape_cast %172 : vector<16xf32> to vector<1x16xf32>
    %c7 = arith.constant 7 : index
    %c0_60 = arith.constant 0 : index
    %c0_61 = arith.constant 0 : index
    %174 = vector.load %arg0[%c7, %c0_60, %c0_61] : memref<8x4x16xf32, #tpu.memory_space<vmem>>, vector<1x4x16xf32>
    %175 = vector.shape_cast %174 : vector<1x4x16xf32> to vector<4x16xf32>
    %176 = arith.truncf %175 : vector<4x16xf32> to vector<4x16xbf16>
    %cst_62 = arith.constant dense<0.000000e+00> : vector<4x64xf32>
    %177 = tpu.matmul %176, %0, %cst_62 {dimension_numbers = #tpu.dot_dimension_numbers<[1], [0], [0], [1], [0, 0, 1, 1], [], []>} : vector<4x16xbf16>, vector<16x64xbf16>, vector<4x64xf32> -> vector<4x64xf32>
    %178 = arith.addf %177, %1 : vector<4x64xf32>
    %179 = math.tanh %178 : vector<4x64xf32>
    %180 = vector.broadcast %2 : vector<1x64xf32> to vector<4x64xf32>
    %181 = arith.mulf %179, %180 : vector<4x64xf32>
    %cst_63 = arith.constant dense<0.000000e+00> : vector<4xf32>
    %182 = vector.multi_reduction <add>, %181, %cst_63 [1] : vector<4x64xf32> to vector<4xf32>
    %183 = vector.shape_cast %182 : vector<4xf32> to vector<4x1xf32>
    %cst_64 = arith.constant dense<0xFF800000> : vector<1xf32>
    %184 = vector.multi_reduction <maximumf>, %183, %cst_64 [0] : vector<4x1xf32> to vector<1xf32>
    %185 = vector.shape_cast %184 : vector<1xf32> to vector<1x1xf32>
    %186 = vector.broadcast %185 : vector<1x1xf32> to vector<4x1xf32>
    %187 = arith.subf %183, %186 : vector<4x1xf32>
    %188 = math.exp %187 : vector<4x1xf32>
    %cst_65 = arith.constant dense<0.000000e+00> : vector<1xf32>
    %189 = vector.multi_reduction <add>, %188, %cst_65 [0] : vector<4x1xf32> to vector<1xf32>
    %190 = vector.shape_cast %189 : vector<1xf32> to vector<1x1xf32>
    %191 = tpu.reciprocal %190 {approx = true} : vector<1x1xf32> -> vector<1x1xf32>
    %192 = vector.broadcast %191 : vector<1x1xf32> to vector<4x1xf32>
    %193 = arith.mulf %188, %192 : vector<4x1xf32>
    %194 = vector.broadcast %193 : vector<4x1xf32> to vector<4x16xf32>
    %195 = arith.mulf %175, %194 : vector<4x16xf32>
    %cst_66 = arith.constant dense<0.000000e+00> : vector<16xf32>
    %196 = vector.multi_reduction <add>, %195, %cst_66 [0] : vector<4x16xf32> to vector<16xf32>
    %197 = vector.shape_cast %196 : vector<16xf32> to vector<1x16xf32>
    %198 = tpu.concatenate %29, %53, %77, %101, %125, %149, %173, %197 in 0 : vector<1x16xf32>, vector<1x16xf32>, vector<1x16xf32>, vector<1x16xf32>, vector<1x16xf32>, vector<1x16xf32>, vector<1x16xf32>, vector<1x16xf32> -> vector<8x16xf32>
    %199 = vector.extract_strided_slice %198 {offsets = [0, 0], sizes = [4, 16], strides = [1, 1]} : vector<8x16xf32> to vector<4x16xf32>
    %200 = arith.truncf %199 : vector<4x16xf32> to vector<4x16xbf16>
    %cst_67 = arith.constant dense<0.000000e+00> : vector<4x64xf32>
    %201 = tpu.matmul %200, %3, %cst_67 {dimension_numbers = #tpu.dot_dimension_numbers<[1], [0], [0], [1], [0, 0, 1, 1], [], []>} : vector<4x16xbf16>, vector<16x64xbf16>, vector<4x64xf32> -> vector<4x64xf32>
    %202 = arith.addf %201, %4 : vector<4x64xf32>
    %203 = math.tanh %202 : vector<4x64xf32>
    %204 = vector.broadcast %5 : vector<1x64xf32> to vector<4x64xf32>
    %205 = arith.mulf %203, %204 : vector<4x64xf32>
    %cst_68 = arith.constant dense<0.000000e+00> : vector<4xf32>
    %206 = vector.multi_reduction <add>, %205, %cst_68 [1] : vector<4x64xf32> to vector<4xf32>
    %207 = vector.shape_cast %206 : vector<4xf32> to vector<4x1xf32>
    %cst_69 = arith.constant dense<0xFF800000> : vector<1xf32>
    %208 = vector.multi_reduction <maximumf>, %207, %cst_69 [0] : vector<4x1xf32> to vector<1xf32>
    %209 = vector.shape_cast %208 : vector<1xf32> to vector<1x1xf32>
    %210 = vector.broadcast %209 : vector<1x1xf32> to vector<4x1xf32>
    %211 = arith.subf %207, %210 : vector<4x1xf32>
    %212 = math.exp %211 : vector<4x1xf32>
    %cst_70 = arith.constant dense<0.000000e+00> : vector<1xf32>
    %213 = vector.multi_reduction <add>, %212, %cst_70 [0] : vector<4x1xf32> to vector<1xf32>
    %214 = vector.shape_cast %213 : vector<1xf32> to vector<1x1xf32>
    %215 = tpu.reciprocal %214 {approx = true} : vector<1x1xf32> -> vector<1x1xf32>
    %216 = vector.broadcast %215 : vector<1x1xf32> to vector<4x1xf32>
    %217 = arith.mulf %212, %216 : vector<4x1xf32>
    %218 = vector.broadcast %217 : vector<4x1xf32> to vector<4x16xf32>
    %219 = arith.mulf %199, %218 : vector<4x16xf32>
    %cst_71 = arith.constant dense<0.000000e+00> : vector<16xf32>
    %220 = vector.multi_reduction <add>, %219, %cst_71 [0] : vector<4x16xf32> to vector<16xf32>
    %221 = vector.shape_cast %220 : vector<16xf32> to vector<1x16xf32>
    %222 = vector.extract_strided_slice %198 {offsets = [4, 0], sizes = [4, 16], strides = [1, 1]} : vector<8x16xf32> to vector<4x16xf32>
    %223 = arith.truncf %222 : vector<4x16xf32> to vector<4x16xbf16>
    %cst_72 = arith.constant dense<0.000000e+00> : vector<4x64xf32>
    %224 = tpu.matmul %223, %3, %cst_72 {dimension_numbers = #tpu.dot_dimension_numbers<[1], [0], [0], [1], [0, 0, 1, 1], [], []>} : vector<4x16xbf16>, vector<16x64xbf16>, vector<4x64xf32> -> vector<4x64xf32>
    %225 = arith.addf %224, %4 : vector<4x64xf32>
    %226 = math.tanh %225 : vector<4x64xf32>
    %227 = vector.broadcast %5 : vector<1x64xf32> to vector<4x64xf32>
    %228 = arith.mulf %226, %227 : vector<4x64xf32>
    %cst_73 = arith.constant dense<0.000000e+00> : vector<4xf32>
    %229 = vector.multi_reduction <add>, %228, %cst_73 [1] : vector<4x64xf32> to vector<4xf32>
    %230 = vector.shape_cast %229 : vector<4xf32> to vector<4x1xf32>
    %cst_74 = arith.constant dense<0xFF800000> : vector<1xf32>
    %231 = vector.multi_reduction <maximumf>, %230, %cst_74 [0] : vector<4x1xf32> to vector<1xf32>
    %232 = vector.shape_cast %231 : vector<1xf32> to vector<1x1xf32>
    %233 = vector.broadcast %232 : vector<1x1xf32> to vector<4x1xf32>
    %234 = arith.subf %230, %233 : vector<4x1xf32>
    %235 = math.exp %234 : vector<4x1xf32>
    %cst_75 = arith.constant dense<0.000000e+00> : vector<1xf32>
    %236 = vector.multi_reduction <add>, %235, %cst_75 [0] : vector<4x1xf32> to vector<1xf32>
    %237 = vector.shape_cast %236 : vector<1xf32> to vector<1x1xf32>
    %238 = tpu.reciprocal %237 {approx = true} : vector<1x1xf32> -> vector<1x1xf32>
    %239 = vector.broadcast %238 : vector<1x1xf32> to vector<4x1xf32>
    %240 = arith.mulf %235, %239 : vector<4x1xf32>
    %241 = vector.broadcast %240 : vector<4x1xf32> to vector<4x16xf32>
    %242 = arith.mulf %222, %241 : vector<4x16xf32>
    %cst_76 = arith.constant dense<0.000000e+00> : vector<16xf32>
    %243 = vector.multi_reduction <add>, %242, %cst_76 [0] : vector<4x16xf32> to vector<16xf32>
    %244 = vector.shape_cast %243 : vector<16xf32> to vector<1x16xf32>
    %245 = tpu.concatenate %221, %244 in 0 : vector<1x16xf32>, vector<1x16xf32> -> vector<2x16xf32>
    %c0_77 = arith.constant 0 : index
    %c0_78 = arith.constant 0 : index
    %246 = vector.load %arg7[%c0_77, %c0_78] : memref<16x5xf32, #tpu.memory_space<vmem>>, vector<16x5xf32>
    %cst_79 = arith.constant dense<0.000000e+00> : vector<2x5xf32>
    %247 = tpu.matmul %245, %246, %cst_79 {dimension_numbers = #tpu.dot_dimension_numbers<[1], [0], [0], [1], [0, 0, 1, 1], [], []>} : vector<2x16xf32>, vector<16x5xf32>, vector<2x5xf32> -> vector<2x5xf32>
    %c0_80 = arith.constant 0 : index
    %c0_81 = arith.constant 0 : index
    %248 = vector.load %arg8[%c0_80, %c0_81] : memref<1x5xf32, #tpu.memory_space<vmem>>, vector<1x5xf32>
    %249 = vector.broadcast %248 : vector<1x5xf32> to vector<2x5xf32>
    %250 = arith.addf %247, %249 : vector<2x5xf32>
    %c0_82 = arith.constant 0 : index
    %c0_83 = arith.constant 0 : index
    %251 = vector.load %arg9[%c0_82, %c0_83] : memref<2x5xf32, #tpu.memory_space<vmem>>, vector<2x5xf32>
    tpu.vector_store %arg9[%c0_82, %c0_83], %250 {strides = array<i32>} : memref<2x5xf32, #tpu.memory_space<vmem>>, vector<2x5xf32>,
    return
  }
}

module attributes {stable_mosaic.version = 11 : i64} {
  func.func @_bilstm_kernel(%arg0: i32, %arg1: memref<8x256xf32, #tpu.memory_space<vmem>>, %arg2: memref<8x32xf32, #tpu.memory_space<vmem>>, %arg3: memref<8x32xf32, #tpu.memory_space<vmem>>, %arg4: memref<8x64xf32, #tpu.memory_space<vmem>>) attributes {dimension_semantics = [#tpu.dimension_semantics<parallel>], iteration_bounds = array<i64: 1>, scalar_prefetch = 0 : i64, scratch_operands = 0 : i64, tpu.core_type = #tpu.core_type<tc>, window_params = [{transform_indices = @transform_0, window_bounds = array<i64: 8, 256>}, {pipeline_mode = #tpu.pipeline_mode<synchronous>, transform_indices = @transform_1, window_bounds = array<i64: 8, 32>}, {pipeline_mode = #tpu.pipeline_mode<synchronous>, transform_indices = @transform_2, window_bounds = array<i64: 8, 32>}, {transform_indices = @transform_3, window_bounds = array<i64: 8, 64>}]} {
    %c0 = arith.constant 0 : index
    %c0_0 = arith.constant 0 : index
    %0 = vector.load %arg1[%c0, %c0_0] : memref<8x256xf32, #tpu.memory_space<vmem>>, vector<8x256xf32>
    %c0_1 = arith.constant 0 : index
    %c0_2 = arith.constant 0 : index
    %1 = vector.load %arg2[%c0_1, %c0_2] : memref<8x32xf32, #tpu.memory_space<vmem>>, vector<8x32xf32>
    %c0_3 = arith.constant 0 : index
    %c0_4 = arith.constant 0 : index
    %2 = vector.load %arg3[%c0_3, %c0_4] : memref<8x32xf32, #tpu.memory_space<vmem>>, vector<8x32xf32>
    %cst = arith.constant 0.000000e+00 : f32
    %3 = vector.broadcast %cst : f32 to vector<8x8xf32>
    %4 = vector.extract_strided_slice %0 {offsets = [0, 0], sizes = [8, 32], strides = [1, 1]} : vector<8x256xf32> to vector<8x32xf32>
    %cst_5 = arith.constant dense<0.000000e+00> : vector<8x32xf32>
    %5 = tpu.matmul %3, %1, %cst_5 {dimension_numbers = #tpu.dot_dimension_numbers<[1], [0], [0], [1], [0, 0, 1, 1], [], []>} : vector<8x8xf32>, vector<8x32xf32>, vector<8x32xf32> -> vector<8x32xf32>
    %6 = arith.addf %4, %5 : vector<8x32xf32>
    %7 = vector.extract_strided_slice %0 {offsets = [0, 224], sizes = [8, 32], strides = [1, 1]} : vector<8x256xf32> to vector<8x32xf32>
    %cst_6 = arith.constant dense<0.000000e+00> : vector<8x32xf32>
    %8 = tpu.matmul %3, %2, %cst_6 {dimension_numbers = #tpu.dot_dimension_numbers<[1], [0], [0], [1], [0, 0, 1, 1], [], []>} : vector<8x8xf32>, vector<8x32xf32>, vector<8x32xf32> -> vector<8x32xf32>
    %9 = arith.addf %7, %8 : vector<8x32xf32>
    %10 = vector.extract_strided_slice %6 {offsets = [0, 0], sizes = [8, 8], strides = [1, 1]} : vector<8x32xf32> to vector<8x8xf32>
    %11 = arith.negf %10 : vector<8x8xf32>
    %12 = math.exp %11 : vector<8x8xf32>
    %cst_7 = arith.constant 1.000000e+00 : f32
    %13 = vector.broadcast %cst_7 : f32 to vector<8x8xf32>
    %14 = arith.addf %13, %12 : vector<8x8xf32>
    %15 = arith.divf %13, %14 : vector<8x8xf32>
    %16 = vector.extract_strided_slice %6 {offsets = [0, 8], sizes = [8, 8], strides = [1, 1]} : vector<8x32xf32> to vector<8x8xf32>
    %17 = arith.negf %16 : vector<8x8xf32>
    %18 = math.exp %17 : vector<8x8xf32>
    %cst_8 = arith.constant 1.000000e+00 : f32
    %19 = vector.broadcast %cst_8 : f32 to vector<8x8xf32>
    %20 = arith.addf %19, %18 : vector<8x8xf32>
    %21 = arith.divf %19, %20 : vector<8x8xf32>
    %22 = vector.extract_strided_slice %6 {offsets = [0, 16], sizes = [8, 8], strides = [1, 1]} : vector<8x32xf32> to vector<8x8xf32>
    %23 = math.tanh %22 : vector<8x8xf32>
    %24 = vector.extract_strided_slice %6 {offsets = [0, 24], sizes = [8, 8], strides = [1, 1]} : vector<8x32xf32> to vector<8x8xf32>
    %25 = arith.negf %24 : vector<8x8xf32>
    %26 = math.exp %25 : vector<8x8xf32>
    %cst_9 = arith.constant 1.000000e+00 : f32
    %27 = vector.broadcast %cst_9 : f32 to vector<8x8xf32>
    %28 = arith.addf %27, %26 : vector<8x8xf32>
    %29 = arith.divf %27, %28 : vector<8x8xf32>
    %30 = arith.mulf %21, %3 : vector<8x8xf32>
    %31 = arith.mulf %15, %23 : vector<8x8xf32>
    %32 = arith.addf %30, %31 : vector<8x8xf32>
    %33 = math.tanh %32 : vector<8x8xf32>
    %34 = arith.mulf %29, %33 : vector<8x8xf32>
    %35 = vector.extract_strided_slice %9 {offsets = [0, 0], sizes = [8, 8], strides = [1, 1]} : vector<8x32xf32> to vector<8x8xf32>
    %36 = arith.negf %35 : vector<8x8xf32>
    %37 = math.exp %36 : vector<8x8xf32>
    %cst_10 = arith.constant 1.000000e+00 : f32
    %38 = vector.broadcast %cst_10 : f32 to vector<8x8xf32>
    %39 = arith.addf %38, %37 : vector<8x8xf32>
    %40 = arith.divf %38, %39 : vector<8x8xf32>
    %41 = vector.extract_strided_slice %9 {offsets = [0, 8], sizes = [8, 8], strides = [1, 1]} : vector<8x32xf32> to vector<8x8xf32>
    %42 = arith.negf %41 : vector<8x8xf32>
    %43 = math.exp %42 : vector<8x8xf32>
    %cst_11 = arith.constant 1.000000e+00 : f32
    %44 = vector.broadcast %cst_11 : f32 to vector<8x8xf32>
    %45 = arith.addf %44, %43 : vector<8x8xf32>
    %46 = arith.divf %44, %45 : vector<8x8xf32>
    %47 = vector.extract_strided_slice %9 {offsets = [0, 16], sizes = [8, 8], strides = [1, 1]} : vector<8x32xf32> to vector<8x8xf32>
    %48 = math.tanh %47 : vector<8x8xf32>
    %49 = vector.extract_strided_slice %9 {offsets = [0, 24], sizes = [8, 8], strides = [1, 1]} : vector<8x32xf32> to vector<8x8xf32>
    %50 = arith.negf %49 : vector<8x8xf32>
    %51 = math.exp %50 : vector<8x8xf32>
    %cst_12 = arith.constant 1.000000e+00 : f32
    %52 = vector.broadcast %cst_12 : f32 to vector<8x8xf32>
    %53 = arith.addf %52, %51 : vector<8x8xf32>
    %54 = arith.divf %52, %53 : vector<8x8xf32>
    %55 = arith.mulf %46, %3 : vector<8x8xf32>
    %56 = arith.mulf %40, %48 : vector<8x8xf32>
    %57 = arith.addf %55, %56 : vector<8x8xf32>
    %58 = math.tanh %57 : vector<8x8xf32>
    %59 = arith.mulf %54, %58 : vector<8x8xf32>
    %c0_13 = arith.constant 0 : index
    %c0_14 = arith.constant 0 : index
    %60 = vector.load %arg4[%c0_13, %c0_14] : memref<8x64xf32, #tpu.memory_space<vmem>>, vector<8x8xf32>
    tpu.vector_store %arg4[%c0_13, %c0_14], %34 {strides = array<i32>} : memref<8x64xf32, #tpu.memory_space<vmem>>, vector<8x8xf32>,
    %c0_15 = arith.constant 0 : index
    %c56 = arith.constant 56 : index
    %61 = vector.load %arg4[%c0_15, %c56] : memref<8x64xf32, #tpu.memory_space<vmem>>, vector<8x8xf32>
    tpu.vector_store %arg4[%c0_15, %c56], %59 {strides = array<i32>} : memref<8x64xf32, #tpu.memory_space<vmem>>, vector<8x8xf32>,
    %62 = vector.extract_strided_slice %0 {offsets = [0, 64], sizes = [8, 32], strides = [1, 1]} : vector<8x256xf32> to vector<8x32xf32>
    %cst_16 = arith.constant dense<0.000000e+00> : vector<8x32xf32>
    %63 = tpu.matmul %34, %1, %cst_16 {dimension_numbers = #tpu.dot_dimension_numbers<[1], [0], [0], [1], [0, 0, 1, 1], [], []>} : vector<8x8xf32>, vector<8x32xf32>, vector<8x32xf32> -> vector<8x32xf32>
    %64 = arith.addf %62, %63 : vector<8x32xf32>
    %65 = vector.extract_strided_slice %0 {offsets = [0, 160], sizes = [8, 32], strides = [1, 1]} : vector<8x256xf32> to vector<8x32xf32>
    %cst_17 = arith.constant dense<0.000000e+00> : vector<8x32xf32>
    %66 = tpu.matmul %59, %2, %cst_17 {dimension_numbers = #tpu.dot_dimension_numbers<[1], [0], [0], [1], [0, 0, 1, 1], [], []>} : vector<8x8xf32>, vector<8x32xf32>, vector<8x32xf32> -> vector<8x32xf32>
    %67 = arith.addf %65, %66 : vector<8x32xf32>
    %68 = vector.extract_strided_slice %64 {offsets = [0, 0], sizes = [8, 8], strides = [1, 1]} : vector<8x32xf32> to vector<8x8xf32>
    %69 = arith.negf %68 : vector<8x8xf32>
    %70 = math.exp %69 : vector<8x8xf32>
    %cst_18 = arith.constant 1.000000e+00 : f32
    %71 = vector.broadcast %cst_18 : f32 to vector<8x8xf32>
    %72 = arith.addf %71, %70 : vector<8x8xf32>
    %73 = arith.divf %71, %72 : vector<8x8xf32>
    %74 = vector.extract_strided_slice %64 {offsets = [0, 8], sizes = [8, 8], strides = [1, 1]} : vector<8x32xf32> to vector<8x8xf32>
    %75 = arith.negf %74 : vector<8x8xf32>
    %76 = math.exp %75 : vector<8x8xf32>
    %cst_19 = arith.constant 1.000000e+00 : f32
    %77 = vector.broadcast %cst_19 : f32 to vector<8x8xf32>
    %78 = arith.addf %77, %76 : vector<8x8xf32>
    %79 = arith.divf %77, %78 : vector<8x8xf32>
    %80 = vector.extract_strided_slice %64 {offsets = [0, 16], sizes = [8, 8], strides = [1, 1]} : vector<8x32xf32> to vector<8x8xf32>
    %81 = math.tanh %80 : vector<8x8xf32>
    %82 = vector.extract_strided_slice %64 {offsets = [0, 24], sizes = [8, 8], strides = [1, 1]} : vector<8x32xf32> to vector<8x8xf32>
    %83 = arith.negf %82 : vector<8x8xf32>
    %84 = math.exp %83 : vector<8x8xf32>
    %cst_20 = arith.constant 1.000000e+00 : f32
    %85 = vector.broadcast %cst_20 : f32 to vector<8x8xf32>
    %86 = arith.addf %85, %84 : vector<8x8xf32>
    %87 = arith.divf %85, %86 : vector<8x8xf32>
    %88 = arith.mulf %79, %32 : vector<8x8xf32>
    %89 = arith.mulf %73, %81 : vector<8x8xf32>
    %90 = arith.addf %88, %89 : vector<8x8xf32>
    %91 = math.tanh %90 : vector<8x8xf32>
    %92 = arith.mulf %87, %91 : vector<8x8xf32>
    %93 = vector.extract_strided_slice %67 {offsets = [0, 0], sizes = [8, 8], strides = [1, 1]} : vector<8x32xf32> to vector<8x8xf32>
    %94 = arith.negf %93 : vector<8x8xf32>
    %95 = math.exp %94 : vector<8x8xf32>
    %cst_21 = arith.constant 1.000000e+00 : f32
    %96 = vector.broadcast %cst_21 : f32 to vector<8x8xf32>
    %97 = arith.addf %96, %95 : vector<8x8xf32>
    %98 = arith.divf %96, %97 : vector<8x8xf32>
    %99 = vector.extract_strided_slice %67 {offsets = [0, 8], sizes = [8, 8], strides = [1, 1]} : vector<8x32xf32> to vector<8x8xf32>
    %100 = arith.negf %99 : vector<8x8xf32>
    %101 = math.exp %100 : vector<8x8xf32>
    %cst_22 = arith.constant 1.000000e+00 : f32
    %102 = vector.broadcast %cst_22 : f32 to vector<8x8xf32>
    %103 = arith.addf %102, %101 : vector<8x8xf32>
    %104 = arith.divf %102, %103 : vector<8x8xf32>
    %105 = vector.extract_strided_slice %67 {offsets = [0, 16], sizes = [8, 8], strides = [1, 1]} : vector<8x32xf32> to vector<8x8xf32>
    %106 = math.tanh %105 : vector<8x8xf32>
    %107 = vector.extract_strided_slice %67 {offsets = [0, 24], sizes = [8, 8], strides = [1, 1]} : vector<8x32xf32> to vector<8x8xf32>
    %108 = arith.negf %107 : vector<8x8xf32>
    %109 = math.exp %108 : vector<8x8xf32>
    %cst_23 = arith.constant 1.000000e+00 : f32
    %110 = vector.broadcast %cst_23 : f32 to vector<8x8xf32>
    %111 = arith.addf %110, %109 : vector<8x8xf32>
    %112 = arith.divf %110, %111 : vector<8x8xf32>
    %113 = arith.mulf %104, %57 : vector<8x8xf32>
    %114 = arith.mulf %98, %106 : vector<8x8xf32>
    %115 = arith.addf %113, %114 : vector<8x8xf32>
    %116 = math.tanh %115 : vector<8x8xf32>
    %117 = arith.mulf %112, %116 : vector<8x8xf32>
    %c0_24 = arith.constant 0 : index
    %c16 = arith.constant 16 : index
    %118 = vector.load %arg4[%c0_24, %c16] : memref<8x64xf32, #tpu.memory_space<vmem>>, vector<8x8xf32>
    tpu.vector_store %arg4[%c0_24, %c16], %92 {strides = array<i32>} : memref<8x64xf32, #tpu.memory_space<vmem>>, vector<8x8xf32>,
    %c0_25 = arith.constant 0 : index
    %c40 = arith.constant 40 : index
    %119 = vector.load %arg4[%c0_25, %c40] : memref<8x64xf32, #tpu.memory_space<vmem>>, vector<8x8xf32>
    tpu.vector_store %arg4[%c0_25, %c40], %117 {strides = array<i32>} : memref<8x64xf32, #tpu.memory_space<vmem>>, vector<8x8xf32>,
    %120 = vector.extract_strided_slice %0 {offsets = [0, 128], sizes = [8, 32], strides = [1, 1]} : vector<8x256xf32> to vector<8x32xf32>
    %cst_26 = arith.constant dense<0.000000e+00> : vector<8x32xf32>
    %121 = tpu.matmul %92, %1, %cst_26 {dimension_numbers = #tpu.dot_dimension_numbers<[1], [0], [0], [1], [0, 0, 1, 1], [], []>} : vector<8x8xf32>, vector<8x32xf32>, vector<8x32xf32> -> vector<8x32xf32>
    %122 = arith.addf %120, %121 : vector<8x32xf32>
    %123 = vector.extract_strided_slice %0 {offsets = [0, 96], sizes = [8, 32], strides = [1, 1]} : vector<8x256xf32> to vector<8x32xf32>
    %cst_27 = arith.constant dense<0.000000e+00> : vector<8x32xf32>
    %124 = tpu.matmul %117, %2, %cst_27 {dimension_numbers = #tpu.dot_dimension_numbers<[1], [0], [0], [1], [0, 0, 1, 1], [], []>} : vector<8x8xf32>, vector<8x32xf32>, vector<8x32xf32> -> vector<8x32xf32>
    %125 = arith.addf %123, %124 : vector<8x32xf32>
    %126 = vector.extract_strided_slice %122 {offsets = [0, 0], sizes = [8, 8], strides = [1, 1]} : vector<8x32xf32> to vector<8x8xf32>
    %127 = arith.negf %126 : vector<8x8xf32>
    %128 = math.exp %127 : vector<8x8xf32>
    %cst_28 = arith.constant 1.000000e+00 : f32
    %129 = vector.broadcast %cst_28 : f32 to vector<8x8xf32>
    %130 = arith.addf %129, %128 : vector<8x8xf32>
    %131 = arith.divf %129, %130 : vector<8x8xf32>
    %132 = vector.extract_strided_slice %122 {offsets = [0, 8], sizes = [8, 8], strides = [1, 1]} : vector<8x32xf32> to vector<8x8xf32>
    %133 = arith.negf %132 : vector<8x8xf32>
    %134 = math.exp %133 : vector<8x8xf32>
    %cst_29 = arith.constant 1.000000e+00 : f32
    %135 = vector.broadcast %cst_29 : f32 to vector<8x8xf32>
    %136 = arith.addf %135, %134 : vector<8x8xf32>
    %137 = arith.divf %135, %136 : vector<8x8xf32>
    %138 = vector.extract_strided_slice %122 {offsets = [0, 16], sizes = [8, 8], strides = [1, 1]} : vector<8x32xf32> to vector<8x8xf32>
    %139 = math.tanh %138 : vector<8x8xf32>
    %140 = vector.extract_strided_slice %122 {offsets = [0, 24], sizes = [8, 8], strides = [1, 1]} : vector<8x32xf32> to vector<8x8xf32>
    %141 = arith.negf %140 : vector<8x8xf32>
    %142 = math.exp %141 : vector<8x8xf32>
    %cst_30 = arith.constant 1.000000e+00 : f32
    %143 = vector.broadcast %cst_30 : f32 to vector<8x8xf32>
    %144 = arith.addf %143, %142 : vector<8x8xf32>
    %145 = arith.divf %143, %144 : vector<8x8xf32>
    %146 = arith.mulf %137, %90 : vector<8x8xf32>
    %147 = arith.mulf %131, %139 : vector<8x8xf32>
    %148 = arith.addf %146, %147 : vector<8x8xf32>
    %149 = math.tanh %148 : vector<8x8xf32>
    %150 = arith.mulf %145, %149 : vector<8x8xf32>
    %151 = vector.extract_strided_slice %125 {offsets = [0, 0], sizes = [8, 8], strides = [1, 1]} : vector<8x32xf32> to vector<8x8xf32>
    %152 = arith.negf %151 : vector<8x8xf32>
    %153 = math.exp %152 : vector<8x8xf32>
    %cst_31 = arith.constant 1.000000e+00 : f32
    %154 = vector.broadcast %cst_31 : f32 to vector<8x8xf32>
    %155 = arith.addf %154, %153 : vector<8x8xf32>
    %156 = arith.divf %154, %155 : vector<8x8xf32>
    %157 = vector.extract_strided_slice %125 {offsets = [0, 8], sizes = [8, 8], strides = [1, 1]} : vector<8x32xf32> to vector<8x8xf32>
    %158 = arith.negf %157 : vector<8x8xf32>
    %159 = math.exp %158 : vector<8x8xf32>
    %cst_32 = arith.constant 1.000000e+00 : f32
    %160 = vector.broadcast %cst_32 : f32 to vector<8x8xf32>
    %161 = arith.addf %160, %159 : vector<8x8xf32>
    %162 = arith.divf %160, %161 : vector<8x8xf32>
    %163 = vector.extract_strided_slice %125 {offsets = [0, 16], sizes = [8, 8], strides = [1, 1]} : vector<8x32xf32> to vector<8x8xf32>
    %164 = math.tanh %163 : vector<8x8xf32>
    %165 = vector.extract_strided_slice %125 {offsets = [0, 24], sizes = [8, 8], strides = [1, 1]} : vector<8x32xf32> to vector<8x8xf32>
    %166 = arith.negf %165 : vector<8x8xf32>
    %167 = math.exp %166 : vector<8x8xf32>
    %cst_33 = arith.constant 1.000000e+00 : f32
    %168 = vector.broadcast %cst_33 : f32 to vector<8x8xf32>
    %169 = arith.addf %168, %167 : vector<8x8xf32>
    %170 = arith.divf %168, %169 : vector<8x8xf32>
    %171 = arith.mulf %162, %115 : vector<8x8xf32>
    %172 = arith.mulf %156, %164 : vector<8x8xf32>
    %173 = arith.addf %171, %172 : vector<8x8xf32>
    %174 = math.tanh %173 : vector<8x8xf32>
    %175 = arith.mulf %170, %174 : vector<8x8xf32>
    %c0_34 = arith.constant 0 : index
    %c32 = arith.constant 32 : index
    %176 = vector.load %arg4[%c0_34, %c32] : memref<8x64xf32, #tpu.memory_space<vmem>>, vector<8x8xf32>
    tpu.vector_store %arg4[%c0_34, %c32], %150 {strides = array<i32>} : memref<8x64xf32, #tpu.memory_space<vmem>>, vector<8x8xf32>,
    %c0_35 = arith.constant 0 : index
    %c24 = arith.constant 24 : index
    %177 = vector.load %arg4[%c0_35, %c24] : memref<8x64xf32, #tpu.memory_space<vmem>>, vector<8x8xf32>
    tpu.vector_store %arg4[%c0_35, %c24], %175 {strides = array<i32>} : memref<8x64xf32, #tpu.memory_space<vmem>>, vector<8x8xf32>,
    %178 = vector.extract_strided_slice %0 {offsets = [0, 192], sizes = [8, 32], strides = [1, 1]} : vector<8x256xf32> to vector<8x32xf32>
    %cst_36 = arith.constant dense<0.000000e+00> : vector<8x32xf32>
    %179 = tpu.matmul %150, %1, %cst_36 {dimension_numbers = #tpu.dot_dimension_numbers<[1], [0], [0], [1], [0, 0, 1, 1], [], []>} : vector<8x8xf32>, vector<8x32xf32>, vector<8x32xf32> -> vector<8x32xf32>
    %180 = arith.addf %178, %179 : vector<8x32xf32>
    %181 = vector.extract_strided_slice %0 {offsets = [0, 32], sizes = [8, 32], strides = [1, 1]} : vector<8x256xf32> to vector<8x32xf32>
    %cst_37 = arith.constant dense<0.000000e+00> : vector<8x32xf32>
    %182 = tpu.matmul %175, %2, %cst_37 {dimension_numbers = #tpu.dot_dimension_numbers<[1], [0], [0], [1], [0, 0, 1, 1], [], []>} : vector<8x8xf32>, vector<8x32xf32>, vector<8x32xf32> -> vector<8x32xf32>
    %183 = arith.addf %181, %182 : vector<8x32xf32>
    %184 = vector.extract_strided_slice %180 {offsets = [0, 0], sizes = [8, 8], strides = [1, 1]} : vector<8x32xf32> to vector<8x8xf32>
    %185 = arith.negf %184 : vector<8x8xf32>
    %186 = math.exp %185 : vector<8x8xf32>
    %cst_38 = arith.constant 1.000000e+00 : f32
    %187 = vector.broadcast %cst_38 : f32 to vector<8x8xf32>
    %188 = arith.addf %187, %186 : vector<8x8xf32>
    %189 = arith.divf %187, %188 : vector<8x8xf32>
    %190 = vector.extract_strided_slice %180 {offsets = [0, 8], sizes = [8, 8], strides = [1, 1]} : vector<8x32xf32> to vector<8x8xf32>
    %191 = arith.negf %190 : vector<8x8xf32>
    %192 = math.exp %191 : vector<8x8xf32>
    %cst_39 = arith.constant 1.000000e+00 : f32
    %193 = vector.broadcast %cst_39 : f32 to vector<8x8xf32>
    %194 = arith.addf %193, %192 : vector<8x8xf32>
    %195 = arith.divf %193, %194 : vector<8x8xf32>
    %196 = vector.extract_strided_slice %180 {offsets = [0, 16], sizes = [8, 8], strides = [1, 1]} : vector<8x32xf32> to vector<8x8xf32>
    %197 = math.tanh %196 : vector<8x8xf32>
    %198 = vector.extract_strided_slice %180 {offsets = [0, 24], sizes = [8, 8], strides = [1, 1]} : vector<8x32xf32> to vector<8x8xf32>
    %199 = arith.negf %198 : vector<8x8xf32>
    %200 = math.exp %199 : vector<8x8xf32>
    %cst_40 = arith.constant 1.000000e+00 : f32
    %201 = vector.broadcast %cst_40 : f32 to vector<8x8xf32>
    %202 = arith.addf %201, %200 : vector<8x8xf32>
    %203 = arith.divf %201, %202 : vector<8x8xf32>
    %204 = arith.mulf %195, %148 : vector<8x8xf32>
    %205 = arith.mulf %189, %197 : vector<8x8xf32>
    %206 = arith.addf %204, %205 : vector<8x8xf32>
    %207 = math.tanh %206 : vector<8x8xf32>
    %208 = arith.mulf %203, %207 : vector<8x8xf32>
    %209 = vector.extract_strided_slice %183 {offsets = [0, 0], sizes = [8, 8], strides = [1, 1]} : vector<8x32xf32> to vector<8x8xf32>
    %210 = arith.negf %209 : vector<8x8xf32>
    %211 = math.exp %210 : vector<8x8xf32>
    %cst_41 = arith.constant 1.000000e+00 : f32
    %212 = vector.broadcast %cst_41 : f32 to vector<8x8xf32>
    %213 = arith.addf %212, %211 : vector<8x8xf32>
    %214 = arith.divf %212, %213 : vector<8x8xf32>
    %215 = vector.extract_strided_slice %183 {offsets = [0, 8], sizes = [8, 8], strides = [1, 1]} : vector<8x32xf32> to vector<8x8xf32>
    %216 = arith.negf %215 : vector<8x8xf32>
    %217 = math.exp %216 : vector<8x8xf32>
    %cst_42 = arith.constant 1.000000e+00 : f32
    %218 = vector.broadcast %cst_42 : f32 to vector<8x8xf32>
    %219 = arith.addf %218, %217 : vector<8x8xf32>
    %220 = arith.divf %218, %219 : vector<8x8xf32>
    %221 = vector.extract_strided_slice %183 {offsets = [0, 16], sizes = [8, 8], strides = [1, 1]} : vector<8x32xf32> to vector<8x8xf32>
    %222 = math.tanh %221 : vector<8x8xf32>
    %223 = vector.extract_strided_slice %183 {offsets = [0, 24], sizes = [8, 8], strides = [1, 1]} : vector<8x32xf32> to vector<8x8xf32>
    %224 = arith.negf %223 : vector<8x8xf32>
    %225 = math.exp %224 : vector<8x8xf32>
    %cst_43 = arith.constant 1.000000e+00 : f32
    %226 = vector.broadcast %cst_43 : f32 to vector<8x8xf32>
    %227 = arith.addf %226, %225 : vector<8x8xf32>
    %228 = arith.divf %226, %227 : vector<8x8xf32>
    %229 = arith.mulf %220, %173 : vector<8x8xf32>
    %230 = arith.mulf %214, %222 : vector<8x8xf32>
    %231 = arith.addf %229, %230 : vector<8x8xf32>
    %232 = math.tanh %231 : vector<8x8xf32>
    %233 = arith.mulf %228, %232 : vector<8x8xf32>
    %c0_44 = arith.constant 0 : index
    %c48 = arith.constant 48 : index
    %234 = vector.load %arg4[%c0_44, %c48] : memref<8x64xf32, #tpu.memory_space<vmem>>, vector<8x8xf32>
    tpu.vector_store %arg4[%c0_44, %c48], %208 {strides = array<i32>} : memref<8x64xf32, #tpu.memory_space<vmem>>, vector<8x8xf32>,
    %c0_45 = arith.constant 0 : index
    %c8 = arith.constant 8 : index
    %235 = vector.load %arg4[%c0_45, %c8] : memref<8x64xf32, #tpu.memory_space<vmem>>, vector<8x8xf32>
    tpu.vector_store %arg4[%c0_45, %c8], %233 {strides = array<i32>} : memref<8x64xf32, #tpu.memory_space<vmem>>, vector<8x8xf32>,
    return
  }
  func.func @transform_0(%arg0: i32) -> (i32, i32) {
    %c0_i32 = arith.constant 0 : i32
    %c0_i32_0 = arith.constant 0 : i32
    return %arg0, %c0_i32 : i32, i32
  }
  func.func @transform_1(%arg0: i32) -> (i32, i32) {
    %c0_i32 = arith.constant 0 : i32
    %c0_i32_0 = arith.constant 0 : i32
    %c0_i32_1 = arith.constant 0 : i32
    return %c0_i32, %c0_i32_0 : i32, i32
  }
  func.func @transform_2(%arg0: i32) -> (i32, i32) {
    %c0_i32 = arith.constant 0 : i32
    %c0_i32_0 = arith.constant 0 : i32
    %c0_i32_1 = arith.constant 0 : i32
    return %c0_i32, %c0_i32_0 : i32, i32
  }
  func.func @transform_3(%arg0: i32) -> (i32, i32) {
    %c0_i32 = arith.constant 0 : i32
    %c0_i32_0 = arith.constant 0 : i32
    return %arg0, %c0_i32 : i32, i32
  }
}

</mosaic_0001>

<llo_original>
// kernel: _lambda_.7
$region0: #{_lambda_.7}
  #allocation0 [shape = 'u32[]', space=smem, size = 0x4, offset = 0x4, fixed_abs, tag = 'smem constant byte address 0x4 - core index']
  #allocation1 [shape = 'u32[144,128]{1,0:T(1,128)}', space=vmem, size = 0x12000, scoped, tag = 'internal scratch']
  %s0 = inlined_call_operand.vmem [shape: f32[32,22,1], index: 0, kind: input, shape index: {}]
  %s1 = inlined_call_operand.vmem [shape: bf16[8,128], index: 1, kind: input, shape index: {}]
  %s2 = inlined_call_operand.vmem [shape: f32[1,128], index: 2, kind: input, shape index: {}]
  %s3 = inlined_call_operand.vmem [shape: bf16[32,15,128], index: 3, kind: output, shape index: {}]
  %s4 = sld [smem:[#allocation0]]
  $region45: #{_lambda_.7} parent=0
    _
  %s6 = ssub.s32 1, %s4
  %s7 = scalar_select 0, %s6, %s4
  loop: start=0, step=1, limit=34
  $region2: #{_lambda_.7} parent=0 // loop_pre_header
    _
  $region3: #{_lambda_.7} parent=0 // loop_header
    %s9 = sphi 0, %s13
    %p10 = scmp.ge.s32.totalorder %s9, 34
    %s19 = sphi 0, %s21
    %s22 = sphi 0, %s19
    %s23 = sphi 0, %s22
    %s39 = sphi 0, %s23
    %s43 = sphi 0, %s43
    %s45 = sphi 0, %s43
    %s46 = sphi 0, %s45
    %s60 = sphi 0, %s46
    %s64 = sphi 0, %s64
    %s66 = sphi 0, %s64
    %s67 = sphi 0, %s66
    %s81 = sphi 0, %s67
    %s87 = sphi 0, %s89
    %s90 = sphi 0, %s87
    %s91 = sphi 0, %s90
    %s107 = sphi 0, %s91
  $region4: #{_lambda_.7} parent=0 // loop_header_branch
    %12 = sbr.rel (%p10) target = $region8
  $region5: #{_lambda_.7} parent=0 // loop_body
    %s14 = ssub.s32 %s9, 1
    %s15 = ssub.s32 %s9, 2
    %s16 = sadd.s32 %s9, 1
    %s17 = ssub.s32 %s9, %s16
    %p18 = scmp.eq.s32.totalorder %s17, 0
    %s20 = sadd.s32 %s19, 1
    %s21 = scalar_select %p18, %s19, %s20
    %p24 = pneg %p18
    %p25 = scmp.eq.s32.totalorder %s9, 31
    %p26 = por %p24, %p25
    %p27 = scmp.ne.s32.totalorder %s19, %s22
    %p28 = scmp.eq.s32.totalorder %s9, 0
    %p29 = por %p27, %p28
    %p30 = scmp.ne.s32.totalorder %s19, %s22
    %p31 = scmp.eq.s32.totalorder %s14, 31
    %p32 = por %p30, %p31
    %p33 = scmp.ne.s32.totalorder %s22, %s23
    %p34 = scmp.eq.s32.totalorder %s14, 0
    %p35 = por %p33, %p34
    %p36 = scmp.ne.s32.totalorder %s22, %s23
    %p37 = scmp.eq.s32.totalorder %s15, 31
    %p38 = por %p36, %p37
    %p40 = scmp.ne.s32.totalorder %s23, %s39
    %p41 = scmp.eq.s32.totalorder %s15, 0
    %p42 = por %p40, %p41
    %s44 = sadd.s32 %s43, 1
    %p47 = scmp.eq.s32.totalorder %s9, 31
    %p48 = scmp.ne.s32.totalorder %s43, %s45
    %p49 = scmp.eq.s32.totalorder %s9, 0
    %p50 = por %p48, %p49
    %p51 = scmp.ne.s32.totalorder %s43, %s45
    %p52 = scmp.eq.s32.totalorder %s14, 31
    %p53 = por %p51, %p52
    %p54 = scmp.ne.s32.totalorder %s45, %s46
    %p55 = scmp.eq.s32.totalorder %s14, 0
    %p56 = por %p54, %p55
    %p57 = scmp.ne.s32.totalorder %s45, %s46
    %p58 = scmp.eq.s32.totalorder %s15, 31
    %p59 = por %p57, %p58
    %p61 = scmp.ne.s32.totalorder %s46, %s60
    %p62 = scmp.eq.s32.totalorder %s15, 0
    %p63 = por %p61, %p62
    %s65 = sadd.s32 %s64, 1
    %p68 = scmp.eq.s32.totalorder %s9, 31
    %p69 = scmp.ne.s32.totalorder %s64, %s66
    %p70 = scmp.eq.s32.totalorder %s9, 0
    %p71 = por %p69, %p70
    %p72 = scmp.ne.s32.totalorder %s64, %s66
    %p73 = scmp.eq.s32.totalorder %s14, 31
    %p74 = por %p72, %p73
    %p75 = scmp.ne.s32.totalorder %s66, %s67
    %p76 = scmp.eq.s32.totalorder %s14, 0
    %p77 = por %p75, %p76
    %p78 = scmp.ne.s32.totalorder %s66, %s67
    %p79 = scmp.eq.s32.totalorder %s15, 31
    %p80 = por %p78, %p79
    %p82 = scmp.ne.s32.totalorder %s67, %s81
    %p83 = scmp.eq.s32.totalorder %s15, 0
    %p84 = por %p82, %p83
    %s85 = ssub.s32 %s9, %s16
    %p86 = scmp.eq.s32.totalorder %s85, 0
    %s88 = sadd.s32 %s87, 1
    %s89 = scalar_select %p86, %s87, %s88
    %p92 = pneg %p86
    %p93 = scmp.eq.s32.totalorder %s9, 31
    %p94 = por %p92, %p93
    %p95 = scmp.ne.s32.totalorder %s87, %s90
    %p96 = scmp.eq.s32.totalorder %s9, 0
    %p97 = por %p95, %p96
    %p98 = scmp.ne.s32.totalorder %s87, %s90
    %p99 = scmp.eq.s32.totalorder %s14, 31
    %p100 = por %p98, %p99
    %p101 = scmp.ne.s32.totalorder %s90, %s91
    %p102 = scmp.eq.s32.totalorder %s14, 0
    %p103 = por %p101, %p102
    %p104 = scmp.ne.s32.totalorder %s90, %s91
    %p105 = scmp.eq.s32.totalorder %s15, 31
    %p106 = por %p104, %p105
    %p108 = scmp.ne.s32.totalorder %s91, %s107
    %p109 = scmp.eq.s32.totalorder %s15, 0
    %p110 = por %p108, %p109
    %p111 = scmp.le.s32.totalorder 1, %s9
    %p112 = scmp.lt.s32.totalorder %s9, 33
    %p113 = pnand %p111, %p112
    %p114 = pneg %p113
    // Predicated region
    $region9: #{_lambda_.7} parent=5 // pred_check
      _
    $region10: #{_lambda_.7} parent=5 // pred_check_branch
      %116 = sbr.rel (%p113) target = $region12
    $region11: #{_lambda_.7} parent=5 // pred_region
      %s117 = ssub.s32 %s9, 1
      // Predicated region
      $region13: #{_lambda_.7} parent=11 // pred_check
        %p118 = pneg %p56
      $region14: #{_lambda_.7} parent=11 // pred_check_branch
        %120 = sbr.rel (%p118) target = $region16
      $region15: #{_lambda_.7} parent=11 // pred_region
        _
      $region16: #{_lambda_.7} parent=11 // pred_fallthru
        _
      // Predicated region
      $region17: #{_lambda_.7} parent=11 // pred_check
        %p121 = pneg %p77
      $region18: #{_lambda_.7} parent=11 // pred_check_branch
        %123 = sbr.rel (%p121) target = $region20
      $region19: #{_lambda_.7} parent=11 // pred_region
        _
      $region20: #{_lambda_.7} parent=11 // pred_fallthru
        _
    $region12: #{_lambda_.7} parent=5 // pred_fallthru
      _
    %p124 = scmp.lt.s32.totalorder %s9, 32
    // Predicated region
    $region21: #{_lambda_.7} parent=5 // pred_check
      %p125 = pneg %p124
    $region22: #{_lambda_.7} parent=5 // pred_check_branch
      %127 = sbr.rel (%p125) target = $region24
    $region23: #{_lambda_.7} parent=5 // pred_region
      // Predicated region
      $region25: #{_lambda_.7} parent=23 // pred_check
        %p128 = pneg %p29
      $region26: #{_lambda_.7} parent=23 // pred_check_branch
        %130 = sbr.rel (%p128) target = $region28
      $region27: #{_lambda_.7} parent=23 // pred_region
        %p131 = scmp.lt.s32.totalorder %s9, 31
        %s132 = scalar_select %p131, %s9, 31
        %s133 = smul.addr %s132, 3
        %s134 = smul.addr %s133, 8
        %s135 = scalar_lea.vmem %s0, %s134
      $region28: #{_lambda_.7} parent=23 // pred_fallthru
        _
    $region24: #{_lambda_.7} parent=5 // pred_fallthru
      _
    %p136 = scmp.le.s32.totalorder 1, %s9
    %p137 = scmp.lt.s32.totalorder %s9, 33
    %p138 = pnand %p136, %p137
    %p139 = pneg %p138
    // Predicated region
    $region29: #{_lambda_.7} parent=5 // pred_check
      _
    $region30: #{_lambda_.7} parent=5 // pred_check_branch
      %141 = sbr.rel (%p138) target = $region32
    $region31: #{_lambda_.7} parent=5 // pred_region
      %s142 = ssub.s32 %s9, 1
      %p143 = scmp.lt.s32.totalorder %s14, 31
      %s144 = scalar_select %p143, %s14, 31
      %s145 = smul.addr %s144, 3
      %s146 = smul.addr %s145, 8
      %s147 = scalar_lea.vmem %s0, %s146
      %p148 = pneg %p35
      %p149 = pneg %p32
      %p150 = pneg %p56
      %p151 = pneg %p53
      %p152 = pneg %p77
      %p153 = pneg %p74
      %p154 = pneg %p103
      %p155 = pneg %p100
      %p156 = scmp.lt.s32.totalorder %s14, 31
      %s157 = scalar_select %p156, %s14, 31
      %s158 = smul.addr %s157, 2
      %s159 = smul.addr %s158, 4
      %s160 = scalar_lea.vmem %s3, %s159
      %p161 = scmp.lt.s32.totalorder %s14, 31
      %s162 = scalar_select %p161, %s14, 31
      %s163 = smul.addr %s162, 3
      %s164 = smul.addr %s163, 8
      %s165 = scalar_lea.vmem %s0, %s164
      %p166 = scmp.lt.s32.totalorder %s14, 31
      %s167 = scalar_select %p166, %s14, 31
      %s168 = smul.addr %s167, 2
      %s169 = smul.addr %s168, 4
      %s170 = scalar_lea.vmem %s3, %s169
      %v171 = vld [vmem:[%s165] sm:$0xff]
      %v172 = vld [vmem:[%s165 + $0x8] sm:$0xff]
      %v173 = vld [vmem:[%s165 + $0x10] sm:$0x3f]
      %v174 = vld [vmem:[%s1] sm:$0xf]
      %v175 = vunpack.c.l.bf16 %v174
      %177 = vset.pattern.permute.xlu0 0
      %178 = vperm.xlu0 %177, %v171
      %v179 = vpop.permute.xlu0 %178
      %182 = vset.pattern.permute.xlu0 0
      %183 = vperm.xlu0 %182, %v172
      %v184 = vpop.permute.xlu0 %183
      %v186 = vlaneseq
      %v187 = vshrl.u32 %v186, 7
      %v188 = vsub.s32 0, %v187
      %v189 = vrot.slane %v175, %v188
      %v190 = vmul.f32 %v179, %v189
      %v191 = vmul.f32 %v184, %v189
      %v192 = vadd.f32 %v190, 0.0
      %v193 = vadd.f32 %v191, 0.0
      %v194 = vlaneseq
      %v195 = vshrl.u32 %v194, 7
      %v196 = vsub.s32 1, %v195
      %v197 = vrot.slane %v175, %v196
      %v198 = vmul.f32 %v179, %v197
      %v199 = vmul.f32 %v184, %v197
      %vm202 = vcmask 1046528
      %v203 = vrot.slane %v198, 1
      %v204 = vrot.slane %v199, 1
      %v205 = vsel %vm202, %v203, %v204
      %v208 = vadd.f32 %v192, %v205
      %v209 = vadd.f32 %v193, %v204
      %211 = vset.pattern.permute.xlu0 0
      %212 = vperm.xlu0 %211, %v173
      %v213 = vpop.permute.xlu0 %212
      %v215 = vlaneseq
      %v216 = vshrl.u32 %v215, 7
      %v217 = vsub.s32 2, %v216
      %v218 = vrot.slane %v175, %v217
      %v219 = vmul.f32 %v179, %v218
      %v220 = vmul.f32 %v184, %v218
      %v221 = vmul.f32 %v213, %v218
      %vm225 = vcmask 1045504
      %v226 = vrot.slane %v219, 2
      %v227 = vrot.slane %v220, 2
      %v228 = vsel %vm225, %v226, %v227
      %v229 = vrot.slane %v221, 2
      %v230 = vsel %vm225, %v227, %v229
      %v233 = vadd.f32 %v208, %v228
      %v234 = vadd.f32 %v209, %v230
      %v235 = vlaneseq
      %v236 = vshrl.u32 %v235, 7
      %v237 = vsub.s32 3, %v236
      %v238 = vrot.slane %v175, %v237
      %v239 = vmul.f32 %v179, %v238
      %v240 = vmul.f32 %v184, %v238
      %v241 = vmul.f32 %v213, %v238
      %vm245 = vcmask 1044480
      %v246 = vrot.slane %v239, 3
      %v247 = vrot.slane %v240, 3
      %v248 = vsel %vm245, %v246, %v247
      %v249 = vrot.slane %v241, 3
      %v250 = vsel %vm245, %v247, %v249
      %v253 = vadd.f32 %v233, %v248
      %v254 = vadd.f32 %v234, %v250
      %v255 = vlaneseq
      %v256 = vshrl.u32 %v255, 7
      %v257 = vsub.s32 4, %v256
      %v258 = vrot.slane %v175, %v257
      %v259 = vmul.f32 %v179, %v258
      %v260 = vmul.f32 %v184, %v258
      %v261 = vmul.f32 %v213, %v258
      %vm265 = vcmask 1043456
      %v266 = vrot.slane %v259, 4
      %v267 = vrot.slane %v260, 4
      %v268 = vsel %vm265, %v266, %v267
      %v269 = vrot.slane %v261, 4
      %v270 = vsel %vm265, %v267, %v269
      %v273 = vadd.f32 %v253, %v268
      %v274 = vadd.f32 %v254, %v270
      %v275 = vlaneseq
      %v276 = vshrl.u32 %v275, 7
      %v277 = vsub.s32 5, %v276
      %v278 = vrot.slane %v175, %v277
      %v279 = vmul.f32 %v179, %v278
      %v280 = vmul.f32 %v184, %v278
      %v281 = vmul.f32 %v213, %v278
      %vm285 = vcmask 1042432
      %v286 = vrot.slane %v279, 5
      %v287 = vrot.slane %v280, 5
      %v288 = vsel %vm285, %v286, %v287
      %v289 = vrot.slane %v281, 5
      %v290 = vsel %vm285, %v287, %v289
      %v293 = vadd.f32 %v273, %v288
      %v294 = vadd.f32 %v274, %v290
      %v295 = vlaneseq
      %v296 = vshrl.u32 %v295, 7
      %v297 = vsub.s32 6, %v296
      %v298 = vrot.slane %v175, %v297
      %v299 = vmul.f32 %v179, %v298
      %v300 = vmul.f32 %v184, %v298
      %v301 = vmul.f32 %v213, %v298
      %vm305 = vcmask 1041408
      %v306 = vrot.slane %v299, 6
      %v307 = vrot.slane %v300, 6
      %v308 = vsel %vm305, %v306, %v307
      %v309 = vrot.slane %v301, 6
      %v310 = vsel %vm305, %v307, %v309
      %v313 = vadd.f32 %v293, %v308
      %v314 = vadd.f32 %v294, %v310
      %v315 = vlaneseq
      %v316 = vshrl.u32 %v315, 7
      %v317 = vsub.s32 7, %v316
      %v318 = vrot.slane %v175, %v317
      %v319 = vmul.f32 %v179, %v318
      %v320 = vmul.f32 %v184, %v318
      %v321 = vmul.f32 %v213, %v318
      %vm325 = vcmask 1040384
      %v326 = vrot.slane %v319, 7
      %v327 = vrot.slane %v320, 7
      %v328 = vsel %vm325, %v326, %v327
      %v329 = vrot.slane %v321, 7
      %v330 = vsel %vm325, %v327, %v329
      %v333 = vadd.f32 %v313, %v328
      %v334 = vadd.f32 %v314, %v330
      %v335 = vld [vmem:[%s2] sm:$0x1]
      %v337 = vlaneseq
      %v338 = vshrl.u32 %v337, 7
      %v339 = vsub.s32 0, %v338
      %v340 = vrot.slane %v335, %v339
      %v342 = vadd.f32 %v333, %v340
      %v343 = vadd.f32 %v334, %v340
      %v344 = vmax.f32 %v342, 0.0
      %v345 = vmax.f32 %v343, 0.0
      %v346 = vpack.c.bf16 %v345, %v344
      %v348 = vunpack.c.l.b16 %v346
      %v349 = vunpack.c.h.b16 %v346
      %v350 = vpack.c.b16 %v348, %v348
      %v351 = vpack.c.b16 %v349, %v349
      %354 = vst [vmem:[%s170] sm:$0xf] %v350
      %vm355 = vcmask 1043456
      %vm356 = vsmask.f32 3328
      %vm357 = vmand %vm355, %vm356
      %v358 = vld [vmem:[%s170 + $0x4] sm:$0xf]
      %v359 = vsel %vm357, %v351, %v358
      %360 = vst [vmem:[%s170 + $0x4] sm:$0xf] %v359
      %p361 = scmp.lt.s32.totalorder %s14, 31
      %s362 = scalar_select %p361, %s14, 31
      %s363 = smul.addr %s362, 2
      %s364 = smul.addr %s363, 4
      %s365 = scalar_lea.vmem %s3, %s364
      // Predicated region
      $region33: #{_lambda_.7} parent=31 // pred_check
        %p366 = pneg %p100
      $region34: #{_lambda_.7} parent=31 // pred_check_branch
        %368 = sbr.rel (%p366) target = $region36
      $region35: #{_lambda_.7} parent=31 // pred_region
        _
      $region36: #{_lambda_.7} parent=31 // pred_fallthru
        _
    $region32: #{_lambda_.7} parent=5 // pred_fallthru
      _
    %p369 = scmp.le.s32.totalorder 2, %s9
    // Predicated region
    $region37: #{_lambda_.7} parent=5 // pred_check
      %p370 = pneg %p369
    $region38: #{_lambda_.7} parent=5 // pred_check_branch
      %372 = sbr.rel (%p370) target = $region40
    $region39: #{_lambda_.7} parent=5 // pred_region
      %s373 = ssub.s32 %s9, 2
      // Predicated region
      $region41: #{_lambda_.7} parent=39 // pred_check
        %p374 = pneg %p106
      $region42: #{_lambda_.7} parent=39 // pred_check_branch
        %376 = sbr.rel (%p374) target = $region44
      $region43: #{_lambda_.7} parent=39 // pred_region
        %p377 = scmp.lt.s32.totalorder %s15, 31
        %s378 = scalar_select %p377, %s15, 31
        %s379 = smul.addr %s378, 2
        %s380 = smul.addr %s379, 4
        %s381 = scalar_lea.vmem %s3, %s380
      $region44: #{_lambda_.7} parent=39 // pred_fallthru
        _
    $region40: #{_lambda_.7} parent=5 // pred_fallthru
      _
  $region6: #{_lambda_.7} parent=0 // loop_footer
    %s13 = sadd.s32 1, %s9
  $region7: #{_lambda_.7} parent=0 // loop_footer_branch
    %8 = sbr.rel target = $region3
  $region8: #{_lambda_.7} parent=0 // loop_exit
    _

// kernel: _lambda_.11
$region0: #{_lambda_.11}
  #allocation0 [shape = 'u32[]', space=smem, size = 0x4, offset = 0x4, fixed_abs, tag = 'smem constant byte address 0x4 - core index']
  #allocation1 [shape = 'u32[144,128]{1,0:T(1,128)}', space=vmem, size = 0x12000, scoped, tag = 'internal scratch']
  %s0 = inlined_call_operand.vmem [shape: bf16[32,128], index: 0, kind: input, shape index: {}]
  %s1 = inlined_call_operand.vmem [shape: bf16[128,64], index: 1, kind: input, shape index: {}]
  %s2 = inlined_call_operand.vmem [shape: f32[1,64], index: 2, kind: input, shape index: {}]
  %s3 = inlined_call_operand.vmem [shape: f32[32,64], index: 3, kind: output, shape index: {}]
  %s4 = sld [smem:[#allocation0]]
  $region45: #{_lambda_.11} parent=0
    _
  %s6 = ssub.s32 1, %s4
  %s7 = scalar_select 0, %s6, %s4
  loop: start=0, step=1, limit=4
  $region2: #{_lambda_.11} parent=0 // loop_pre_header
    _
  $region3: #{_lambda_.11} parent=0 // loop_header
    %s9 = sphi 0, %s13
    %p10 = scmp.ge.s32.totalorder %s9, 4
    %s19 = sphi 0, %s21
    %s22 = sphi 0, %s19
    %s23 = sphi 0, %s22
    %s39 = sphi 0, %s23
    %s43 = sphi 0, %s43
    %s45 = sphi 0, %s43
    %s46 = sphi 0, %s45
    %s60 = sphi 0, %s46
    %s64 = sphi 0, %s64
    %s66 = sphi 0, %s64
    %s67 = sphi 0, %s66
    %s81 = sphi 0, %s67
    %s87 = sphi 0, %s89
    %s90 = sphi 0, %s87
    %s91 = sphi 0, %s90
    %s107 = sphi 0, %s91
  $region4: #{_lambda_.11} parent=0 // loop_header_branch
    %12 = sbr.rel (%p10) target = $region8
  $region5: #{_lambda_.11} parent=0 // loop_body
    %s14 = ssub.s32 %s9, 1
    %s15 = ssub.s32 %s9, 2
    %s16 = sadd.s32 %s9, 1
    %s17 = ssub.s32 %s9, %s16
    %p18 = scmp.eq.s32.totalorder %s17, 0
    %s20 = sadd.s32 %s19, 1
    %s21 = scalar_select %p18, %s19, %s20
    %p24 = pneg %p18
    %p25 = scmp.eq.s32.totalorder %s9, 1
    %p26 = por %p24, %p25
    %p27 = scmp.ne.s32.totalorder %s19, %s22
    %p28 = scmp.eq.s32.totalorder %s9, 0
    %p29 = por %p27, %p28
    %p30 = scmp.ne.s32.totalorder %s19, %s22
    %p31 = scmp.eq.s32.totalorder %s14, 1
    %p32 = por %p30, %p31
    %p33 = scmp.ne.s32.totalorder %s22, %s23
    %p34 = scmp.eq.s32.totalorder %s14, 0
    %p35 = por %p33, %p34
    %p36 = scmp.ne.s32.totalorder %s22, %s23
    %p37 = scmp.eq.s32.totalorder %s15, 1
    %p38 = por %p36, %p37
    %p40 = scmp.ne.s32.totalorder %s23, %s39
    %p41 = scmp.eq.s32.totalorder %s15, 0
    %p42 = por %p40, %p41
    %s44 = sadd.s32 %s43, 1
    %p47 = scmp.eq.s32.totalorder %s9, 1
    %p48 = scmp.ne.s32.totalorder %s43, %s45
    %p49 = scmp.eq.s32.totalorder %s9, 0
    %p50 = por %p48, %p49
    %p51 = scmp.ne.s32.totalorder %s43, %s45
    %p52 = scmp.eq.s32.totalorder %s14, 1
    %p53 = por %p51, %p52
    %p54 = scmp.ne.s32.totalorder %s45, %s46
    %p55 = scmp.eq.s32.totalorder %s14, 0
    %p56 = por %p54, %p55
    %p57 = scmp.ne.s32.totalorder %s45, %s46
    %p58 = scmp.eq.s32.totalorder %s15, 1
    %p59 = por %p57, %p58
    %p61 = scmp.ne.s32.totalorder %s46, %s60
    %p62 = scmp.eq.s32.totalorder %s15, 0
    %p63 = por %p61, %p62
    %s65 = sadd.s32 %s64, 1
    %p68 = scmp.eq.s32.totalorder %s9, 1
    %p69 = scmp.ne.s32.totalorder %s64, %s66
    %p70 = scmp.eq.s32.totalorder %s9, 0
    %p71 = por %p69, %p70
    %p72 = scmp.ne.s32.totalorder %s64, %s66
    %p73 = scmp.eq.s32.totalorder %s14, 1
    %p74 = por %p72, %p73
    %p75 = scmp.ne.s32.totalorder %s66, %s67
    %p76 = scmp.eq.s32.totalorder %s14, 0
    %p77 = por %p75, %p76
    %p78 = scmp.ne.s32.totalorder %s66, %s67
    %p79 = scmp.eq.s32.totalorder %s15, 1
    %p80 = por %p78, %p79
    %p82 = scmp.ne.s32.totalorder %s67, %s81
    %p83 = scmp.eq.s32.totalorder %s15, 0
    %p84 = por %p82, %p83
    %s85 = ssub.s32 %s9, %s16
    %p86 = scmp.eq.s32.totalorder %s85, 0
    %s88 = sadd.s32 %s87, 1
    %s89 = scalar_select %p86, %s87, %s88
    %p92 = pneg %p86
    %p93 = scmp.eq.s32.totalorder %s9, 1
    %p94 = por %p92, %p93
    %p95 = scmp.ne.s32.totalorder %s87, %s90
    %p96 = scmp.eq.s32.totalorder %s9, 0
    %p97 = por %p95, %p96
    %p98 = scmp.ne.s32.totalorder %s87, %s90
    %p99 = scmp.eq.s32.totalorder %s14, 1
    %p100 = por %p98, %p99
    %p101 = scmp.ne.s32.totalorder %s90, %s91
    %p102 = scmp.eq.s32.totalorder %s14, 0
    %p103 = por %p101, %p102
    %p104 = scmp.ne.s32.totalorder %s90, %s91
    %p105 = scmp.eq.s32.totalorder %s15, 1
    %p106 = por %p104, %p105
    %p108 = scmp.ne.s32.totalorder %s91, %s107
    %p109 = scmp.eq.s32.totalorder %s15, 0
    %p110 = por %p108, %p109
    %p111 = scmp.le.s32.totalorder 1, %s9
    %p112 = scmp.lt.s32.totalorder %s9, 3
    %p113 = pnand %p111, %p112
    %p114 = pneg %p113
    // Predicated region
    $region9: #{_lambda_.11} parent=5 // pred_check
      _
    $region10: #{_lambda_.11} parent=5 // pred_check_branch
      %116 = sbr.rel (%p113) target = $region12
    $region11: #{_lambda_.11} parent=5 // pred_region
      %s117 = ssub.s32 %s9, 1
      // Predicated region
      $region13: #{_lambda_.11} parent=11 // pred_check
        %p118 = pneg %p56
      $region14: #{_lambda_.11} parent=11 // pred_check_branch
        %120 = sbr.rel (%p118) target = $region16
      $region15: #{_lambda_.11} parent=11 // pred_region
        _
      $region16: #{_lambda_.11} parent=11 // pred_fallthru
        _
      // Predicated region
      $region17: #{_lambda_.11} parent=11 // pred_check
        %p121 = pneg %p77
      $region18: #{_lambda_.11} parent=11 // pred_check_branch
        %123 = sbr.rel (%p121) target = $region20
      $region19: #{_lambda_.11} parent=11 // pred_region
        _
      $region20: #{_lambda_.11} parent=11 // pred_fallthru
        _
    $region12: #{_lambda_.11} parent=5 // pred_fallthru
      _
    %p124 = scmp.lt.s32.totalorder %s9, 2
    // Predicated region
    $region21: #{_lambda_.11} parent=5 // pred_check
      %p125 = pneg %p124
    $region22: #{_lambda_.11} parent=5 // pred_check_branch
      %127 = sbr.rel (%p125) target = $region24
    $region23: #{_lambda_.11} parent=5 // pred_region
      // Predicated region
      $region25: #{_lambda_.11} parent=23 // pred_check
        %p128 = pneg %p29
      $region26: #{_lambda_.11} parent=23 // pred_check_branch
        %130 = sbr.rel (%p128) target = $region28
      $region27: #{_lambda_.11} parent=23 // pred_region
        %s131 = smul.u32 2, %s9
        %p132 = scmp.lt.s32.totalorder %s131, 3
        %s133 = scalar_select %p132, %s131, 3
        %s134 = smul.addr %s133, 4
        %s135 = scalar_lea.vmem %s0, %s134
        %s136 = smul.u32 2, %s9
      $region28: #{_lambda_.11} parent=23 // pred_fallthru
        _
    $region24: #{_lambda_.11} parent=5 // pred_fallthru
      _
    %p137 = scmp.le.s32.totalorder 1, %s9
    %p138 = scmp.lt.s32.totalorder %s9, 3
    %p139 = pnand %p137, %p138
    %p140 = pneg %p139
    // Predicated region
    $region29: #{_lambda_.11} parent=5 // pred_check
      _
    $region30: #{_lambda_.11} parent=5 // pred_check_branch
      %142 = sbr.rel (%p139) target = $region32
    $region31: #{_lambda_.11} parent=5 // pred_region
      %s143 = ssub.s32 %s9, 1
      %s144 = smul.u32 2, %s14
      %p145 = scmp.lt.s32.totalorder %s144, 3
      %s146 = scalar_select %p145, %s144, 3
      %s147 = smul.addr %s146, 4
      %s148 = scalar_lea.vmem %s0, %s147
      %p149 = pneg %p35
      %p150 = pneg %p32
      %p151 = pneg %p56
      %p152 = pneg %p53
      %p153 = pneg %p77
      %p154 = pneg %p74
      %p155 = pneg %p103
      %p156 = pneg %p100
      %s157 = smul.u32 2, %s14
      %p158 = scmp.lt.s32.totalorder %s157, 3
      %s159 = scalar_select %p158, %s157, 3
      %s160 = smul.addr %s159, 8
      %s161 = scalar_lea.vmem %s3, %s160
      %s162 = smul.u32 2, %s14
      %p163 = scmp.lt.s32.totalorder %s162, 3
      %s164 = scalar_select %p163, %s162, 3
      %s165 = smul.addr %s164, 4
      %s166 = scalar_lea.vmem %s0, %s165
      %s167 = smul.u32 2, %s14
      %s168 = smul.u32 2, %s14
      %p169 = scmp.lt.s32.totalorder %s168, 3
      %s170 = scalar_select %p169, %s168, 3
      %s171 = smul.addr %s170, 8
      %s172 = scalar_lea.vmem %s3, %s171
      %s173 = smul.u32 2, %s14
      %v175 = vld [vmem:[%s166] sm:$0xf]
      %v176 = vld [vmem:[%s166 + $0x4] sm:$0xf]
      %v177 = vld [vmem:[%s1] sm:$0xf]
      %v178 = vld [vmem:[%s1 + $0x4] sm:$0xf]
      %v179 = vld [vmem:[%s1 + $0x8] sm:$0xf]
      %v180 = vld [vmem:[%s1 + $0xc] sm:$0xf]
      %v181 = vld [vmem:[%s1 + $0x10] sm:$0xf]
      %v182 = vld [vmem:[%s1 + $0x14] sm:$0xf]
      %v183 = vld [vmem:[%s1 + $0x18] sm:$0xf]
      %v184 = vld [vmem:[%s1 + $0x1c] sm:$0xf]
      %v185 = vld [vmem:[%s1 + $0x20] sm:$0xf]
      %v186 = vld [vmem:[%s1 + $0x24] sm:$0xf]
      %v187 = vld [vmem:[%s1 + $0x28] sm:$0xf]
      %v188 = vld [vmem:[%s1 + $0x2c] sm:$0xf]
      %v189 = vld [vmem:[%s1 + $0x30] sm:$0xf]
      %v190 = vld [vmem:[%s1 + $0x34] sm:$0xf]
      %v191 = vld [vmem:[%s1 + $0x38] sm:$0xf]
      %v192 = vld [vmem:[%s1 + $0x3c] sm:$0xf]
      %v193 = vld [vmem:[%s2] sm:$0x1]
      %v195 = vlaneseq
      %v196 = vshrl.u32 %v195, 7
      %v197 = vsub.s32 0, %v196
      %v198 = vrot.slane %v193, %v197
      %v202 = vunpack.c.l.b16 %v175
      %v203 = vunpack.c.l.b16 %v176
      %v204 = vpack.c.b16 %v203, %v202
      %v222 = vunpack.c.l.b16 %v177
      %v223 = vunpack.c.l.b16 %v178
      %v224 = vunpack.c.l.b16 %v179
      %v225 = vunpack.c.l.b16 %v180
      %v226 = vunpack.c.l.b16 %v181
      %v227 = vunpack.c.l.b16 %v182
      %v228 = vunpack.c.l.b16 %v183
      %v229 = vunpack.c.l.b16 %v184
      %v230 = vunpack.c.l.b16 %v185
      %v231 = vunpack.c.l.b16 %v186
      %v232 = vunpack.c.l.b16 %v187
      %v233 = vunpack.c.l.b16 %v188
      %v234 = vunpack.c.l.b16 %v189
      %v235 = vunpack.c.l.b16 %v190
      %v236 = vunpack.c.l.b16 %v191
      %v237 = vunpack.c.l.b16 %v192
      %v238 = vpack.c.b16 %v223, %v222
      %v239 = vpack.c.b16 %v225, %v224
      %v240 = vpack.c.b16 %v227, %v226
      %v241 = vpack.c.b16 %v229, %v228
      %v242 = vpack.c.b16 %v231, %v230
      %v243 = vpack.c.b16 %v233, %v232
      %v244 = vpack.c.b16 %v235, %v234
      %v245 = vpack.c.b16 %v237, %v236
      %254 = vmatprep.subr.bf16.mxu0 0
      %255 = vmatpush1.bf16.msra.mxu0 %v245
      %256 = vmatprep.subr.bf16.mxu0 0
      %257 = vmatpush1.bf16.msra.mxu0 %v244
      %258 = vmatprep.subr.bf16.mxu0 0
      %259 = vmatpush1.bf16.msra.mxu0 %v243
      %260 = vmatprep.subr.bf16.mxu0 0
      %261 = vmatpush1.bf16.msra.mxu0 %v242
      %262 = vmatprep.subr.bf16.mxu0 0
      %263 = vmatpush1.bf16.msra.mxu0 %v241
      %264 = vmatprep.subr.bf16.mxu0 0
      %265 = vmatpush1.bf16.msra.mxu0 %v240
      %266 = vmatprep.subr.bf16.mxu0 0
      %267 = vmatpush1.bf16.msra.mxu0 %v239
      %268 = vmatprep.subr.bf16.mxu0 0
      %269 = vmatpush1.bf16.msra.mxu0 %v238
      %270 = vmatprep.subr.bf16.mxu0 0
      %271 = vmatpush2.bf16.msra.mxu0 0
      %272 = vmatprep.subr.bf16.mxu0 0
      %273 = vmatpush2.bf16.msra.mxu0 0
      %274 = vmatprep.subr.bf16.mxu0 0
      %275 = vmatpush2.bf16.msra.mxu0 0
      %276 = vmatprep.subr.bf16.mxu0 0
      %277 = vmatpush2.bf16.msra.mxu0 0
      %278 = vmatprep.subr.bf16.mxu0 0
      %279 = vmatpush2.bf16.msra.mxu0 0
      %280 = vmatprep.subr.bf16.mxu0 0
      %281 = vmatpush2.bf16.msra.mxu0 0
      %282 = vmatprep.subr.bf16.mxu0 0
      %283 = vmatpush2.bf16.msra.mxu0 0
      %284 = vmatprep.subr.bf16.mxu0 0
      %285 = vmatpush2.bf16.msra.mxu0 0
      %286 = vmatprep.mubr.bf16.mxu0 0
      %287 = vmatmul.mubr.bf16.gmra.mxu0 %v204
      %v288 = vpop.f32.mrf.mxu0
      %v289 = vadd.f32 %v198, %v288
      %v290 = vpop.f32.mrf.mxu0
      %v291 = vpop.f32.mrf.mxu0
      %v292 = vadd.f32 %v198, %v291
      %v293 = vpop.f32.mrf.mxu0
      %294 = vdwg.mxu0
      %vm295 = vcmask 523264
      %296 = vst.msk [vmem:[%s172] sm:$0xff] %vm295, %v289
      %297 = vst.msk [vmem:[%s172 + $0x8] sm:$0xff] %vm295, %v292
      %s298 = smul.u32 2, %s14
      %p299 = scmp.lt.s32.totalorder %s298, 3
      %s300 = scalar_select %p299, %s298, 3
      %s301 = smul.addr %s300, 8
      %s302 = scalar_lea.vmem %s3, %s301
      // Predicated region
      $region33: #{_lambda_.11} parent=31 // pred_check
        %p303 = pneg %p100
      $region34: #{_lambda_.11} parent=31 // pred_check_branch
        %305 = sbr.rel (%p303) target = $region36
      $region35: #{_lambda_.11} parent=31 // pred_region
        %s306 = smul.u32 2, %s14
      $region36: #{_lambda_.11} parent=31 // pred_fallthru
        _
    $region32: #{_lambda_.11} parent=5 // pred_fallthru
      _
    %p307 = scmp.le.s32.totalorder 2, %s9
    // Predicated region
    $region37: #{_lambda_.11} parent=5 // pred_check
      %p308 = pneg %p307
    $region38: #{_lambda_.11} parent=5 // pred_check_branch
      %310 = sbr.rel (%p308) target = $region40
    $region39: #{_lambda_.11} parent=5 // pred_region
      %s311 = ssub.s32 %s9, 2
      // Predicated region
      $region41: #{_lambda_.11} parent=39 // pred_check
        %p312 = pneg %p106
      $region42: #{_lambda_.11} parent=39 // pred_check_branch
        %314 = sbr.rel (%p312) target = $region44
      $region43: #{_lambda_.11} parent=39 // pred_region
        %s315 = smul.u32 2, %s15
        %p316 = scmp.lt.s32.totalorder %s315, 3
        %s317 = scalar_select %p316, %s315, 3
        %s318 = smul.addr %s317, 8
        %s319 = scalar_lea.vmem %s3, %s318
      $region44: #{_lambda_.11} parent=39 // pred_fallthru
        _
    $region40: #{_lambda_.11} parent=5 // pred_fallthru
      _
  $region6: #{_lambda_.11} parent=0 // loop_footer
    %s13 = sadd.s32 1, %s9
  $region7: #{_lambda_.11} parent=0 // loop_footer_branch
    %8 = sbr.rel target = $region3
  $region8: #{_lambda_.11} parent=0 // loop_exit
    _

// kernel: _lambda_.8
$region0: #{_lambda_.8}
  #allocation0 [shape = 'u32[]', space=smem, size = 0x4, offset = 0x4, fixed_abs, tag = 'smem constant byte address 0x4 - core index']
  #allocation1 [shape = 'u32[144,128]{1,0:T(1,128)}', space=vmem, size = 0x12000, scoped, tag = 'internal scratch']
  %s0 = inlined_call_operand.vmem [shape: bf16[32,1,21,128], index: 0, kind: input, shape index: {}]
  %s1 = inlined_call_operand.vmem [shape: bf16[8,128,128], index: 1, kind: input, shape index: {}]
  %s2 = inlined_call_operand.vmem [shape: f32[1,128], index: 2, kind: input, shape index: {}]
  %s3 = inlined_call_operand.vmem [shape: f32[1,128], index: 3, kind: input, shape index: {}]
  %s4 = inlined_call_operand.vmem [shape: f32[1,128], index: 4, kind: input, shape index: {}]
  %s5 = inlined_call_operand.vmem [shape: bf16[8,128,128], index: 5, kind: input, shape index: {}]
  %s6 = inlined_call_operand.vmem [shape: f32[1,128], index: 6, kind: input, shape index: {}]
  %s7 = inlined_call_operand.vmem [shape: f32[1,128], index: 7, kind: input, shape index: {}]
  %s8 = inlined_call_operand.vmem [shape: f32[1,128], index: 8, kind: input, shape index: {}]
  %s9 = inlined_call_operand.vmem [shape: bf16[32,15,128], index: 9, kind: output, shape index: {}]
  %s10 = sld [smem:[#allocation0]]
  $region69: #{_lambda_.8} parent=0
    _
  %s12 = ssub.s32 1, %s10
  %s13 = scalar_select 0, %s12, %s10
  loop: start=0, step=1, limit=34
  $region2: #{_lambda_.8} parent=0 // loop_pre_header
    _
  $region3: #{_lambda_.8} parent=0 // loop_header
    %s15 = sphi 0, %s19
    %p16 = scmp.ge.s32.totalorder %s15, 34
    %s25 = sphi 0, %s27
    %s28 = sphi 0, %s25
    %s29 = sphi 0, %s28
    %s45 = sphi 0, %s29
    %s49 = sphi 0, %s49
    %s51 = sphi 0, %s49
    %s52 = sphi 0, %s51
    %s66 = sphi 0, %s52
    %s70 = sphi 0, %s70
    %s72 = sphi 0, %s70
    %s73 = sphi 0, %s72
    %s87 = sphi 0, %s73
    %s91 = sphi 0, %s91
    %s93 = sphi 0, %s91
    %s94 = sphi 0, %s93
    %s108 = sphi 0, %s94
    %s112 = sphi 0, %s112
    %s114 = sphi 0, %s112
    %s115 = sphi 0, %s114
    %s129 = sphi 0, %s115
    %s133 = sphi 0, %s133
    %s135 = sphi 0, %s133
    %s136 = sphi 0, %s135
    %s150 = sphi 0, %s136
    %s154 = sphi 0, %s154
    %s156 = sphi 0, %s154
    %s157 = sphi 0, %s156
    %s171 = sphi 0, %s157
    %s175 = sphi 0, %s175
    %s177 = sphi 0, %s175
    %s178 = sphi 0, %s177
    %s192 = sphi 0, %s178
    %s196 = sphi 0, %s196
    %s198 = sphi 0, %s196
    %s199 = sphi 0, %s198
    %s213 = sphi 0, %s199
    %s219 = sphi 0, %s221
    %s222 = sphi 0, %s219
    %s223 = sphi 0, %s222
    %s239 = sphi 0, %s223
  $region4: #{_lambda_.8} parent=0 // loop_header_branch
    %18 = sbr.rel (%p16) target = $region8
  $region5: #{_lambda_.8} parent=0 // loop_body
    %s20 = ssub.s32 %s15, 1
    %s21 = ssub.s32 %s15, 2
    %s22 = sadd.s32 %s15, 1
    %s23 = ssub.s32 %s15, %s22
    %p24 = scmp.eq.s32.totalorder %s23, 0
    %s26 = sadd.s32 %s25, 1
    %s27 = scalar_select %p24, %s25, %s26
    %p30 = pneg %p24
    %p31 = scmp.eq.s32.totalorder %s15, 31
    %p32 = por %p30, %p31
    %p33 = scmp.ne.s32.totalorder %s25, %s28
    %p34 = scmp.eq.s32.totalorder %s15, 0
    %p35 = por %p33, %p34
    %p36 = scmp.ne.s32.totalorder %s25, %s28
    %p37 = scmp.eq.s32.totalorder %s20, 31
    %p38 = por %p36, %p37
    %p39 = scmp.ne.s32.totalorder %s28, %s29
    %p40 = scmp.eq.s32.totalorder %s20, 0
    %p41 = por %p39, %p40
    %p42 = scmp.ne.s32.totalorder %s28, %s29
    %p43 = scmp.eq.s32.totalorder %s21, 31
    %p44 = por %p42, %p43
    %p46 = scmp.ne.s32.totalorder %s29, %s45
    %p47 = scmp.eq.s32.totalorder %s21, 0
    %p48 = por %p46, %p47
    %s50 = sadd.s32 %s49, 1
    %p53 = scmp.eq.s32.totalorder %s15, 31
    %p54 = scmp.ne.s32.totalorder %s49, %s51
    %p55 = scmp.eq.s32.totalorder %s15, 0
    %p56 = por %p54, %p55
    %p57 = scmp.ne.s32.totalorder %s49, %s51
    %p58 = scmp.eq.s32.totalorder %s20, 31
    %p59 = por %p57, %p58
    %p60 = scmp.ne.s32.totalorder %s51, %s52
    %p61 = scmp.eq.s32.totalorder %s20, 0
    %p62 = por %p60, %p61
    %p63 = scmp.ne.s32.totalorder %s51, %s52
    %p64 = scmp.eq.s32.totalorder %s21, 31
    %p65 = por %p63, %p64
    %p67 = scmp.ne.s32.totalorder %s52, %s66
    %p68 = scmp.eq.s32.totalorder %s21, 0
    %p69 = por %p67, %p68
    %s71 = sadd.s32 %s70, 1
    %p74 = scmp.eq.s32.totalorder %s15, 31
    %p75 = scmp.ne.s32.totalorder %s70, %s72
    %p76 = scmp.eq.s32.totalorder %s15, 0
    %p77 = por %p75, %p76
    %p78 = scmp.ne.s32.totalorder %s70, %s72
    %p79 = scmp.eq.s32.totalorder %s20, 31
    %p80 = por %p78, %p79
    %p81 = scmp.ne.s32.totalorder %s72, %s73
    %p82 = scmp.eq.s32.totalorder %s20, 0
    %p83 = por %p81, %p82
    %p84 = scmp.ne.s32.totalorder %s72, %s73
    %p85 = scmp.eq.s32.totalorder %s21, 31
    %p86 = por %p84, %p85
    %p88 = scmp.ne.s32.totalorder %s73, %s87
    %p89 = scmp.eq.s32.totalorder %s21, 0
    %p90 = por %p88, %p89
    %s92 = sadd.s32 %s91, 1
    %p95 = scmp.eq.s32.totalorder %s15, 31
    %p96 = scmp.ne.s32.totalorder %s91, %s93
    %p97 = scmp.eq.s32.totalorder %s15, 0
    %p98 = por %p96, %p97
    %p99 = scmp.ne.s32.totalorder %s91, %s93
    %p100 = scmp.eq.s32.totalorder %s20, 31
    %p101 = por %p99, %p100
    %p102 = scmp.ne.s32.totalorder %s93, %s94
    %p103 = scmp.eq.s32.totalorder %s20, 0
    %p104 = por %p102, %p103
    %p105 = scmp.ne.s32.totalorder %s93, %s94
    %p106 = scmp.eq.s32.totalorder %s21, 31
    %p107 = por %p105, %p106
    %p109 = scmp.ne.s32.totalorder %s94, %s108
    %p110 = scmp.eq.s32.totalorder %s21, 0
    %p111 = por %p109, %p110
    %s113 = sadd.s32 %s112, 1
    %p116 = scmp.eq.s32.totalorder %s15, 31
    %p117 = scmp.ne.s32.totalorder %s112, %s114
    %p118 = scmp.eq.s32.totalorder %s15, 0
    %p119 = por %p117, %p118
    %p120 = scmp.ne.s32.totalorder %s112, %s114
    %p121 = scmp.eq.s32.totalorder %s20, 31
    %p122 = por %p120, %p121
    %p123 = scmp.ne.s32.totalorder %s114, %s115
    %p124 = scmp.eq.s32.totalorder %s20, 0
    %p125 = por %p123, %p124
    %p126 = scmp.ne.s32.totalorder %s114, %s115
    %p127 = scmp.eq.s32.totalorder %s21, 31
    %p128 = por %p126, %p127
    %p130 = scmp.ne.s32.totalorder %s115, %s129
    %p131 = scmp.eq.s32.totalorder %s21, 0
    %p132 = por %p130, %p131
    %s134 = sadd.s32 %s133, 1
    %p137 = scmp.eq.s32.totalorder %s15, 31
    %p138 = scmp.ne.s32.totalorder %s133, %s135
    %p139 = scmp.eq.s32.totalorder %s15, 0
    %p140 = por %p138, %p139
    %p141 = scmp.ne.s32.totalorder %s133, %s135
    %p142 = scmp.eq.s32.totalorder %s20, 31
    %p143 = por %p141, %p142
    %p144 = scmp.ne.s32.totalorder %s135, %s136
    %p145 = scmp.eq.s32.totalorder %s20, 0
    %p146 = por %p144, %p145
    %p147 = scmp.ne.s32.totalorder %s135, %s136
    %p148 = scmp.eq.s32.totalorder %s21, 31
    %p149 = por %p147, %p148
    %p151 = scmp.ne.s32.totalorder %s136, %s150
    %p152 = scmp.eq.s32.totalorder %s21, 0
    %p153 = por %p151, %p152
    %s155 = sadd.s32 %s154, 1
    %p158 = scmp.eq.s32.totalorder %s15, 31
    %p159 = scmp.ne.s32.totalorder %s154, %s156
    %p160 = scmp.eq.s32.totalorder %s15, 0
    %p161 = por %p159, %p160
    %p162 = scmp.ne.s32.totalorder %s154, %s156
    %p163 = scmp.eq.s32.totalorder %s20, 31
    %p164 = por %p162, %p163
    %p165 = scmp.ne.s32.totalorder %s156, %s157
    %p166 = scmp.eq.s32.totalorder %s20, 0
    %p167 = por %p165, %p166
    %p168 = scmp.ne.s32.totalorder %s156, %s157
    %p169 = scmp.eq.s32.totalorder %s21, 31
    %p170 = por %p168, %p169
    %p172 = scmp.ne.s32.totalorder %s157, %s171
    %p173 = scmp.eq.s32.totalorder %s21, 0
    %p174 = por %p172, %p173
    %s176 = sadd.s32 %s175, 1
    %p179 = scmp.eq.s32.totalorder %s15, 31
    %p180 = scmp.ne.s32.totalorder %s175, %s177
    %p181 = scmp.eq.s32.totalorder %s15, 0
    %p182 = por %p180, %p181
    %p183 = scmp.ne.s32.totalorder %s175, %s177
    %p184 = scmp.eq.s32.totalorder %s20, 31
    %p185 = por %p183, %p184
    %p186 = scmp.ne.s32.totalorder %s177, %s178
    %p187 = scmp.eq.s32.totalorder %s20, 0
    %p188 = por %p186, %p187
    %p189 = scmp.ne.s32.totalorder %s177, %s178
    %p190 = scmp.eq.s32.totalorder %s21, 31
    %p191 = por %p189, %p190
    %p193 = scmp.ne.s32.totalorder %s178, %s192
    %p194 = scmp.eq.s32.totalorder %s21, 0
    %p195 = por %p193, %p194
    %s197 = sadd.s32 %s196, 1
    %p200 = scmp.eq.s32.totalorder %s15, 31
    %p201 = scmp.ne.s32.totalorder %s196, %s198
    %p202 = scmp.eq.s32.totalorder %s15, 0
    %p203 = por %p201, %p202
    %p204 = scmp.ne.s32.totalorder %s196, %s198
    %p205 = scmp.eq.s32.totalorder %s20, 31
    %p206 = por %p204, %p205
    %p207 = scmp.ne.s32.totalorder %s198, %s199
    %p208 = scmp.eq.s32.totalorder %s20, 0
    %p209 = por %p207, %p208
    %p210 = scmp.ne.s32.totalorder %s198, %s199
    %p211 = scmp.eq.s32.totalorder %s21, 31
    %p212 = por %p210, %p211
    %p214 = scmp.ne.s32.totalorder %s199, %s213
    %p215 = scmp.eq.s32.totalorder %s21, 0
    %p216 = por %p214, %p215
    %s217 = ssub.s32 %s15, %s22
    %p218 = scmp.eq.s32.totalorder %s217, 0
    %s220 = sadd.s32 %s219, 1
    %s221 = scalar_select %p218, %s219, %s220
    %p224 = pneg %p218
    %p225 = scmp.eq.s32.totalorder %s15, 31
    %p226 = por %p224, %p225
    %p227 = scmp.ne.s32.totalorder %s219, %s222
    %p228 = scmp.eq.s32.totalorder %s15, 0
    %p229 = por %p227, %p228
    %p230 = scmp.ne.s32.totalorder %s219, %s222
    %p231 = scmp.eq.s32.totalorder %s20, 31
    %p232 = por %p230, %p231
    %p233 = scmp.ne.s32.totalorder %s222, %s223
    %p234 = scmp.eq.s32.totalorder %s20, 0
    %p235 = por %p233, %p234
    %p236 = scmp.ne.s32.totalorder %s222, %s223
    %p237 = scmp.eq.s32.totalorder %s21, 31
    %p238 = por %p236, %p237
    %p240 = scmp.ne.s32.totalorder %s223, %s239
    %p241 = scmp.eq.s32.totalorder %s21, 0
    %p242 = por %p240, %p241
    %p243 = scmp.le.s32.totalorder 1, %s15
    %p244 = scmp.lt.s32.totalorder %s15, 33
    %p245 = pnand %p243, %p244
    %p246 = pneg %p245
    // Predicated region
    $region9: #{_lambda_.8} parent=5 // pred_check
      _
    $region10: #{_lambda_.8} parent=5 // pred_check_branch
      %248 = sbr.rel (%p245) target = $region12
    $region11: #{_lambda_.8} parent=5 // pred_region
      %s249 = ssub.s32 %s15, 1
      // Predicated region
      $region13: #{_lambda_.8} parent=11 // pred_check
        %p250 = pneg %p62
      $region14: #{_lambda_.8} parent=11 // pred_check_branch
        %252 = sbr.rel (%p250) target = $region16
      $region15: #{_lambda_.8} parent=11 // pred_region
        _
      $region16: #{_lambda_.8} parent=11 // pred_fallthru
        _
      // Predicated region
      $region17: #{_lambda_.8} parent=11 // pred_check
        %p253 = pneg %p83
      $region18: #{_lambda_.8} parent=11 // pred_check_branch
        %255 = sbr.rel (%p253) target = $region20
      $region19: #{_lambda_.8} parent=11 // pred_region
        _
      $region20: #{_lambda_.8} parent=11 // pred_fallthru
        _
      // Predicated region
      $region21: #{_lambda_.8} parent=11 // pred_check
        %p256 = pneg %p104
      $region22: #{_lambda_.8} parent=11 // pred_check_branch
        %258 = sbr.rel (%p256) target = $region24
      $region23: #{_lambda_.8} parent=11 // pred_region
        _
      $region24: #{_lambda_.8} parent=11 // pred_fallthru
        _
      // Predicated region
      $region25: #{_lambda_.8} parent=11 // pred_check
        %p259 = pneg %p125
      $region26: #{_lambda_.8} parent=11 // pred_check_branch
        %261 = sbr.rel (%p259) target = $region28
      $region27: #{_lambda_.8} parent=11 // pred_region
        _
      $region28: #{_lambda_.8} parent=11 // pred_fallthru
        _
      // Predicated region
      $region29: #{_lambda_.8} parent=11 // pred_check
        %p262 = pneg %p146
      $region30: #{_lambda_.8} parent=11 // pred_check_branch
        %264 = sbr.rel (%p262) target = $region32
      $region31: #{_lambda_.8} parent=11 // pred_region
        _
      $region32: #{_lambda_.8} parent=11 // pred_fallthru
        _
      // Predicated region
      $region33: #{_lambda_.8} parent=11 // pred_check
        %p265 = pneg %p167
      $region34: #{_lambda_.8} parent=11 // pred_check_branch
        %267 = sbr.rel (%p265) target = $region36
      $region35: #{_lambda_.8} parent=11 // pred_region
        _
      $region36: #{_lambda_.8} parent=11 // pred_fallthru
        _
      // Predicated region
      $region37: #{_lambda_.8} parent=11 // pred_check
        %p268 = pneg %p188
      $region38: #{_lambda_.8} parent=11 // pred_check_branch
        %270 = sbr.rel (%p268) target = $region40
      $region39: #{_lambda_.8} parent=11 // pred_region
        _
      $region40: #{_lambda_.8} parent=11 // pred_fallthru
        _
      // Predicated region
      $region41: #{_lambda_.8} parent=11 // pred_check
        %p271 = pneg %p209
      $region42: #{_lambda_.8} parent=11 // pred_check_branch
        %273 = sbr.rel (%p271) target = $region44
      $region43: #{_lambda_.8} parent=11 // pred_region
        _
      $region44: #{_lambda_.8} parent=11 // pred_fallthru
        _
    $region12: #{_lambda_.8} parent=5 // pred_fallthru
      _
    %p274 = scmp.lt.s32.totalorder %s15, 32
    // Predicated region
    $region45: #{_lambda_.8} parent=5 // pred_check
      %p275 = pneg %p274
    $region46: #{_lambda_.8} parent=5 // pred_check_branch
      %277 = sbr.rel (%p275) target = $region48
    $region47: #{_lambda_.8} parent=5 // pred_region
      // Predicated region
      $region49: #{_lambda_.8} parent=47 // pred_check
        %p278 = pneg %p35
      $region50: #{_lambda_.8} parent=47 // pred_check_branch
        %280 = sbr.rel (%p278) target = $region52
      $region51: #{_lambda_.8} parent=47 // pred_region
        %p281 = scmp.lt.s32.totalorder %s15, 31
        %s282 = scalar_select %p281, %s15, 31
        %s283 = smul.addr %s282, 3
        %s284 = smul.addr %s283, 4
        %s285 = scalar_lea.vmem %s0, %s284
      $region52: #{_lambda_.8} parent=47 // pred_fallthru
        _
    $region48: #{_lambda_.8} parent=5 // pred_fallthru
      _
    %p286 = scmp.le.s32.totalorder 1, %s15
    %p287 = scmp.lt.s32.totalorder %s15, 33
    %p288 = pnand %p286, %p287
    %p289 = pneg %p288
    // Predicated region
    $region53: #{_lambda_.8} parent=5 // pred_check
      _
    $region54: #{_lambda_.8} parent=5 // pred_check_branch
      %291 = sbr.rel (%p288) target = $region56
    $region55: #{_lambda_.8} parent=5 // pred_region
      %s292 = ssub.s32 %s15, 1
      %p293 = scmp.lt.s32.totalorder %s20, 31
      %s294 = scalar_select %p293, %s20, 31
      %s295 = smul.addr %s294, 3
      %s296 = smul.addr %s295, 4
      %s297 = scalar_lea.vmem %s0, %s296
      %p298 = pneg %p41
      %p299 = pneg %p38
      %p300 = pneg %p62
      %p301 = pneg %p59
      %p302 = pneg %p83
      %p303 = pneg %p80
      %p304 = pneg %p104
      %p305 = pneg %p101
      %p306 = pneg %p125
      %p307 = pneg %p122
      %p308 = pneg %p146
      %p309 = pneg %p143
      %p310 = pneg %p167
      %p311 = pneg %p164
      %p312 = pneg %p188
      %p313 = pneg %p185
      %p314 = pneg %p209
      %p315 = pneg %p206
      %p316 = pneg %p235
      %p317 = pneg %p232
      %p318 = scmp.lt.s32.totalorder %s20, 31
      %s319 = scalar_select %p318, %s20, 31
      %s320 = smul.addr %s319, 2
      %s321 = smul.addr %s320, 4
      %s322 = scalar_lea.vmem %s9, %s321
      %p323 = scmp.lt.s32.totalorder %s20, 31
      %s324 = scalar_select %p323, %s20, 31
      %s325 = smul.addr %s324, 3
      %s326 = smul.addr %s325, 4
      %s327 = scalar_lea.vmem %s0, %s326
      %p328 = scmp.lt.s32.totalorder %s20, 31
      %s329 = scalar_select %p328, %s20, 31
      %s330 = smul.addr %s329, 2
      %s331 = smul.addr %s330, 4
      %s332 = scalar_lea.vmem %s9, %s331
      %v334 = vld [vmem:[%s327] sm:$0xf]
      %v335 = vld [vmem:[%s327 + $0x4] sm:$0xf]
      %v336 = vld [vmem:[%s327 + $0x8] sm:$0x7]
      %v337 = vunpack.c.l.bf16 %v334
      %v338 = vunpack.c.l.bf16 %v335
      %v339 = vunpack.c.l.bf16 %v336
      %v340 = vpack.c.bf16 %v338, %v337
      %v341 = vld [vmem:[%s1] sm:$0xf]
      %v342 = vld [vmem:[%s1 + $0x4] sm:$0xf]
      %v343 = vld [vmem:[%s1 + $0x8] sm:$0xf]
      %v344 = vld [vmem:[%s1 + $0xc] sm:$0xf]
      %v345 = vld [vmem:[%s1 + $0x10] sm:$0xf]
      %v346 = vld [vmem:[%s1 + $0x14] sm:$0xf]
      %v347 = vld [vmem:[%s1 + $0x18] sm:$0xf]
      %v348 = vld [vmem:[%s1 + $0x1c] sm:$0xf]
      %v349 = vld [vmem:[%s1 + $0x20] sm:$0xf]
      %v350 = vld [vmem:[%s1 + $0x24] sm:$0xf]
      %v351 = vld [vmem:[%s1 + $0x28] sm:$0xf]
      %v352 = vld [vmem:[%s1 + $0x2c] sm:$0xf]
      %v353 = vld [vmem:[%s1 + $0x30] sm:$0xf]
      %v354 = vld [vmem:[%s1 + $0x34] sm:$0xf]
      %v355 = vld [vmem:[%s1 + $0x38] sm:$0xf]
      %v356 = vld [vmem:[%s1 + $0x3c] sm:$0xf]
      %s357 = scalar_lea.vmem %s1, 64
      %v358 = vld [vmem:[%s357] sm:$0xf]
      %v359 = vld [vmem:[%s357 + $0x4] sm:$0xf]
      %v360 = vld [vmem:[%s357 + $0x8] sm:$0xf]
      %v361 = vld [vmem:[%s357 + $0xc] sm:$0xf]
      %v362 = vld [vmem:[%s357 + $0x10] sm:$0xf]
      %v363 = vld [vmem:[%s357 + $0x14] sm:$0xf]
      %v364 = vld [vmem:[%s357 + $0x18] sm:$0xf]
      %v365 = vld [vmem:[%s357 + $0x1c] sm:$0xf]
      %v366 = vld [vmem:[%s357 + $0x20] sm:$0xf]
      %v367 = vld [vmem:[%s357 + $0x24] sm:$0xf]
      %v368 = vld [vmem:[%s357 + $0x28] sm:$0xf]
      %v369 = vld [vmem:[%s357 + $0x2c] sm:$0xf]
      %v370 = vld [vmem:[%s357 + $0x30] sm:$0xf]
      %v371 = vld [vmem:[%s357 + $0x34] sm:$0xf]
      %v372 = vld [vmem:[%s357 + $0x38] sm:$0xf]
      %v373 = vld [vmem:[%s357 + $0x3c] sm:$0xf]
      %v375 = vshrl.u32 %v340, 16
      %v377 = vshll.u32 %v340, 16
      %v379 = vrot.slane %v377, 1
      %v380 = vor.u32 %v375, %v379
      %v398 = vunpack.c.l.b16 %v358
      %v399 = vunpack.c.l.b16 %v359
      %v400 = vunpack.c.l.b16 %v360
      %v401 = vunpack.c.l.b16 %v361
      %v402 = vunpack.c.l.b16 %v362
      %v403 = vunpack.c.l.b16 %v363
      %v404 = vunpack.c.l.b16 %v364
      %v405 = vunpack.c.l.b16 %v365
      %v406 = vunpack.c.l.b16 %v366
      %v407 = vunpack.c.l.b16 %v367
      %v408 = vunpack.c.l.b16 %v368
      %v409 = vunpack.c.l.b16 %v369
      %v410 = vunpack.c.l.b16 %v370
      %v411 = vunpack.c.l.b16 %v371
      %v412 = vunpack.c.l.b16 %v372
      %v413 = vunpack.c.l.b16 %v373
      %v414 = vpack.c.b16 %v399, %v398
      %v415 = vpack.c.b16 %v401, %v400
      %v416 = vpack.c.b16 %v403, %v402
      %v417 = vpack.c.b16 %v405, %v404
      %v418 = vpack.c.b16 %v407, %v406
      %v419 = vpack.c.b16 %v409, %v408
      %v420 = vpack.c.b16 %v411, %v410
      %v421 = vpack.c.b16 %v413, %v412
      %430 = vmatprep.subr.bf16.mxu0 0
      %431 = vmatpush1.bf16.msra.mxu0 %v421
      %432 = vmatprep.subr.bf16.mxu0 0
      %433 = vmatpush1.bf16.msra.mxu0 %v420
      %434 = vmatprep.subr.bf16.mxu0 0
      %435 = vmatpush1.bf16.msra.mxu0 %v419
      %436 = vmatprep.subr.bf16.mxu0 0
      %437 = vmatpush1.bf16.msra.mxu0 %v418
      %438 = vmatprep.subr.bf16.mxu0 0
      %439 = vmatpush1.bf16.msra.mxu0 %v417
      %440 = vmatprep.subr.bf16.mxu0 0
      %441 = vmatpush1.bf16.msra.mxu0 %v416
      %442 = vmatprep.subr.bf16.mxu0 0
      %443 = vmatpush1.bf16.msra.mxu0 %v415
      %444 = vmatprep.subr.bf16.mxu0 0
      %445 = vmatpush1.bf16.msra.mxu0 %v414
      %446 = vmatprep.subr.bf16.mxu0 0
      %447 = vmatpush2.bf16.msra.mxu0 0
      %448 = vmatprep.subr.bf16.mxu0 0
      %449 = vmatpush2.bf16.msra.mxu0 0
      %450 = vmatprep.subr.bf16.mxu0 0
      %451 = vmatpush2.bf16.msra.mxu0 0
      %452 = vmatprep.subr.bf16.mxu0 0
      %453 = vmatpush2.bf16.msra.mxu0 0
      %454 = vmatprep.subr.bf16.mxu0 0
      %455 = vmatpush2.bf16.msra.mxu0 0
      %456 = vmatprep.subr.bf16.mxu0 0
      %457 = vmatpush2.bf16.msra.mxu0 0
      %458 = vmatprep.subr.bf16.mxu0 0
      %459 = vmatpush2.bf16.msra.mxu0 0
      %460 = vmatprep.subr.bf16.mxu0 0
      %461 = vmatpush2.bf16.msra.mxu0 0
      %462 = vmatprep.mubr.bf16.mxu0 0
      %463 = vmatmul.mubr.bf16.gmra.mxu0 %v380
      %v464 = vpop.f32.mrf.mxu0
      %v465 = vadd.f32 0.0, %v464
      %v466 = vpop.f32.mrf.mxu0
      %v467 = vpop.f32.mrf.mxu0
      %v468 = vadd.f32 0.0, %v467
      %v469 = vpop.f32.mrf.mxu0
      %470 = vdwg.mxu0
      %v487 = vunpack.c.l.b16 %v341
      %v488 = vunpack.c.l.b16 %v342
      %v489 = vunpack.c.l.b16 %v343
      %v490 = vunpack.c.l.b16 %v344
      %v491 = vunpack.c.l.b16 %v345
      %v492 = vunpack.c.l.b16 %v346
      %v493 = vunpack.c.l.b16 %v347
      %v494 = vunpack.c.l.b16 %v348
      %v495 = vunpack.c.l.b16 %v349
      %v496 = vunpack.c.l.b16 %v350
      %v497 = vunpack.c.l.b16 %v351
      %v498 = vunpack.c.l.b16 %v352
      %v499 = vunpack.c.l.b16 %v353
      %v500 = vunpack.c.l.b16 %v354
      %v501 = vunpack.c.l.b16 %v355
      %v502 = vunpack.c.l.b16 %v356
      %v503 = vpack.c.b16 %v488, %v487
      %v504 = vpack.c.b16 %v490, %v489
      %v505 = vpack.c.b16 %v492, %v491
      %v506 = vpack.c.b16 %v494, %v493
      %v507 = vpack.c.b16 %v496, %v495
      %v508 = vpack.c.b16 %v498, %v497
      %v509 = vpack.c.b16 %v500, %v499
      %v510 = vpack.c.b16 %v502, %v501
      %519 = vmatprep.subr.bf16.mxu0 0
      %520 = vmatpush1.bf16.msra.mxu0 %v510
      %521 = vmatprep.subr.bf16.mxu0 0
      %522 = vmatpush1.bf16.msra.mxu0 %v509
      %523 = vmatprep.subr.bf16.mxu0 0
      %524 = vmatpush1.bf16.msra.mxu0 %v508
      %525 = vmatprep.subr.bf16.mxu0 0
      %526 = vmatpush1.bf16.msra.mxu0 %v507
      %527 = vmatprep.subr.bf16.mxu0 0
      %528 = vmatpush1.bf16.msra.mxu0 %v506
      %529 = vmatprep.subr.bf16.mxu0 0
      %530 = vmatpush1.bf16.msra.mxu0 %v505
      %531 = vmatprep.subr.bf16.mxu0 0
      %532 = vmatpush1.bf16.msra.mxu0 %v504
      %533 = vmatprep.subr.bf16.mxu0 0
      %534 = vmatpush1.bf16.msra.mxu0 %v503
      %535 = vmatprep.subr.bf16.mxu0 0
      %536 = vmatpush2.bf16.msra.mxu0 0
      %537 = vmatprep.subr.bf16.mxu0 0
      %538 = vmatpush2.bf16.msra.mxu0 0
      %539 = vmatprep.subr.bf16.mxu0 0
      %540 = vmatpush2.bf16.msra.mxu0 0
      %541 = vmatprep.subr.bf16.mxu0 0
      %542 = vmatpush2.bf16.msra.mxu0 0
      %543 = vmatprep.subr.bf16.mxu0 0
      %544 = vmatpush2.bf16.msra.mxu0 0
      %545 = vmatprep.subr.bf16.mxu0 0
      %546 = vmatpush2.bf16.msra.mxu0 0
      %547 = vmatprep.subr.bf16.mxu0 0
      %548 = vmatpush2.bf16.msra.mxu0 0
      %549 = vmatprep.subr.bf16.mxu0 0
      %550 = vmatpush2.bf16.msra.mxu0 0
      %551 = vmatprep.mubr.bf16.mxu0 0
      %552 = vmatmul.mubr.bf16.gmra.mxu0 %v340
      %v553 = vpop.f32.mrf.mxu0
      %v554 = vadd.f32 %v465, %v553
      %v555 = vpop.f32.mrf.mxu0
      %v556 = vpop.f32.mrf.mxu0
      %v557 = vadd.f32 %v468, %v556
      %v558 = vpop.f32.mrf.mxu0
      %559 = vdwg.mxu0
      %s560 = scalar_lea.vmem %s1, 128
      %v561 = vld [vmem:[%s560] sm:$0xf]
      %v562 = vld [vmem:[%s560 + $0x4] sm:$0xf]
      %v563 = vld [vmem:[%s560 + $0x8] sm:$0xf]
      %v564 = vld [vmem:[%s560 + $0xc] sm:$0xf]
      %v565 = vld [vmem:[%s560 + $0x10] sm:$0xf]
      %v566 = vld [vmem:[%s560 + $0x14] sm:$0xf]
      %v567 = vld [vmem:[%s560 + $0x18] sm:$0xf]
      %v568 = vld [vmem:[%s560 + $0x1c] sm:$0xf]
      %v569 = vld [vmem:[%s560 + $0x20] sm:$0xf]
      %v570 = vld [vmem:[%s560 + $0x24] sm:$0xf]
      %v571 = vld [vmem:[%s560 + $0x28] sm:$0xf]
      %v572 = vld [vmem:[%s560 + $0x2c] sm:$0xf]
      %v573 = vld [vmem:[%s560 + $0x30] sm:$0xf]
      %v574 = vld [vmem:[%s560 + $0x34] sm:$0xf]
      %v575 = vld [vmem:[%s560 + $0x38] sm:$0xf]
      %v576 = vld [vmem:[%s560 + $0x3c] sm:$0xf]
      %v578 = vrot.slane %v340, 1
      %v596 = vunpack.c.l.b16 %v561
      %v597 = vunpack.c.l.b16 %v562
      %v598 = vunpack.c.l.b16 %v563
      %v599 = vunpack.c.l.b16 %v564
      %v600 = vunpack.c.l.b16 %v565
      %v601 = vunpack.c.l.b16 %v566
      %v602 = vunpack.c.l.b16 %v567
      %v603 = vunpack.c.l.b16 %v568
      %v604 = vunpack.c.l.b16 %v569
      %v605 = vunpack.c.l.b16 %v570
      %v606 = vunpack.c.l.b16 %v571
      %v607 = vunpack.c.l.b16 %v572
      %v608 = vunpack.c.l.b16 %v573
      %v609 = vunpack.c.l.b16 %v574
      %v610 = vunpack.c.l.b16 %v575
      %v611 = vunpack.c.l.b16 %v576
      %v612 = vpack.c.b16 %v597, %v596
      %v613 = vpack.c.b16 %v599, %v598
      %v614 = vpack.c.b16 %v601, %v600
      %v615 = vpack.c.b16 %v603, %v602
      %v616 = vpack.c.b16 %v605, %v604
      %v617 = vpack.c.b16 %v607, %v606
      %v618 = vpack.c.b16 %v609, %v608
      %v619 = vpack.c.b16 %v611, %v610
      %628 = vmatprep.subr.bf16.mxu0 0
      %629 = vmatpush1.bf16.msra.mxu0 %v619
      %630 = vmatprep.subr.bf16.mxu0 0
      %631 = vmatpush1.bf16.msra.mxu0 %v618
      %632 = vmatprep.subr.bf16.mxu0 0
      %633 = vmatpush1.bf16.msra.mxu0 %v617
      %634 = vmatprep.subr.bf16.mxu0 0
      %635 = vmatpush1.bf16.msra.mxu0 %v616
      %636 = vmatprep.subr.bf16.mxu0 0
      %637 = vmatpush1.bf16.msra.mxu0 %v615
      %638 = vmatprep.subr.bf16.mxu0 0
      %639 = vmatpush1.bf16.msra.mxu0 %v614
      %640 = vmatprep.subr.bf16.mxu0 0
      %641 = vmatpush1.bf16.msra.mxu0 %v613
      %642 = vmatprep.subr.bf16.mxu0 0
      %643 = vmatpush1.bf16.msra.mxu0 %v612
      %644 = vmatprep.subr.bf16.mxu0 0
      %645 = vmatpush2.bf16.msra.mxu0 0
      %646 = vmatprep.subr.bf16.mxu0 0
      %647 = vmatpush2.bf16.msra.mxu0 0
      %648 = vmatprep.subr.bf16.mxu0 0
      %649 = vmatpush2.bf16.msra.mxu0 0
      %650 = vmatprep.subr.bf16.mxu0 0
      %651 = vmatpush2.bf16.msra.mxu0 0
      %652 = vmatprep.subr.bf16.mxu0 0
      %653 = vmatpush2.bf16.msra.mxu0 0
      %654 = vmatprep.subr.bf16.mxu0 0
      %655 = vmatpush2.bf16.msra.mxu0 0
      %656 = vmatprep.subr.bf16.mxu0 0
      %657 = vmatpush2.bf16.msra.mxu0 0
      %658 = vmatprep.subr.bf16.mxu0 0
      %659 = vmatpush2.bf16.msra.mxu0 0
      %660 = vmatprep.mubr.bf16.mxu0 0
      %661 = vmatmul.mubr.bf16.gmra.mxu0 %v578
      %v662 = vpop.f32.mrf.mxu0
      %v663 = vadd.f32 0.0, %v662
      %v664 = vpop.f32.mrf.mxu0
      %v665 = vpop.f32.mrf.mxu0
      %v666 = vadd.f32 0.0, %v665
      %v667 = vpop.f32.mrf.mxu0
      %668 = vdwg.mxu0
      %v669 = vadd.f32 %v554, %v663
      %v670 = vadd.f32 %v557, %v666
      %v671 = vpack.c.bf16 %v339, %v339
      %s672 = scalar_lea.vmem %s1, 192
      %v673 = vld [vmem:[%s672] sm:$0xf]
      %v674 = vld [vmem:[%s672 + $0x4] sm:$0xf]
      %v675 = vld [vmem:[%s672 + $0x8] sm:$0xf]
      %v676 = vld [vmem:[%s672 + $0xc] sm:$0xf]
      %v677 = vld [vmem:[%s672 + $0x10] sm:$0xf]
      %v678 = vld [vmem:[%s672 + $0x14] sm:$0xf]
      %v679 = vld [vmem:[%s672 + $0x18] sm:$0xf]
      %v680 = vld [vmem:[%s672 + $0x1c] sm:$0xf]
      %v681 = vld [vmem:[%s672 + $0x20] sm:$0xf]
      %v682 = vld [vmem:[%s672 + $0x24] sm:$0xf]
      %v683 = vld [vmem:[%s672 + $0x28] sm:$0xf]
      %v684 = vld [vmem:[%s672 + $0x2c] sm:$0xf]
      %v685 = vld [vmem:[%s672 + $0x30] sm:$0xf]
      %v686 = vld [vmem:[%s672 + $0x34] sm:$0xf]
      %v687 = vld [vmem:[%s672 + $0x38] sm:$0xf]
      %v688 = vld [vmem:[%s672 + $0x3c] sm:$0xf]
      %vm689 = vsmask.f32 6400
      %v690 = vrot.slane %v375, 1
      %v691 = vrot.slane %v377, 2
      %v692 = vor.u32 %v690, %v691
      %v694 = vshll.u32 %v671, 16
      %v696 = vrot.slane %v694, 2
      %v697 = vsel %vm689, %v692, %v696
      %v715 = vunpack.c.l.b16 %v673
      %v716 = vunpack.c.l.b16 %v674
      %v717 = vunpack.c.l.b16 %v675
      %v718 = vunpack.c.l.b16 %v676
      %v719 = vunpack.c.l.b16 %v677
      %v720 = vunpack.c.l.b16 %v678
      %v721 = vunpack.c.l.b16 %v679
      %v722 = vunpack.c.l.b16 %v680
      %v723 = vunpack.c.l.b16 %v681
      %v724 = vunpack.c.l.b16 %v682
      %v725 = vunpack.c.l.b16 %v683
      %v726 = vunpack.c.l.b16 %v684
      %v727 = vunpack.c.l.b16 %v685
      %v728 = vunpack.c.l.b16 %v686
      %v729 = vunpack.c.l.b16 %v687
      %v730 = vunpack.c.l.b16 %v688
      %v731 = vpack.c.b16 %v716, %v715
      %v732 = vpack.c.b16 %v718, %v717
      %v733 = vpack.c.b16 %v720, %v719
      %v734 = vpack.c.b16 %v722, %v721
      %v735 = vpack.c.b16 %v724, %v723
      %v736 = vpack.c.b16 %v726, %v725
      %v737 = vpack.c.b16 %v728, %v727
      %v738 = vpack.c.b16 %v730, %v729
      %747 = vmatprep.subr.bf16.mxu0 0
      %748 = vmatpush1.bf16.msra.mxu0 %v738
      %749 = vmatprep.subr.bf16.mxu0 0
      %750 = vmatpush1.bf16.msra.mxu0 %v737
      %751 = vmatprep.subr.bf16.mxu0 0
      %752 = vmatpush1.bf16.msra.mxu0 %v736
      %753 = vmatprep.subr.bf16.mxu0 0
      %754 = vmatpush1.bf16.msra.mxu0 %v735
      %755 = vmatprep.subr.bf16.mxu0 0
      %756 = vmatpush1.bf16.msra.mxu0 %v734
      %757 = vmatprep.subr.bf16.mxu0 0
      %758 = vmatpush1.bf16.msra.mxu0 %v733
      %759 = vmatprep.subr.bf16.mxu0 0
      %760 = vmatpush1.bf16.msra.mxu0 %v732
      %761 = vmatprep.subr.bf16.mxu0 0
      %762 = vmatpush1.bf16.msra.mxu0 %v731
      %763 = vmatprep.subr.bf16.mxu0 0
      %764 = vmatpush2.bf16.msra.mxu0 0
      %765 = vmatprep.subr.bf16.mxu0 0
      %766 = vmatpush2.bf16.msra.mxu0 0
      %767 = vmatprep.subr.bf16.mxu0 0
      %768 = vmatpush2.bf16.msra.mxu0 0
      %769 = vmatprep.subr.bf16.mxu0 0
      %770 = vmatpush2.bf16.msra.mxu0 0
      %771 = vmatprep.subr.bf16.mxu0 0
      %772 = vmatpush2.bf16.msra.mxu0 0
      %773 = vmatprep.subr.bf16.mxu0 0
      %774 = vmatpush2.bf16.msra.mxu0 0
      %775 = vmatprep.subr.bf16.mxu0 0
      %776 = vmatpush2.bf16.msra.mxu0 0
      %777 = vmatprep.subr.bf16.mxu0 0
      %778 = vmatpush2.bf16.msra.mxu0 0
      %779 = vmatprep.mubr.bf16.mxu0 0
      %780 = vmatmul.mubr.bf16.gmra.mxu0 %v697
      %v781 = vpop.f32.mrf.mxu0
      %v782 = vadd.f32 0.0, %v781
      %v783 = vpop.f32.mrf.mxu0
      %v784 = vpop.f32.mrf.mxu0
      %v785 = vadd.f32 0.0, %v784
      %v786 = vpop.f32.mrf.mxu0
      %787 = vdwg.mxu0
      %v788 = vadd.f32 %v669, %v782
      %v789 = vadd.f32 %v670, %v785
      %s790 = scalar_lea.vmem %s1, 256
      %v791 = vld [vmem:[%s790] sm:$0xf]
      %v792 = vld [vmem:[%s790 + $0x4] sm:$0xf]
      %v793 = vld [vmem:[%s790 + $0x8] sm:$0xf]
      %v794 = vld [vmem:[%s790 + $0xc] sm:$0xf]
      %v795 = vld [vmem:[%s790 + $0x10] sm:$0xf]
      %v796 = vld [vmem:[%s790 + $0x14] sm:$0xf]
      %v797 = vld [vmem:[%s790 + $0x18] sm:$0xf]
      %v798 = vld [vmem:[%s790 + $0x1c] sm:$0xf]
      %v799 = vld [vmem:[%s790 + $0x20] sm:$0xf]
      %v800 = vld [vmem:[%s790 + $0x24] sm:$0xf]
      %v801 = vld [vmem:[%s790 + $0x28] sm:$0xf]
      %v802 = vld [vmem:[%s790 + $0x2c] sm:$0xf]
      %v803 = vld [vmem:[%s790 + $0x30] sm:$0xf]
      %v804 = vld [vmem:[%s790 + $0x34] sm:$0xf]
      %v805 = vld [vmem:[%s790 + $0x38] sm:$0xf]
      %v806 = vld [vmem:[%s790 + $0x3c] sm:$0xf]
      %vm808 = vcmask 1045504
      %v809 = vrot.slane %v340, 2
      %v810 = vrot.slane %v671, 2
      %v811 = vsel %vm808, %v809, %v810
      %v829 = vunpack.c.l.b16 %v791
      %v830 = vunpack.c.l.b16 %v792
      %v831 = vunpack.c.l.b16 %v793
      %v832 = vunpack.c.l.b16 %v794
      %v833 = vunpack.c.l.b16 %v795
      %v834 = vunpack.c.l.b16 %v796
      %v835 = vunpack.c.l.b16 %v797
      %v836 = vunpack.c.l.b16 %v798
      %v837 = vunpack.c.l.b16 %v799
      %v838 = vunpack.c.l.b16 %v800
      %v839 = vunpack.c.l.b16 %v801
      %v840 = vunpack.c.l.b16 %v802
      %v841 = vunpack.c.l.b16 %v803
      %v842 = vunpack.c.l.b16 %v804
      %v843 = vunpack.c.l.b16 %v805
      %v844 = vunpack.c.l.b16 %v806
      %v845 = vpack.c.b16 %v830, %v829
      %v846 = vpack.c.b16 %v832, %v831
      %v847 = vpack.c.b16 %v834, %v833
      %v848 = vpack.c.b16 %v836, %v835
      %v849 = vpack.c.b16 %v838, %v837
      %v850 = vpack.c.b16 %v840, %v839
      %v851 = vpack.c.b16 %v842, %v841
      %v852 = vpack.c.b16 %v844, %v843
      %861 = vmatprep.subr.bf16.mxu0 0
      %862 = vmatpush1.bf16.msra.mxu0 %v852
      %863 = vmatprep.subr.bf16.mxu0 0
      %864 = vmatpush1.bf16.msra.mxu0 %v851
      %865 = vmatprep.subr.bf16.mxu0 0
      %866 = vmatpush1.bf16.msra.mxu0 %v850
      %867 = vmatprep.subr.bf16.mxu0 0
      %868 = vmatpush1.bf16.msra.mxu0 %v849
      %869 = vmatprep.subr.bf16.mxu0 0
      %870 = vmatpush1.bf16.msra.mxu0 %v848
      %871 = vmatprep.subr.bf16.mxu0 0
      %872 = vmatpush1.bf16.msra.mxu0 %v847
      %873 = vmatprep.subr.bf16.mxu0 0
      %874 = vmatpush1.bf16.msra.mxu0 %v846
      %875 = vmatprep.subr.bf16.mxu0 0
      %876 = vmatpush1.bf16.msra.mxu0 %v845
      %877 = vmatprep.subr.bf16.mxu0 0
      %878 = vmatpush2.bf16.msra.mxu0 0
      %879 = vmatprep.subr.bf16.mxu0 0
      %880 = vmatpush2.bf16.msra.mxu0 0
      %881 = vmatprep.subr.bf16.mxu0 0
      %882 = vmatpush2.bf16.msra.mxu0 0
      %883 = vmatprep.subr.bf16.mxu0 0
      %884 = vmatpush2.bf16.msra.mxu0 0
      %885 = vmatprep.subr.bf16.mxu0 0
      %886 = vmatpush2.bf16.msra.mxu0 0
      %887 = vmatprep.subr.bf16.mxu0 0
      %888 = vmatpush2.bf16.msra.mxu0 0
      %889 = vmatprep.subr.bf16.mxu0 0
      %890 = vmatpush2.bf16.msra.mxu0 0
      %891 = vmatprep.subr.bf16.mxu0 0
      %892 = vmatpush2.bf16.msra.mxu0 0
      %893 = vmatprep.mubr.bf16.mxu0 0
      %894 = vmatmul.mubr.bf16.gmra.mxu0 %v811
      %v895 = vpop.f32.mrf.mxu0
      %v896 = vadd.f32 0.0, %v895
      %v897 = vpop.f32.mrf.mxu0
      %v898 = vpop.f32.mrf.mxu0
      %v899 = vadd.f32 0.0, %v898
      %v900 = vpop.f32.mrf.mxu0
      %901 = vdwg.mxu0
      %v902 = vadd.f32 %v788, %v896
      %v903 = vadd.f32 %v789, %v899
      %s904 = scalar_lea.vmem %s1, 320
      %v905 = vld [vmem:[%s904] sm:$0xf]
      %v906 = vld [vmem:[%s904 + $0x4] sm:$0xf]
      %v907 = vld [vmem:[%s904 + $0x8] sm:$0xf]
      %v908 = vld [vmem:[%s904 + $0xc] sm:$0xf]
      %v909 = vld [vmem:[%s904 + $0x10] sm:$0xf]
      %v910 = vld [vmem:[%s904 + $0x14] sm:$0xf]
      %v911 = vld [vmem:[%s904 + $0x18] sm:$0xf]
      %v912 = vld [vmem:[%s904 + $0x1c] sm:$0xf]
      %v913 = vld [vmem:[%s904 + $0x20] sm:$0xf]
      %v914 = vld [vmem:[%s904 + $0x24] sm:$0xf]
      %v915 = vld [vmem:[%s904 + $0x28] sm:$0xf]
      %v916 = vld [vmem:[%s904 + $0x2c] sm:$0xf]
      %v917 = vld [vmem:[%s904 + $0x30] sm:$0xf]
      %v918 = vld [vmem:[%s904 + $0x34] sm:$0xf]
      %v919 = vld [vmem:[%s904 + $0x38] sm:$0xf]
      %v920 = vld [vmem:[%s904 + $0x3c] sm:$0xf]
      %vm921 = vsmask.f32 5376
      %v922 = vrot.slane %v375, 2
      %v923 = vrot.slane %v377, 3
      %v924 = vor.u32 %v922, %v923
      %v925 = vshrl.u32 %v671, 16
      %v927 = vrot.slane %v925, 2
      %v928 = vrot.slane %v694, 3
      %v929 = vor.u32 %v927, %v928
      %v930 = vsel %vm921, %v924, %v929
      %v948 = vunpack.c.l.b16 %v905
      %v949 = vunpack.c.l.b16 %v906
      %v950 = vunpack.c.l.b16 %v907
      %v951 = vunpack.c.l.b16 %v908
      %v952 = vunpack.c.l.b16 %v909
      %v953 = vunpack.c.l.b16 %v910
      %v954 = vunpack.c.l.b16 %v911
      %v955 = vunpack.c.l.b16 %v912
      %v956 = vunpack.c.l.b16 %v913
      %v957 = vunpack.c.l.b16 %v914
      %v958 = vunpack.c.l.b16 %v915
      %v959 = vunpack.c.l.b16 %v916
      %v960 = vunpack.c.l.b16 %v917
      %v961 = vunpack.c.l.b16 %v918
      %v962 = vunpack.c.l.b16 %v919
      %v963 = vunpack.c.l.b16 %v920
      %v964 = vpack.c.b16 %v949, %v948
      %v965 = vpack.c.b16 %v951, %v950
      %v966 = vpack.c.b16 %v953, %v952
      %v967 = vpack.c.b16 %v955, %v954
      %v968 = vpack.c.b16 %v957, %v956
      %v969 = vpack.c.b16 %v959, %v958
      %v970 = vpack.c.b16 %v961, %v960
      %v971 = vpack.c.b16 %v963, %v962
      %980 = vmatprep.subr.bf16.mxu0 0
      %981 = vmatpush1.bf16.msra.mxu0 %v971
      %982 = vmatprep.subr.bf16.mxu0 0
      %983 = vmatpush1.bf16.msra.mxu0 %v970
      %984 = vmatprep.subr.bf16.mxu0 0
      %985 = vmatpush1.bf16.msra.mxu0 %v969
      %986 = vmatprep.subr.bf16.mxu0 0
      %987 = vmatpush1.bf16.msra.mxu0 %v968
      %988 = vmatprep.subr.bf16.mxu0 0
      %989 = vmatpush1.bf16.msra.mxu0 %v967
      %990 = vmatprep.subr.bf16.mxu0 0
      %991 = vmatpush1.bf16.msra.mxu0 %v966
      %992 = vmatprep.subr.bf16.mxu0 0
      %993 = vmatpush1.bf16.msra.mxu0 %v965
      %994 = vmatprep.subr.bf16.mxu0 0
      %995 = vmatpush1.bf16.msra.mxu0 %v964
      %996 = vmatprep.subr.bf16.mxu0 0
      %997 = vmatpush2.bf16.msra.mxu0 0
      %998 = vmatprep.subr.bf16.mxu0 0
      %999 = vmatpush2.bf16.msra.mxu0 0
      %1000 = vmatprep.subr.bf16.mxu0 0
      %1001 = vmatpush2.bf16.msra.mxu0 0
      %1002 = vmatprep.subr.bf16.mxu0 0
      %1003 = vmatpush2.bf16.msra.mxu0 0
      %1004 = vmatprep.subr.bf16.mxu0 0
      %1005 = vmatpush2.bf16.msra.mxu0 0
      %1006 = vmatprep.subr.bf16.mxu0 0
      %1007 = vmatpush2.bf16.msra.mxu0 0
      %1008 = vmatprep.subr.bf16.mxu0 0
      %1009 = vmatpush2.bf16.msra.mxu0 0
      %1010 = vmatprep.subr.bf16.mxu0 0
      %1011 = vmatpush2.bf16.msra.mxu0 0
      %1012 = vmatprep.mubr.bf16.mxu0 0
      %1013 = vmatmul.mubr.bf16.gmra.mxu0 %v930
      %v1014 = vpop.f32.mrf.mxu0
      %v1015 = vadd.f32 0.0, %v1014
      %v1016 = vpop.f32.mrf.mxu0
      %v1017 = vpop.f32.mrf.mxu0
      %v1018 = vadd.f32 0.0, %v1017
      %v1019 = vpop.f32.mrf.mxu0
      %1020 = vdwg.mxu0
      %v1021 = vadd.f32 %v902, %v1015
      %v1022 = vadd.f32 %v903, %v1018
      %s1023 = scalar_lea.vmem %s1, 384
      %v1024 = vld [vmem:[%s1023] sm:$0xf]
      %v1025 = vld [vmem:[%s1023 + $0x4] sm:$0xf]
      %v1026 = vld [vmem:[%s1023 + $0x8] sm:$0xf]
      %v1027 = vld [vmem:[%s1023 + $0xc] sm:$0xf]
      %v1028 = vld [vmem:[%s1023 + $0x10] sm:$0xf]
      %v1029 = vld [vmem:[%s1023 + $0x14] sm:$0xf]
      %v1030 = vld [vmem:[%s1023 + $0x18] sm:$0xf]
      %v1031 = vld [vmem:[%s1023 + $0x1c] sm:$0xf]
      %v1032 = vld [vmem:[%s1023 + $0x20] sm:$0xf]
      %v1033 = vld [vmem:[%s1023 + $0x24] sm:$0xf]
      %v1034 = vld [vmem:[%s1023 + $0x28] sm:$0xf]
      %v1035 = vld [vmem:[%s1023 + $0x2c] sm:$0xf]
      %v1036 = vld [vmem:[%s1023 + $0x30] sm:$0xf]
      %v1037 = vld [vmem:[%s1023 + $0x34] sm:$0xf]
      %v1038 = vld [vmem:[%s1023 + $0x38] sm:$0xf]
      %v1039 = vld [vmem:[%s1023 + $0x3c] sm:$0xf]
      %vm1040 = vcmask 1044480
      %v1041 = vrot.slane %v340, 3
      %v1042 = vrot.slane %v671, 3
      %v1043 = vsel %vm1040, %v1041, %v1042
      %v1061 = vunpack.c.l.b16 %v1024
      %v1062 = vunpack.c.l.b16 %v1025
      %v1063 = vunpack.c.l.b16 %v1026
      %v1064 = vunpack.c.l.b16 %v1027
      %v1065 = vunpack.c.l.b16 %v1028
      %v1066 = vunpack.c.l.b16 %v1029
      %v1067 = vunpack.c.l.b16 %v1030
      %v1068 = vunpack.c.l.b16 %v1031
      %v1069 = vunpack.c.l.b16 %v1032
      %v1070 = vunpack.c.l.b16 %v1033
      %v1071 = vunpack.c.l.b16 %v1034
      %v1072 = vunpack.c.l.b16 %v1035
      %v1073 = vunpack.c.l.b16 %v1036
      %v1074 = vunpack.c.l.b16 %v1037
      %v1075 = vunpack.c.l.b16 %v1038
      %v1076 = vunpack.c.l.b16 %v1039
      %v1077 = vpack.c.b16 %v1062, %v1061
      %v1078 = vpack.c.b16 %v1064, %v1063
      %v1079 = vpack.c.b16 %v1066, %v1065
      %v1080 = vpack.c.b16 %v1068, %v1067
      %v1081 = vpack.c.b16 %v1070, %v1069
      %v1082 = vpack.c.b16 %v1072, %v1071
      %v1083 = vpack.c.b16 %v1074, %v1073
      %v1084 = vpack.c.b16 %v1076, %v1075
      %1093 = vmatprep.subr.bf16.mxu0 0
      %1094 = vmatpush1.bf16.msra.mxu0 %v1084
      %1095 = vmatprep.subr.bf16.mxu0 0
      %1096 = vmatpush1.bf16.msra.mxu0 %v1083
      %1097 = vmatprep.subr.bf16.mxu0 0
      %1098 = vmatpush1.bf16.msra.mxu0 %v1082
      %1099 = vmatprep.subr.bf16.mxu0 0
      %1100 = vmatpush1.bf16.msra.mxu0 %v1081
      %1101 = vmatprep.subr.bf16.mxu0 0
      %1102 = vmatpush1.bf16.msra.mxu0 %v1080
      %1103 = vmatprep.subr.bf16.mxu0 0
      %1104 = vmatpush1.bf16.msra.mxu0 %v1079
      %1105 = vmatprep.subr.bf16.mxu0 0
      %1106 = vmatpush1.bf16.msra.mxu0 %v1078
      %1107 = vmatprep.subr.bf16.mxu0 0
      %1108 = vmatpush1.bf16.msra.mxu0 %v1077
      %1109 = vmatprep.subr.bf16.mxu0 0
      %1110 = vmatpush2.bf16.msra.mxu0 0
      %1111 = vmatprep.subr.bf16.mxu0 0
      %1112 = vmatpush2.bf16.msra.mxu0 0
      %1113 = vmatprep.subr.bf16.mxu0 0
      %1114 = vmatpush2.bf16.msra.mxu0 0
      %1115 = vmatprep.subr.bf16.mxu0 0
      %1116 = vmatpush2.bf16.msra.mxu0 0
      %1117 = vmatprep.subr.bf16.mxu0 0
      %1118 = vmatpush2.bf16.msra.mxu0 0
      %1119 = vmatprep.subr.bf16.mxu0 0
      %1120 = vmatpush2.bf16.msra.mxu0 0
      %1121 = vmatprep.subr.bf16.mxu0 0
      %1122 = vmatpush2.bf16.msra.mxu0 0
      %1123 = vmatprep.subr.bf16.mxu0 0
      %1124 = vmatpush2.bf16.msra.mxu0 0
      %1125 = vmatprep.mubr.bf16.mxu0 0
      %1126 = vmatmul.mubr.bf16.gmra.mxu0 %v1043
      %v1127 = vpop.f32.mrf.mxu0
      %v1128 = vadd.f32 0.0, %v1127
      %v1129 = vpop.f32.mrf.mxu0
      %v1130 = vpop.f32.mrf.mxu0
      %v1131 = vadd.f32 0.0, %v1130
      %v1132 = vpop.f32.mrf.mxu0
      %1133 = vdwg.mxu0
      %v1134 = vadd.f32 %v1021, %v1128
      %v1135 = vadd.f32 %v1022, %v1131
      %s1136 = scalar_lea.vmem %s1, 448
      %v1137 = vld [vmem:[%s1136] sm:$0xf]
      %v1138 = vld [vmem:[%s1136 + $0x4] sm:$0xf]
      %v1139 = vld [vmem:[%s1136 + $0x8] sm:$0xf]
      %v1140 = vld [vmem:[%s1136 + $0xc] sm:$0xf]
      %v1141 = vld [vmem:[%s1136 + $0x10] sm:$0xf]
      %v1142 = vld [vmem:[%s1136 + $0x14] sm:$0xf]
      %v1143 = vld [vmem:[%s1136 + $0x18] sm:$0xf]
      %v1144 = vld [vmem:[%s1136 + $0x1c] sm:$0xf]
      %v1145 = vld [vmem:[%s1136 + $0x20] sm:$0xf]
      %v1146 = vld [vmem:[%s1136 + $0x24] sm:$0xf]
      %v1147 = vld [vmem:[%s1136 + $0x28] sm:$0xf]
      %v1148 = vld [vmem:[%s1136 + $0x2c] sm:$0xf]
      %v1149 = vld [vmem:[%s1136 + $0x30] sm:$0xf]
      %v1150 = vld [vmem:[%s1136 + $0x34] sm:$0xf]
      %v1151 = vld [vmem:[%s1136 + $0x38] sm:$0xf]
      %v1152 = vld [vmem:[%s1136 + $0x3c] sm:$0xf]
      %vm1153 = vsmask.f32 4352
      %v1154 = vrot.slane %v375, 3
      %v1155 = vrot.slane %v377, 4
      %v1156 = vor.u32 %v1154, %v1155
      %v1157 = vrot.slane %v925, 3
      %v1158 = vrot.slane %v694, 4
      %v1159 = vor.u32 %v1157, %v1158
      %v1160 = vsel %vm1153, %v1156, %v1159
      %v1178 = vunpack.c.l.b16 %v1137
      %v1179 = vunpack.c.l.b16 %v1138
      %v1180 = vunpack.c.l.b16 %v1139
      %v1181 = vunpack.c.l.b16 %v1140
      %v1182 = vunpack.c.l.b16 %v1141
      %v1183 = vunpack.c.l.b16 %v1142
      %v1184 = vunpack.c.l.b16 %v1143
      %v1185 = vunpack.c.l.b16 %v1144
      %v1186 = vunpack.c.l.b16 %v1145
      %v1187 = vunpack.c.l.b16 %v1146
      %v1188 = vunpack.c.l.b16 %v1147
      %v1189 = vunpack.c.l.b16 %v1148
      %v1190 = vunpack.c.l.b16 %v1149
      %v1191 = vunpack.c.l.b16 %v1150
      %v1192 = vunpack.c.l.b16 %v1151
      %v1193 = vunpack.c.l.b16 %v1152
      %v1194 = vpack.c.b16 %v1179, %v1178
      %v1195 = vpack.c.b16 %v1181, %v1180
      %v1196 = vpack.c.b16 %v1183, %v1182
      %v1197 = vpack.c.b16 %v1185, %v1184
      %v1198 = vpack.c.b16 %v1187, %v1186
      %v1199 = vpack.c.b16 %v1189, %v1188
      %v1200 = vpack.c.b16 %v1191, %v1190
      %v1201 = vpack.c.b16 %v1193, %v1192
      %1210 = vmatprep.subr.bf16.mxu0 0
      %1211 = vmatpush1.bf16.msra.mxu0 %v1201
      %1212 = vmatprep.subr.bf16.mxu0 0
      %1213 = vmatpush1.bf16.msra.mxu0 %v1200
      %1214 = vmatprep.subr.bf16.mxu0 0
      %1215 = vmatpush1.bf16.msra.mxu0 %v1199
      %1216 = vmatprep.subr.bf16.mxu0 0
      %1217 = vmatpush1.bf16.msra.mxu0 %v1198
      %1218 = vmatprep.subr.bf16.mxu0 0
      %1219 = vmatpush1.bf16.msra.mxu0 %v1197
      %1220 = vmatprep.subr.bf16.mxu0 0
      %1221 = vmatpush1.bf16.msra.mxu0 %v1196
      %1222 = vmatprep.subr.bf16.mxu0 0
      %1223 = vmatpush1.bf16.msra.mxu0 %v1195
      %1224 = vmatprep.subr.bf16.mxu0 0
      %1225 = vmatpush1.bf16.msra.mxu0 %v1194
      %1226 = vmatprep.subr.bf16.mxu0 0
      %1227 = vmatpush2.bf16.msra.mxu0 0
      %1228 = vmatprep.subr.bf16.mxu0 0
      %1229 = vmatpush2.bf16.msra.mxu0 0
      %1230 = vmatprep.subr.bf16.mxu0 0
      %1231 = vmatpush2.bf16.msra.mxu0 0
      %1232 = vmatprep.subr.bf16.mxu0 0
      %1233 = vmatpush2.bf16.msra.mxu0 0
      %1234 = vmatprep.subr.bf16.mxu0 0
      %1235 = vmatpush2.bf16.msra.mxu0 0
      %1236 = vmatprep.subr.bf16.mxu0 0
      %1237 = vmatpush2.bf16.msra.mxu0 0
      %1238 = vmatprep.subr.bf16.mxu0 0
      %1239 = vmatpush2.bf16.msra.mxu0 0
      %1240 = vmatprep.subr.bf16.mxu0 0
      %1241 = vmatpush2.bf16.msra.mxu0 0
      %1242 = vmatprep.mubr.bf16.mxu0 0
      %1243 = vmatmul.mubr.bf16.gmra.mxu0 %v1160
      %v1244 = vpop.f32.mrf.mxu0
      %v1245 = vadd.f32 0.0, %v1244
      %v1246 = vpop.f32.mrf.mxu0
      %v1247 = vpop.f32.mrf.mxu0
      %v1248 = vadd.f32 0.0, %v1247
      %v1249 = vpop.f32.mrf.mxu0
      %1250 = vdwg.mxu0
      %v1251 = vadd.f32 %v1134, %v1245
      %v1252 = vadd.f32 %v1135, %v1248
      %v1253 = vld [vmem:[%s2] sm:$0x1]
      %v1255 = vlaneseq
      %v1256 = vshrl.u32 %v1255, 7
      %v1257 = vsub.s32 0, %v1256
      %v1258 = vrot.slane %v1253, %v1257
      %v1260 = vadd.f32 %v1251, %v1258
      %v1261 = vadd.f32 %v1252, %v1258
      %v1262 = vmax.f32 %v1260, 0.0
      %v1263 = vmax.f32 %v1261, 0.0
      %v1264 = vld [vmem:[%s3] sm:$0x1]
      %v1266 = vlaneseq
      %v1267 = vshrl.u32 %v1266, 7
      %v1268 = vsub.s32 0, %v1267
      %v1269 = vrot.slane %v1264, %v1268
      %v1271 = vmul.f32 %v1262, %v1269
      %v1272 = vmul.f32 %v1263, %v1269
      %v1273 = vld [vmem:[%s4] sm:$0x1]
      %v1275 = vlaneseq
      %v1276 = vshrl.u32 %v1275, 7
      %v1277 = vsub.s32 0, %v1276
      %v1278 = vrot.slane %v1273, %v1277
      %v1280 = vadd.f32 %v1271, %v1278
      %v1281 = vadd.f32 %v1272, %v1278
      %vm1284 = vcmask 1043456
      %v1285 = vrot.slane %v1280, 4
      %v1286 = vrot.slane %v1281, 4
      %v1287 = vsel %vm1284, %v1285, %v1286
      %v1291 = vsel %vm1284, 0.0, %v1285
      %vm1292 = vcmask 1041408
      %v1293 = vsel %vm1292, %v1286, 0.0
      %v1294 = vpack.c.bf16 %v1287, %v1291
      %v1295 = vld [vmem:[%s5] sm:$0xf]
      %v1296 = vld [vmem:[%s5 + $0x4] sm:$0xf]
      %v1297 = vld [vmem:[%s5 + $0x8] sm:$0xf]
      %v1298 = vld [vmem:[%s5 + $0xc] sm:$0xf]
      %v1299 = vld [vmem:[%s5 + $0x10] sm:$0xf]
      %v1300 = vld [vmem:[%s5 + $0x14] sm:$0xf]
      %v1301 = vld [vmem:[%s5 + $0x18] sm:$0xf]
      %v1302 = vld [vmem:[%s5 + $0x1c] sm:$0xf]
      %v1303 = vld [vmem:[%s5 + $0x20] sm:$0xf]
      %v1304 = vld [vmem:[%s5 + $0x24] sm:$0xf]
      %v1305 = vld [vmem:[%s5 + $0x28] sm:$0xf]
      %v1306 = vld [vmem:[%s5 + $0x2c] sm:$0xf]
      %v1307 = vld [vmem:[%s5 + $0x30] sm:$0xf]
      %v1308 = vld [vmem:[%s5 + $0x34] sm:$0xf]
      %v1309 = vld [vmem:[%s5 + $0x38] sm:$0xf]
      %v1310 = vld [vmem:[%s5 + $0x3c] sm:$0xf]
      %s1311 = scalar_lea.vmem %s5, 64
      %v1312 = vld [vmem:[%s1311] sm:$0xf]
      %v1313 = vld [vmem:[%s1311 + $0x4] sm:$0xf]
      %v1314 = vld [vmem:[%s1311 + $0x8] sm:$0xf]
      %v1315 = vld [vmem:[%s1311 + $0xc] sm:$0xf]
      %v1316 = vld [vmem:[%s1311 + $0x10] sm:$0xf]
      %v1317 = vld [vmem:[%s1311 + $0x14] sm:$0xf]
      %v1318 = vld [vmem:[%s1311 + $0x18] sm:$0xf]
      %v1319 = vld [vmem:[%s1311 + $0x1c] sm:$0xf]
      %v1320 = vld [vmem:[%s1311 + $0x20] sm:$0xf]
      %v1321 = vld [vmem:[%s1311 + $0x24] sm:$0xf]
      %v1322 = vld [vmem:[%s1311 + $0x28] sm:$0xf]
      %v1323 = vld [vmem:[%s1311 + $0x2c] sm:$0xf]
      %v1324 = vld [vmem:[%s1311 + $0x30] sm:$0xf]
      %v1325 = vld [vmem:[%s1311 + $0x34] sm:$0xf]
      %v1326 = vld [vmem:[%s1311 + $0x38] sm:$0xf]
      %v1327 = vld [vmem:[%s1311 + $0x3c] sm:$0xf]
      %v1329 = vshrl.u32 %v1294, 16
      %v1331 = vshll.u32 %v1294, 16
      %v1333 = vrot.slane %v1331, 1
      %v1334 = vor.u32 %v1329, %v1333
      %v1352 = vunpack.c.l.b16 %v1312
      %v1353 = vunpack.c.l.b16 %v1313
      %v1354 = vunpack.c.l.b16 %v1314
      %v1355 = vunpack.c.l.b16 %v1315
      %v1356 = vunpack.c.l.b16 %v1316
      %v1357 = vunpack.c.l.b16 %v1317
      %v1358 = vunpack.c.l.b16 %v1318
      %v1359 = vunpack.c.l.b16 %v1319
      %v1360 = vunpack.c.l.b16 %v1320
      %v1361 = vunpack.c.l.b16 %v1321
      %v1362 = vunpack.c.l.b16 %v1322
      %v1363 = vunpack.c.l.b16 %v1323
      %v1364 = vunpack.c.l.b16 %v1324
      %v1365 = vunpack.c.l.b16 %v1325
      %v1366 = vunpack.c.l.b16 %v1326
      %v1367 = vunpack.c.l.b16 %v1327
      %v1368 = vpack.c.b16 %v1353, %v1352
      %v1369 = vpack.c.b16 %v1355, %v1354
      %v1370 = vpack.c.b16 %v1357, %v1356
      %v1371 = vpack.c.b16 %v1359, %v1358
      %v1372 = vpack.c.b16 %v1361, %v1360
      %v1373 = vpack.c.b16 %v1363, %v1362
      %v1374 = vpack.c.b16 %v1365, %v1364
      %v1375 = vpack.c.b16 %v1367, %v1366
      %1384 = vmatprep.subr.bf16.mxu0 0
      %1385 = vmatpush1.bf16.msra.mxu0 %v1375
      %1386 = vmatprep.subr.bf16.mxu0 0
      %1387 = vmatpush1.bf16.msra.mxu0 %v1374
      %1388 = vmatprep.subr.bf16.mxu0 0
      %1389 = vmatpush1.bf16.msra.mxu0 %v1373
      %1390 = vmatprep.subr.bf16.mxu0 0
      %1391 = vmatpush1.bf16.msra.mxu0 %v1372
      %1392 = vmatprep.subr.bf16.mxu0 0
      %1393 = vmatpush1.bf16.msra.mxu0 %v1371
      %1394 = vmatprep.subr.bf16.mxu0 0
      %1395 = vmatpush1.bf16.msra.mxu0 %v1370
      %1396 = vmatprep.subr.bf16.mxu0 0
      %1397 = vmatpush1.bf16.msra.mxu0 %v1369
      %1398 = vmatprep.subr.bf16.mxu0 0
      %1399 = vmatpush1.bf16.msra.mxu0 %v1368
      %1400 = vmatprep.subr.bf16.mxu0 0
      %1401 = vmatpush2.bf16.msra.mxu0 0
      %1402 = vmatprep.subr.bf16.mxu0 0
      %1403 = vmatpush2.bf16.msra.mxu0 0
      %1404 = vmatprep.subr.bf16.mxu0 0
      %1405 = vmatpush2.bf16.msra.mxu0 0
      %1406 = vmatprep.subr.bf16.mxu0 0
      %1407 = vmatpush2.bf16.msra.mxu0 0
      %1408 = vmatprep.subr.bf16.mxu0 0
      %1409 = vmatpush2.bf16.msra.mxu0 0
      %1410 = vmatprep.subr.bf16.mxu0 0
      %1411 = vmatpush2.bf16.msra.mxu0 0
      %1412 = vmatprep.subr.bf16.mxu0 0
      %1413 = vmatpush2.bf16.msra.mxu0 0
      %1414 = vmatprep.subr.bf16.mxu0 0
      %1415 = vmatpush2.bf16.msra.mxu0 0
      %1416 = vmatprep.mubr.bf16.mxu0 0
      %1417 = vmatmul.mubr.bf16.gmra.mxu0 %v1334
      %v1418 = vpop.f32.mrf.mxu0
      %v1419 = vadd.f32 0.0, %v1418
      %v1420 = vpop.f32.mrf.mxu0
      %v1421 = vpop.f32.mrf.mxu0
      %v1422 = vadd.f32 0.0, %v1421
      %v1423 = vpop.f32.mrf.mxu0
      %1424 = vdwg.mxu0
      %v1441 = vunpack.c.l.b16 %v1295
      %v1442 = vunpack.c.l.b16 %v1296
      %v1443 = vunpack.c.l.b16 %v1297
      %v1444 = vunpack.c.l.b16 %v1298
      %v1445 = vunpack.c.l.b16 %v1299
      %v1446 = vunpack.c.l.b16 %v1300
      %v1447 = vunpack.c.l.b16 %v1301
      %v1448 = vunpack.c.l.b16 %v1302
      %v1449 = vunpack.c.l.b16 %v1303
      %v1450 = vunpack.c.l.b16 %v1304
      %v1451 = vunpack.c.l.b16 %v1305
      %v1452 = vunpack.c.l.b16 %v1306
      %v1453 = vunpack.c.l.b16 %v1307
      %v1454 = vunpack.c.l.b16 %v1308
      %v1455 = vunpack.c.l.b16 %v1309
      %v1456 = vunpack.c.l.b16 %v1310
      %v1457 = vpack.c.b16 %v1442, %v1441
      %v1458 = vpack.c.b16 %v1444, %v1443
      %v1459 = vpack.c.b16 %v1446, %v1445
      %v1460 = vpack.c.b16 %v1448, %v1447
      %v1461 = vpack.c.b16 %v1450, %v1449
      %v1462 = vpack.c.b16 %v1452, %v1451
      %v1463 = vpack.c.b16 %v1454, %v1453
      %v1464 = vpack.c.b16 %v1456, %v1455
      %1473 = vmatprep.subr.bf16.mxu0 0
      %1474 = vmatpush1.bf16.msra.mxu0 %v1464
      %1475 = vmatprep.subr.bf16.mxu0 0
      %1476 = vmatpush1.bf16.msra.mxu0 %v1463
      %1477 = vmatprep.subr.bf16.mxu0 0
      %1478 = vmatpush1.bf16.msra.mxu0 %v1462
      %1479 = vmatprep.subr.bf16.mxu0 0
      %1480 = vmatpush1.bf16.msra.mxu0 %v1461
      %1481 = vmatprep.subr.bf16.mxu0 0
      %1482 = vmatpush1.bf16.msra.mxu0 %v1460
      %1483 = vmatprep.subr.bf16.mxu0 0
      %1484 = vmatpush1.bf16.msra.mxu0 %v1459
      %1485 = vmatprep.subr.bf16.mxu0 0
      %1486 = vmatpush1.bf16.msra.mxu0 %v1458
      %1487 = vmatprep.subr.bf16.mxu0 0
      %1488 = vmatpush1.bf16.msra.mxu0 %v1457
      %1489 = vmatprep.subr.bf16.mxu0 0
      %1490 = vmatpush2.bf16.msra.mxu0 0
      %1491 = vmatprep.subr.bf16.mxu0 0
      %1492 = vmatpush2.bf16.msra.mxu0 0
      %1493 = vmatprep.subr.bf16.mxu0 0
      %1494 = vmatpush2.bf16.msra.mxu0 0
      %1495 = vmatprep.subr.bf16.mxu0 0
      %1496 = vmatpush2.bf16.msra.mxu0 0
      %1497 = vmatprep.subr.bf16.mxu0 0
      %1498 = vmatpush2.bf16.msra.mxu0 0
      %1499 = vmatprep.subr.bf16.mxu0 0
      %1500 = vmatpush2.bf16.msra.mxu0 0
      %1501 = vmatprep.subr.bf16.mxu0 0
      %1502 = vmatpush2.bf16.msra.mxu0 0
      %1503 = vmatprep.subr.bf16.mxu0 0
      %1504 = vmatpush2.bf16.msra.mxu0 0
      %1505 = vmatprep.mubr.bf16.mxu0 0
      %1506 = vmatmul.mubr.bf16.gmra.mxu0 %v1294
      %v1507 = vpop.f32.mrf.mxu0
      %v1508 = vadd.f32 %v1419, %v1507
      %v1509 = vpop.f32.mrf.mxu0
      %v1510 = vpop.f32.mrf.mxu0
      %v1511 = vadd.f32 %v1422, %v1510
      %v1512 = vpop.f32.mrf.mxu0
      %1513 = vdwg.mxu0
      %v1514 = vpack.c.bf16 %v1293, %v1293
      %s1515 = scalar_lea.vmem %s5, 128
      %v1516 = vld [vmem:[%s1515] sm:$0xf]
      %v1517 = vld [vmem:[%s1515 + $0x4] sm:$0xf]
      %v1518 = vld [vmem:[%s1515 + $0x8] sm:$0xf]
      %v1519 = vld [vmem:[%s1515 + $0xc] sm:$0xf]
      %v1520 = vld [vmem:[%s1515 + $0x10] sm:$0xf]
      %v1521 = vld [vmem:[%s1515 + $0x14] sm:$0xf]
      %v1522 = vld [vmem:[%s1515 + $0x18] sm:$0xf]
      %v1523 = vld [vmem:[%s1515 + $0x1c] sm:$0xf]
      %v1524 = vld [vmem:[%s1515 + $0x20] sm:$0xf]
      %v1525 = vld [vmem:[%s1515 + $0x24] sm:$0xf]
      %v1526 = vld [vmem:[%s1515 + $0x28] sm:$0xf]
      %v1527 = vld [vmem:[%s1515 + $0x2c] sm:$0xf]
      %v1528 = vld [vmem:[%s1515 + $0x30] sm:$0xf]
      %v1529 = vld [vmem:[%s1515 + $0x34] sm:$0xf]
      %v1530 = vld [vmem:[%s1515 + $0x38] sm:$0xf]
      %v1531 = vld [vmem:[%s1515 + $0x3c] sm:$0xf]
      %vm1534 = vcmask 1046528
      %v1535 = vrot.slane %v1294, 1
      %v1536 = vrot.slane %v1514, 1
      %v1537 = vsel %vm1534, %v1535, %v1536
      %v1555 = vunpack.c.l.b16 %v1516
      %v1556 = vunpack.c.l.b16 %v1517
      %v1557 = vunpack.c.l.b16 %v1518
      %v1558 = vunpack.c.l.b16 %v1519
      %v1559 = vunpack.c.l.b16 %v1520
      %v1560 = vunpack.c.l.b16 %v1521
      %v1561 = vunpack.c.l.b16 %v1522
      %v1562 = vunpack.c.l.b16 %v1523
      %v1563 = vunpack.c.l.b16 %v1524
      %v1564 = vunpack.c.l.b16 %v1525
      %v1565 = vunpack.c.l.b16 %v1526
      %v1566 = vunpack.c.l.b16 %v1527
      %v1567 = vunpack.c.l.b16 %v1528
      %v1568 = vunpack.c.l.b16 %v1529
      %v1569 = vunpack.c.l.b16 %v1530
      %v1570 = vunpack.c.l.b16 %v1531
      %v1571 = vpack.c.b16 %v1556, %v1555
      %v1572 = vpack.c.b16 %v1558, %v1557
      %v1573 = vpack.c.b16 %v1560, %v1559
      %v1574 = vpack.c.b16 %v1562, %v1561
      %v1575 = vpack.c.b16 %v1564, %v1563
      %v1576 = vpack.c.b16 %v1566, %v1565
      %v1577 = vpack.c.b16 %v1568, %v1567
      %v1578 = vpack.c.b16 %v1570, %v1569
      %1587 = vmatprep.subr.bf16.mxu0 0
      %1588 = vmatpush1.bf16.msra.mxu0 %v1578
      %1589 = vmatprep.subr.bf16.mxu0 0
      %1590 = vmatpush1.bf16.msra.mxu0 %v1577
      %1591 = vmatprep.subr.bf16.mxu0 0
      %1592 = vmatpush1.bf16.msra.mxu0 %v1576
      %1593 = vmatprep.subr.bf16.mxu0 0
      %1594 = vmatpush1.bf16.msra.mxu0 %v1575
      %1595 = vmatprep.subr.bf16.mxu0 0
      %1596 = vmatpush1.bf16.msra.mxu0 %v1574
      %1597 = vmatprep.subr.bf16.mxu0 0
      %1598 = vmatpush1.bf16.msra.mxu0 %v1573
      %1599 = vmatprep.subr.bf16.mxu0 0
      %1600 = vmatpush1.bf16.msra.mxu0 %v1572
      %1601 = vmatprep.subr.bf16.mxu0 0
      %1602 = vmatpush1.bf16.msra.mxu0 %v1571
      %1603 = vmatprep.subr.bf16.mxu0 0
      %1604 = vmatpush2.bf16.msra.mxu0 0
      %1605 = vmatprep.subr.bf16.mxu0 0
      %1606 = vmatpush2.bf16.msra.mxu0 0
      %1607 = vmatprep.subr.bf16.mxu0 0
      %1608 = vmatpush2.bf16.msra.mxu0 0
      %1609 = vmatprep.subr.bf16.mxu0 0
      %1610 = vmatpush2.bf16.msra.mxu0 0
      %1611 = vmatprep.subr.bf16.mxu0 0
      %1612 = vmatpush2.bf16.msra.mxu0 0
      %1613 = vmatprep.subr.bf16.mxu0 0
      %1614 = vmatpush2.bf16.msra.mxu0 0
      %1615 = vmatprep.subr.bf16.mxu0 0
      %1616 = vmatpush2.bf16.msra.mxu0 0
      %1617 = vmatprep.subr.bf16.mxu0 0
      %1618 = vmatpush2.bf16.msra.mxu0 0
      %1619 = vmatprep.mubr.bf16.mxu0 0
      %1620 = vmatmul.mubr.bf16.gmra.mxu0 %v1537
      %v1621 = vpop.f32.mrf.mxu0
      %v1622 = vadd.f32 0.0, %v1621
      %v1623 = vpop.f32.mrf.mxu0
      %v1624 = vpop.f32.mrf.mxu0
      %v1625 = vadd.f32 0.0, %v1624
      %v1626 = vpop.f32.mrf.mxu0
      %1627 = vdwg.mxu0
      %v1628 = vadd.f32 %v1508, %v1622
      %v1629 = vadd.f32 %v1511, %v1625
      %s1630 = scalar_lea.vmem %s5, 192
      %v1631 = vld [vmem:[%s1630] sm:$0xf]
      %v1632 = vld [vmem:[%s1630 + $0x4] sm:$0xf]
      %v1633 = vld [vmem:[%s1630 + $0x8] sm:$0xf]
      %v1634 = vld [vmem:[%s1630 + $0xc] sm:$0xf]
      %v1635 = vld [vmem:[%s1630 + $0x10] sm:$0xf]
      %v1636 = vld [vmem:[%s1630 + $0x14] sm:$0xf]
      %v1637 = vld [vmem:[%s1630 + $0x18] sm:$0xf]
      %v1638 = vld [vmem:[%s1630 + $0x1c] sm:$0xf]
      %v1639 = vld [vmem:[%s1630 + $0x20] sm:$0xf]
      %v1640 = vld [vmem:[%s1630 + $0x24] sm:$0xf]
      %v1641 = vld [vmem:[%s1630 + $0x28] sm:$0xf]
      %v1642 = vld [vmem:[%s1630 + $0x2c] sm:$0xf]
      %v1643 = vld [vmem:[%s1630 + $0x30] sm:$0xf]
      %v1644 = vld [vmem:[%s1630 + $0x34] sm:$0xf]
      %v1645 = vld [vmem:[%s1630 + $0x38] sm:$0xf]
      %v1646 = vld [vmem:[%s1630 + $0x3c] sm:$0xf]
      %v1647 = vrot.slane %v1329, 1
      %v1648 = vrot.slane %v1331, 2
      %v1649 = vor.u32 %v1647, %v1648
      %v1651 = vshrl.u32 %v1514, 16
      %v1653 = vrot.slane %v1651, 1
      %v1654 = vshll.u32 %v1514, 16
      %v1656 = vrot.slane %v1654, 2
      %v1657 = vor.u32 %v1653, %v1656
      %v1658 = vsel %vm689, %v1649, %v1657
      %v1676 = vunpack.c.l.b16 %v1631
      %v1677 = vunpack.c.l.b16 %v1632
      %v1678 = vunpack.c.l.b16 %v1633
      %v1679 = vunpack.c.l.b16 %v1634
      %v1680 = vunpack.c.l.b16 %v1635
      %v1681 = vunpack.c.l.b16 %v1636
      %v1682 = vunpack.c.l.b16 %v1637
      %v1683 = vunpack.c.l.b16 %v1638
      %v1684 = vunpack.c.l.b16 %v1639
      %v1685 = vunpack.c.l.b16 %v1640
      %v1686 = vunpack.c.l.b16 %v1641
      %v1687 = vunpack.c.l.b16 %v1642
      %v1688 = vunpack.c.l.b16 %v1643
      %v1689 = vunpack.c.l.b16 %v1644
      %v1690 = vunpack.c.l.b16 %v1645
      %v1691 = vunpack.c.l.b16 %v1646
      %v1692 = vpack.c.b16 %v1677, %v1676
      %v1693 = vpack.c.b16 %v1679, %v1678
      %v1694 = vpack.c.b16 %v1681, %v1680
      %v1695 = vpack.c.b16 %v1683, %v1682
      %v1696 = vpack.c.b16 %v1685, %v1684
      %v1697 = vpack.c.b16 %v1687, %v1686
      %v1698 = vpack.c.b16 %v1689, %v1688
      %v1699 = vpack.c.b16 %v1691, %v1690
      %1708 = vmatprep.subr.bf16.mxu0 0
      %1709 = vmatpush1.bf16.msra.mxu0 %v1699
      %1710 = vmatprep.subr.bf16.mxu0 0
      %1711 = vmatpush1.bf16.msra.mxu0 %v1698
      %1712 = vmatprep.subr.bf16.mxu0 0
      %1713 = vmatpush1.bf16.msra.mxu0 %v1697
      %1714 = vmatprep.subr.bf16.mxu0 0
      %1715 = vmatpush1.bf16.msra.mxu0 %v1696
      %1716 = vmatprep.subr.bf16.mxu0 0
      %1717 = vmatpush1.bf16.msra.mxu0 %v1695
      %1718 = vmatprep.subr.bf16.mxu0 0
      %1719 = vmatpush1.bf16.msra.mxu0 %v1694
      %1720 = vmatprep.subr.bf16.mxu0 0
      %1721 = vmatpush1.bf16.msra.mxu0 %v1693
      %1722 = vmatprep.subr.bf16.mxu0 0
      %1723 = vmatpush1.bf16.msra.mxu0 %v1692
      %1724 = vmatprep.subr.bf16.mxu0 0
      %1725 = vmatpush2.bf16.msra.mxu0 0
      %1726 = vmatprep.subr.bf16.mxu0 0
      %1727 = vmatpush2.bf16.msra.mxu0 0
      %1728 = vmatprep.subr.bf16.mxu0 0
      %1729 = vmatpush2.bf16.msra.mxu0 0
      %1730 = vmatprep.subr.bf16.mxu0 0
      %1731 = vmatpush2.bf16.msra.mxu0 0
      %1732 = vmatprep.subr.bf16.mxu0 0
      %1733 = vmatpush2.bf16.msra.mxu0 0
      %1734 = vmatprep.subr.bf16.mxu0 0
      %1735 = vmatpush2.bf16.msra.mxu0 0
      %1736 = vmatprep.subr.bf16.mxu0 0
      %1737 = vmatpush2.bf16.msra.mxu0 0
      %1738 = vmatprep.subr.bf16.mxu0 0
      %1739 = vmatpush2.bf16.msra.mxu0 0
      %1740 = vmatprep.mubr.bf16.mxu0 0
      %1741 = vmatmul.mubr.bf16.gmra.mxu0 %v1658
      %v1742 = vpop.f32.mrf.mxu0
      %v1743 = vadd.f32 0.0, %v1742
      %v1744 = vpop.f32.mrf.mxu0
      %v1745 = vpop.f32.mrf.mxu0
      %v1746 = vadd.f32 0.0, %v1745
      %v1747 = vpop.f32.mrf.mxu0
      %1748 = vdwg.mxu0
      %v1749 = vadd.f32 %v1628, %v1743
      %v1750 = vadd.f32 %v1629, %v1746
      %s1751 = scalar_lea.vmem %s5, 256
      %v1752 = vld [vmem:[%s1751] sm:$0xf]
      %v1753 = vld [vmem:[%s1751 + $0x4] sm:$0xf]
      %v1754 = vld [vmem:[%s1751 + $0x8] sm:$0xf]
      %v1755 = vld [vmem:[%s1751 + $0xc] sm:$0xf]
      %v1756 = vld [vmem:[%s1751 + $0x10] sm:$0xf]
      %v1757 = vld [vmem:[%s1751 + $0x14] sm:$0xf]
      %v1758 = vld [vmem:[%s1751 + $0x18] sm:$0xf]
      %v1759 = vld [vmem:[%s1751 + $0x1c] sm:$0xf]
      %v1760 = vld [vmem:[%s1751 + $0x20] sm:$0xf]
      %v1761 = vld [vmem:[%s1751 + $0x24] sm:$0xf]
      %v1762 = vld [vmem:[%s1751 + $0x28] sm:$0xf]
      %v1763 = vld [vmem:[%s1751 + $0x2c] sm:$0xf]
      %v1764 = vld [vmem:[%s1751 + $0x30] sm:$0xf]
      %v1765 = vld [vmem:[%s1751 + $0x34] sm:$0xf]
      %v1766 = vld [vmem:[%s1751 + $0x38] sm:$0xf]
      %v1767 = vld [vmem:[%s1751 + $0x3c] sm:$0xf]
      %v1768 = vrot.slane %v1294, 2
      %v1769 = vrot.slane %v1514, 2
      %v1770 = vsel %vm808, %v1768, %v1769
      %v1788 = vunpack.c.l.b16 %v1752
      %v1789 = vunpack.c.l.b16 %v1753
      %v1790 = vunpack.c.l.b16 %v1754
      %v1791 = vunpack.c.l.b16 %v1755
      %v1792 = vunpack.c.l.b16 %v1756
      %v1793 = vunpack.c.l.b16 %v1757
      %v1794 = vunpack.c.l.b16 %v1758
      %v1795 = vunpack.c.l.b16 %v1759
      %v1796 = vunpack.c.l.b16 %v1760
      %v1797 = vunpack.c.l.b16 %v1761
      %v1798 = vunpack.c.l.b16 %v1762
      %v1799 = vunpack.c.l.b16 %v1763
      %v1800 = vunpack.c.l.b16 %v1764
      %v1801 = vunpack.c.l.b16 %v1765
      %v1802 = vunpack.c.l.b16 %v1766
      %v1803 = vunpack.c.l.b16 %v1767
      %v1804 = vpack.c.b16 %v1789, %v1788
      %v1805 = vpack.c.b16 %v1791, %v1790
      %v1806 = vpack.c.b16 %v1793, %v1792
      %v1807 = vpack.c.b16 %v1795, %v1794
      %v1808 = vpack.c.b16 %v1797, %v1796
      %v1809 = vpack.c.b16 %v1799, %v1798
      %v1810 = vpack.c.b16 %v1801, %v1800
      %v1811 = vpack.c.b16 %v1803, %v1802
      %1820 = vmatprep.subr.bf16.mxu0 0
      %1821 = vmatpush1.bf16.msra.mxu0 %v1811
      %1822 = vmatprep.subr.bf16.mxu0 0
      %1823 = vmatpush1.bf16.msra.mxu0 %v1810
      %1824 = vmatprep.subr.bf16.mxu0 0
      %1825 = vmatpush1.bf16.msra.mxu0 %v1809
      %1826 = vmatprep.subr.bf16.mxu0 0
      %1827 = vmatpush1.bf16.msra.mxu0 %v1808
      %1828 = vmatprep.subr.bf16.mxu0 0
      %1829 = vmatpush1.bf16.msra.mxu0 %v1807
      %1830 = vmatprep.subr.bf16.mxu0 0
      %1831 = vmatpush1.bf16.msra.mxu0 %v1806
      %1832 = vmatprep.subr.bf16.mxu0 0
      %1833 = vmatpush1.bf16.msra.mxu0 %v1805
      %1834 = vmatprep.subr.bf16.mxu0 0
      %1835 = vmatpush1.bf16.msra.mxu0 %v1804
      %1836 = vmatprep.subr.bf16.mxu0 0
      %1837 = vmatpush2.bf16.msra.mxu0 0
      %1838 = vmatprep.subr.bf16.mxu0 0
      %1839 = vmatpush2.bf16.msra.mxu0 0
      %1840 = vmatprep.subr.bf16.mxu0 0
      %1841 = vmatpush2.bf16.msra.mxu0 0
      %1842 = vmatprep.subr.bf16.mxu0 0
      %1843 = vmatpush2.bf16.msra.mxu0 0
      %1844 = vmatprep.subr.bf16.mxu0 0
      %1845 = vmatpush2.bf16.msra.mxu0 0
      %1846 = vmatprep.subr.bf16.mxu0 0
      %1847 = vmatpush2.bf16.msra.mxu0 0
      %1848 = vmatprep.subr.bf16.mxu0 0
      %1849 = vmatpush2.bf16.msra.mxu0 0
      %1850 = vmatprep.subr.bf16.mxu0 0
      %1851 = vmatpush2.bf16.msra.mxu0 0
      %1852 = vmatprep.mubr.bf16.mxu0 0
      %1853 = vmatmul.mubr.bf16.gmra.mxu0 %v1770
      %v1854 = vpop.f32.mrf.mxu0
      %v1855 = vadd.f32 0.0, %v1854
      %v1856 = vpop.f32.mrf.mxu0
      %v1857 = vpop.f32.mrf.mxu0
      %v1858 = vadd.f32 0.0, %v1857
      %v1859 = vpop.f32.mrf.mxu0
      %1860 = vdwg.mxu0
      %v1861 = vadd.f32 %v1749, %v1855
      %v1862 = vadd.f32 %v1750, %v1858
      %s1863 = scalar_lea.vmem %s5, 320
      %v1864 = vld [vmem:[%s1863] sm:$0xf]
      %v1865 = vld [vmem:[%s1863 + $0x4] sm:$0xf]
      %v1866 = vld [vmem:[%s1863 + $0x8] sm:$0xf]
      %v1867 = vld [vmem:[%s1863 + $0xc] sm:$0xf]
      %v1868 = vld [vmem:[%s1863 + $0x10] sm:$0xf]
      %v1869 = vld [vmem:[%s1863 + $0x14] sm:$0xf]
      %v1870 = vld [vmem:[%s1863 + $0x18] sm:$0xf]
      %v1871 = vld [vmem:[%s1863 + $0x1c] sm:$0xf]
      %v1872 = vld [vmem:[%s1863 + $0x20] sm:$0xf]
      %v1873 = vld [vmem:[%s1863 + $0x24] sm:$0xf]
      %v1874 = vld [vmem:[%s1863 + $0x28] sm:$0xf]
      %v1875 = vld [vmem:[%s1863 + $0x2c] sm:$0xf]
      %v1876 = vld [vmem:[%s1863 + $0x30] sm:$0xf]
      %v1877 = vld [vmem:[%s1863 + $0x34] sm:$0xf]
      %v1878 = vld [vmem:[%s1863 + $0x38] sm:$0xf]
      %v1879 = vld [vmem:[%s1863 + $0x3c] sm:$0xf]
      %v1880 = vrot.slane %v1329, 2
      %v1881 = vrot.slane %v1331, 3
      %v1882 = vor.u32 %v1880, %v1881
      %v1883 = vrot.slane %v1651, 2
      %v1884 = vrot.slane %v1654, 3
      %v1885 = vor.u32 %v1883, %v1884
      %v1886 = vsel %vm921, %v1882, %v1885
      %v1904 = vunpack.c.l.b16 %v1864
      %v1905 = vunpack.c.l.b16 %v1865
      %v1906 = vunpack.c.l.b16 %v1866
      %v1907 = vunpack.c.l.b16 %v1867
      %v1908 = vunpack.c.l.b16 %v1868
      %v1909 = vunpack.c.l.b16 %v1869
      %v1910 = vunpack.c.l.b16 %v1870
      %v1911 = vunpack.c.l.b16 %v1871
      %v1912 = vunpack.c.l.b16 %v1872
      %v1913 = vunpack.c.l.b16 %v1873
      %v1914 = vunpack.c.l.b16 %v1874
      %v1915 = vunpack.c.l.b16 %v1875
      %v1916 = vunpack.c.l.b16 %v1876
      %v1917 = vunpack.c.l.b16 %v1877
      %v1918 = vunpack.c.l.b16 %v1878
      %v1919 = vunpack.c.l.b16 %v1879
      %v1920 = vpack.c.b16 %v1905, %v1904
      %v1921 = vpack.c.b16 %v1907, %v1906
      %v1922 = vpack.c.b16 %v1909, %v1908
      %v1923 = vpack.c.b16 %v1911, %v1910
      %v1924 = vpack.c.b16 %v1913, %v1912
      %v1925 = vpack.c.b16 %v1915, %v1914
      %v1926 = vpack.c.b16 %v1917, %v1916
      %v1927 = vpack.c.b16 %v1919, %v1918
      %1936 = vmatprep.subr.bf16.mxu0 0
      %1937 = vmatpush1.bf16.msra.mxu0 %v1927
      %1938 = vmatprep.subr.bf16.mxu0 0
      %1939 = vmatpush1.bf16.msra.mxu0 %v1926
      %1940 = vmatprep.subr.bf16.mxu0 0
      %1941 = vmatpush1.bf16.msra.mxu0 %v1925
      %1942 = vmatprep.subr.bf16.mxu0 0
      %1943 = vmatpush1.bf16.msra.mxu0 %v1924
      %1944 = vmatprep.subr.bf16.mxu0 0
      %1945 = vmatpush1.bf16.msra.mxu0 %v1923
      %1946 = vmatprep.subr.bf16.mxu0 0
      %1947 = vmatpush1.bf16.msra.mxu0 %v1922
      %1948 = vmatprep.subr.bf16.mxu0 0
      %1949 = vmatpush1.bf16.msra.mxu0 %v1921
      %1950 = vmatprep.subr.bf16.mxu0 0
      %1951 = vmatpush1.bf16.msra.mxu0 %v1920
      %1952 = vmatprep.subr.bf16.mxu0 0
      %1953 = vmatpush2.bf16.msra.mxu0 0
      %1954 = vmatprep.subr.bf16.mxu0 0
      %1955 = vmatpush2.bf16.msra.mxu0 0
      %1956 = vmatprep.subr.bf16.mxu0 0
      %1957 = vmatpush2.bf16.msra.mxu0 0
      %1958 = vmatprep.subr.bf16.mxu0 0
      %1959 = vmatpush2.bf16.msra.mxu0 0
      %1960 = vmatprep.subr.bf16.mxu0 0
      %1961 = vmatpush2.bf16.msra.mxu0 0
      %1962 = vmatprep.subr.bf16.mxu0 0
      %1963 = vmatpush2.bf16.msra.mxu0 0
      %1964 = vmatprep.subr.bf16.mxu0 0
      %1965 = vmatpush2.bf16.msra.mxu0 0
      %1966 = vmatprep.subr.bf16.mxu0 0
      %1967 = vmatpush2.bf16.msra.mxu0 0
      %1968 = vmatprep.mubr.bf16.mxu0 0
      %1969 = vmatmul.mubr.bf16.gmra.mxu0 %v1886
      %v1970 = vpop.f32.mrf.mxu0
      %v1971 = vadd.f32 0.0, %v1970
      %v1972 = vpop.f32.mrf.mxu0
      %v1973 = vpop.f32.mrf.mxu0
      %v1974 = vadd.f32 0.0, %v1973
      %v1975 = vpop.f32.mrf.mxu0
      %1976 = vdwg.mxu0
      %v1977 = vadd.f32 %v1861, %v1971
      %v1978 = vadd.f32 %v1862, %v1974
      %s1979 = scalar_lea.vmem %s5, 384
      %v1980 = vld [vmem:[%s1979] sm:$0xf]
      %v1981 = vld [vmem:[%s1979 + $0x4] sm:$0xf]
      %v1982 = vld [vmem:[%s1979 + $0x8] sm:$0xf]
      %v1983 = vld [vmem:[%s1979 + $0xc] sm:$0xf]
      %v1984 = vld [vmem:[%s1979 + $0x10] sm:$0xf]
      %v1985 = vld [vmem:[%s1979 + $0x14] sm:$0xf]
      %v1986 = vld [vmem:[%s1979 + $0x18] sm:$0xf]
      %v1987 = vld [vmem:[%s1979 + $0x1c] sm:$0xf]
      %v1988 = vld [vmem:[%s1979 + $0x20] sm:$0xf]
      %v1989 = vld [vmem:[%s1979 + $0x24] sm:$0xf]
      %v1990 = vld [vmem:[%s1979 + $0x28] sm:$0xf]
      %v1991 = vld [vmem:[%s1979 + $0x2c] sm:$0xf]
      %v1992 = vld [vmem:[%s1979 + $0x30] sm:$0xf]
      %v1993 = vld [vmem:[%s1979 + $0x34] sm:$0xf]
      %v1994 = vld [vmem:[%s1979 + $0x38] sm:$0xf]
      %v1995 = vld [vmem:[%s1979 + $0x3c] sm:$0xf]
      %v1996 = vrot.slane %v1294, 3
      %v1997 = vrot.slane %v1514, 3
      %v1998 = vsel %vm1040, %v1996, %v1997
      %v2016 = vunpack.c.l.b16 %v1980
      %v2017 = vunpack.c.l.b16 %v1981
      %v2018 = vunpack.c.l.b16 %v1982
      %v2019 = vunpack.c.l.b16 %v1983
      %v2020 = vunpack.c.l.b16 %v1984
      %v2021 = vunpack.c.l.b16 %v1985
      %v2022 = vunpack.c.l.b16 %v1986
      %v2023 = vunpack.c.l.b16 %v1987
      %v2024 = vunpack.c.l.b16 %v1988
      %v2025 = vunpack.c.l.b16 %v1989
      %v2026 = vunpack.c.l.b16 %v1990
      %v2027 = vunpack.c.l.b16 %v1991
      %v2028 = vunpack.c.l.b16 %v1992
      %v2029 = vunpack.c.l.b16 %v1993
      %v2030 = vunpack.c.l.b16 %v1994
      %v2031 = vunpack.c.l.b16 %v1995
      %v2032 = vpack.c.b16 %v2017, %v2016
      %v2033 = vpack.c.b16 %v2019, %v2018
      %v2034 = vpack.c.b16 %v2021, %v2020
      %v2035 = vpack.c.b16 %v2023, %v2022
      %v2036 = vpack.c.b16 %v2025, %v2024
      %v2037 = vpack.c.b16 %v2027, %v2026
      %v2038 = vpack.c.b16 %v2029, %v2028
      %v2039 = vpack.c.b16 %v2031, %v2030
      %2048 = vmatprep.subr.bf16.mxu0 0
      %2049 = vmatpush1.bf16.msra.mxu0 %v2039
      %2050 = vmatprep.subr.bf16.mxu0 0
      %2051 = vmatpush1.bf16.msra.mxu0 %v2038
      %2052 = vmatprep.subr.bf16.mxu0 0
      %2053 = vmatpush1.bf16.msra.mxu0 %v2037
      %2054 = vmatprep.subr.bf16.mxu0 0
      %2055 = vmatpush1.bf16.msra.mxu0 %v2036
      %2056 = vmatprep.subr.bf16.mxu0 0
      %2057 = vmatpush1.bf16.msra.mxu0 %v2035
      %2058 = vmatprep.subr.bf16.mxu0 0
      %2059 = vmatpush1.bf16.msra.mxu0 %v2034
      %2060 = vmatprep.subr.bf16.mxu0 0
      %2061 = vmatpush1.bf16.msra.mxu0 %v2033
      %2062 = vmatprep.subr.bf16.mxu0 0
      %2063 = vmatpush1.bf16.msra.mxu0 %v2032
      %2064 = vmatprep.subr.bf16.mxu0 0
      %2065 = vmatpush2.bf16.msra.mxu0 0
      %2066 = vmatprep.subr.bf16.mxu0 0
      %2067 = vmatpush2.bf16.msra.mxu0 0
      %2068 = vmatprep.subr.bf16.mxu0 0
      %2069 = vmatpush2.bf16.msra.mxu0 0
      %2070 = vmatprep.subr.bf16.mxu0 0
      %2071 = vmatpush2.bf16.msra.mxu0 0
      %2072 = vmatprep.subr.bf16.mxu0 0
      %2073 = vmatpush2.bf16.msra.mxu0 0
      %2074 = vmatprep.subr.bf16.mxu0 0
      %2075 = vmatpush2.bf16.msra.mxu0 0
      %2076 = vmatprep.subr.bf16.mxu0 0
      %2077 = vmatpush2.bf16.msra.mxu0 0
      %2078 = vmatprep.subr.bf16.mxu0 0
      %2079 = vmatpush2.bf16.msra.mxu0 0
      %2080 = vmatprep.mubr.bf16.mxu0 0
      %2081 = vmatmul.mubr.bf16.gmra.mxu0 %v1998
      %v2082 = vpop.f32.mrf.mxu0
      %v2083 = vadd.f32 0.0, %v2082
      %v2084 = vpop.f32.mrf.mxu0
      %v2085 = vpop.f32.mrf.mxu0
      %v2086 = vadd.f32 0.0, %v2085
      %v2087 = vpop.f32.mrf.mxu0
      %2088 = vdwg.mxu0
      %v2089 = vadd.f32 %v1977, %v2083
      %v2090 = vadd.f32 %v1978, %v2086
      %s2091 = scalar_lea.vmem %s5, 448
      %v2092 = vld [vmem:[%s2091] sm:$0xf]
      %v2093 = vld [vmem:[%s2091 + $0x4] sm:$0xf]
      %v2094 = vld [vmem:[%s2091 + $0x8] sm:$0xf]
      %v2095 = vld [vmem:[%s2091 + $0xc] sm:$0xf]
      %v2096 = vld [vmem:[%s2091 + $0x10] sm:$0xf]
      %v2097 = vld [vmem:[%s2091 + $0x14] sm:$0xf]
      %v2098 = vld [vmem:[%s2091 + $0x18] sm:$0xf]
      %v2099 = vld [vmem:[%s2091 + $0x1c] sm:$0xf]
      %v2100 = vld [vmem:[%s2091 + $0x20] sm:$0xf]
      %v2101 = vld [vmem:[%s2091 + $0x24] sm:$0xf]
      %v2102 = vld [vmem:[%s2091 + $0x28] sm:$0xf]
      %v2103 = vld [vmem:[%s2091 + $0x2c] sm:$0xf]
      %v2104 = vld [vmem:[%s2091 + $0x30] sm:$0xf]
      %v2105 = vld [vmem:[%s2091 + $0x34] sm:$0xf]
      %v2106 = vld [vmem:[%s2091 + $0x38] sm:$0xf]
      %v2107 = vld [vmem:[%s2091 + $0x3c] sm:$0xf]
      %v2108 = vrot.slane %v1329, 3
      %v2109 = vrot.slane %v1331, 4
      %v2110 = vor.u32 %v2108, %v2109
      %v2111 = vrot.slane %v1651, 3
      %v2112 = vrot.slane %v1654, 4
      %v2113 = vor.u32 %v2111, %v2112
      %v2114 = vsel %vm1153, %v2110, %v2113
      %v2132 = vunpack.c.l.b16 %v2092
      %v2133 = vunpack.c.l.b16 %v2093
      %v2134 = vunpack.c.l.b16 %v2094
      %v2135 = vunpack.c.l.b16 %v2095
      %v2136 = vunpack.c.l.b16 %v2096
      %v2137 = vunpack.c.l.b16 %v2097
      %v2138 = vunpack.c.l.b16 %v2098
      %v2139 = vunpack.c.l.b16 %v2099
      %v2140 = vunpack.c.l.b16 %v2100
      %v2141 = vunpack.c.l.b16 %v2101
      %v2142 = vunpack.c.l.b16 %v2102
      %v2143 = vunpack.c.l.b16 %v2103
      %v2144 = vunpack.c.l.b16 %v2104
      %v2145 = vunpack.c.l.b16 %v2105
      %v2146 = vunpack.c.l.b16 %v2106
      %v2147 = vunpack.c.l.b16 %v2107
      %v2148 = vpack.c.b16 %v2133, %v2132
      %v2149 = vpack.c.b16 %v2135, %v2134
      %v2150 = vpack.c.b16 %v2137, %v2136
      %v2151 = vpack.c.b16 %v2139, %v2138
      %v2152 = vpack.c.b16 %v2141, %v2140
      %v2153 = vpack.c.b16 %v2143, %v2142
      %v2154 = vpack.c.b16 %v2145, %v2144
      %v2155 = vpack.c.b16 %v2147, %v2146
      %2164 = vmatprep.subr.bf16.mxu0 0
      %2165 = vmatpush1.bf16.msra.mxu0 %v2155
      %2166 = vmatprep.subr.bf16.mxu0 0
      %2167 = vmatpush1.bf16.msra.mxu0 %v2154
      %2168 = vmatprep.subr.bf16.mxu0 0
      %2169 = vmatpush1.bf16.msra.mxu0 %v2153
      %2170 = vmatprep.subr.bf16.mxu0 0
      %2171 = vmatpush1.bf16.msra.mxu0 %v2152
      %2172 = vmatprep.subr.bf16.mxu0 0
      %2173 = vmatpush1.bf16.msra.mxu0 %v2151
      %2174 = vmatprep.subr.bf16.mxu0 0
      %2175 = vmatpush1.bf16.msra.mxu0 %v2150
      %2176 = vmatprep.subr.bf16.mxu0 0
      %2177 = vmatpush1.bf16.msra.mxu0 %v2149
      %2178 = vmatprep.subr.bf16.mxu0 0
      %2179 = vmatpush1.bf16.msra.mxu0 %v2148
      %2180 = vmatprep.subr.bf16.mxu0 0
      %2181 = vmatpush2.bf16.msra.mxu0 0
      %2182 = vmatprep.subr.bf16.mxu0 0
      %2183 = vmatpush2.bf16.msra.mxu0 0
      %2184 = vmatprep.subr.bf16.mxu0 0
      %2185 = vmatpush2.bf16.msra.mxu0 0
      %2186 = vmatprep.subr.bf16.mxu0 0
      %2187 = vmatpush2.bf16.msra.mxu0 0
      %2188 = vmatprep.subr.bf16.mxu0 0
      %2189 = vmatpush2.bf16.msra.mxu0 0
      %2190 = vmatprep.subr.bf16.mxu0 0
      %2191 = vmatpush2.bf16.msra.mxu0 0
      %2192 = vmatprep.subr.bf16.mxu0 0
      %2193 = vmatpush2.bf16.msra.mxu0 0
      %2194 = vmatprep.subr.bf16.mxu0 0
      %2195 = vmatpush2.bf16.msra.mxu0 0
      %2196 = vmatprep.mubr.bf16.mxu0 0
      %2197 = vmatmul.mubr.bf16.gmra.mxu0 %v2114
      %v2198 = vpop.f32.mrf.mxu0
      %v2199 = vadd.f32 0.0, %v2198
      %v2200 = vpop.f32.mrf.mxu0
      %v2201 = vpop.f32.mrf.mxu0
      %v2202 = vadd.f32 0.0, %v2201
      %v2203 = vpop.f32.mrf.mxu0
      %2204 = vdwg.mxu0
      %v2205 = vadd.f32 %v2089, %v2199
      %v2206 = vadd.f32 %v2090, %v2202
      %v2207 = vld [vmem:[%s6] sm:$0x1]
      %v2209 = vlaneseq
      %v2210 = vshrl.u32 %v2209, 7
      %v2211 = vsub.s32 0, %v2210
      %v2212 = vrot.slane %v2207, %v2211
      %v2214 = vadd.f32 %v2205, %v2212
      %v2215 = vadd.f32 %v2206, %v2212
      %vm2219 = vcmask 1044480
      %v2220 = vrot.slane %v337, 3
      %v2221 = vrot.slane %v338, 3
      %v2222 = vsel %vm2219, %v2220, %v2221
      %v2223 = vrot.slane %v339, 3
      %v2224 = vsel %vm2219, %v2221, %v2223
      %v2227 = vadd.f32 %v2214, %v2222
      %v2228 = vadd.f32 %v2215, %v2224
      %v2229 = vmax.f32 %v2227, 0.0
      %v2230 = vmax.f32 %v2228, 0.0
      %v2231 = vld [vmem:[%s7] sm:$0x1]
      %v2233 = vlaneseq
      %v2234 = vshrl.u32 %v2233, 7
      %v2235 = vsub.s32 0, %v2234
      %v2236 = vrot.slane %v2231, %v2235
      %v2238 = vmul.f32 %v2229, %v2236
      %v2239 = vmul.f32 %v2230, %v2236
      %v2240 = vld [vmem:[%s8] sm:$0x1]
      %v2242 = vlaneseq
      %v2243 = vshrl.u32 %v2242, 7
      %v2244 = vsub.s32 0, %v2243
      %v2245 = vrot.slane %v2240, %v2244
      %v2247 = vadd.f32 %v2238, %v2245
      %v2248 = vadd.f32 %v2239, %v2245
      %v2249 = vpack.c.bf16 %v2248, %v2247
      %v2251 = vunpack.c.l.b16 %v2249
      %v2252 = vunpack.c.h.b16 %v2249
      %v2253 = vpack.c.b16 %v2251, %v2251
      %v2254 = vpack.c.b16 %v2252, %v2252
      %2257 = vst [vmem:[%s332] sm:$0xf] %v2253
      %vm2258 = vcmask 1043456
      %vm2259 = vsmask.f32 3328
      %vm2260 = vmand %vm2258, %vm2259
      %v2261 = vld [vmem:[%s332 + $0x4] sm:$0xf]
      %v2262 = vsel %vm2260, %v2254, %v2261
      %2263 = vst [vmem:[%s332 + $0x4] sm:$0xf] %v2262
      %p2264 = scmp.lt.s32.totalorder %s20, 31
      %s2265 = scalar_select %p2264, %s20, 31
      %s2266 = smul.addr %s2265, 2
      %s2267 = smul.addr %s2266, 4
      %s2268 = scalar_lea.vmem %s9, %s2267
      // Predicated region
      $region57: #{_lambda_.8} parent=55 // pred_check
        %p2269 = pneg %p232
      $region58: #{_lambda_.8} parent=55 // pred_check_branch
        %2271 = sbr.rel (%p2269) target = $region60
      $region59: #{_lambda_.8} parent=55 // pred_region
        _
      $region60: #{_lambda_.8} parent=55 // pred_fallthru
        _
    $region56: #{_lambda_.8} parent=5 // pred_fallthru
      _
    %p2272 = scmp.le.s32.totalorder 2, %s15
    // Predicated region
    $region61: #{_lambda_.8} parent=5 // pred_check
      %p2273 = pneg %p2272
    $region62: #{_lambda_.8} parent=5 // pred_check_branch
      %2275 = sbr.rel (%p2273) target = $region64
    $region63: #{_lambda_.8} parent=5 // pred_region
      %s2276 = ssub.s32 %s15, 2
      // Predicated region
      $region65: #{_lambda_.8} parent=63 // pred_check
        %p2277 = pneg %p238
      $region66: #{_lambda_.8} parent=63 // pred_check_branch
        %2279 = sbr.rel (%p2277) target = $region68
      $region67: #{_lambda_.8} parent=63 // pred_region
        %p2280 = scmp.lt.s32.totalorder %s21, 31
        %s2281 = scalar_select %p2280, %s21, 31
        %s2282 = smul.addr %s2281, 2
        %s2283 = smul.addr %s2282, 4
        %s2284 = scalar_lea.vmem %s9, %s2283
      $region68: #{_lambda_.8} parent=63 // pred_fallthru
        _
    $region64: #{_lambda_.8} parent=5 // pred_fallthru
      _
  $region6: #{_lambda_.8} parent=0 // loop_footer
    %s19 = sadd.s32 1, %s15
  $region7: #{_lambda_.8} parent=0 // loop_footer_branch
    %14 = sbr.rel target = $region3
  $region8: #{_lambda_.8} parent=0 // loop_exit
    _

// kernel: _lambda_.10
$region0: #{_lambda_.10}
  #allocation0 [shape = 'u32[]', space=smem, size = 0x4, offset = 0x4, fixed_abs, tag = 'smem constant byte address 0x4 - core index']
  #allocation1 [shape = 'u32[144,128]{1,0:T(1,128)}', space=vmem, size = 0x12000, scoped, tag = 'internal scratch']
  %s0 = inlined_call_operand.vmem [shape: bf16[32,8,128], index: 0, kind: input, shape index: {}]
  %s1 = inlined_call_operand.vmem [shape: bf16[128,64], index: 1, kind: input, shape index: {}]
  %s2 = inlined_call_operand.vmem [shape: f32[8,64], index: 2, kind: input, shape index: {}]
  %s3 = inlined_call_operand.vmem [shape: f32[1,64], index: 3, kind: input, shape index: {}]
  %s4 = inlined_call_operand.vmem [shape: bf16[32,128], index: 4, kind: output, shape index: {}]
  %s5 = sld [smem:[#allocation0]]
  $region49: #{_lambda_.10} parent=0
    _
  %s7 = ssub.s32 1, %s5
  %s8 = scalar_select 0, %s7, %s5
  loop: start=0, step=1, limit=4
  $region2: #{_lambda_.10} parent=0 // loop_pre_header
    _
  $region3: #{_lambda_.10} parent=0 // loop_header
    %s10 = sphi 0, %s14
    %p11 = scmp.ge.s32.totalorder %s10, 4
    %s20 = sphi 0, %s22
    %s23 = sphi 0, %s20
    %s24 = sphi 0, %s23
    %s40 = sphi 0, %s24
    %s44 = sphi 0, %s44
    %s46 = sphi 0, %s44
    %s47 = sphi 0, %s46
    %s61 = sphi 0, %s47
    %s65 = sphi 0, %s65
    %s67 = sphi 0, %s65
    %s68 = sphi 0, %s67
    %s82 = sphi 0, %s68
    %s86 = sphi 0, %s86
    %s88 = sphi 0, %s86
    %s89 = sphi 0, %s88
    %s103 = sphi 0, %s89
    %s109 = sphi 0, %s111
    %s112 = sphi 0, %s109
    %s113 = sphi 0, %s112
    %s129 = sphi 0, %s113
  $region4: #{_lambda_.10} parent=0 // loop_header_branch
    %13 = sbr.rel (%p11) target = $region8
  $region5: #{_lambda_.10} parent=0 // loop_body
    %s15 = ssub.s32 %s10, 1
    %s16 = ssub.s32 %s10, 2
    %s17 = sadd.s32 %s10, 1
    %s18 = ssub.s32 %s10, %s17
    %p19 = scmp.eq.s32.totalorder %s18, 0
    %s21 = sadd.s32 %s20, 1
    %s22 = scalar_select %p19, %s20, %s21
    %p25 = pneg %p19
    %p26 = scmp.eq.s32.totalorder %s10, 1
    %p27 = por %p25, %p26
    %p28 = scmp.ne.s32.totalorder %s20, %s23
    %p29 = scmp.eq.s32.totalorder %s10, 0
    %p30 = por %p28, %p29
    %p31 = scmp.ne.s32.totalorder %s20, %s23
    %p32 = scmp.eq.s32.totalorder %s15, 1
    %p33 = por %p31, %p32
    %p34 = scmp.ne.s32.totalorder %s23, %s24
    %p35 = scmp.eq.s32.totalorder %s15, 0
    %p36 = por %p34, %p35
    %p37 = scmp.ne.s32.totalorder %s23, %s24
    %p38 = scmp.eq.s32.totalorder %s16, 1
    %p39 = por %p37, %p38
    %p41 = scmp.ne.s32.totalorder %s24, %s40
    %p42 = scmp.eq.s32.totalorder %s16, 0
    %p43 = por %p41, %p42
    %s45 = sadd.s32 %s44, 1
    %p48 = scmp.eq.s32.totalorder %s10, 1
    %p49 = scmp.ne.s32.totalorder %s44, %s46
    %p50 = scmp.eq.s32.totalorder %s10, 0
    %p51 = por %p49, %p50
    %p52 = scmp.ne.s32.totalorder %s44, %s46
    %p53 = scmp.eq.s32.totalorder %s15, 1
    %p54 = por %p52, %p53
    %p55 = scmp.ne.s32.totalorder %s46, %s47
    %p56 = scmp.eq.s32.totalorder %s15, 0
    %p57 = por %p55, %p56
    %p58 = scmp.ne.s32.totalorder %s46, %s47
    %p59 = scmp.eq.s32.totalorder %s16, 1
    %p60 = por %p58, %p59
    %p62 = scmp.ne.s32.totalorder %s47, %s61
    %p63 = scmp.eq.s32.totalorder %s16, 0
    %p64 = por %p62, %p63
    %s66 = sadd.s32 %s65, 1
    %p69 = scmp.eq.s32.totalorder %s10, 1
    %p70 = scmp.ne.s32.totalorder %s65, %s67
    %p71 = scmp.eq.s32.totalorder %s10, 0
    %p72 = por %p70, %p71
    %p73 = scmp.ne.s32.totalorder %s65, %s67
    %p74 = scmp.eq.s32.totalorder %s15, 1
    %p75 = por %p73, %p74
    %p76 = scmp.ne.s32.totalorder %s67, %s68
    %p77 = scmp.eq.s32.totalorder %s15, 0
    %p78 = por %p76, %p77
    %p79 = scmp.ne.s32.totalorder %s67, %s68
    %p80 = scmp.eq.s32.totalorder %s16, 1
    %p81 = por %p79, %p80
    %p83 = scmp.ne.s32.totalorder %s68, %s82
    %p84 = scmp.eq.s32.totalorder %s16, 0
    %p85 = por %p83, %p84
    %s87 = sadd.s32 %s86, 1
    %p90 = scmp.eq.s32.totalorder %s10, 1
    %p91 = scmp.ne.s32.totalorder %s86, %s88
    %p92 = scmp.eq.s32.totalorder %s10, 0
    %p93 = por %p91, %p92
    %p94 = scmp.ne.s32.totalorder %s86, %s88
    %p95 = scmp.eq.s32.totalorder %s15, 1
    %p96 = por %p94, %p95
    %p97 = scmp.ne.s32.totalorder %s88, %s89
    %p98 = scmp.eq.s32.totalorder %s15, 0
    %p99 = por %p97, %p98
    %p100 = scmp.ne.s32.totalorder %s88, %s89
    %p101 = scmp.eq.s32.totalorder %s16, 1
    %p102 = por %p100, %p101
    %p104 = scmp.ne.s32.totalorder %s89, %s103
    %p105 = scmp.eq.s32.totalorder %s16, 0
    %p106 = por %p104, %p105
    %s107 = ssub.s32 %s10, %s17
    %p108 = scmp.eq.s32.totalorder %s107, 0
    %s110 = sadd.s32 %s109, 1
    %s111 = scalar_select %p108, %s109, %s110
    %p114 = pneg %p108
    %p115 = scmp.eq.s32.totalorder %s10, 1
    %p116 = por %p114, %p115
    %p117 = scmp.ne.s32.totalorder %s109, %s112
    %p118 = scmp.eq.s32.totalorder %s10, 0
    %p119 = por %p117, %p118
    %p120 = scmp.ne.s32.totalorder %s109, %s112
    %p121 = scmp.eq.s32.totalorder %s15, 1
    %p122 = por %p120, %p121
    %p123 = scmp.ne.s32.totalorder %s112, %s113
    %p124 = scmp.eq.s32.totalorder %s15, 0
    %p125 = por %p123, %p124
    %p126 = scmp.ne.s32.totalorder %s112, %s113
    %p127 = scmp.eq.s32.totalorder %s16, 1
    %p128 = por %p126, %p127
    %p130 = scmp.ne.s32.totalorder %s113, %s129
    %p131 = scmp.eq.s32.totalorder %s16, 0
    %p132 = por %p130, %p131
    %p133 = scmp.le.s32.totalorder 1, %s10
    %p134 = scmp.lt.s32.totalorder %s10, 3
    %p135 = pnand %p133, %p134
    %p136 = pneg %p135
    // Predicated region
    $region9: #{_lambda_.10} parent=5 // pred_check
      _
    $region10: #{_lambda_.10} parent=5 // pred_check_branch
      %138 = sbr.rel (%p135) target = $region12
    $region11: #{_lambda_.10} parent=5 // pred_region
      %s139 = ssub.s32 %s10, 1
      // Predicated region
      $region13: #{_lambda_.10} parent=11 // pred_check
        %p140 = pneg %p57
      $region14: #{_lambda_.10} parent=11 // pred_check_branch
        %142 = sbr.rel (%p140) target = $region16
      $region15: #{_lambda_.10} parent=11 // pred_region
        _
      $region16: #{_lambda_.10} parent=11 // pred_fallthru
        _
      // Predicated region
      $region17: #{_lambda_.10} parent=11 // pred_check
        %p143 = pneg %p78
      $region18: #{_lambda_.10} parent=11 // pred_check_branch
        %145 = sbr.rel (%p143) target = $region20
      $region19: #{_lambda_.10} parent=11 // pred_region
        _
      $region20: #{_lambda_.10} parent=11 // pred_fallthru
        _
      // Predicated region
      $region21: #{_lambda_.10} parent=11 // pred_check
        %p146 = pneg %p99
      $region22: #{_lambda_.10} parent=11 // pred_check_branch
        %148 = sbr.rel (%p146) target = $region24
      $region23: #{_lambda_.10} parent=11 // pred_region
        _
      $region24: #{_lambda_.10} parent=11 // pred_fallthru
        _
    $region12: #{_lambda_.10} parent=5 // pred_fallthru
      _
    %p149 = scmp.lt.s32.totalorder %s10, 2
    // Predicated region
    $region25: #{_lambda_.10} parent=5 // pred_check
      %p150 = pneg %p149
    $region26: #{_lambda_.10} parent=5 // pred_check_branch
      %152 = sbr.rel (%p150) target = $region28
    $region27: #{_lambda_.10} parent=5 // pred_region
      // Predicated region
      $region29: #{_lambda_.10} parent=27 // pred_check
        %p153 = pneg %p30
      $region30: #{_lambda_.10} parent=27 // pred_check_branch
        %155 = sbr.rel (%p153) target = $region32
      $region31: #{_lambda_.10} parent=27 // pred_region
        %s156 = smul.u32 16, %s10
        %p157 = scmp.lt.s32.totalorder %s156, 31
        %s158 = scalar_select %p157, %s156, 31
        %s159 = smul.addr %s158, 4
        %s160 = scalar_lea.vmem %s0, %s159
        %s161 = smul.u32 16, %s10
      $region32: #{_lambda_.10} parent=27 // pred_fallthru
        _
    $region28: #{_lambda_.10} parent=5 // pred_fallthru
      _
    %p162 = scmp.le.s32.totalorder 1, %s10
    %p163 = scmp.lt.s32.totalorder %s10, 3
    %p164 = pnand %p162, %p163
    %p165 = pneg %p164
    // Predicated region
    $region33: #{_lambda_.10} parent=5 // pred_check
      _
    $region34: #{_lambda_.10} parent=5 // pred_check_branch
      %167 = sbr.rel (%p164) target = $region36
    $region35: #{_lambda_.10} parent=5 // pred_region
      %s168 = ssub.s32 %s10, 1
      %s169 = smul.u32 16, %s15
      %p170 = scmp.lt.s32.totalorder %s169, 31
      %s171 = scalar_select %p170, %s169, 31
      %s172 = smul.addr %s171, 4
      %s173 = scalar_lea.vmem %s0, %s172
      %p174 = pneg %p36
      %p175 = pneg %p33
      %p176 = pneg %p57
      %p177 = pneg %p54
      %p178 = pneg %p78
      %p179 = pneg %p75
      %p180 = pneg %p99
      %p181 = pneg %p96
      %p182 = pneg %p125
      %p183 = pneg %p122
      %s184 = smul.u32 2, %s15
      %p185 = scmp.lt.s32.totalorder %s184, 3
      %s186 = scalar_select %p185, %s184, 3
      %s187 = smul.addr %s186, 4
      %s188 = scalar_lea.vmem %s4, %s187
      %s189 = smul.u32 16, %s15
      %p190 = scmp.lt.s32.totalorder %s189, 31
      %s191 = scalar_select %p190, %s189, 31
      %s192 = smul.addr %s191, 4
      %s193 = scalar_lea.vmem %s0, %s192
      %s194 = smul.u32 16, %s15
      %s195 = smul.u32 2, %s15
      %p196 = scmp.lt.s32.totalorder %s195, 3
      %s197 = scalar_select %p196, %s195, 3
      %s198 = smul.addr %s197, 4
      %s199 = scalar_lea.vmem %s4, %s198
      %s200 = smul.u32 2, %s15
      %v202 = vld [vmem:[%s193] sm:$0xf]
      %v203 = vld [vmem:[%s193 + $0x4] sm:$0xf]
      %v204 = vld [vmem:[%s193 + $0x8] sm:$0xf]
      %v205 = vld [vmem:[%s193 + $0xc] sm:$0xf]
      %v206 = vld [vmem:[%s193 + $0x10] sm:$0xf]
      %v207 = vld [vmem:[%s193 + $0x14] sm:$0xf]
      %v208 = vld [vmem:[%s193 + $0x18] sm:$0xf]
      %v209 = vld [vmem:[%s193 + $0x1c] sm:$0xf]
      %v210 = vld [vmem:[%s193 + $0x20] sm:$0xf]
      %v211 = vld [vmem:[%s193 + $0x24] sm:$0xf]
      %v212 = vld [vmem:[%s193 + $0x28] sm:$0xf]
      %v213 = vld [vmem:[%s193 + $0x2c] sm:$0xf]
      %v214 = vld [vmem:[%s193 + $0x30] sm:$0xf]
      %v215 = vld [vmem:[%s193 + $0x34] sm:$0xf]
      %v216 = vld [vmem:[%s193 + $0x38] sm:$0xf]
      %v217 = vld [vmem:[%s193 + $0x3c] sm:$0xf]
      %v218 = vunpack.c.l.bf16 %v202
      %v219 = vunpack.c.l.bf16 %v203
      %v220 = vunpack.c.l.bf16 %v204
      %v221 = vunpack.c.l.bf16 %v205
      %v222 = vunpack.c.l.bf16 %v206
      %v223 = vunpack.c.l.bf16 %v207
      %v224 = vunpack.c.l.bf16 %v208
      %v225 = vunpack.c.l.bf16 %v209
      %v226 = vunpack.c.l.bf16 %v210
      %v227 = vunpack.c.l.bf16 %v211
      %v228 = vunpack.c.l.bf16 %v212
      %v229 = vunpack.c.l.bf16 %v213
      %v230 = vunpack.c.l.bf16 %v214
      %v231 = vunpack.c.l.bf16 %v215
      %v232 = vunpack.c.l.bf16 %v216
      %v233 = vunpack.c.l.bf16 %v217
      %v234 = vld [vmem:[%s1] sm:$0xf]
      %v235 = vld [vmem:[%s1 + $0x4] sm:$0xf]
      %v236 = vld [vmem:[%s1 + $0x8] sm:$0xf]
      %v237 = vld [vmem:[%s1 + $0xc] sm:$0xf]
      %v238 = vld [vmem:[%s1 + $0x10] sm:$0xf]
      %v239 = vld [vmem:[%s1 + $0x14] sm:$0xf]
      %v240 = vld [vmem:[%s1 + $0x18] sm:$0xf]
      %v241 = vld [vmem:[%s1 + $0x1c] sm:$0xf]
      %v242 = vld [vmem:[%s1 + $0x20] sm:$0xf]
      %v243 = vld [vmem:[%s1 + $0x24] sm:$0xf]
      %v244 = vld [vmem:[%s1 + $0x28] sm:$0xf]
      %v245 = vld [vmem:[%s1 + $0x2c] sm:$0xf]
      %v246 = vld [vmem:[%s1 + $0x30] sm:$0xf]
      %v247 = vld [vmem:[%s1 + $0x34] sm:$0xf]
      %v248 = vld [vmem:[%s1 + $0x38] sm:$0xf]
      %v249 = vld [vmem:[%s1 + $0x3c] sm:$0xf]
      %v250 = vld [vmem:[%s2] sm:$0xff]
      %v251 = vld [vmem:[%s3] sm:$0x1]
      %v252 = vpack.c.bf16 %v218, %v218
      %v253 = vpack.c.bf16 %v219, %v219
      %v254 = vpack.c.bf16 %v220, %v220
      %v255 = vpack.c.bf16 %v221, %v221
      %v256 = vpack.c.bf16 %v222, %v222
      %v257 = vpack.c.bf16 %v223, %v223
      %v258 = vpack.c.bf16 %v224, %v224
      %v259 = vpack.c.bf16 %v225, %v225
      %v260 = vpack.c.bf16 %v226, %v226
      %v261 = vpack.c.bf16 %v227, %v227
      %v262 = vpack.c.bf16 %v228, %v228
      %v263 = vpack.c.bf16 %v229, %v229
      %v264 = vpack.c.bf16 %v230, %v230
      %v265 = vpack.c.bf16 %v231, %v231
      %v266 = vpack.c.bf16 %v232, %v232
      %v267 = vpack.c.bf16 %v233, %v233
      %v268 = vlaneseq
      %v269 = vshrl.u32 %v268, 7
      %v270 = vsub.s32 0, %v269
      %v271 = vrot.slane %v250, %v270
      %v288 = vunpack.c.l.b16 %v252
      %v289 = vunpack.c.l.b16 %v253
      %v290 = vunpack.c.l.b16 %v254
      %v291 = vunpack.c.l.b16 %v255
      %v292 = vunpack.c.l.b16 %v256
      %v293 = vunpack.c.l.b16 %v257
      %v294 = vunpack.c.l.b16 %v258
      %v295 = vunpack.c.l.b16 %v259
      %v296 = vunpack.c.l.b16 %v260
      %v297 = vunpack.c.l.b16 %v261
      %v298 = vunpack.c.l.b16 %v262
      %v299 = vunpack.c.l.b16 %v263
      %v300 = vunpack.c.l.b16 %v264
      %v301 = vunpack.c.l.b16 %v265
      %v302 = vunpack.c.l.b16 %v266
      %v303 = vunpack.c.l.b16 %v267
      %v304 = vrot.slane %v289, 7
      %vm305 = vcmask 1041409
      %v306 = vsel %vm305, %v304, %v288
      %v307 = vrot.slane %v290, 6
      %vm308 = vcmask 1042434
      %v309 = vsel %vm308, %v307, %v306
      %v310 = vrot.slane %v291, 5
      %vm311 = vcmask 1043459
      %v312 = vsel %vm311, %v310, %v309
      %v313 = vrot.slane %v292, 4
      %vm314 = vcmask 1044484
      %v315 = vsel %vm314, %v313, %v312
      %v316 = vrot.slane %v293, 3
      %vm317 = vcmask 1045509
      %v318 = vsel %vm317, %v316, %v315
      %v319 = vrot.slane %v294, 2
      %vm320 = vcmask 1046534
      %v321 = vsel %vm320, %v319, %v318
      %v322 = vrot.slane %v295, 1
      %vm323 = vcmask 1047559
      %v324 = vsel %vm323, %v322, %v321
      %v325 = vrot.slane %v297, 7
      %v326 = vsel %vm305, %v325, %v296
      %v327 = vrot.slane %v298, 6
      %v328 = vsel %vm308, %v327, %v326
      %v329 = vrot.slane %v299, 5
      %v330 = vsel %vm311, %v329, %v328
      %v331 = vrot.slane %v300, 4
      %v332 = vsel %vm314, %v331, %v330
      %v333 = vrot.slane %v301, 3
      %v334 = vsel %vm317, %v333, %v332
      %v335 = vrot.slane %v302, 2
      %v336 = vsel %vm320, %v335, %v334
      %v337 = vrot.slane %v303, 1
      %v338 = vsel %vm323, %v337, %v336
      %v339 = vpack.c.b16 %v338, %v324
      %v357 = vunpack.c.l.b16 %v234
      %v358 = vunpack.c.l.b16 %v235
      %v359 = vunpack.c.l.b16 %v236
      %v360 = vunpack.c.l.b16 %v237
      %v361 = vunpack.c.l.b16 %v238
      %v362 = vunpack.c.l.b16 %v239
      %v363 = vunpack.c.l.b16 %v240
      %v364 = vunpack.c.l.b16 %v241
      %v365 = vunpack.c.l.b16 %v242
      %v366 = vunpack.c.l.b16 %v243
      %v367 = vunpack.c.l.b16 %v244
      %v368 = vunpack.c.l.b16 %v245
      %v369 = vunpack.c.l.b16 %v246
      %v370 = vunpack.c.l.b16 %v247
      %v371 = vunpack.c.l.b16 %v248
      %v372 = vunpack.c.l.b16 %v249
      %v373 = vpack.c.b16 %v358, %v357
      %v374 = vpack.c.b16 %v360, %v359
      %v375 = vpack.c.b16 %v362, %v361
      %v376 = vpack.c.b16 %v364, %v363
      %v377 = vpack.c.b16 %v366, %v365
      %v378 = vpack.c.b16 %v368, %v367
      %v379 = vpack.c.b16 %v370, %v369
      %v380 = vpack.c.b16 %v372, %v371
      %389 = vmatprep.subr.bf16.mxu0 0
      %390 = vmatpush1.bf16.msra.mxu0 %v380
      %391 = vmatprep.subr.bf16.mxu0 0
      %392 = vmatpush1.bf16.msra.mxu0 %v379
      %393 = vmatprep.subr.bf16.mxu0 0
      %394 = vmatpush1.bf16.msra.mxu0 %v378
      %395 = vmatprep.subr.bf16.mxu0 0
      %396 = vmatpush1.bf16.msra.mxu0 %v377
      %397 = vmatprep.subr.bf16.mxu0 0
      %398 = vmatpush1.bf16.msra.mxu0 %v376
      %399 = vmatprep.subr.bf16.mxu0 0
      %400 = vmatpush1.bf16.msra.mxu0 %v375
      %401 = vmatprep.subr.bf16.mxu0 0
      %402 = vmatpush1.bf16.msra.mxu0 %v374
      %403 = vmatprep.subr.bf16.mxu0 0
      %404 = vmatpush1.bf16.msra.mxu0 %v373
      %405 = vmatprep.subr.bf16.mxu0 0
      %406 = vmatpush2.bf16.msra.mxu0 0
      %407 = vmatprep.subr.bf16.mxu0 0
      %408 = vmatpush2.bf16.msra.mxu0 0
      %409 = vmatprep.subr.bf16.mxu0 0
      %410 = vmatpush2.bf16.msra.mxu0 0
      %411 = vmatprep.subr.bf16.mxu0 0
      %412 = vmatpush2.bf16.msra.mxu0 0
      %413 = vmatprep.subr.bf16.mxu0 0
      %414 = vmatpush2.bf16.msra.mxu0 0
      %415 = vmatprep.subr.bf16.mxu0 0
      %416 = vmatpush2.bf16.msra.mxu0 0
      %417 = vmatprep.subr.bf16.mxu0 0
      %418 = vmatpush2.bf16.msra.mxu0 0
      %419 = vmatprep.subr.bf16.mxu0 0
      %420 = vmatpush2.bf16.msra.mxu0 0
      %421 = vmatprep.mubr.bf16.mxu0 0
      %422 = vmatmul.mubr.bf16.gmra.mxu0 %v339
      %v423 = vpop.f32.mrf.mxu0
      %v424 = vadd.f32 %v271, %v423
      %v425 = vpop.f32.mrf.mxu0
      %v426 = vpop.f32.mrf.mxu0
      %v427 = vadd.f32 %v271, %v426
      %v428 = vpop.f32.mrf.mxu0
      %429 = vdwg.mxu0
      %v430 = vtanh.pop %v424
      %v431 = vtanh.pop %v427
      %v433 = vlaneseq
      %v434 = vshrl.u32 %v433, 7
      %v435 = vsub.s32 0, %v434
      %v436 = vrot.slane %v251, %v435
      %v438 = vmul.f32 %v430, %v436
      %v439 = vmul.f32 %v431, %v436
      %vm440 = vcmask 523264
      %v441 = vsel %vm440, %v438, 0.0
      %442 = vadd.xlane.f32.xlu0 %v441
      %v443 = vpop.xlane.xlu0 %442
      %v444 = vsel %vm440, %v439, 0.0
      %445 = vadd.xlane.f32.xlu0 %v444
      %v446 = vpop.xlane.xlu0 %445
      %v447 = vlaneseq
      %v448 = vshrl.u32 %v447, 7
      %v449 = vsub.s32 1, %v448
      %v450 = vrot.slane %v250, %v449
      %v451 = vrot.slane %v288, 1
      %v452 = vsel %vm305, %v289, %v451
      %v453 = vrot.slane %v290, 7
      %v454 = vsel %vm308, %v453, %v452
      %v455 = vrot.slane %v291, 6
      %v456 = vsel %vm311, %v455, %v454
      %v457 = vrot.slane %v292, 5
      %v458 = vsel %vm314, %v457, %v456
      %v459 = vrot.slane %v293, 4
      %v460 = vsel %vm317, %v459, %v458
      %v461 = vrot.slane %v294, 3
      %v462 = vsel %vm320, %v461, %v460
      %v463 = vrot.slane %v295, 2
      %v464 = vsel %vm323, %v463, %v462
      %v465 = vrot.slane %v296, 1
      %v466 = vsel %vm305, %v297, %v465
      %v467 = vrot.slane %v298, 7
      %v468 = vsel %vm308, %v467, %v466
      %v469 = vrot.slane %v299, 6
      %v470 = vsel %vm311, %v469, %v468
      %v471 = vrot.slane %v300, 5
      %v472 = vsel %vm314, %v471, %v470
      %v473 = vrot.slane %v301, 4
      %v474 = vsel %vm317, %v473, %v472
      %v475 = vrot.slane %v302, 3
      %v476 = vsel %vm320, %v475, %v474
      %v477 = vrot.slane %v303, 2
      %v478 = vsel %vm323, %v477, %v476
      %v479 = vpack.c.b16 %v478, %v464
      %481 = vmatprep.subr.bf16.mxu0 0
      %482 = vmatpush1.bf16.msra.mxu0 %v380
      %483 = vmatprep.subr.bf16.mxu0 0
      %484 = vmatpush1.bf16.msra.mxu0 %v379
      %485 = vmatprep.subr.bf16.mxu0 0
      %486 = vmatpush1.bf16.msra.mxu0 %v378
      %487 = vmatprep.subr.bf16.mxu0 0
      %488 = vmatpush1.bf16.msra.mxu0 %v377
      %489 = vmatprep.subr.bf16.mxu0 0
      %490 = vmatpush1.bf16.msra.mxu0 %v376
      %491 = vmatprep.subr.bf16.mxu0 0
      %492 = vmatpush1.bf16.msra.mxu0 %v375
      %493 = vmatprep.subr.bf16.mxu0 0
      %494 = vmatpush1.bf16.msra.mxu0 %v374
      %495 = vmatprep.subr.bf16.mxu0 0
      %496 = vmatpush1.bf16.msra.mxu0 %v373
      %497 = vmatprep.subr.bf16.mxu0 0
      %498 = vmatpush2.bf16.msra.mxu0 0
      %499 = vmatprep.subr.bf16.mxu0 0
      %500 = vmatpush2.bf16.msra.mxu0 0
      %501 = vmatprep.subr.bf16.mxu0 0
      %502 = vmatpush2.bf16.msra.mxu0 0
      %503 = vmatprep.subr.bf16.mxu0 0
      %504 = vmatpush2.bf16.msra.mxu0 0
      %505 = vmatprep.subr.bf16.mxu0 0
      %506 = vmatpush2.bf16.msra.mxu0 0
      %507 = vmatprep.subr.bf16.mxu0 0
      %508 = vmatpush2.bf16.msra.mxu0 0
      %509 = vmatprep.subr.bf16.mxu0 0
      %510 = vmatpush2.bf16.msra.mxu0 0
      %511 = vmatprep.subr.bf16.mxu0 0
      %512 = vmatpush2.bf16.msra.mxu0 0
      %513 = vmatprep.mubr.bf16.mxu0 0
      %514 = vmatmul.mubr.bf16.gmra.mxu0 %v479
      %v515 = vpop.f32.mrf.mxu0
      %v516 = vadd.f32 %v450, %v515
      %v517 = vpop.f32.mrf.mxu0
      %v518 = vpop.f32.mrf.mxu0
      %v519 = vadd.f32 %v450, %v518
      %v520 = vpop.f32.mrf.mxu0
      %521 = vdwg.mxu0
      %v522 = vtanh.pop %v516
      %v523 = vtanh.pop %v519
      %v524 = vmul.f32 %v522, %v436
      %v525 = vmul.f32 %v523, %v436
      %v526 = vsel %vm440, %v524, 0.0
      %527 = vadd.xlane.f32.xlu0 %v526
      %v528 = vpop.xlane.xlu0 %527
      %v529 = vsel %vm440, %v525, 0.0
      %530 = vadd.xlane.f32.xlu0 %v529
      %v531 = vpop.xlane.xlu0 %530
      %v532 = vlaneseq
      %v533 = vshrl.u32 %v532, 7
      %v534 = vsub.s32 2, %v533
      %v535 = vrot.slane %v250, %v534
      %v536 = vrot.slane %v288, 2
      %v537 = vrot.slane %v289, 1
      %v538 = vsel %vm305, %v537, %v536
      %v539 = vsel %vm308, %v290, %v538
      %v540 = vrot.slane %v291, 7
      %v541 = vsel %vm311, %v540, %v539
      %v542 = vrot.slane %v292, 6
      %v543 = vsel %vm314, %v542, %v541
      %v544 = vrot.slane %v293, 5
      %v545 = vsel %vm317, %v544, %v543
      %v546 = vrot.slane %v294, 4
      %v547 = vsel %vm320, %v546, %v545
      %v548 = vrot.slane %v295, 3
      %v549 = vsel %vm323, %v548, %v547
      %v550 = vrot.slane %v296, 2
      %v551 = vrot.slane %v297, 1
      %v552 = vsel %vm305, %v551, %v550
      %v553 = vsel %vm308, %v298, %v552
      %v554 = vrot.slane %v299, 7
      %v555 = vsel %vm311, %v554, %v553
      %v556 = vrot.slane %v300, 6
      %v557 = vsel %vm314, %v556, %v555
      %v558 = vrot.slane %v301, 5
      %v559 = vsel %vm317, %v558, %v557
      %v560 = vrot.slane %v302, 4
      %v561 = vsel %vm320, %v560, %v559
      %v562 = vrot.slane %v303, 3
      %v563 = vsel %vm323, %v562, %v561
      %v564 = vpack.c.b16 %v563, %v549
      %566 = vmatprep.subr.bf16.mxu0 0
      %567 = vmatpush1.bf16.msra.mxu0 %v380
      %568 = vmatprep.subr.bf16.mxu0 0
      %569 = vmatpush1.bf16.msra.mxu0 %v379
      %570 = vmatprep.subr.bf16.mxu0 0
      %571 = vmatpush1.bf16.msra.mxu0 %v378
      %572 = vmatprep.subr.bf16.mxu0 0
      %573 = vmatpush1.bf16.msra.mxu0 %v377
      %574 = vmatprep.subr.bf16.mxu0 0
      %575 = vmatpush1.bf16.msra.mxu0 %v376
      %576 = vmatprep.subr.bf16.mxu0 0
      %577 = vmatpush1.bf16.msra.mxu0 %v375
      %578 = vmatprep.subr.bf16.mxu0 0
      %579 = vmatpush1.bf16.msra.mxu0 %v374
      %580 = vmatprep.subr.bf16.mxu0 0
      %581 = vmatpush1.bf16.msra.mxu0 %v373
      %582 = vmatprep.subr.bf16.mxu0 0
      %583 = vmatpush2.bf16.msra.mxu0 0
      %584 = vmatprep.subr.bf16.mxu0 0
      %585 = vmatpush2.bf16.msra.mxu0 0
      %586 = vmatprep.subr.bf16.mxu0 0
      %587 = vmatpush2.bf16.msra.mxu0 0
      %588 = vmatprep.subr.bf16.mxu0 0
      %589 = vmatpush2.bf16.msra.mxu0 0
      %590 = vmatprep.subr.bf16.mxu0 0
      %591 = vmatpush2.bf16.msra.mxu0 0
      %592 = vmatprep.subr.bf16.mxu0 0
      %593 = vmatpush2.bf16.msra.mxu0 0
      %594 = vmatprep.subr.bf16.mxu0 0
      %595 = vmatpush2.bf16.msra.mxu0 0
      %596 = vmatprep.subr.bf16.mxu0 0
      %597 = vmatpush2.bf16.msra.mxu0 0
      %598 = vmatprep.mubr.bf16.mxu0 0
      %599 = vmatmul.mubr.bf16.gmra.mxu0 %v564
      %v600 = vpop.f32.mrf.mxu0
      %v601 = vadd.f32 %v535, %v600
      %v602 = vpop.f32.mrf.mxu0
      %v603 = vpop.f32.mrf.mxu0
      %v604 = vadd.f32 %v535, %v603
      %v605 = vpop.f32.mrf.mxu0
      %606 = vdwg.mxu0
      %v607 = vtanh.pop %v601
      %v608 = vtanh.pop %v604
      %v609 = vmul.f32 %v607, %v436
      %v610 = vmul.f32 %v608, %v436
      %v611 = vsel %vm440, %v609, 0.0
      %612 = vadd.xlane.f32.xlu0 %v611
      %v613 = vpop.xlane.xlu0 %612
      %v614 = vsel %vm440, %v610, 0.0
      %615 = vadd.xlane.f32.xlu0 %v614
      %v616 = vpop.xlane.xlu0 %615
      %v617 = vlaneseq
      %v618 = vshrl.u32 %v617, 7
      %v619 = vsub.s32 3, %v618
      %v620 = vrot.slane %v250, %v619
      %v621 = vrot.slane %v288, 3
      %v622 = vrot.slane %v289, 2
      %v623 = vsel %vm305, %v622, %v621
      %v624 = vrot.slane %v290, 1
      %v625 = vsel %vm308, %v624, %v623
      %v626 = vsel %vm311, %v291, %v625
      %v627 = vrot.slane %v292, 7
      %v628 = vsel %vm314, %v627, %v626
      %v629 = vrot.slane %v293, 6
      %v630 = vsel %vm317, %v629, %v628
      %v631 = vrot.slane %v294, 5
      %v632 = vsel %vm320, %v631, %v630
      %v633 = vrot.slane %v295, 4
      %v634 = vsel %vm323, %v633, %v632
      %v635 = vrot.slane %v296, 3
      %v636 = vrot.slane %v297, 2
      %v637 = vsel %vm305, %v636, %v635
      %v638 = vrot.slane %v298, 1
      %v639 = vsel %vm308, %v638, %v637
      %v640 = vsel %vm311, %v299, %v639
      %v641 = vrot.slane %v300, 7
      %v642 = vsel %vm314, %v641, %v640
      %v643 = vrot.slane %v301, 6
      %v644 = vsel %vm317, %v643, %v642
      %v645 = vrot.slane %v302, 5
      %v646 = vsel %vm320, %v645, %v644
      %v647 = vrot.slane %v303, 4
      %v648 = vsel %vm323, %v647, %v646
      %v649 = vpack.c.b16 %v648, %v634
      %651 = vmatprep.subr.bf16.mxu0 0
      %652 = vmatpush1.bf16.msra.mxu0 %v380
      %653 = vmatprep.subr.bf16.mxu0 0
      %654 = vmatpush1.bf16.msra.mxu0 %v379
      %655 = vmatprep.subr.bf16.mxu0 0
      %656 = vmatpush1.bf16.msra.mxu0 %v378
      %657 = vmatprep.subr.bf16.mxu0 0
      %658 = vmatpush1.bf16.msra.mxu0 %v377
      %659 = vmatprep.subr.bf16.mxu0 0
      %660 = vmatpush1.bf16.msra.mxu0 %v376
      %661 = vmatprep.subr.bf16.mxu0 0
      %662 = vmatpush1.bf16.msra.mxu0 %v375
      %663 = vmatprep.subr.bf16.mxu0 0
      %664 = vmatpush1.bf16.msra.mxu0 %v374
      %665 = vmatprep.subr.bf16.mxu0 0
      %666 = vmatpush1.bf16.msra.mxu0 %v373
      %667 = vmatprep.subr.bf16.mxu0 0
      %668 = vmatpush2.bf16.msra.mxu0 0
      %669 = vmatprep.subr.bf16.mxu0 0
      %670 = vmatpush2.bf16.msra.mxu0 0
      %671 = vmatprep.subr.bf16.mxu0 0
      %672 = vmatpush2.bf16.msra.mxu0 0
      %673 = vmatprep.subr.bf16.mxu0 0
      %674 = vmatpush2.bf16.msra.mxu0 0
      %675 = vmatprep.subr.bf16.mxu0 0
      %676 = vmatpush2.bf16.msra.mxu0 0
      %677 = vmatprep.subr.bf16.mxu0 0
      %678 = vmatpush2.bf16.msra.mxu0 0
      %679 = vmatprep.subr.bf16.mxu0 0
      %680 = vmatpush2.bf16.msra.mxu0 0
      %681 = vmatprep.subr.bf16.mxu0 0
      %682 = vmatpush2.bf16.msra.mxu0 0
      %683 = vmatprep.mubr.bf16.mxu0 0
      %684 = vmatmul.mubr.bf16.gmra.mxu0 %v649
      %v685 = vpop.f32.mrf.mxu0
      %v686 = vadd.f32 %v620, %v685
      %v687 = vpop.f32.mrf.mxu0
      %v688 = vpop.f32.mrf.mxu0
      %v689 = vadd.f32 %v620, %v688
      %v690 = vpop.f32.mrf.mxu0
      %691 = vdwg.mxu0
      %v692 = vtanh.pop %v686
      %v693 = vtanh.pop %v689
      %v694 = vmul.f32 %v692, %v436
      %v695 = vmul.f32 %v693, %v436
      %v696 = vsel %vm440, %v694, 0.0
      %697 = vadd.xlane.f32.xlu0 %v696
      %v698 = vpop.xlane.xlu0 %697
      %v699 = vsel %vm440, %v695, 0.0
      %700 = vadd.xlane.f32.xlu0 %v699
      %v701 = vpop.xlane.xlu0 %700
      %v702 = vlaneseq
      %v703 = vshrl.u32 %v702, 7
      %v704 = vsub.s32 4, %v703
      %v705 = vrot.slane %v250, %v704
      %v706 = vrot.slane %v288, 4
      %v707 = vrot.slane %v289, 3
      %v708 = vsel %vm305, %v707, %v706
      %v709 = vrot.slane %v290, 2
      %v710 = vsel %vm308, %v709, %v708
      %v711 = vrot.slane %v291, 1
      %v712 = vsel %vm311, %v711, %v710
      %v713 = vsel %vm314, %v292, %v712
      %v714 = vrot.slane %v293, 7
      %v715 = vsel %vm317, %v714, %v713
      %v716 = vrot.slane %v294, 6
      %v717 = vsel %vm320, %v716, %v715
      %v718 = vrot.slane %v295, 5
      %v719 = vsel %vm323, %v718, %v717
      %v720 = vrot.slane %v296, 4
      %v721 = vrot.slane %v297, 3
      %v722 = vsel %vm305, %v721, %v720
      %v723 = vrot.slane %v298, 2
      %v724 = vsel %vm308, %v723, %v722
      %v725 = vrot.slane %v299, 1
      %v726 = vsel %vm311, %v725, %v724
      %v727 = vsel %vm314, %v300, %v726
      %v728 = vrot.slane %v301, 7
      %v729 = vsel %vm317, %v728, %v727
      %v730 = vrot.slane %v302, 6
      %v731 = vsel %vm320, %v730, %v729
      %v732 = vrot.slane %v303, 5
      %v733 = vsel %vm323, %v732, %v731
      %v734 = vpack.c.b16 %v733, %v719
      %736 = vmatprep.subr.bf16.mxu0 0
      %737 = vmatpush1.bf16.msra.mxu0 %v380
      %738 = vmatprep.subr.bf16.mxu0 0
      %739 = vmatpush1.bf16.msra.mxu0 %v379
      %740 = vmatprep.subr.bf16.mxu0 0
      %741 = vmatpush1.bf16.msra.mxu0 %v378
      %742 = vmatprep.subr.bf16.mxu0 0
      %743 = vmatpush1.bf16.msra.mxu0 %v377
      %744 = vmatprep.subr.bf16.mxu0 0
      %745 = vmatpush1.bf16.msra.mxu0 %v376
      %746 = vmatprep.subr.bf16.mxu0 0
      %747 = vmatpush1.bf16.msra.mxu0 %v375
      %748 = vmatprep.subr.bf16.mxu0 0
      %749 = vmatpush1.bf16.msra.mxu0 %v374
      %750 = vmatprep.subr.bf16.mxu0 0
      %751 = vmatpush1.bf16.msra.mxu0 %v373
      %752 = vmatprep.subr.bf16.mxu0 0
      %753 = vmatpush2.bf16.msra.mxu0 0
      %754 = vmatprep.subr.bf16.mxu0 0
      %755 = vmatpush2.bf16.msra.mxu0 0
      %756 = vmatprep.subr.bf16.mxu0 0
      %757 = vmatpush2.bf16.msra.mxu0 0
      %758 = vmatprep.subr.bf16.mxu0 0
      %759 = vmatpush2.bf16.msra.mxu0 0
      %760 = vmatprep.subr.bf16.mxu0 0
      %761 = vmatpush2.bf16.msra.mxu0 0
      %762 = vmatprep.subr.bf16.mxu0 0
      %763 = vmatpush2.bf16.msra.mxu0 0
      %764 = vmatprep.subr.bf16.mxu0 0
      %765 = vmatpush2.bf16.msra.mxu0 0
      %766 = vmatprep.subr.bf16.mxu0 0
      %767 = vmatpush2.bf16.msra.mxu0 0
      %768 = vmatprep.mubr.bf16.mxu0 0
      %769 = vmatmul.mubr.bf16.gmra.mxu0 %v734
      %v770 = vpop.f32.mrf.mxu0
      %v771 = vadd.f32 %v705, %v770
      %v772 = vpop.f32.mrf.mxu0
      %v773 = vpop.f32.mrf.mxu0
      %v774 = vadd.f32 %v705, %v773
      %v775 = vpop.f32.mrf.mxu0
      %776 = vdwg.mxu0
      %v777 = vtanh.pop %v771
      %v778 = vtanh.pop %v774
      %v779 = vmul.f32 %v777, %v436
      %v780 = vmul.f32 %v778, %v436
      %v781 = vsel %vm440, %v779, 0.0
      %782 = vadd.xlane.f32.xlu0 %v781
      %v783 = vpop.xlane.xlu0 %782
      %v784 = vsel %vm440, %v780, 0.0
      %785 = vadd.xlane.f32.xlu0 %v784
      %v786 = vpop.xlane.xlu0 %785
      %v787 = vlaneseq
      %v788 = vshrl.u32 %v787, 7
      %v789 = vsub.s32 5, %v788
      %v790 = vrot.slane %v250, %v789
      %v791 = vrot.slane %v288, 5
      %v792 = vrot.slane %v289, 4
      %v793 = vsel %vm305, %v792, %v791
      %v794 = vrot.slane %v290, 3
      %v795 = vsel %vm308, %v794, %v793
      %v796 = vrot.slane %v291, 2
      %v797 = vsel %vm311, %v796, %v795
      %v798 = vrot.slane %v292, 1
      %v799 = vsel %vm314, %v798, %v797
      %v800 = vsel %vm317, %v293, %v799
      %v801 = vrot.slane %v294, 7
      %v802 = vsel %vm320, %v801, %v800
      %v803 = vrot.slane %v295, 6
      %v804 = vsel %vm323, %v803, %v802
      %v805 = vrot.slane %v296, 5
      %v806 = vrot.slane %v297, 4
      %v807 = vsel %vm305, %v806, %v805
      %v808 = vrot.slane %v298, 3
      %v809 = vsel %vm308, %v808, %v807
      %v810 = vrot.slane %v299, 2
      %v811 = vsel %vm311, %v810, %v809
      %v812 = vrot.slane %v300, 1
      %v813 = vsel %vm314, %v812, %v811
      %v814 = vsel %vm317, %v301, %v813
      %v815 = vrot.slane %v302, 7
      %v816 = vsel %vm320, %v815, %v814
      %v817 = vrot.slane %v303, 6
      %v818 = vsel %vm323, %v817, %v816
      %v819 = vpack.c.b16 %v818, %v804
      %821 = vmatprep.subr.bf16.mxu0 0
      %822 = vmatpush1.bf16.msra.mxu0 %v380
      %823 = vmatprep.subr.bf16.mxu0 0
      %824 = vmatpush1.bf16.msra.mxu0 %v379
      %825 = vmatprep.subr.bf16.mxu0 0
      %826 = vmatpush1.bf16.msra.mxu0 %v378
      %827 = vmatprep.subr.bf16.mxu0 0
      %828 = vmatpush1.bf16.msra.mxu0 %v377
      %829 = vmatprep.subr.bf16.mxu0 0
      %830 = vmatpush1.bf16.msra.mxu0 %v376
      %831 = vmatprep.subr.bf16.mxu0 0
      %832 = vmatpush1.bf16.msra.mxu0 %v375
      %833 = vmatprep.subr.bf16.mxu0 0
      %834 = vmatpush1.bf16.msra.mxu0 %v374
      %835 = vmatprep.subr.bf16.mxu0 0
      %836 = vmatpush1.bf16.msra.mxu0 %v373
      %837 = vmatprep.subr.bf16.mxu0 0
      %838 = vmatpush2.bf16.msra.mxu0 0
      %839 = vmatprep.subr.bf16.mxu0 0
      %840 = vmatpush2.bf16.msra.mxu0 0
      %841 = vmatprep.subr.bf16.mxu0 0
      %842 = vmatpush2.bf16.msra.mxu0 0
      %843 = vmatprep.subr.bf16.mxu0 0
      %844 = vmatpush2.bf16.msra.mxu0 0
      %845 = vmatprep.subr.bf16.mxu0 0
      %846 = vmatpush2.bf16.msra.mxu0 0
      %847 = vmatprep.subr.bf16.mxu0 0
      %848 = vmatpush2.bf16.msra.mxu0 0
      %849 = vmatprep.subr.bf16.mxu0 0
      %850 = vmatpush2.bf16.msra.mxu0 0
      %851 = vmatprep.subr.bf16.mxu0 0
      %852 = vmatpush2.bf16.msra.mxu0 0
      %853 = vmatprep.mubr.bf16.mxu0 0
      %854 = vmatmul.mubr.bf16.gmra.mxu0 %v819
      %v855 = vpop.f32.mrf.mxu0
      %v856 = vadd.f32 %v790, %v855
      %v857 = vpop.f32.mrf.mxu0
      %v858 = vpop.f32.mrf.mxu0
      %v859 = vadd.f32 %v790, %v858
      %v860 = vpop.f32.mrf.mxu0
      %861 = vdwg.mxu0
      %v862 = vtanh.pop %v856
      %v863 = vtanh.pop %v859
      %v864 = vmul.f32 %v862, %v436
      %v865 = vmul.f32 %v863, %v436
      %v866 = vsel %vm440, %v864, 0.0
      %867 = vadd.xlane.f32.xlu0 %v866
      %v868 = vpop.xlane.xlu0 %867
      %v869 = vsel %vm440, %v865, 0.0
      %870 = vadd.xlane.f32.xlu0 %v869
      %v871 = vpop.xlane.xlu0 %870
      %v872 = vlaneseq
      %v873 = vshrl.u32 %v872, 7
      %v874 = vsub.s32 6, %v873
      %v875 = vrot.slane %v250, %v874
      %v876 = vrot.slane %v288, 6
      %v877 = vrot.slane %v289, 5
      %v878 = vsel %vm305, %v877, %v876
      %v879 = vrot.slane %v290, 4
      %v880 = vsel %vm308, %v879, %v878
      %v881 = vrot.slane %v291, 3
      %v882 = vsel %vm311, %v881, %v880
      %v883 = vrot.slane %v292, 2
      %v884 = vsel %vm314, %v883, %v882
      %v885 = vrot.slane %v293, 1
      %v886 = vsel %vm317, %v885, %v884
      %v887 = vsel %vm320, %v294, %v886
      %v888 = vrot.slane %v295, 7
      %v889 = vsel %vm323, %v888, %v887
      %v890 = vrot.slane %v296, 6
      %v891 = vrot.slane %v297, 5
      %v892 = vsel %vm305, %v891, %v890
      %v893 = vrot.slane %v298, 4
      %v894 = vsel %vm308, %v893, %v892
      %v895 = vrot.slane %v299, 3
      %v896 = vsel %vm311, %v895, %v894
      %v897 = vrot.slane %v300, 2
      %v898 = vsel %vm314, %v897, %v896
      %v899 = vrot.slane %v301, 1
      %v900 = vsel %vm317, %v899, %v898
      %v901 = vsel %vm320, %v302, %v900
      %v902 = vrot.slane %v303, 7
      %v903 = vsel %vm323, %v902, %v901
      %v904 = vpack.c.b16 %v903, %v889
      %906 = vmatprep.subr.bf16.mxu0 0
      %907 = vmatpush1.bf16.msra.mxu0 %v380
      %908 = vmatprep.subr.bf16.mxu0 0
      %909 = vmatpush1.bf16.msra.mxu0 %v379
      %910 = vmatprep.subr.bf16.mxu0 0
      %911 = vmatpush1.bf16.msra.mxu0 %v378
      %912 = vmatprep.subr.bf16.mxu0 0
      %913 = vmatpush1.bf16.msra.mxu0 %v377
      %914 = vmatprep.subr.bf16.mxu0 0
      %915 = vmatpush1.bf16.msra.mxu0 %v376
      %916 = vmatprep.subr.bf16.mxu0 0
      %917 = vmatpush1.bf16.msra.mxu0 %v375
      %918 = vmatprep.subr.bf16.mxu0 0
      %919 = vmatpush1.bf16.msra.mxu0 %v374
      %920 = vmatprep.subr.bf16.mxu0 0
      %921 = vmatpush1.bf16.msra.mxu0 %v373
      %922 = vmatprep.subr.bf16.mxu0 0
      %923 = vmatpush2.bf16.msra.mxu0 0
      %924 = vmatprep.subr.bf16.mxu0 0
      %925 = vmatpush2.bf16.msra.mxu0 0
      %926 = vmatprep.subr.bf16.mxu0 0
      %927 = vmatpush2.bf16.msra.mxu0 0
      %928 = vmatprep.subr.bf16.mxu0 0
      %929 = vmatpush2.bf16.msra.mxu0 0
      %930 = vmatprep.subr.bf16.mxu0 0
      %931 = vmatpush2.bf16.msra.mxu0 0
      %932 = vmatprep.subr.bf16.mxu0 0
      %933 = vmatpush2.bf16.msra.mxu0 0
      %934 = vmatprep.subr.bf16.mxu0 0
      %935 = vmatpush2.bf16.msra.mxu0 0
      %936 = vmatprep.subr.bf16.mxu0 0
      %937 = vmatpush2.bf16.msra.mxu0 0
      %938 = vmatprep.mubr.bf16.mxu0 0
      %939 = vmatmul.mubr.bf16.gmra.mxu0 %v904
      %v940 = vpop.f32.mrf.mxu0
      %v941 = vadd.f32 %v875, %v940
      %v942 = vpop.f32.mrf.mxu0
      %v943 = vpop.f32.mrf.mxu0
      %v944 = vadd.f32 %v875, %v943
      %v945 = vpop.f32.mrf.mxu0
      %946 = vdwg.mxu0
      %v947 = vtanh.pop %v941
      %v948 = vtanh.pop %v944
      %v949 = vmul.f32 %v947, %v436
      %v950 = vmul.f32 %v948, %v436
      %v951 = vsel %vm440, %v949, 0.0
      %952 = vadd.xlane.f32.xlu0 %v951
      %v953 = vpop.xlane.xlu0 %952
      %v954 = vsel %vm440, %v950, 0.0
      %955 = vadd.xlane.f32.xlu0 %v954
      %v956 = vpop.xlane.xlu0 %955
      %v957 = vlaneseq
      %v958 = vshrl.u32 %v957, 7
      %v959 = vsub.s32 7, %v958
      %v960 = vrot.slane %v250, %v959
      %v961 = vrot.slane %v288, 7
      %v962 = vrot.slane %v289, 6
      %v963 = vsel %vm305, %v962, %v961
      %v964 = vrot.slane %v290, 5
      %v965 = vsel %vm308, %v964, %v963
      %v966 = vrot.slane %v291, 4
      %v967 = vsel %vm311, %v966, %v965
      %v968 = vrot.slane %v292, 3
      %v969 = vsel %vm314, %v968, %v967
      %v970 = vrot.slane %v293, 2
      %v971 = vsel %vm317, %v970, %v969
      %v972 = vrot.slane %v294, 1
      %v973 = vsel %vm320, %v972, %v971
      %v974 = vsel %vm323, %v295, %v973
      %v975 = vrot.slane %v296, 7
      %v976 = vrot.slane %v297, 6
      %v977 = vsel %vm305, %v976, %v975
      %v978 = vrot.slane %v298, 5
      %v979 = vsel %vm308, %v978, %v977
      %v980 = vrot.slane %v299, 4
      %v981 = vsel %vm311, %v980, %v979
      %v982 = vrot.slane %v300, 3
      %v983 = vsel %vm314, %v982, %v981
      %v984 = vrot.slane %v301, 2
      %v985 = vsel %vm317, %v984, %v983
      %v986 = vrot.slane %v302, 1
      %v987 = vsel %vm320, %v986, %v985
      %v988 = vsel %vm323, %v303, %v987
      %v989 = vpack.c.b16 %v988, %v974
      %991 = vmatprep.subr.bf16.mxu0 0
      %992 = vmatpush1.bf16.msra.mxu0 %v380
      %993 = vmatprep.subr.bf16.mxu0 0
      %994 = vmatpush1.bf16.msra.mxu0 %v379
      %995 = vmatprep.subr.bf16.mxu0 0
      %996 = vmatpush1.bf16.msra.mxu0 %v378
      %997 = vmatprep.subr.bf16.mxu0 0
      %998 = vmatpush1.bf16.msra.mxu0 %v377
      %999 = vmatprep.subr.bf16.mxu0 0
      %1000 = vmatpush1.bf16.msra.mxu0 %v376
      %1001 = vmatprep.subr.bf16.mxu0 0
      %1002 = vmatpush1.bf16.msra.mxu0 %v375
      %1003 = vmatprep.subr.bf16.mxu0 0
      %1004 = vmatpush1.bf16.msra.mxu0 %v374
      %1005 = vmatprep.subr.bf16.mxu0 0
      %1006 = vmatpush1.bf16.msra.mxu0 %v373
      %1007 = vmatprep.subr.bf16.mxu0 0
      %1008 = vmatpush2.bf16.msra.mxu0 0
      %1009 = vmatprep.subr.bf16.mxu0 0
      %1010 = vmatpush2.bf16.msra.mxu0 0
      %1011 = vmatprep.subr.bf16.mxu0 0
      %1012 = vmatpush2.bf16.msra.mxu0 0
      %1013 = vmatprep.subr.bf16.mxu0 0
      %1014 = vmatpush2.bf16.msra.mxu0 0
      %1015 = vmatprep.subr.bf16.mxu0 0
      %1016 = vmatpush2.bf16.msra.mxu0 0
      %1017 = vmatprep.subr.bf16.mxu0 0
      %1018 = vmatpush2.bf16.msra.mxu0 0
      %1019 = vmatprep.subr.bf16.mxu0 0
      %1020 = vmatpush2.bf16.msra.mxu0 0
      %1021 = vmatprep.subr.bf16.mxu0 0
      %1022 = vmatpush2.bf16.msra.mxu0 0
      %1023 = vmatprep.mubr.bf16.mxu0 0
      %1024 = vmatmul.mubr.bf16.gmra.mxu0 %v989
      %v1025 = vpop.f32.mrf.mxu0
      %v1026 = vadd.f32 %v960, %v1025
      %v1027 = vpop.f32.mrf.mxu0
      %v1028 = vpop.f32.mrf.mxu0
      %v1029 = vadd.f32 %v960, %v1028
      %v1030 = vpop.f32.mrf.mxu0
      %1031 = vdwg.mxu0
      %v1032 = vtanh.pop %v1026
      %v1033 = vtanh.pop %v1029
      %v1034 = vmul.f32 %v1032, %v436
      %v1035 = vmul.f32 %v1033, %v436
      %v1036 = vsel %vm440, %v1034, 0.0
      %1037 = vadd.xlane.f32.xlu0 %v1036
      %v1038 = vpop.xlane.xlu0 %1037
      %v1039 = vsel %vm440, %v1035, 0.0
      %1040 = vadd.xlane.f32.xlu0 %v1039
      %v1041 = vpop.xlane.xlu0 %1040
      %vm1042 = vcmask 7168
      %v1043 = vsel %vm1042, %v443, %v528
      %v1044 = vsel %vm1042, %v446, %v531
      %vm1045 = vcmask 15360
      %v1046 = vsel %vm1045, %v1043, %v613
      %v1047 = vsel %vm1045, %v1044, %v616
      %vm1048 = vcmask 23552
      %v1049 = vsel %vm1048, %v1046, %v698
      %v1050 = vsel %vm1048, %v1047, %v701
      %vm1051 = vcmask 31744
      %v1052 = vsel %vm1051, %v1049, %v783
      %v1053 = vsel %vm1051, %v1050, %v786
      %vm1054 = vcmask 39936
      %v1055 = vsel %vm1054, %v1052, %v868
      %v1056 = vsel %vm1054, %v1053, %v871
      %vm1057 = vcmask 48128
      %v1058 = vsel %vm1057, %v1055, %v953
      %v1059 = vsel %vm1057, %v1056, %v956
      %vm1060 = vcmask 56320
      %v1061 = vsel %vm1060, %v1058, %v1038
      %v1062 = vsel %vm1060, %v1059, %v1041
      %vm1063 = vcmask 64512
      %v1064 = vsel %vm1063, %v1061, -inf
      %1065 = vmax.xlane.f32.xlu0 %v1064
      %v1066 = vpop.xlane.xlu0 %1065
      %v1067 = vsel %vm1063, %v1062, -inf
      %1068 = vmax.xlane.f32.xlu0 %v1067
      %v1069 = vpop.xlane.xlu0 %1068
      %v1070 = vsub.f32 %v1061, %v1066
      %v1071 = vsub.f32 %v1062, %v1069
      %v1072 = vmul.f32 %v1070, 1.442695
      %v1073 = vpow.pop %v1072
      %v1074 = vmul.f32 %v1071, 1.442695
      %v1075 = vpow.pop %v1074
      %v1076 = vsel %vm1063, %v1073, 0.0
      %1077 = vadd.xlane.f32.xlu0 %v1076
      %v1078 = vpop.xlane.xlu0 %1077
      %v1079 = vsel %vm1063, %v1075, 0.0
      %1080 = vadd.xlane.f32.xlu0 %v1079
      %v1081 = vpop.xlane.xlu0 %1080
      %v1082 = vrcp.pop %v1078
      %v1083 = vrcp.pop %v1081
      %v1084 = vmul.f32 %v1073, %v1082
      %v1085 = vmul.f32 %v1075, %v1083
      %1087 = vset.pattern.permute.xlu0 0
      %1088 = vperm.xlu0 %1087, %v1084
      %v1089 = vpop.permute.xlu0 %1088
      %1091 = vset.pattern.permute.xlu0 0
      %1092 = vperm.xlu0 %1091, %v1085
      %v1093 = vpop.permute.xlu0 %1092
      %v1094 = vrot.slane %v1089, 1
      %v1095 = vrot.slane %v1089, 2
      %v1096 = vrot.slane %v1089, 3
      %v1097 = vrot.slane %v1089, 4
      %v1098 = vrot.slane %v1089, 5
      %v1099 = vrot.slane %v1089, 6
      %v1100 = vrot.slane %v1089, 7
      %v1101 = vrot.slane %v1093, 1
      %v1102 = vrot.slane %v1093, 2
      %v1103 = vrot.slane %v1093, 3
      %v1104 = vrot.slane %v1093, 4
      %v1105 = vrot.slane %v1093, 5
      %v1106 = vrot.slane %v1093, 6
      %v1107 = vrot.slane %v1093, 7
      %v1124 = vmul.f32 %v218, %v1089
      %v1125 = vmul.f32 %v219, %v1094
      %v1126 = vmul.f32 %v220, %v1095
      %v1127 = vmul.f32 %v221, %v1096
      %v1128 = vmul.f32 %v222, %v1097
      %v1129 = vmul.f32 %v223, %v1098
      %v1130 = vmul.f32 %v224, %v1099
      %v1131 = vmul.f32 %v225, %v1100
      %v1132 = vmul.f32 %v226, %v1093
      %v1133 = vmul.f32 %v227, %v1101
      %v1134 = vmul.f32 %v228, %v1102
      %v1135 = vmul.f32 %v229, %v1103
      %v1136 = vmul.f32 %v230, %v1104
      %v1137 = vmul.f32 %v231, %v1105
      %v1138 = vmul.f32 %v232, %v1106
      %v1139 = vmul.f32 %v233, %v1107
      %v1140 = vadd.f32 %v1124, 0.0
      %v1141 = vadd.f32 %v1125, 0.0
      %v1142 = vadd.f32 %v1126, 0.0
      %v1143 = vadd.f32 %v1127, 0.0
      %v1144 = vadd.f32 %v1128, 0.0
      %v1145 = vadd.f32 %v1129, 0.0
      %v1146 = vadd.f32 %v1130, 0.0
      %v1147 = vadd.f32 %v1131, 0.0
      %v1148 = vadd.f32 %v1132, 0.0
      %v1149 = vadd.f32 %v1133, 0.0
      %v1150 = vadd.f32 %v1134, 0.0
      %v1151 = vadd.f32 %v1135, 0.0
      %v1152 = vadd.f32 %v1136, 0.0
      %v1153 = vadd.f32 %v1137, 0.0
      %v1154 = vadd.f32 %v1138, 0.0
      %v1155 = vadd.f32 %v1139, 0.0
      %1156 = vset.pattern.permute.xlu0 1
      %1157 = vperm.xlu0 %1156, %v1084
      %v1158 = vpop.permute.xlu0 %1157
      %1159 = vset.pattern.permute.xlu0 1
      %1160 = vperm.xlu0 %1159, %v1085
      %v1161 = vpop.permute.xlu0 %1160
      %v1162 = vrot.slane %v1158, 7
      %v1163 = vrot.slane %v1158, 1
      %v1164 = vrot.slane %v1158, 2
      %v1165 = vrot.slane %v1158, 3
      %v1166 = vrot.slane %v1158, 4
      %v1167 = vrot.slane %v1158, 5
      %v1168 = vrot.slane %v1158, 6
      %v1169 = vrot.slane %v1161, 7
      %v1170 = vrot.slane %v1161, 1
      %v1171 = vrot.slane %v1161, 2
      %v1172 = vrot.slane %v1161, 3
      %v1173 = vrot.slane %v1161, 4
      %v1174 = vrot.slane %v1161, 5
      %v1175 = vrot.slane %v1161, 6
      %v1192 = vmul.f32 %v218, %v1162
      %v1193 = vmul.f32 %v219, %v1158
      %v1194 = vmul.f32 %v220, %v1163
      %v1195 = vmul.f32 %v221, %v1164
      %v1196 = vmul.f32 %v222, %v1165
      %v1197 = vmul.f32 %v223, %v1166
      %v1198 = vmul.f32 %v224, %v1167
      %v1199 = vmul.f32 %v225, %v1168
      %v1200 = vmul.f32 %v226, %v1169
      %v1201 = vmul.f32 %v227, %v1161
      %v1202 = vmul.f32 %v228, %v1170
      %v1203 = vmul.f32 %v229, %v1171
      %v1204 = vmul.f32 %v230, %v1172
      %v1205 = vmul.f32 %v231, %v1173
      %v1206 = vmul.f32 %v232, %v1174
      %v1207 = vmul.f32 %v233, %v1175
      %v1224 = vrot.slane %v1192, 1
      %v1225 = vrot.slane %v1193, 1
      %v1226 = vrot.slane %v1194, 1
      %v1227 = vrot.slane %v1195, 1
      %v1228 = vrot.slane %v1196, 1
      %v1229 = vrot.slane %v1197, 1
      %v1230 = vrot.slane %v1198, 1
      %v1231 = vrot.slane %v1199, 1
      %v1232 = vrot.slane %v1200, 1
      %v1233 = vrot.slane %v1201, 1
      %v1234 = vrot.slane %v1202, 1
      %v1235 = vrot.slane %v1203, 1
      %v1236 = vrot.slane %v1204, 1
      %v1237 = vrot.slane %v1205, 1
      %v1238 = vrot.slane %v1206, 1
      %v1239 = vrot.slane %v1207, 1
      %v1256 = vadd.f32 %v1140, %v1224
      %v1257 = vadd.f32 %v1141, %v1225
      %v1258 = vadd.f32 %v1142, %v1226
      %v1259 = vadd.f32 %v1143, %v1227
      %v1260 = vadd.f32 %v1144, %v1228
      %v1261 = vadd.f32 %v1145, %v1229
      %v1262 = vadd.f32 %v1146, %v1230
      %v1263 = vadd.f32 %v1147, %v1231
      %v1264 = vadd.f32 %v1148, %v1232
      %v1265 = vadd.f32 %v1149, %v1233
      %v1266 = vadd.f32 %v1150, %v1234
      %v1267 = vadd.f32 %v1151, %v1235
      %v1268 = vadd.f32 %v1152, %v1236
      %v1269 = vadd.f32 %v1153, %v1237
      %v1270 = vadd.f32 %v1154, %v1238
      %v1271 = vadd.f32 %v1155, %v1239
      %1272 = vset.pattern.permute.xlu0 2
      %1273 = vperm.xlu0 %1272, %v1084
      %v1274 = vpop.permute.xlu0 %1273
      %1275 = vset.pattern.permute.xlu0 2
      %1276 = vperm.xlu0 %1275, %v1085
      %v1277 = vpop.permute.xlu0 %1276
      %v1278 = vrot.slane %v1274, 6
      %v1279 = vrot.slane %v1274, 7
      %v1280 = vrot.slane %v1274, 1
      %v1281 = vrot.slane %v1274, 2
      %v1282 = vrot.slane %v1274, 3
      %v1283 = vrot.slane %v1274, 4
      %v1284 = vrot.slane %v1274, 5
      %v1285 = vrot.slane %v1277, 6
      %v1286 = vrot.slane %v1277, 7
      %v1287 = vrot.slane %v1277, 1
      %v1288 = vrot.slane %v1277, 2
      %v1289 = vrot.slane %v1277, 3
      %v1290 = vrot.slane %v1277, 4
      %v1291 = vrot.slane %v1277, 5
      %v1308 = vmul.f32 %v218, %v1278
      %v1309 = vmul.f32 %v219, %v1279
      %v1310 = vmul.f32 %v220, %v1274
      %v1311 = vmul.f32 %v221, %v1280
      %v1312 = vmul.f32 %v222, %v1281
      %v1313 = vmul.f32 %v223, %v1282
      %v1314 = vmul.f32 %v224, %v1283
      %v1315 = vmul.f32 %v225, %v1284
      %v1316 = vmul.f32 %v226, %v1285
      %v1317 = vmul.f32 %v227, %v1286
      %v1318 = vmul.f32 %v228, %v1277
      %v1319 = vmul.f32 %v229, %v1287
      %v1320 = vmul.f32 %v230, %v1288
      %v1321 = vmul.f32 %v231, %v1289
      %v1322 = vmul.f32 %v232, %v1290
      %v1323 = vmul.f32 %v233, %v1291
      %v1340 = vrot.slane %v1308, 2
      %v1341 = vrot.slane %v1309, 2
      %v1342 = vrot.slane %v1310, 2
      %v1343 = vrot.slane %v1311, 2
      %v1344 = vrot.slane %v1312, 2
      %v1345 = vrot.slane %v1313, 2
      %v1346 = vrot.slane %v1314, 2
      %v1347 = vrot.slane %v1315, 2
      %v1348 = vrot.slane %v1316, 2
      %v1349 = vrot.slane %v1317, 2
      %v1350 = vrot.slane %v1318, 2
      %v1351 = vrot.slane %v1319, 2
      %v1352 = vrot.slane %v1320, 2
      %v1353 = vrot.slane %v1321, 2
      %v1354 = vrot.slane %v1322, 2
      %v1355 = vrot.slane %v1323, 2
      %v1372 = vadd.f32 %v1256, %v1340
      %v1373 = vadd.f32 %v1257, %v1341
      %v1374 = vadd.f32 %v1258, %v1342
      %v1375 = vadd.f32 %v1259, %v1343
      %v1376 = vadd.f32 %v1260, %v1344
      %v1377 = vadd.f32 %v1261, %v1345
      %v1378 = vadd.f32 %v1262, %v1346
      %v1379 = vadd.f32 %v1263, %v1347
      %v1380 = vadd.f32 %v1264, %v1348
      %v1381 = vadd.f32 %v1265, %v1349
      %v1382 = vadd.f32 %v1266, %v1350
      %v1383 = vadd.f32 %v1267, %v1351
      %v1384 = vadd.f32 %v1268, %v1352
      %v1385 = vadd.f32 %v1269, %v1353
      %v1386 = vadd.f32 %v1270, %v1354
      %v1387 = vadd.f32 %v1271, %v1355
      %1388 = vset.pattern.permute.xlu0 3
      %1389 = vperm.xlu0 %1388, %v1084
      %v1390 = vpop.permute.xlu0 %1389
      %1391 = vset.pattern.permute.xlu0 3
      %1392 = vperm.xlu0 %1391, %v1085
      %v1393 = vpop.permute.xlu0 %1392
      %v1394 = vrot.slane %v1390, 5
      %v1395 = vrot.slane %v1390, 6
      %v1396 = vrot.slane %v1390, 7
      %v1397 = vrot.slane %v1390, 1
      %v1398 = vrot.slane %v1390, 2
      %v1399 = vrot.slane %v1390, 3
      %v1400 = vrot.slane %v1390, 4
      %v1401 = vrot.slane %v1393, 5
      %v1402 = vrot.slane %v1393, 6
      %v1403 = vrot.slane %v1393, 7
      %v1404 = vrot.slane %v1393, 1
      %v1405 = vrot.slane %v1393, 2
      %v1406 = vrot.slane %v1393, 3
      %v1407 = vrot.slane %v1393, 4
      %v1424 = vmul.f32 %v218, %v1394
      %v1425 = vmul.f32 %v219, %v1395
      %v1426 = vmul.f32 %v220, %v1396
      %v1427 = vmul.f32 %v221, %v1390
      %v1428 = vmul.f32 %v222, %v1397
      %v1429 = vmul.f32 %v223, %v1398
      %v1430 = vmul.f32 %v224, %v1399
      %v1431 = vmul.f32 %v225, %v1400
      %v1432 = vmul.f32 %v226, %v1401
      %v1433 = vmul.f32 %v227, %v1402
      %v1434 = vmul.f32 %v228, %v1403
      %v1435 = vmul.f32 %v229, %v1393
      %v1436 = vmul.f32 %v230, %v1404
      %v1437 = vmul.f32 %v231, %v1405
      %v1438 = vmul.f32 %v232, %v1406
      %v1439 = vmul.f32 %v233, %v1407
      %v1456 = vrot.slane %v1424, 3
      %v1457 = vrot.slane %v1425, 3
      %v1458 = vrot.slane %v1426, 3
      %v1459 = vrot.slane %v1427, 3
      %v1460 = vrot.slane %v1428, 3
      %v1461 = vrot.slane %v1429, 3
      %v1462 = vrot.slane %v1430, 3
      %v1463 = vrot.slane %v1431, 3
      %v1464 = vrot.slane %v1432, 3
      %v1465 = vrot.slane %v1433, 3
      %v1466 = vrot.slane %v1434, 3
      %v1467 = vrot.slane %v1435, 3
      %v1468 = vrot.slane %v1436, 3
      %v1469 = vrot.slane %v1437, 3
      %v1470 = vrot.slane %v1438, 3
      %v1471 = vrot.slane %v1439, 3
      %v1488 = vadd.f32 %v1372, %v1456
      %v1489 = vadd.f32 %v1373, %v1457
      %v1490 = vadd.f32 %v1374, %v1458
      %v1491 = vadd.f32 %v1375, %v1459
      %v1492 = vadd.f32 %v1376, %v1460
      %v1493 = vadd.f32 %v1377, %v1461
      %v1494 = vadd.f32 %v1378, %v1462
      %v1495 = vadd.f32 %v1379, %v1463
      %v1496 = vadd.f32 %v1380, %v1464
      %v1497 = vadd.f32 %v1381, %v1465
      %v1498 = vadd.f32 %v1382, %v1466
      %v1499 = vadd.f32 %v1383, %v1467
      %v1500 = vadd.f32 %v1384, %v1468
      %v1501 = vadd.f32 %v1385, %v1469
      %v1502 = vadd.f32 %v1386, %v1470
      %v1503 = vadd.f32 %v1387, %v1471
      %1504 = vset.pattern.permute.xlu0 4
      %1505 = vperm.xlu0 %1504, %v1084
      %v1506 = vpop.permute.xlu0 %1505
      %1507 = vset.pattern.permute.xlu0 4
      %1508 = vperm.xlu0 %1507, %v1085
      %v1509 = vpop.permute.xlu0 %1508
      %v1510 = vrot.slane %v1506, 4
      %v1511 = vrot.slane %v1506, 5
      %v1512 = vrot.slane %v1506, 6
      %v1513 = vrot.slane %v1506, 7
      %v1514 = vrot.slane %v1506, 1
      %v1515 = vrot.slane %v1506, 2
      %v1516 = vrot.slane %v1506, 3
      %v1517 = vrot.slane %v1509, 4
      %v1518 = vrot.slane %v1509, 5
      %v1519 = vrot.slane %v1509, 6
      %v1520 = vrot.slane %v1509, 7
      %v1521 = vrot.slane %v1509, 1
      %v1522 = vrot.slane %v1509, 2
      %v1523 = vrot.slane %v1509, 3
      %v1540 = vmul.f32 %v218, %v1510
      %v1541 = vmul.f32 %v219, %v1511
      %v1542 = vmul.f32 %v220, %v1512
      %v1543 = vmul.f32 %v221, %v1513
      %v1544 = vmul.f32 %v222, %v1506
      %v1545 = vmul.f32 %v223, %v1514
      %v1546 = vmul.f32 %v224, %v1515
      %v1547 = vmul.f32 %v225, %v1516
      %v1548 = vmul.f32 %v226, %v1517
      %v1549 = vmul.f32 %v227, %v1518
      %v1550 = vmul.f32 %v228, %v1519
      %v1551 = vmul.f32 %v229, %v1520
      %v1552 = vmul.f32 %v230, %v1509
      %v1553 = vmul.f32 %v231, %v1521
      %v1554 = vmul.f32 %v232, %v1522
      %v1555 = vmul.f32 %v233, %v1523
      %v1572 = vrot.slane %v1540, 4
      %v1573 = vrot.slane %v1541, 4
      %v1574 = vrot.slane %v1542, 4
      %v1575 = vrot.slane %v1543, 4
      %v1576 = vrot.slane %v1544, 4
      %v1577 = vrot.slane %v1545, 4
      %v1578 = vrot.slane %v1546, 4
      %v1579 = vrot.slane %v1547, 4
      %v1580 = vrot.slane %v1548, 4
      %v1581 = vrot.slane %v1549, 4
      %v1582 = vrot.slane %v1550, 4
      %v1583 = vrot.slane %v1551, 4
      %v1584 = vrot.slane %v1552, 4
      %v1585 = vrot.slane %v1553, 4
      %v1586 = vrot.slane %v1554, 4
      %v1587 = vrot.slane %v1555, 4
      %v1604 = vadd.f32 %v1488, %v1572
      %v1605 = vadd.f32 %v1489, %v1573
      %v1606 = vadd.f32 %v1490, %v1574
      %v1607 = vadd.f32 %v1491, %v1575
      %v1608 = vadd.f32 %v1492, %v1576
      %v1609 = vadd.f32 %v1493, %v1577
      %v1610 = vadd.f32 %v1494, %v1578
      %v1611 = vadd.f32 %v1495, %v1579
      %v1612 = vadd.f32 %v1496, %v1580
      %v1613 = vadd.f32 %v1497, %v1581
      %v1614 = vadd.f32 %v1498, %v1582
      %v1615 = vadd.f32 %v1499, %v1583
      %v1616 = vadd.f32 %v1500, %v1584
      %v1617 = vadd.f32 %v1501, %v1585
      %v1618 = vadd.f32 %v1502, %v1586
      %v1619 = vadd.f32 %v1503, %v1587
      %1620 = vset.pattern.permute.xlu0 5
      %1621 = vperm.xlu0 %1620, %v1084
      %v1622 = vpop.permute.xlu0 %1621
      %1623 = vset.pattern.permute.xlu0 5
      %1624 = vperm.xlu0 %1623, %v1085
      %v1625 = vpop.permute.xlu0 %1624
      %v1626 = vrot.slane %v1622, 3
      %v1627 = vrot.slane %v1622, 4
      %v1628 = vrot.slane %v1622, 5
      %v1629 = vrot.slane %v1622, 6
      %v1630 = vrot.slane %v1622, 7
      %v1631 = vrot.slane %v1622, 1
      %v1632 = vrot.slane %v1622, 2
      %v1633 = vrot.slane %v1625, 3
      %v1634 = vrot.slane %v1625, 4
      %v1635 = vrot.slane %v1625, 5
      %v1636 = vrot.slane %v1625, 6
      %v1637 = vrot.slane %v1625, 7
      %v1638 = vrot.slane %v1625, 1
      %v1639 = vrot.slane %v1625, 2
      %v1656 = vmul.f32 %v218, %v1626
      %v1657 = vmul.f32 %v219, %v1627
      %v1658 = vmul.f32 %v220, %v1628
      %v1659 = vmul.f32 %v221, %v1629
      %v1660 = vmul.f32 %v222, %v1630
      %v1661 = vmul.f32 %v223, %v1622
      %v1662 = vmul.f32 %v224, %v1631
      %v1663 = vmul.f32 %v225, %v1632
      %v1664 = vmul.f32 %v226, %v1633
      %v1665 = vmul.f32 %v227, %v1634
      %v1666 = vmul.f32 %v228, %v1635
      %v1667 = vmul.f32 %v229, %v1636
      %v1668 = vmul.f32 %v230, %v1637
      %v1669 = vmul.f32 %v231, %v1625
      %v1670 = vmul.f32 %v232, %v1638
      %v1671 = vmul.f32 %v233, %v1639
      %v1688 = vrot.slane %v1656, 5
      %v1689 = vrot.slane %v1657, 5
      %v1690 = vrot.slane %v1658, 5
      %v1691 = vrot.slane %v1659, 5
      %v1692 = vrot.slane %v1660, 5
      %v1693 = vrot.slane %v1661, 5
      %v1694 = vrot.slane %v1662, 5
      %v1695 = vrot.slane %v1663, 5
      %v1696 = vrot.slane %v1664, 5
      %v1697 = vrot.slane %v1665, 5
      %v1698 = vrot.slane %v1666, 5
      %v1699 = vrot.slane %v1667, 5
      %v1700 = vrot.slane %v1668, 5
      %v1701 = vrot.slane %v1669, 5
      %v1702 = vrot.slane %v1670, 5
      %v1703 = vrot.slane %v1671, 5
      %v1720 = vadd.f32 %v1604, %v1688
      %v1721 = vadd.f32 %v1605, %v1689
      %v1722 = vadd.f32 %v1606, %v1690
      %v1723 = vadd.f32 %v1607, %v1691
      %v1724 = vadd.f32 %v1608, %v1692
      %v1725 = vadd.f32 %v1609, %v1693
      %v1726 = vadd.f32 %v1610, %v1694
      %v1727 = vadd.f32 %v1611, %v1695
      %v1728 = vadd.f32 %v1612, %v1696
      %v1729 = vadd.f32 %v1613, %v1697
      %v1730 = vadd.f32 %v1614, %v1698
      %v1731 = vadd.f32 %v1615, %v1699
      %v1732 = vadd.f32 %v1616, %v1700
      %v1733 = vadd.f32 %v1617, %v1701
      %v1734 = vadd.f32 %v1618, %v1702
      %v1735 = vadd.f32 %v1619, %v1703
      %1736 = vset.pattern.permute.xlu0 6
      %1737 = vperm.xlu0 %1736, %v1084
      %v1738 = vpop.permute.xlu0 %1737
      %1739 = vset.pattern.permute.xlu0 6
      %1740 = vperm.xlu0 %1739, %v1085
      %v1741 = vpop.permute.xlu0 %1740
      %v1742 = vrot.slane %v1738, 2
      %v1743 = vrot.slane %v1738, 3
      %v1744 = vrot.slane %v1738, 4
      %v1745 = vrot.slane %v1738, 5
      %v1746 = vrot.slane %v1738, 6
      %v1747 = vrot.slane %v1738, 7
      %v1748 = vrot.slane %v1738, 1
      %v1749 = vrot.slane %v1741, 2
      %v1750 = vrot.slane %v1741, 3
      %v1751 = vrot.slane %v1741, 4
      %v1752 = vrot.slane %v1741, 5
      %v1753 = vrot.slane %v1741, 6
      %v1754 = vrot.slane %v1741, 7
      %v1755 = vrot.slane %v1741, 1
      %v1772 = vmul.f32 %v218, %v1742
      %v1773 = vmul.f32 %v219, %v1743
      %v1774 = vmul.f32 %v220, %v1744
      %v1775 = vmul.f32 %v221, %v1745
      %v1776 = vmul.f32 %v222, %v1746
      %v1777 = vmul.f32 %v223, %v1747
      %v1778 = vmul.f32 %v224, %v1738
      %v1779 = vmul.f32 %v225, %v1748
      %v1780 = vmul.f32 %v226, %v1749
      %v1781 = vmul.f32 %v227, %v1750
      %v1782 = vmul.f32 %v228, %v1751
      %v1783 = vmul.f32 %v229, %v1752
      %v1784 = vmul.f32 %v230, %v1753
      %v1785 = vmul.f32 %v231, %v1754
      %v1786 = vmul.f32 %v232, %v1741
      %v1787 = vmul.f32 %v233, %v1755
      %v1804 = vrot.slane %v1772, 6
      %v1805 = vrot.slane %v1773, 6
      %v1806 = vrot.slane %v1774, 6
      %v1807 = vrot.slane %v1775, 6
      %v1808 = vrot.slane %v1776, 6
      %v1809 = vrot.slane %v1777, 6
      %v1810 = vrot.slane %v1778, 6
      %v1811 = vrot.slane %v1779, 6
      %v1812 = vrot.slane %v1780, 6
      %v1813 = vrot.slane %v1781, 6
      %v1814 = vrot.slane %v1782, 6
      %v1815 = vrot.slane %v1783, 6
      %v1816 = vrot.slane %v1784, 6
      %v1817 = vrot.slane %v1785, 6
      %v1818 = vrot.slane %v1786, 6
      %v1819 = vrot.slane %v1787, 6
      %v1836 = vadd.f32 %v1720, %v1804
      %v1837 = vadd.f32 %v1721, %v1805
      %v1838 = vadd.f32 %v1722, %v1806
      %v1839 = vadd.f32 %v1723, %v1807
      %v1840 = vadd.f32 %v1724, %v1808
      %v1841 = vadd.f32 %v1725, %v1809
      %v1842 = vadd.f32 %v1726, %v1810
      %v1843 = vadd.f32 %v1727, %v1811
      %v1844 = vadd.f32 %v1728, %v1812
      %v1845 = vadd.f32 %v1729, %v1813
      %v1846 = vadd.f32 %v1730, %v1814
      %v1847 = vadd.f32 %v1731, %v1815
      %v1848 = vadd.f32 %v1732, %v1816
      %v1849 = vadd.f32 %v1733, %v1817
      %v1850 = vadd.f32 %v1734, %v1818
      %v1851 = vadd.f32 %v1735, %v1819
      %1852 = vset.pattern.permute.xlu0 7
      %1853 = vperm.xlu0 %1852, %v1084
      %v1854 = vpop.permute.xlu0 %1853
      %1855 = vset.pattern.permute.xlu0 7
      %1856 = vperm.xlu0 %1855, %v1085
      %v1857 = vpop.permute.xlu0 %1856
      %v1858 = vrot.slane %v1854, 1
      %v1859 = vrot.slane %v1854, 2
      %v1860 = vrot.slane %v1854, 3
      %v1861 = vrot.slane %v1854, 4
      %v1862 = vrot.slane %v1854, 5
      %v1863 = vrot.slane %v1854, 6
      %v1864 = vrot.slane %v1854, 7
      %v1865 = vrot.slane %v1857, 1
      %v1866 = vrot.slane %v1857, 2
      %v1867 = vrot.slane %v1857, 3
      %v1868 = vrot.slane %v1857, 4
      %v1869 = vrot.slane %v1857, 5
      %v1870 = vrot.slane %v1857, 6
      %v1871 = vrot.slane %v1857, 7
      %v1888 = vmul.f32 %v218, %v1858
      %v1889 = vmul.f32 %v219, %v1859
      %v1890 = vmul.f32 %v220, %v1860
      %v1891 = vmul.f32 %v221, %v1861
      %v1892 = vmul.f32 %v222, %v1862
      %v1893 = vmul.f32 %v223, %v1863
      %v1894 = vmul.f32 %v224, %v1864
      %v1895 = vmul.f32 %v225, %v1854
      %v1896 = vmul.f32 %v226, %v1865
      %v1897 = vmul.f32 %v227, %v1866
      %v1898 = vmul.f32 %v228, %v1867
      %v1899 = vmul.f32 %v229, %v1868
      %v1900 = vmul.f32 %v230, %v1869
      %v1901 = vmul.f32 %v231, %v1870
      %v1902 = vmul.f32 %v232, %v1871
      %v1903 = vmul.f32 %v233, %v1857
      %v1920 = vrot.slane %v1888, 7
      %v1921 = vrot.slane %v1889, 7
      %v1922 = vrot.slane %v1890, 7
      %v1923 = vrot.slane %v1891, 7
      %v1924 = vrot.slane %v1892, 7
      %v1925 = vrot.slane %v1893, 7
      %v1926 = vrot.slane %v1894, 7
      %v1927 = vrot.slane %v1895, 7
      %v1928 = vrot.slane %v1896, 7
      %v1929 = vrot.slane %v1897, 7
      %v1930 = vrot.slane %v1898, 7
      %v1931 = vrot.slane %v1899, 7
      %v1932 = vrot.slane %v1900, 7
      %v1933 = vrot.slane %v1901, 7
      %v1934 = vrot.slane %v1902, 7
      %v1935 = vrot.slane %v1903, 7
      %v1952 = vadd.f32 %v1836, %v1920
      %v1953 = vadd.f32 %v1837, %v1921
      %v1954 = vadd.f32 %v1838, %v1922
      %v1955 = vadd.f32 %v1839, %v1923
      %v1956 = vadd.f32 %v1840, %v1924
      %v1957 = vadd.f32 %v1841, %v1925
      %v1958 = vadd.f32 %v1842, %v1926
      %v1959 = vadd.f32 %v1843, %v1927
      %v1960 = vadd.f32 %v1844, %v1928
      %v1961 = vadd.f32 %v1845, %v1929
      %v1962 = vadd.f32 %v1846, %v1930
      %v1963 = vadd.f32 %v1847, %v1931
      %v1964 = vadd.f32 %v1848, %v1932
      %v1965 = vadd.f32 %v1849, %v1933
      %v1966 = vadd.f32 %v1850, %v1934
      %v1967 = vadd.f32 %v1851, %v1935
      %v1968 = vpack.c.bf16 %v1952, %v1952
      %v1969 = vpack.c.bf16 %v1953, %v1953
      %v1970 = vpack.c.bf16 %v1954, %v1954
      %v1971 = vpack.c.bf16 %v1955, %v1955
      %v1972 = vpack.c.bf16 %v1956, %v1956
      %v1973 = vpack.c.bf16 %v1957, %v1957
      %v1974 = vpack.c.bf16 %v1958, %v1958
      %v1975 = vpack.c.bf16 %v1959, %v1959
      %v1976 = vpack.c.bf16 %v1960, %v1960
      %v1977 = vpack.c.bf16 %v1961, %v1961
      %v1978 = vpack.c.bf16 %v1962, %v1962
      %v1979 = vpack.c.bf16 %v1963, %v1963
      %v1980 = vpack.c.bf16 %v1964, %v1964
      %v1981 = vpack.c.bf16 %v1965, %v1965
      %v1982 = vpack.c.bf16 %v1966, %v1966
      %v1983 = vpack.c.bf16 %v1967, %v1967
      %v2000 = vunpack.c.l.b16 %v1968
      %v2001 = vunpack.c.l.b16 %v1969
      %v2002 = vunpack.c.l.b16 %v1970
      %v2003 = vunpack.c.l.b16 %v1971
      %v2004 = vunpack.c.l.b16 %v1972
      %v2005 = vunpack.c.l.b16 %v1973
      %v2006 = vunpack.c.l.b16 %v1974
      %v2007 = vunpack.c.l.b16 %v1975
      %v2008 = vunpack.c.l.b16 %v1976
      %v2009 = vunpack.c.l.b16 %v1977
      %v2010 = vunpack.c.l.b16 %v1978
      %v2011 = vunpack.c.l.b16 %v1979
      %v2012 = vunpack.c.l.b16 %v1980
      %v2013 = vunpack.c.l.b16 %v1981
      %v2014 = vunpack.c.l.b16 %v1982
      %v2015 = vunpack.c.l.b16 %v1983
      %v2016 = vpack.c.b16 %v2000, %v2000
      %v2017 = vpack.c.b16 %v2001, %v2001
      %v2018 = vpack.c.b16 %v2002, %v2002
      %v2019 = vpack.c.b16 %v2003, %v2003
      %v2020 = vpack.c.b16 %v2004, %v2004
      %v2021 = vpack.c.b16 %v2005, %v2005
      %v2022 = vpack.c.b16 %v2006, %v2006
      %v2023 = vpack.c.b16 %v2007, %v2007
      %v2024 = vpack.c.b16 %v2008, %v2008
      %v2025 = vpack.c.b16 %v2009, %v2009
      %v2026 = vpack.c.b16 %v2010, %v2010
      %v2027 = vpack.c.b16 %v2011, %v2011
      %v2028 = vpack.c.b16 %v2012, %v2012
      %v2029 = vpack.c.b16 %v2013, %v2013
      %v2030 = vpack.c.b16 %v2014, %v2014
      %v2031 = vpack.c.b16 %v2015, %v2015
      %v2032 = vunpack.c.l.b16 %v2016
      %v2033 = vunpack.c.l.b16 %v2017
      %v2034 = vunpack.c.l.b16 %v2018
      %v2035 = vunpack.c.l.b16 %v2019
      %v2036 = vunpack.c.l.b16 %v2020
      %v2037 = vunpack.c.l.b16 %v2021
      %v2038 = vunpack.c.l.b16 %v2022
      %v2039 = vunpack.c.l.b16 %v2023
      %v2040 = vunpack.c.l.b16 %v2024
      %v2041 = vunpack.c.l.b16 %v2025
      %v2042 = vunpack.c.l.b16 %v2026
      %v2043 = vunpack.c.l.b16 %v2027
      %v2044 = vunpack.c.l.b16 %v2028
      %v2045 = vunpack.c.l.b16 %v2029
      %v2046 = vunpack.c.l.b16 %v2030
      %v2047 = vunpack.c.l.b16 %v2031
      %v2048 = vrot.slane %v2033, 7
      %v2049 = vsel %vm305, %v2048, %v2032
      %v2050 = vrot.slane %v2034, 6
      %v2051 = vsel %vm308, %v2050, %v2049
      %v2052 = vrot.slane %v2035, 5
      %v2053 = vsel %vm311, %v2052, %v2051
      %v2054 = vrot.slane %v2036, 4
      %v2055 = vsel %vm314, %v2054, %v2053
      %v2056 = vrot.slane %v2037, 3
      %v2057 = vsel %vm317, %v2056, %v2055
      %v2058 = vrot.slane %v2038, 2
      %v2059 = vsel %vm320, %v2058, %v2057
      %v2060 = vrot.slane %v2039, 1
      %v2061 = vsel %vm323, %v2060, %v2059
      %v2062 = vrot.slane %v2041, 7
      %v2063 = vsel %vm305, %v2062, %v2040
      %v2064 = vrot.slane %v2042, 6
      %v2065 = vsel %vm308, %v2064, %v2063
      %v2066 = vrot.slane %v2043, 5
      %v2067 = vsel %vm311, %v2066, %v2065
      %v2068 = vrot.slane %v2044, 4
      %v2069 = vsel %vm314, %v2068, %v2067
      %v2070 = vrot.slane %v2045, 3
      %v2071 = vsel %vm317, %v2070, %v2069
      %v2072 = vrot.slane %v2046, 2
      %v2073 = vsel %vm320, %v2072, %v2071
      %v2074 = vrot.slane %v2047, 1
      %v2075 = vsel %vm323, %v2074, %v2073
      %v2076 = vpack.c.b16 %v2061, %v2061
      %v2077 = vpack.c.b16 %v2075, %v2075
      %2080 = vst [vmem:[%s199] sm:$0xf] %v2076
      %2081 = vst [vmem:[%s199 + $0x4] sm:$0xf] %v2077
      %s2082 = smul.u32 2, %s15
      %p2083 = scmp.lt.s32.totalorder %s2082, 3
      %s2084 = scalar_select %p2083, %s2082, 3
      %s2085 = smul.addr %s2084, 4
      %s2086 = scalar_lea.vmem %s4, %s2085
      // Predicated region
      $region37: #{_lambda_.10} parent=35 // pred_check
        %p2087 = pneg %p122
      $region38: #{_lambda_.10} parent=35 // pred_check_branch
        %2089 = sbr.rel (%p2087) target = $region40
      $region39: #{_lambda_.10} parent=35 // pred_region
        %s2090 = smul.u32 2, %s15
      $region40: #{_lambda_.10} parent=35 // pred_fallthru
        _
    $region36: #{_lambda_.10} parent=5 // pred_fallthru
      _
    %p2091 = scmp.le.s32.totalorder 2, %s10
    // Predicated region
    $region41: #{_lambda_.10} parent=5 // pred_check
      %p2092 = pneg %p2091
    $region42: #{_lambda_.10} parent=5 // pred_check_branch
      %2094 = sbr.rel (%p2092) target = $region44
    $region43: #{_lambda_.10} parent=5 // pred_region
      %s2095 = ssub.s32 %s10, 2
      // Predicated region
      $region45: #{_lambda_.10} parent=43 // pred_check
        %p2096 = pneg %p128
      $region46: #{_lambda_.10} parent=43 // pred_check_branch
        %2098 = sbr.rel (%p2096) target = $region48
      $region47: #{_lambda_.10} parent=43 // pred_region
        %s2099 = smul.u32 2, %s16
        %p2100 = scmp.lt.s32.totalorder %s2099, 3
        %s2101 = scalar_select %p2100, %s2099, 3
        %s2102 = smul.addr %s2101, 4
        %s2103 = scalar_lea.vmem %s4, %s2102
      $region48: #{_lambda_.10} parent=43 // pred_fallthru
        _
    $region44: #{_lambda_.10} parent=5 // pred_fallthru
      _
  $region6: #{_lambda_.10} parent=0 // loop_footer
    %s14 = sadd.s32 1, %s10
  $region7: #{_lambda_.10} parent=0 // loop_footer_branch
    %9 = sbr.rel target = $region3
  $region8: #{_lambda_.10} parent=0 // loop_exit
    _

// kernel: _lambda_.9
$region0: #{_lambda_.9}
  #allocation0 [shape = 'u32[]', space=smem, size = 0x4, offset = 0x4, fixed_abs, tag = 'smem constant byte address 0x4 - core index']
  #allocation1 [shape = 'u32[144,128]{1,0:T(1,128)}', space=vmem, size = 0x12000, scoped, tag = 'internal scratch']
  %s0 = inlined_call_operand.vmem [shape: bf16[32,2,11,128], index: 0, kind: input, shape index: {}]
  %s1 = inlined_call_operand.vmem [shape: bf16[8,128,128], index: 1, kind: input, shape index: {}]
  %s2 = inlined_call_operand.vmem [shape: f32[1,128], index: 2, kind: input, shape index: {}]
  %s3 = inlined_call_operand.vmem [shape: f32[1,128], index: 3, kind: input, shape index: {}]
  %s4 = inlined_call_operand.vmem [shape: f32[1,128], index: 4, kind: input, shape index: {}]
  %s5 = inlined_call_operand.vmem [shape: bf16[8,128,128], index: 5, kind: input, shape index: {}]
  %s6 = inlined_call_operand.vmem [shape: f32[1,128], index: 6, kind: input, shape index: {}]
  %s7 = inlined_call_operand.vmem [shape: f32[1,128], index: 7, kind: input, shape index: {}]
  %s8 = inlined_call_operand.vmem [shape: f32[1,128], index: 8, kind: input, shape index: {}]
  %s9 = inlined_call_operand.vmem [shape: bf16[128,128], index: 9, kind: input, shape index: {}]
  %s10 = inlined_call_operand.vmem [shape: f32[1,128], index: 10, kind: input, shape index: {}]
  %s11 = inlined_call_operand.vmem [shape: bf16[32,8,128], index: 11, kind: output, shape index: {}]
  %s12 = sld [smem:[#allocation0]]
  $region77: #{_lambda_.9} parent=0
    _
  %s14 = ssub.s32 1, %s12
  %s15 = scalar_select 0, %s14, %s12
  loop: start=0, step=1, limit=34
  $region2: #{_lambda_.9} parent=0 // loop_pre_header
    _
  $region3: #{_lambda_.9} parent=0 // loop_header
    %s17 = sphi 0, %s21
    %p18 = scmp.ge.s32.totalorder %s17, 34
    %s27 = sphi 0, %s29
    %s30 = sphi 0, %s27
    %s31 = sphi 0, %s30
    %s47 = sphi 0, %s31
    %s51 = sphi 0, %s51
    %s53 = sphi 0, %s51
    %s54 = sphi 0, %s53
    %s68 = sphi 0, %s54
    %s72 = sphi 0, %s72
    %s74 = sphi 0, %s72
    %s75 = sphi 0, %s74
    %s89 = sphi 0, %s75
    %s93 = sphi 0, %s93
    %s95 = sphi 0, %s93
    %s96 = sphi 0, %s95
    %s110 = sphi 0, %s96
    %s114 = sphi 0, %s114
    %s116 = sphi 0, %s114
    %s117 = sphi 0, %s116
    %s131 = sphi 0, %s117
    %s135 = sphi 0, %s135
    %s137 = sphi 0, %s135
    %s138 = sphi 0, %s137
    %s152 = sphi 0, %s138
    %s156 = sphi 0, %s156
    %s158 = sphi 0, %s156
    %s159 = sphi 0, %s158
    %s173 = sphi 0, %s159
    %s177 = sphi 0, %s177
    %s179 = sphi 0, %s177
    %s180 = sphi 0, %s179
    %s194 = sphi 0, %s180
    %s198 = sphi 0, %s198
    %s200 = sphi 0, %s198
    %s201 = sphi 0, %s200
    %s215 = sphi 0, %s201
    %s219 = sphi 0, %s219
    %s221 = sphi 0, %s219
    %s222 = sphi 0, %s221
    %s236 = sphi 0, %s222
    %s240 = sphi 0, %s240
    %s242 = sphi 0, %s240
    %s243 = sphi 0, %s242
    %s257 = sphi 0, %s243
    %s263 = sphi 0, %s265
    %s266 = sphi 0, %s263
    %s267 = sphi 0, %s266
    %s283 = sphi 0, %s267
  $region4: #{_lambda_.9} parent=0 // loop_header_branch
    %20 = sbr.rel (%p18) target = $region8
  $region5: #{_lambda_.9} parent=0 // loop_body
    %s22 = ssub.s32 %s17, 1
    %s23 = ssub.s32 %s17, 2
    %s24 = sadd.s32 %s17, 1
    %s25 = ssub.s32 %s17, %s24
    %p26 = scmp.eq.s32.totalorder %s25, 0
    %s28 = sadd.s32 %s27, 1
    %s29 = scalar_select %p26, %s27, %s28
    %p32 = pneg %p26
    %p33 = scmp.eq.s32.totalorder %s17, 31
    %p34 = por %p32, %p33
    %p35 = scmp.ne.s32.totalorder %s27, %s30
    %p36 = scmp.eq.s32.totalorder %s17, 0
    %p37 = por %p35, %p36
    %p38 = scmp.ne.s32.totalorder %s27, %s30
    %p39 = scmp.eq.s32.totalorder %s22, 31
    %p40 = por %p38, %p39
    %p41 = scmp.ne.s32.totalorder %s30, %s31
    %p42 = scmp.eq.s32.totalorder %s22, 0
    %p43 = por %p41, %p42
    %p44 = scmp.ne.s32.totalorder %s30, %s31
    %p45 = scmp.eq.s32.totalorder %s23, 31
    %p46 = por %p44, %p45
    %p48 = scmp.ne.s32.totalorder %s31, %s47
    %p49 = scmp.eq.s32.totalorder %s23, 0
    %p50 = por %p48, %p49
    %s52 = sadd.s32 %s51, 1
    %p55 = scmp.eq.s32.totalorder %s17, 31
    %p56 = scmp.ne.s32.totalorder %s51, %s53
    %p57 = scmp.eq.s32.totalorder %s17, 0
    %p58 = por %p56, %p57
    %p59 = scmp.ne.s32.totalorder %s51, %s53
    %p60 = scmp.eq.s32.totalorder %s22, 31
    %p61 = por %p59, %p60
    %p62 = scmp.ne.s32.totalorder %s53, %s54
    %p63 = scmp.eq.s32.totalorder %s22, 0
    %p64 = por %p62, %p63
    %p65 = scmp.ne.s32.totalorder %s53, %s54
    %p66 = scmp.eq.s32.totalorder %s23, 31
    %p67 = por %p65, %p66
    %p69 = scmp.ne.s32.totalorder %s54, %s68
    %p70 = scmp.eq.s32.totalorder %s23, 0
    %p71 = por %p69, %p70
    %s73 = sadd.s32 %s72, 1
    %p76 = scmp.eq.s32.totalorder %s17, 31
    %p77 = scmp.ne.s32.totalorder %s72, %s74
    %p78 = scmp.eq.s32.totalorder %s17, 0
    %p79 = por %p77, %p78
    %p80 = scmp.ne.s32.totalorder %s72, %s74
    %p81 = scmp.eq.s32.totalorder %s22, 31
    %p82 = por %p80, %p81
    %p83 = scmp.ne.s32.totalorder %s74, %s75
    %p84 = scmp.eq.s32.totalorder %s22, 0
    %p85 = por %p83, %p84
    %p86 = scmp.ne.s32.totalorder %s74, %s75
    %p87 = scmp.eq.s32.totalorder %s23, 31
    %p88 = por %p86, %p87
    %p90 = scmp.ne.s32.totalorder %s75, %s89
    %p91 = scmp.eq.s32.totalorder %s23, 0
    %p92 = por %p90, %p91
    %s94 = sadd.s32 %s93, 1
    %p97 = scmp.eq.s32.totalorder %s17, 31
    %p98 = scmp.ne.s32.totalorder %s93, %s95
    %p99 = scmp.eq.s32.totalorder %s17, 0
    %p100 = por %p98, %p99
    %p101 = scmp.ne.s32.totalorder %s93, %s95
    %p102 = scmp.eq.s32.totalorder %s22, 31
    %p103 = por %p101, %p102
    %p104 = scmp.ne.s32.totalorder %s95, %s96
    %p105 = scmp.eq.s32.totalorder %s22, 0
    %p106 = por %p104, %p105
    %p107 = scmp.ne.s32.totalorder %s95, %s96
    %p108 = scmp.eq.s32.totalorder %s23, 31
    %p109 = por %p107, %p108
    %p111 = scmp.ne.s32.totalorder %s96, %s110
    %p112 = scmp.eq.s32.totalorder %s23, 0
    %p113 = por %p111, %p112
    %s115 = sadd.s32 %s114, 1
    %p118 = scmp.eq.s32.totalorder %s17, 31
    %p119 = scmp.ne.s32.totalorder %s114, %s116
    %p120 = scmp.eq.s32.totalorder %s17, 0
    %p121 = por %p119, %p120
    %p122 = scmp.ne.s32.totalorder %s114, %s116
    %p123 = scmp.eq.s32.totalorder %s22, 31
    %p124 = por %p122, %p123
    %p125 = scmp.ne.s32.totalorder %s116, %s117
    %p126 = scmp.eq.s32.totalorder %s22, 0
    %p127 = por %p125, %p126
    %p128 = scmp.ne.s32.totalorder %s116, %s117
    %p129 = scmp.eq.s32.totalorder %s23, 31
    %p130 = por %p128, %p129
    %p132 = scmp.ne.s32.totalorder %s117, %s131
    %p133 = scmp.eq.s32.totalorder %s23, 0
    %p134 = por %p132, %p133
    %s136 = sadd.s32 %s135, 1
    %p139 = scmp.eq.s32.totalorder %s17, 31
    %p140 = scmp.ne.s32.totalorder %s135, %s137
    %p141 = scmp.eq.s32.totalorder %s17, 0
    %p142 = por %p140, %p141
    %p143 = scmp.ne.s32.totalorder %s135, %s137
    %p144 = scmp.eq.s32.totalorder %s22, 31
    %p145 = por %p143, %p144
    %p146 = scmp.ne.s32.totalorder %s137, %s138
    %p147 = scmp.eq.s32.totalorder %s22, 0
    %p148 = por %p146, %p147
    %p149 = scmp.ne.s32.totalorder %s137, %s138
    %p150 = scmp.eq.s32.totalorder %s23, 31
    %p151 = por %p149, %p150
    %p153 = scmp.ne.s32.totalorder %s138, %s152
    %p154 = scmp.eq.s32.totalorder %s23, 0
    %p155 = por %p153, %p154
    %s157 = sadd.s32 %s156, 1
    %p160 = scmp.eq.s32.totalorder %s17, 31
    %p161 = scmp.ne.s32.totalorder %s156, %s158
    %p162 = scmp.eq.s32.totalorder %s17, 0
    %p163 = por %p161, %p162
    %p164 = scmp.ne.s32.totalorder %s156, %s158
    %p165 = scmp.eq.s32.totalorder %s22, 31
    %p166 = por %p164, %p165
    %p167 = scmp.ne.s32.totalorder %s158, %s159
    %p168 = scmp.eq.s32.totalorder %s22, 0
    %p169 = por %p167, %p168
    %p170 = scmp.ne.s32.totalorder %s158, %s159
    %p171 = scmp.eq.s32.totalorder %s23, 31
    %p172 = por %p170, %p171
    %p174 = scmp.ne.s32.totalorder %s159, %s173
    %p175 = scmp.eq.s32.totalorder %s23, 0
    %p176 = por %p174, %p175
    %s178 = sadd.s32 %s177, 1
    %p181 = scmp.eq.s32.totalorder %s17, 31
    %p182 = scmp.ne.s32.totalorder %s177, %s179
    %p183 = scmp.eq.s32.totalorder %s17, 0
    %p184 = por %p182, %p183
    %p185 = scmp.ne.s32.totalorder %s177, %s179
    %p186 = scmp.eq.s32.totalorder %s22, 31
    %p187 = por %p185, %p186
    %p188 = scmp.ne.s32.totalorder %s179, %s180
    %p189 = scmp.eq.s32.totalorder %s22, 0
    %p190 = por %p188, %p189
    %p191 = scmp.ne.s32.totalorder %s179, %s180
    %p192 = scmp.eq.s32.totalorder %s23, 31
    %p193 = por %p191, %p192
    %p195 = scmp.ne.s32.totalorder %s180, %s194
    %p196 = scmp.eq.s32.totalorder %s23, 0
    %p197 = por %p195, %p196
    %s199 = sadd.s32 %s198, 1
    %p202 = scmp.eq.s32.totalorder %s17, 31
    %p203 = scmp.ne.s32.totalorder %s198, %s200
    %p204 = scmp.eq.s32.totalorder %s17, 0
    %p205 = por %p203, %p204
    %p206 = scmp.ne.s32.totalorder %s198, %s200
    %p207 = scmp.eq.s32.totalorder %s22, 31
    %p208 = por %p206, %p207
    %p209 = scmp.ne.s32.totalorder %s200, %s201
    %p210 = scmp.eq.s32.totalorder %s22, 0
    %p211 = por %p209, %p210
    %p212 = scmp.ne.s32.totalorder %s200, %s201
    %p213 = scmp.eq.s32.totalorder %s23, 31
    %p214 = por %p212, %p213
    %p216 = scmp.ne.s32.totalorder %s201, %s215
    %p217 = scmp.eq.s32.totalorder %s23, 0
    %p218 = por %p216, %p217
    %s220 = sadd.s32 %s219, 1
    %p223 = scmp.eq.s32.totalorder %s17, 31
    %p224 = scmp.ne.s32.totalorder %s219, %s221
    %p225 = scmp.eq.s32.totalorder %s17, 0
    %p226 = por %p224, %p225
    %p227 = scmp.ne.s32.totalorder %s219, %s221
    %p228 = scmp.eq.s32.totalorder %s22, 31
    %p229 = por %p227, %p228
    %p230 = scmp.ne.s32.totalorder %s221, %s222
    %p231 = scmp.eq.s32.totalorder %s22, 0
    %p232 = por %p230, %p231
    %p233 = scmp.ne.s32.totalorder %s221, %s222
    %p234 = scmp.eq.s32.totalorder %s23, 31
    %p235 = por %p233, %p234
    %p237 = scmp.ne.s32.totalorder %s222, %s236
    %p238 = scmp.eq.s32.totalorder %s23, 0
    %p239 = por %p237, %p238
    %s241 = sadd.s32 %s240, 1
    %p244 = scmp.eq.s32.totalorder %s17, 31
    %p245 = scmp.ne.s32.totalorder %s240, %s242
    %p246 = scmp.eq.s32.totalorder %s17, 0
    %p247 = por %p245, %p246
    %p248 = scmp.ne.s32.totalorder %s240, %s242
    %p249 = scmp.eq.s32.totalorder %s22, 31
    %p250 = por %p248, %p249
    %p251 = scmp.ne.s32.totalorder %s242, %s243
    %p252 = scmp.eq.s32.totalorder %s22, 0
    %p253 = por %p251, %p252
    %p254 = scmp.ne.s32.totalorder %s242, %s243
    %p255 = scmp.eq.s32.totalorder %s23, 31
    %p256 = por %p254, %p255
    %p258 = scmp.ne.s32.totalorder %s243, %s257
    %p259 = scmp.eq.s32.totalorder %s23, 0
    %p260 = por %p258, %p259
    %s261 = ssub.s32 %s17, %s24
    %p262 = scmp.eq.s32.totalorder %s261, 0
    %s264 = sadd.s32 %s263, 1
    %s265 = scalar_select %p262, %s263, %s264
    %p268 = pneg %p262
    %p269 = scmp.eq.s32.totalorder %s17, 31
    %p270 = por %p268, %p269
    %p271 = scmp.ne.s32.totalorder %s263, %s266
    %p272 = scmp.eq.s32.totalorder %s17, 0
    %p273 = por %p271, %p272
    %p274 = scmp.ne.s32.totalorder %s263, %s266
    %p275 = scmp.eq.s32.totalorder %s22, 31
    %p276 = por %p274, %p275
    %p277 = scmp.ne.s32.totalorder %s266, %s267
    %p278 = scmp.eq.s32.totalorder %s22, 0
    %p279 = por %p277, %p278
    %p280 = scmp.ne.s32.totalorder %s266, %s267
    %p281 = scmp.eq.s32.totalorder %s23, 31
    %p282 = por %p280, %p281
    %p284 = scmp.ne.s32.totalorder %s267, %s283
    %p285 = scmp.eq.s32.totalorder %s23, 0
    %p286 = por %p284, %p285
    %p287 = scmp.le.s32.totalorder 1, %s17
    %p288 = scmp.lt.s32.totalorder %s17, 33
    %p289 = pnand %p287, %p288
    %p290 = pneg %p289
    // Predicated region
    $region9: #{_lambda_.9} parent=5 // pred_check
      _
    $region10: #{_lambda_.9} parent=5 // pred_check_branch
      %292 = sbr.rel (%p289) target = $region12
    $region11: #{_lambda_.9} parent=5 // pred_region
      %s293 = ssub.s32 %s17, 1
      // Predicated region
      $region13: #{_lambda_.9} parent=11 // pred_check
        %p294 = pneg %p64
      $region14: #{_lambda_.9} parent=11 // pred_check_branch
        %296 = sbr.rel (%p294) target = $region16
      $region15: #{_lambda_.9} parent=11 // pred_region
        _
      $region16: #{_lambda_.9} parent=11 // pred_fallthru
        _
      // Predicated region
      $region17: #{_lambda_.9} parent=11 // pred_check
        %p297 = pneg %p85
      $region18: #{_lambda_.9} parent=11 // pred_check_branch
        %299 = sbr.rel (%p297) target = $region20
      $region19: #{_lambda_.9} parent=11 // pred_region
        _
      $region20: #{_lambda_.9} parent=11 // pred_fallthru
        _
      // Predicated region
      $region21: #{_lambda_.9} parent=11 // pred_check
        %p300 = pneg %p106
      $region22: #{_lambda_.9} parent=11 // pred_check_branch
        %302 = sbr.rel (%p300) target = $region24
      $region23: #{_lambda_.9} parent=11 // pred_region
        _
      $region24: #{_lambda_.9} parent=11 // pred_fallthru
        _
      // Predicated region
      $region25: #{_lambda_.9} parent=11 // pred_check
        %p303 = pneg %p127
      $region26: #{_lambda_.9} parent=11 // pred_check_branch
        %305 = sbr.rel (%p303) target = $region28
      $region27: #{_lambda_.9} parent=11 // pred_region
        _
      $region28: #{_lambda_.9} parent=11 // pred_fallthru
        _
      // Predicated region
      $region29: #{_lambda_.9} parent=11 // pred_check
        %p306 = pneg %p148
      $region30: #{_lambda_.9} parent=11 // pred_check_branch
        %308 = sbr.rel (%p306) target = $region32
      $region31: #{_lambda_.9} parent=11 // pred_region
        _
      $region32: #{_lambda_.9} parent=11 // pred_fallthru
        _
      // Predicated region
      $region33: #{_lambda_.9} parent=11 // pred_check
        %p309 = pneg %p169
      $region34: #{_lambda_.9} parent=11 // pred_check_branch
        %311 = sbr.rel (%p309) target = $region36
      $region35: #{_lambda_.9} parent=11 // pred_region
        _
      $region36: #{_lambda_.9} parent=11 // pred_fallthru
        _
      // Predicated region
      $region37: #{_lambda_.9} parent=11 // pred_check
        %p312 = pneg %p190
      $region38: #{_lambda_.9} parent=11 // pred_check_branch
        %314 = sbr.rel (%p312) target = $region40
      $region39: #{_lambda_.9} parent=11 // pred_region
        _
      $region40: #{_lambda_.9} parent=11 // pred_fallthru
        _
      // Predicated region
      $region41: #{_lambda_.9} parent=11 // pred_check
        %p315 = pneg %p211
      $region42: #{_lambda_.9} parent=11 // pred_check_branch
        %317 = sbr.rel (%p315) target = $region44
      $region43: #{_lambda_.9} parent=11 // pred_region
        _
      $region44: #{_lambda_.9} parent=11 // pred_fallthru
        _
      // Predicated region
      $region45: #{_lambda_.9} parent=11 // pred_check
        %p318 = pneg %p232
      $region46: #{_lambda_.9} parent=11 // pred_check_branch
        %320 = sbr.rel (%p318) target = $region48
      $region47: #{_lambda_.9} parent=11 // pred_region
        _
      $region48: #{_lambda_.9} parent=11 // pred_fallthru
        _
      // Predicated region
      $region49: #{_lambda_.9} parent=11 // pred_check
        %p321 = pneg %p253
      $region50: #{_lambda_.9} parent=11 // pred_check_branch
        %323 = sbr.rel (%p321) target = $region52
      $region51: #{_lambda_.9} parent=11 // pred_region
        _
      $region52: #{_lambda_.9} parent=11 // pred_fallthru
        _
    $region12: #{_lambda_.9} parent=5 // pred_fallthru
      _
    %p324 = scmp.lt.s32.totalorder %s17, 32
    // Predicated region
    $region53: #{_lambda_.9} parent=5 // pred_check
      %p325 = pneg %p324
    $region54: #{_lambda_.9} parent=5 // pred_check_branch
      %327 = sbr.rel (%p325) target = $region56
    $region55: #{_lambda_.9} parent=5 // pred_region
      // Predicated region
      $region57: #{_lambda_.9} parent=55 // pred_check
        %p328 = pneg %p37
      $region58: #{_lambda_.9} parent=55 // pred_check_branch
        %330 = sbr.rel (%p328) target = $region60
      $region59: #{_lambda_.9} parent=55 // pred_region
        %p331 = scmp.lt.s32.totalorder %s17, 31
        %s332 = scalar_select %p331, %s17, 31
        %s333 = smul.addr %s332, 4
        %s334 = smul.addr %s333, 4
        %s335 = scalar_lea.vmem %s0, %s334
      $region60: #{_lambda_.9} parent=55 // pred_fallthru
        _
    $region56: #{_lambda_.9} parent=5 // pred_fallthru
      _
    %p336 = scmp.le.s32.totalorder 1, %s17
    %p337 = scmp.lt.s32.totalorder %s17, 33
    %p338 = pnand %p336, %p337
    %p339 = pneg %p338
    // Predicated region
    $region61: #{_lambda_.9} parent=5 // pred_check
      _
    $region62: #{_lambda_.9} parent=5 // pred_check_branch
      %341 = sbr.rel (%p338) target = $region64
    $region63: #{_lambda_.9} parent=5 // pred_region
      %s342 = ssub.s32 %s17, 1
      %p343 = scmp.lt.s32.totalorder %s22, 31
      %s344 = scalar_select %p343, %s22, 31
      %s345 = smul.addr %s344, 4
      %s346 = smul.addr %s345, 4
      %s347 = scalar_lea.vmem %s0, %s346
      %p348 = pneg %p43
      %p349 = pneg %p40
      %p350 = pneg %p64
      %p351 = pneg %p61
      %p352 = pneg %p85
      %p353 = pneg %p82
      %p354 = pneg %p106
      %p355 = pneg %p103
      %p356 = pneg %p127
      %p357 = pneg %p124
      %p358 = pneg %p148
      %p359 = pneg %p145
      %p360 = pneg %p169
      %p361 = pneg %p166
      %p362 = pneg %p190
      %p363 = pneg %p187
      %p364 = pneg %p211
      %p365 = pneg %p208
      %p366 = pneg %p232
      %p367 = pneg %p229
      %p368 = pneg %p253
      %p369 = pneg %p250
      %p370 = pneg %p279
      %p371 = pneg %p276
      %p372 = scmp.lt.s32.totalorder %s22, 31
      %s373 = scalar_select %p372, %s22, 31
      %s374 = smul.addr %s373, 4
      %s375 = scalar_lea.vmem %s11, %s374
      %p376 = scmp.lt.s32.totalorder %s22, 31
      %s377 = scalar_select %p376, %s22, 31
      %s378 = smul.addr %s377, 4
      %s379 = smul.addr %s378, 4
      %s380 = scalar_lea.vmem %s0, %s379
      %p381 = scmp.lt.s32.totalorder %s22, 31
      %s382 = scalar_select %p381, %s22, 31
      %s383 = smul.addr %s382, 4
      %s384 = scalar_lea.vmem %s11, %s383
      %v386 = vld [vmem:[%s380] sm:$0xf]
      %v387 = vld [vmem:[%s380 + $0x4] sm:$0x3]
      %v388 = vunpack.c.l.bf16 %v386
      %v389 = vunpack.c.l.bf16 %v387
      %s390 = scalar_lea.vmem %s380, 8
      %v391 = vld [vmem:[%s390] sm:$0xf]
      %v392 = vld [vmem:[%s390 + $0x4] sm:$0x3]
      %v393 = vunpack.c.l.bf16 %v391
      %v394 = vunpack.c.l.bf16 %v392
      %v395 = vpack.c.bf16 %v388, %v388
      %v396 = vld [vmem:[%s1] sm:$0xf]
      %v397 = vld [vmem:[%s1 + $0x4] sm:$0xf]
      %v398 = vld [vmem:[%s1 + $0x8] sm:$0xf]
      %v399 = vld [vmem:[%s1 + $0xc] sm:$0xf]
      %v400 = vld [vmem:[%s1 + $0x10] sm:$0xf]
      %v401 = vld [vmem:[%s1 + $0x14] sm:$0xf]
      %v402 = vld [vmem:[%s1 + $0x18] sm:$0xf]
      %v403 = vld [vmem:[%s1 + $0x1c] sm:$0xf]
      %v404 = vld [vmem:[%s1 + $0x20] sm:$0xf]
      %v405 = vld [vmem:[%s1 + $0x24] sm:$0xf]
      %v406 = vld [vmem:[%s1 + $0x28] sm:$0xf]
      %v407 = vld [vmem:[%s1 + $0x2c] sm:$0xf]
      %v408 = vld [vmem:[%s1 + $0x30] sm:$0xf]
      %v409 = vld [vmem:[%s1 + $0x34] sm:$0xf]
      %v410 = vld [vmem:[%s1 + $0x38] sm:$0xf]
      %v411 = vld [vmem:[%s1 + $0x3c] sm:$0xf]
      %v412 = vpack.c.bf16 %v393, %v393
      %s413 = scalar_lea.vmem %s1, 64
      %v414 = vld [vmem:[%s413] sm:$0xf]
      %v415 = vld [vmem:[%s413 + $0x4] sm:$0xf]
      %v416 = vld [vmem:[%s413 + $0x8] sm:$0xf]
      %v417 = vld [vmem:[%s413 + $0xc] sm:$0xf]
      %v418 = vld [vmem:[%s413 + $0x10] sm:$0xf]
      %v419 = vld [vmem:[%s413 + $0x14] sm:$0xf]
      %v420 = vld [vmem:[%s413 + $0x18] sm:$0xf]
      %v421 = vld [vmem:[%s413 + $0x1c] sm:$0xf]
      %v422 = vld [vmem:[%s413 + $0x20] sm:$0xf]
      %v423 = vld [vmem:[%s413 + $0x24] sm:$0xf]
      %v424 = vld [vmem:[%s413 + $0x28] sm:$0xf]
      %v425 = vld [vmem:[%s413 + $0x2c] sm:$0xf]
      %v426 = vld [vmem:[%s413 + $0x30] sm:$0xf]
      %v427 = vld [vmem:[%s413 + $0x34] sm:$0xf]
      %v428 = vld [vmem:[%s413 + $0x38] sm:$0xf]
      %v429 = vld [vmem:[%s413 + $0x3c] sm:$0xf]
      %v446 = vunpack.c.l.b16 %v414
      %v447 = vunpack.c.l.b16 %v415
      %v448 = vunpack.c.l.b16 %v416
      %v449 = vunpack.c.l.b16 %v417
      %v450 = vunpack.c.l.b16 %v418
      %v451 = vunpack.c.l.b16 %v419
      %v452 = vunpack.c.l.b16 %v420
      %v453 = vunpack.c.l.b16 %v421
      %v454 = vunpack.c.l.b16 %v422
      %v455 = vunpack.c.l.b16 %v423
      %v456 = vunpack.c.l.b16 %v424
      %v457 = vunpack.c.l.b16 %v425
      %v458 = vunpack.c.l.b16 %v426
      %v459 = vunpack.c.l.b16 %v427
      %v460 = vunpack.c.l.b16 %v428
      %v461 = vunpack.c.l.b16 %v429
      %v462 = vpack.c.b16 %v447, %v446
      %v463 = vpack.c.b16 %v449, %v448
      %v464 = vpack.c.b16 %v451, %v450
      %v465 = vpack.c.b16 %v453, %v452
      %v466 = vpack.c.b16 %v455, %v454
      %v467 = vpack.c.b16 %v457, %v456
      %v468 = vpack.c.b16 %v459, %v458
      %v469 = vpack.c.b16 %v461, %v460
      %478 = vmatprep.subr.bf16.mxu0 0
      %479 = vmatpush1.bf16.msra.mxu0 %v469
      %480 = vmatprep.subr.bf16.mxu0 0
      %481 = vmatpush1.bf16.msra.mxu0 %v468
      %482 = vmatprep.subr.bf16.mxu0 0
      %483 = vmatpush1.bf16.msra.mxu0 %v467
      %484 = vmatprep.subr.bf16.mxu0 0
      %485 = vmatpush1.bf16.msra.mxu0 %v466
      %486 = vmatprep.subr.bf16.mxu0 0
      %487 = vmatpush1.bf16.msra.mxu0 %v465
      %488 = vmatprep.subr.bf16.mxu0 0
      %489 = vmatpush1.bf16.msra.mxu0 %v464
      %490 = vmatprep.subr.bf16.mxu0 0
      %491 = vmatpush1.bf16.msra.mxu0 %v463
      %492 = vmatprep.subr.bf16.mxu0 0
      %493 = vmatpush1.bf16.msra.mxu0 %v462
      %494 = vmatprep.subr.bf16.mxu0 0
      %495 = vmatpush2.bf16.msra.mxu0 0
      %496 = vmatprep.subr.bf16.mxu0 0
      %497 = vmatpush2.bf16.msra.mxu0 0
      %498 = vmatprep.subr.bf16.mxu0 0
      %499 = vmatpush2.bf16.msra.mxu0 0
      %500 = vmatprep.subr.bf16.mxu0 0
      %501 = vmatpush2.bf16.msra.mxu0 0
      %502 = vmatprep.subr.bf16.mxu0 0
      %503 = vmatpush2.bf16.msra.mxu0 0
      %504 = vmatprep.subr.bf16.mxu0 0
      %505 = vmatpush2.bf16.msra.mxu0 0
      %506 = vmatprep.subr.bf16.mxu0 0
      %507 = vmatpush2.bf16.msra.mxu0 0
      %508 = vmatprep.subr.bf16.mxu0 0
      %509 = vmatpush2.bf16.msra.mxu0 0
      %510 = vmatprep.mubr.bf16.mxu0 0
      %511 = vmatmul.mubr.bf16.gmra.mxu0 %v412
      %v512 = vpop.f32.mrf.mxu0
      %v513 = vadd.f32 0.0, %v512
      %v514 = vpop.f32.mrf.mxu0
      %v515 = vpop.f32.mrf.mxu0
      %v516 = vpop.f32.mrf.mxu0
      %517 = vdwg.mxu0
      %v534 = vunpack.c.l.b16 %v396
      %v535 = vunpack.c.l.b16 %v397
      %v536 = vunpack.c.l.b16 %v398
      %v537 = vunpack.c.l.b16 %v399
      %v538 = vunpack.c.l.b16 %v400
      %v539 = vunpack.c.l.b16 %v401
      %v540 = vunpack.c.l.b16 %v402
      %v541 = vunpack.c.l.b16 %v403
      %v542 = vunpack.c.l.b16 %v404
      %v543 = vunpack.c.l.b16 %v405
      %v544 = vunpack.c.l.b16 %v406
      %v545 = vunpack.c.l.b16 %v407
      %v546 = vunpack.c.l.b16 %v408
      %v547 = vunpack.c.l.b16 %v409
      %v548 = vunpack.c.l.b16 %v410
      %v549 = vunpack.c.l.b16 %v411
      %v550 = vpack.c.b16 %v535, %v534
      %v551 = vpack.c.b16 %v537, %v536
      %v552 = vpack.c.b16 %v539, %v538
      %v553 = vpack.c.b16 %v541, %v540
      %v554 = vpack.c.b16 %v543, %v542
      %v555 = vpack.c.b16 %v545, %v544
      %v556 = vpack.c.b16 %v547, %v546
      %v557 = vpack.c.b16 %v549, %v548
      %566 = vmatprep.subr.bf16.mxu0 0
      %567 = vmatpush1.bf16.msra.mxu0 %v557
      %568 = vmatprep.subr.bf16.mxu0 0
      %569 = vmatpush1.bf16.msra.mxu0 %v556
      %570 = vmatprep.subr.bf16.mxu0 0
      %571 = vmatpush1.bf16.msra.mxu0 %v555
      %572 = vmatprep.subr.bf16.mxu0 0
      %573 = vmatpush1.bf16.msra.mxu0 %v554
      %574 = vmatprep.subr.bf16.mxu0 0
      %575 = vmatpush1.bf16.msra.mxu0 %v553
      %576 = vmatprep.subr.bf16.mxu0 0
      %577 = vmatpush1.bf16.msra.mxu0 %v552
      %578 = vmatprep.subr.bf16.mxu0 0
      %579 = vmatpush1.bf16.msra.mxu0 %v551
      %580 = vmatprep.subr.bf16.mxu0 0
      %581 = vmatpush1.bf16.msra.mxu0 %v550
      %582 = vmatprep.subr.bf16.mxu0 0
      %583 = vmatpush2.bf16.msra.mxu0 0
      %584 = vmatprep.subr.bf16.mxu0 0
      %585 = vmatpush2.bf16.msra.mxu0 0
      %586 = vmatprep.subr.bf16.mxu0 0
      %587 = vmatpush2.bf16.msra.mxu0 0
      %588 = vmatprep.subr.bf16.mxu0 0
      %589 = vmatpush2.bf16.msra.mxu0 0
      %590 = vmatprep.subr.bf16.mxu0 0
      %591 = vmatpush2.bf16.msra.mxu0 0
      %592 = vmatprep.subr.bf16.mxu0 0
      %593 = vmatpush2.bf16.msra.mxu0 0
      %594 = vmatprep.subr.bf16.mxu0 0
      %595 = vmatpush2.bf16.msra.mxu0 0
      %596 = vmatprep.subr.bf16.mxu0 0
      %597 = vmatpush2.bf16.msra.mxu0 0
      %598 = vmatprep.mubr.bf16.mxu0 0
      %599 = vmatmul.mubr.bf16.gmra.mxu0 %v395
      %v600 = vpop.f32.mrf.mxu0
      %v601 = vadd.f32 %v513, %v600
      %v602 = vpop.f32.mrf.mxu0
      %v603 = vpop.f32.mrf.mxu0
      %v604 = vpop.f32.mrf.mxu0
      %605 = vdwg.mxu0
      %s606 = scalar_lea.vmem %s1, 128
      %v607 = vld [vmem:[%s606] sm:$0xf]
      %v608 = vld [vmem:[%s606 + $0x4] sm:$0xf]
      %v609 = vld [vmem:[%s606 + $0x8] sm:$0xf]
      %v610 = vld [vmem:[%s606 + $0xc] sm:$0xf]
      %v611 = vld [vmem:[%s606 + $0x10] sm:$0xf]
      %v612 = vld [vmem:[%s606 + $0x14] sm:$0xf]
      %v613 = vld [vmem:[%s606 + $0x18] sm:$0xf]
      %v614 = vld [vmem:[%s606 + $0x1c] sm:$0xf]
      %v615 = vld [vmem:[%s606 + $0x20] sm:$0xf]
      %v616 = vld [vmem:[%s606 + $0x24] sm:$0xf]
      %v617 = vld [vmem:[%s606 + $0x28] sm:$0xf]
      %v618 = vld [vmem:[%s606 + $0x2c] sm:$0xf]
      %v619 = vld [vmem:[%s606 + $0x30] sm:$0xf]
      %v620 = vld [vmem:[%s606 + $0x34] sm:$0xf]
      %v621 = vld [vmem:[%s606 + $0x38] sm:$0xf]
      %v622 = vld [vmem:[%s606 + $0x3c] sm:$0xf]
      %v624 = vshrl.u32 %v395, 16
      %v626 = vshll.u32 %v395, 16
      %v628 = vrot.slane %v626, 1
      %v629 = vor.u32 %v624, %v628
      %v647 = vunpack.c.l.b16 %v607
      %v648 = vunpack.c.l.b16 %v608
      %v649 = vunpack.c.l.b16 %v609
      %v650 = vunpack.c.l.b16 %v610
      %v651 = vunpack.c.l.b16 %v611
      %v652 = vunpack.c.l.b16 %v612
      %v653 = vunpack.c.l.b16 %v613
      %v654 = vunpack.c.l.b16 %v614
      %v655 = vunpack.c.l.b16 %v615
      %v656 = vunpack.c.l.b16 %v616
      %v657 = vunpack.c.l.b16 %v617
      %v658 = vunpack.c.l.b16 %v618
      %v659 = vunpack.c.l.b16 %v619
      %v660 = vunpack.c.l.b16 %v620
      %v661 = vunpack.c.l.b16 %v621
      %v662 = vunpack.c.l.b16 %v622
      %v663 = vpack.c.b16 %v648, %v647
      %v664 = vpack.c.b16 %v650, %v649
      %v665 = vpack.c.b16 %v652, %v651
      %v666 = vpack.c.b16 %v654, %v653
      %v667 = vpack.c.b16 %v656, %v655
      %v668 = vpack.c.b16 %v658, %v657
      %v669 = vpack.c.b16 %v660, %v659
      %v670 = vpack.c.b16 %v662, %v661
      %679 = vmatprep.subr.bf16.mxu0 0
      %680 = vmatpush1.bf16.msra.mxu0 %v670
      %681 = vmatprep.subr.bf16.mxu0 0
      %682 = vmatpush1.bf16.msra.mxu0 %v669
      %683 = vmatprep.subr.bf16.mxu0 0
      %684 = vmatpush1.bf16.msra.mxu0 %v668
      %685 = vmatprep.subr.bf16.mxu0 0
      %686 = vmatpush1.bf16.msra.mxu0 %v667
      %687 = vmatprep.subr.bf16.mxu0 0
      %688 = vmatpush1.bf16.msra.mxu0 %v666
      %689 = vmatprep.subr.bf16.mxu0 0
      %690 = vmatpush1.bf16.msra.mxu0 %v665
      %691 = vmatprep.subr.bf16.mxu0 0
      %692 = vmatpush1.bf16.msra.mxu0 %v664
      %693 = vmatprep.subr.bf16.mxu0 0
      %694 = vmatpush1.bf16.msra.mxu0 %v663
      %695 = vmatprep.subr.bf16.mxu0 0
      %696 = vmatpush2.bf16.msra.mxu0 0
      %697 = vmatprep.subr.bf16.mxu0 0
      %698 = vmatpush2.bf16.msra.mxu0 0
      %699 = vmatprep.subr.bf16.mxu0 0
      %700 = vmatpush2.bf16.msra.mxu0 0
      %701 = vmatprep.subr.bf16.mxu0 0
      %702 = vmatpush2.bf16.msra.mxu0 0
      %703 = vmatprep.subr.bf16.mxu0 0
      %704 = vmatpush2.bf16.msra.mxu0 0
      %705 = vmatprep.subr.bf16.mxu0 0
      %706 = vmatpush2.bf16.msra.mxu0 0
      %707 = vmatprep.subr.bf16.mxu0 0
      %708 = vmatpush2.bf16.msra.mxu0 0
      %709 = vmatprep.subr.bf16.mxu0 0
      %710 = vmatpush2.bf16.msra.mxu0 0
      %711 = vmatprep.mubr.bf16.mxu0 0
      %712 = vmatmul.mubr.bf16.gmra.mxu0 %v629
      %v713 = vpop.f32.mrf.mxu0
      %v714 = vadd.f32 0.0, %v713
      %v715 = vpop.f32.mrf.mxu0
      %v716 = vpop.f32.mrf.mxu0
      %v717 = vpop.f32.mrf.mxu0
      %718 = vdwg.mxu0
      %v719 = vadd.f32 %v601, %v714
      %s720 = scalar_lea.vmem %s1, 192
      %v721 = vld [vmem:[%s720] sm:$0xf]
      %v722 = vld [vmem:[%s720 + $0x4] sm:$0xf]
      %v723 = vld [vmem:[%s720 + $0x8] sm:$0xf]
      %v724 = vld [vmem:[%s720 + $0xc] sm:$0xf]
      %v725 = vld [vmem:[%s720 + $0x10] sm:$0xf]
      %v726 = vld [vmem:[%s720 + $0x14] sm:$0xf]
      %v727 = vld [vmem:[%s720 + $0x18] sm:$0xf]
      %v728 = vld [vmem:[%s720 + $0x1c] sm:$0xf]
      %v729 = vld [vmem:[%s720 + $0x20] sm:$0xf]
      %v730 = vld [vmem:[%s720 + $0x24] sm:$0xf]
      %v731 = vld [vmem:[%s720 + $0x28] sm:$0xf]
      %v732 = vld [vmem:[%s720 + $0x2c] sm:$0xf]
      %v733 = vld [vmem:[%s720 + $0x30] sm:$0xf]
      %v734 = vld [vmem:[%s720 + $0x34] sm:$0xf]
      %v735 = vld [vmem:[%s720 + $0x38] sm:$0xf]
      %v736 = vld [vmem:[%s720 + $0x3c] sm:$0xf]
      %v738 = vshrl.u32 %v412, 16
      %v740 = vshll.u32 %v412, 16
      %v742 = vrot.slane %v740, 1
      %v743 = vor.u32 %v738, %v742
      %v761 = vunpack.c.l.b16 %v721
      %v762 = vunpack.c.l.b16 %v722
      %v763 = vunpack.c.l.b16 %v723
      %v764 = vunpack.c.l.b16 %v724
      %v765 = vunpack.c.l.b16 %v725
      %v766 = vunpack.c.l.b16 %v726
      %v767 = vunpack.c.l.b16 %v727
      %v768 = vunpack.c.l.b16 %v728
      %v769 = vunpack.c.l.b16 %v729
      %v770 = vunpack.c.l.b16 %v730
      %v771 = vunpack.c.l.b16 %v731
      %v772 = vunpack.c.l.b16 %v732
      %v773 = vunpack.c.l.b16 %v733
      %v774 = vunpack.c.l.b16 %v734
      %v775 = vunpack.c.l.b16 %v735
      %v776 = vunpack.c.l.b16 %v736
      %v777 = vpack.c.b16 %v762, %v761
      %v778 = vpack.c.b16 %v764, %v763
      %v779 = vpack.c.b16 %v766, %v765
      %v780 = vpack.c.b16 %v768, %v767
      %v781 = vpack.c.b16 %v770, %v769
      %v782 = vpack.c.b16 %v772, %v771
      %v783 = vpack.c.b16 %v774, %v773
      %v784 = vpack.c.b16 %v776, %v775
      %793 = vmatprep.subr.bf16.mxu0 0
      %794 = vmatpush1.bf16.msra.mxu0 %v784
      %795 = vmatprep.subr.bf16.mxu0 0
      %796 = vmatpush1.bf16.msra.mxu0 %v783
      %797 = vmatprep.subr.bf16.mxu0 0
      %798 = vmatpush1.bf16.msra.mxu0 %v782
      %799 = vmatprep.subr.bf16.mxu0 0
      %800 = vmatpush1.bf16.msra.mxu0 %v781
      %801 = vmatprep.subr.bf16.mxu0 0
      %802 = vmatpush1.bf16.msra.mxu0 %v780
      %803 = vmatprep.subr.bf16.mxu0 0
      %804 = vmatpush1.bf16.msra.mxu0 %v779
      %805 = vmatprep.subr.bf16.mxu0 0
      %806 = vmatpush1.bf16.msra.mxu0 %v778
      %807 = vmatprep.subr.bf16.mxu0 0
      %808 = vmatpush1.bf16.msra.mxu0 %v777
      %809 = vmatprep.subr.bf16.mxu0 0
      %810 = vmatpush2.bf16.msra.mxu0 0
      %811 = vmatprep.subr.bf16.mxu0 0
      %812 = vmatpush2.bf16.msra.mxu0 0
      %813 = vmatprep.subr.bf16.mxu0 0
      %814 = vmatpush2.bf16.msra.mxu0 0
      %815 = vmatprep.subr.bf16.mxu0 0
      %816 = vmatpush2.bf16.msra.mxu0 0
      %817 = vmatprep.subr.bf16.mxu0 0
      %818 = vmatpush2.bf16.msra.mxu0 0
      %819 = vmatprep.subr.bf16.mxu0 0
      %820 = vmatpush2.bf16.msra.mxu0 0
      %821 = vmatprep.subr.bf16.mxu0 0
      %822 = vmatpush2.bf16.msra.mxu0 0
      %823 = vmatprep.subr.bf16.mxu0 0
      %824 = vmatpush2.bf16.msra.mxu0 0
      %825 = vmatprep.mubr.bf16.mxu0 0
      %826 = vmatmul.mubr.bf16.gmra.mxu0 %v743
      %v827 = vpop.f32.mrf.mxu0
      %v828 = vadd.f32 0.0, %v827
      %v829 = vpop.f32.mrf.mxu0
      %v830 = vpop.f32.mrf.mxu0
      %v831 = vpop.f32.mrf.mxu0
      %832 = vdwg.mxu0
      %v833 = vadd.f32 %v719, %v828
      %v834 = vpack.c.bf16 %v389, %v388
      %s835 = scalar_lea.vmem %s1, 256
      %v836 = vld [vmem:[%s835] sm:$0xf]
      %v837 = vld [vmem:[%s835 + $0x4] sm:$0xf]
      %v838 = vld [vmem:[%s835 + $0x8] sm:$0xf]
      %v839 = vld [vmem:[%s835 + $0xc] sm:$0xf]
      %v840 = vld [vmem:[%s835 + $0x10] sm:$0xf]
      %v841 = vld [vmem:[%s835 + $0x14] sm:$0xf]
      %v842 = vld [vmem:[%s835 + $0x18] sm:$0xf]
      %v843 = vld [vmem:[%s835 + $0x1c] sm:$0xf]
      %v844 = vld [vmem:[%s835 + $0x20] sm:$0xf]
      %v845 = vld [vmem:[%s835 + $0x24] sm:$0xf]
      %v846 = vld [vmem:[%s835 + $0x28] sm:$0xf]
      %v847 = vld [vmem:[%s835 + $0x2c] sm:$0xf]
      %v848 = vld [vmem:[%s835 + $0x30] sm:$0xf]
      %v849 = vld [vmem:[%s835 + $0x34] sm:$0xf]
      %v850 = vld [vmem:[%s835 + $0x38] sm:$0xf]
      %v851 = vld [vmem:[%s835 + $0x3c] sm:$0xf]
      %v853 = vrot.slane %v834, 1
      %v871 = vunpack.c.l.b16 %v836
      %v872 = vunpack.c.l.b16 %v837
      %v873 = vunpack.c.l.b16 %v838
      %v874 = vunpack.c.l.b16 %v839
      %v875 = vunpack.c.l.b16 %v840
      %v876 = vunpack.c.l.b16 %v841
      %v877 = vunpack.c.l.b16 %v842
      %v878 = vunpack.c.l.b16 %v843
      %v879 = vunpack.c.l.b16 %v844
      %v880 = vunpack.c.l.b16 %v845
      %v881 = vunpack.c.l.b16 %v846
      %v882 = vunpack.c.l.b16 %v847
      %v883 = vunpack.c.l.b16 %v848
      %v884 = vunpack.c.l.b16 %v849
      %v885 = vunpack.c.l.b16 %v850
      %v886 = vunpack.c.l.b16 %v851
      %v887 = vpack.c.b16 %v872, %v871
      %v888 = vpack.c.b16 %v874, %v873
      %v889 = vpack.c.b16 %v876, %v875
      %v890 = vpack.c.b16 %v878, %v877
      %v891 = vpack.c.b16 %v880, %v879
      %v892 = vpack.c.b16 %v882, %v881
      %v893 = vpack.c.b16 %v884, %v883
      %v894 = vpack.c.b16 %v886, %v885
      %903 = vmatprep.subr.bf16.mxu0 0
      %904 = vmatpush1.bf16.msra.mxu0 %v894
      %905 = vmatprep.subr.bf16.mxu0 0
      %906 = vmatpush1.bf16.msra.mxu0 %v893
      %907 = vmatprep.subr.bf16.mxu0 0
      %908 = vmatpush1.bf16.msra.mxu0 %v892
      %909 = vmatprep.subr.bf16.mxu0 0
      %910 = vmatpush1.bf16.msra.mxu0 %v891
      %911 = vmatprep.subr.bf16.mxu0 0
      %912 = vmatpush1.bf16.msra.mxu0 %v890
      %913 = vmatprep.subr.bf16.mxu0 0
      %914 = vmatpush1.bf16.msra.mxu0 %v889
      %915 = vmatprep.subr.bf16.mxu0 0
      %916 = vmatpush1.bf16.msra.mxu0 %v888
      %917 = vmatprep.subr.bf16.mxu0 0
      %918 = vmatpush1.bf16.msra.mxu0 %v887
      %919 = vmatprep.subr.bf16.mxu0 0
      %920 = vmatpush2.bf16.msra.mxu0 0
      %921 = vmatprep.subr.bf16.mxu0 0
      %922 = vmatpush2.bf16.msra.mxu0 0
      %923 = vmatprep.subr.bf16.mxu0 0
      %924 = vmatpush2.bf16.msra.mxu0 0
      %925 = vmatprep.subr.bf16.mxu0 0
      %926 = vmatpush2.bf16.msra.mxu0 0
      %927 = vmatprep.subr.bf16.mxu0 0
      %928 = vmatpush2.bf16.msra.mxu0 0
      %929 = vmatprep.subr.bf16.mxu0 0
      %930 = vmatpush2.bf16.msra.mxu0 0
      %931 = vmatprep.subr.bf16.mxu0 0
      %932 = vmatpush2.bf16.msra.mxu0 0
      %933 = vmatprep.subr.bf16.mxu0 0
      %934 = vmatpush2.bf16.msra.mxu0 0
      %935 = vmatprep.mubr.bf16.mxu0 0
      %936 = vmatmul.mubr.bf16.gmra.mxu0 %v853
      %v937 = vpop.f32.mrf.mxu0
      %v938 = vadd.f32 0.0, %v937
      %v939 = vpop.f32.mrf.mxu0
      %v940 = vpop.f32.mrf.mxu0
      %v941 = vpop.f32.mrf.mxu0
      %942 = vdwg.mxu0
      %v943 = vadd.f32 %v833, %v938
      %v944 = vpack.c.bf16 %v394, %v393
      %s945 = scalar_lea.vmem %s1, 320
      %v946 = vld [vmem:[%s945] sm:$0xf]
      %v947 = vld [vmem:[%s945 + $0x4] sm:$0xf]
      %v948 = vld [vmem:[%s945 + $0x8] sm:$0xf]
      %v949 = vld [vmem:[%s945 + $0xc] sm:$0xf]
      %v950 = vld [vmem:[%s945 + $0x10] sm:$0xf]
      %v951 = vld [vmem:[%s945 + $0x14] sm:$0xf]
      %v952 = vld [vmem:[%s945 + $0x18] sm:$0xf]
      %v953 = vld [vmem:[%s945 + $0x1c] sm:$0xf]
      %v954 = vld [vmem:[%s945 + $0x20] sm:$0xf]
      %v955 = vld [vmem:[%s945 + $0x24] sm:$0xf]
      %v956 = vld [vmem:[%s945 + $0x28] sm:$0xf]
      %v957 = vld [vmem:[%s945 + $0x2c] sm:$0xf]
      %v958 = vld [vmem:[%s945 + $0x30] sm:$0xf]
      %v959 = vld [vmem:[%s945 + $0x34] sm:$0xf]
      %v960 = vld [vmem:[%s945 + $0x38] sm:$0xf]
      %v961 = vld [vmem:[%s945 + $0x3c] sm:$0xf]
      %v963 = vrot.slane %v944, 1
      %v981 = vunpack.c.l.b16 %v946
      %v982 = vunpack.c.l.b16 %v947
      %v983 = vunpack.c.l.b16 %v948
      %v984 = vunpack.c.l.b16 %v949
      %v985 = vunpack.c.l.b16 %v950
      %v986 = vunpack.c.l.b16 %v951
      %v987 = vunpack.c.l.b16 %v952
      %v988 = vunpack.c.l.b16 %v953
      %v989 = vunpack.c.l.b16 %v954
      %v990 = vunpack.c.l.b16 %v955
      %v991 = vunpack.c.l.b16 %v956
      %v992 = vunpack.c.l.b16 %v957
      %v993 = vunpack.c.l.b16 %v958
      %v994 = vunpack.c.l.b16 %v959
      %v995 = vunpack.c.l.b16 %v960
      %v996 = vunpack.c.l.b16 %v961
      %v997 = vpack.c.b16 %v982, %v981
      %v998 = vpack.c.b16 %v984, %v983
      %v999 = vpack.c.b16 %v986, %v985
      %v1000 = vpack.c.b16 %v988, %v987
      %v1001 = vpack.c.b16 %v990, %v989
      %v1002 = vpack.c.b16 %v992, %v991
      %v1003 = vpack.c.b16 %v994, %v993
      %v1004 = vpack.c.b16 %v996, %v995
      %1013 = vmatprep.subr.bf16.mxu0 0
      %1014 = vmatpush1.bf16.msra.mxu0 %v1004
      %1015 = vmatprep.subr.bf16.mxu0 0
      %1016 = vmatpush1.bf16.msra.mxu0 %v1003
      %1017 = vmatprep.subr.bf16.mxu0 0
      %1018 = vmatpush1.bf16.msra.mxu0 %v1002
      %1019 = vmatprep.subr.bf16.mxu0 0
      %1020 = vmatpush1.bf16.msra.mxu0 %v1001
      %1021 = vmatprep.subr.bf16.mxu0 0
      %1022 = vmatpush1.bf16.msra.mxu0 %v1000
      %1023 = vmatprep.subr.bf16.mxu0 0
      %1024 = vmatpush1.bf16.msra.mxu0 %v999
      %1025 = vmatprep.subr.bf16.mxu0 0
      %1026 = vmatpush1.bf16.msra.mxu0 %v998
      %1027 = vmatprep.subr.bf16.mxu0 0
      %1028 = vmatpush1.bf16.msra.mxu0 %v997
      %1029 = vmatprep.subr.bf16.mxu0 0
      %1030 = vmatpush2.bf16.msra.mxu0 0
      %1031 = vmatprep.subr.bf16.mxu0 0
      %1032 = vmatpush2.bf16.msra.mxu0 0
      %1033 = vmatprep.subr.bf16.mxu0 0
      %1034 = vmatpush2.bf16.msra.mxu0 0
      %1035 = vmatprep.subr.bf16.mxu0 0
      %1036 = vmatpush2.bf16.msra.mxu0 0
      %1037 = vmatprep.subr.bf16.mxu0 0
      %1038 = vmatpush2.bf16.msra.mxu0 0
      %1039 = vmatprep.subr.bf16.mxu0 0
      %1040 = vmatpush2.bf16.msra.mxu0 0
      %1041 = vmatprep.subr.bf16.mxu0 0
      %1042 = vmatpush2.bf16.msra.mxu0 0
      %1043 = vmatprep.subr.bf16.mxu0 0
      %1044 = vmatpush2.bf16.msra.mxu0 0
      %1045 = vmatprep.mubr.bf16.mxu0 0
      %1046 = vmatmul.mubr.bf16.gmra.mxu0 %v963
      %v1047 = vpop.f32.mrf.mxu0
      %v1048 = vadd.f32 0.0, %v1047
      %v1049 = vpop.f32.mrf.mxu0
      %v1050 = vpop.f32.mrf.mxu0
      %v1051 = vpop.f32.mrf.mxu0
      %1052 = vdwg.mxu0
      %v1053 = vadd.f32 %v943, %v1048
      %s1054 = scalar_lea.vmem %s1, 384
      %v1055 = vld [vmem:[%s1054] sm:$0xf]
      %v1056 = vld [vmem:[%s1054 + $0x4] sm:$0xf]
      %v1057 = vld [vmem:[%s1054 + $0x8] sm:$0xf]
      %v1058 = vld [vmem:[%s1054 + $0xc] sm:$0xf]
      %v1059 = vld [vmem:[%s1054 + $0x10] sm:$0xf]
      %v1060 = vld [vmem:[%s1054 + $0x14] sm:$0xf]
      %v1061 = vld [vmem:[%s1054 + $0x18] sm:$0xf]
      %v1062 = vld [vmem:[%s1054 + $0x1c] sm:$0xf]
      %v1063 = vld [vmem:[%s1054 + $0x20] sm:$0xf]
      %v1064 = vld [vmem:[%s1054 + $0x24] sm:$0xf]
      %v1065 = vld [vmem:[%s1054 + $0x28] sm:$0xf]
      %v1066 = vld [vmem:[%s1054 + $0x2c] sm:$0xf]
      %v1067 = vld [vmem:[%s1054 + $0x30] sm:$0xf]
      %v1068 = vld [vmem:[%s1054 + $0x34] sm:$0xf]
      %v1069 = vld [vmem:[%s1054 + $0x38] sm:$0xf]
      %v1070 = vld [vmem:[%s1054 + $0x3c] sm:$0xf]
      %v1072 = vshrl.u32 %v834, 16
      %v1074 = vrot.slane %v1072, 1
      %v1075 = vshll.u32 %v834, 16
      %v1077 = vrot.slane %v1075, 2
      %v1078 = vor.u32 %v1074, %v1077
      %v1096 = vunpack.c.l.b16 %v1055
      %v1097 = vunpack.c.l.b16 %v1056
      %v1098 = vunpack.c.l.b16 %v1057
      %v1099 = vunpack.c.l.b16 %v1058
      %v1100 = vunpack.c.l.b16 %v1059
      %v1101 = vunpack.c.l.b16 %v1060
      %v1102 = vunpack.c.l.b16 %v1061
      %v1103 = vunpack.c.l.b16 %v1062
      %v1104 = vunpack.c.l.b16 %v1063
      %v1105 = vunpack.c.l.b16 %v1064
      %v1106 = vunpack.c.l.b16 %v1065
      %v1107 = vunpack.c.l.b16 %v1066
      %v1108 = vunpack.c.l.b16 %v1067
      %v1109 = vunpack.c.l.b16 %v1068
      %v1110 = vunpack.c.l.b16 %v1069
      %v1111 = vunpack.c.l.b16 %v1070
      %v1112 = vpack.c.b16 %v1097, %v1096
      %v1113 = vpack.c.b16 %v1099, %v1098
      %v1114 = vpack.c.b16 %v1101, %v1100
      %v1115 = vpack.c.b16 %v1103, %v1102
      %v1116 = vpack.c.b16 %v1105, %v1104
      %v1117 = vpack.c.b16 %v1107, %v1106
      %v1118 = vpack.c.b16 %v1109, %v1108
      %v1119 = vpack.c.b16 %v1111, %v1110
      %1128 = vmatprep.subr.bf16.mxu0 0
      %1129 = vmatpush1.bf16.msra.mxu0 %v1119
      %1130 = vmatprep.subr.bf16.mxu0 0
      %1131 = vmatpush1.bf16.msra.mxu0 %v1118
      %1132 = vmatprep.subr.bf16.mxu0 0
      %1133 = vmatpush1.bf16.msra.mxu0 %v1117
      %1134 = vmatprep.subr.bf16.mxu0 0
      %1135 = vmatpush1.bf16.msra.mxu0 %v1116
      %1136 = vmatprep.subr.bf16.mxu0 0
      %1137 = vmatpush1.bf16.msra.mxu0 %v1115
      %1138 = vmatprep.subr.bf16.mxu0 0
      %1139 = vmatpush1.bf16.msra.mxu0 %v1114
      %1140 = vmatprep.subr.bf16.mxu0 0
      %1141 = vmatpush1.bf16.msra.mxu0 %v1113
      %1142 = vmatprep.subr.bf16.mxu0 0
      %1143 = vmatpush1.bf16.msra.mxu0 %v1112
      %1144 = vmatprep.subr.bf16.mxu0 0
      %1145 = vmatpush2.bf16.msra.mxu0 0
      %1146 = vmatprep.subr.bf16.mxu0 0
      %1147 = vmatpush2.bf16.msra.mxu0 0
      %1148 = vmatprep.subr.bf16.mxu0 0
      %1149 = vmatpush2.bf16.msra.mxu0 0
      %1150 = vmatprep.subr.bf16.mxu0 0
      %1151 = vmatpush2.bf16.msra.mxu0 0
      %1152 = vmatprep.subr.bf16.mxu0 0
      %1153 = vmatpush2.bf16.msra.mxu0 0
      %1154 = vmatprep.subr.bf16.mxu0 0
      %1155 = vmatpush2.bf16.msra.mxu0 0
      %1156 = vmatprep.subr.bf16.mxu0 0
      %1157 = vmatpush2.bf16.msra.mxu0 0
      %1158 = vmatprep.subr.bf16.mxu0 0
      %1159 = vmatpush2.bf16.msra.mxu0 0
      %1160 = vmatprep.mubr.bf16.mxu0 0
      %1161 = vmatmul.mubr.bf16.gmra.mxu0 %v1078
      %v1162 = vpop.f32.mrf.mxu0
      %v1163 = vadd.f32 0.0, %v1162
      %v1164 = vpop.f32.mrf.mxu0
      %v1165 = vpop.f32.mrf.mxu0
      %v1166 = vpop.f32.mrf.mxu0
      %1167 = vdwg.mxu0
      %v1168 = vadd.f32 %v1053, %v1163
      %s1169 = scalar_lea.vmem %s1, 448
      %v1170 = vld [vmem:[%s1169] sm:$0xf]
      %v1171 = vld [vmem:[%s1169 + $0x4] sm:$0xf]
      %v1172 = vld [vmem:[%s1169 + $0x8] sm:$0xf]
      %v1173 = vld [vmem:[%s1169 + $0xc] sm:$0xf]
      %v1174 = vld [vmem:[%s1169 + $0x10] sm:$0xf]
      %v1175 = vld [vmem:[%s1169 + $0x14] sm:$0xf]
      %v1176 = vld [vmem:[%s1169 + $0x18] sm:$0xf]
      %v1177 = vld [vmem:[%s1169 + $0x1c] sm:$0xf]
      %v1178 = vld [vmem:[%s1169 + $0x20] sm:$0xf]
      %v1179 = vld [vmem:[%s1169 + $0x24] sm:$0xf]
      %v1180 = vld [vmem:[%s1169 + $0x28] sm:$0xf]
      %v1181 = vld [vmem:[%s1169 + $0x2c] sm:$0xf]
      %v1182 = vld [vmem:[%s1169 + $0x30] sm:$0xf]
      %v1183 = vld [vmem:[%s1169 + $0x34] sm:$0xf]
      %v1184 = vld [vmem:[%s1169 + $0x38] sm:$0xf]
      %v1185 = vld [vmem:[%s1169 + $0x3c] sm:$0xf]
      %v1187 = vshrl.u32 %v944, 16
      %v1189 = vrot.slane %v1187, 1
      %v1190 = vshll.u32 %v944, 16
      %v1192 = vrot.slane %v1190, 2
      %v1193 = vor.u32 %v1189, %v1192
      %v1211 = vunpack.c.l.b16 %v1170
      %v1212 = vunpack.c.l.b16 %v1171
      %v1213 = vunpack.c.l.b16 %v1172
      %v1214 = vunpack.c.l.b16 %v1173
      %v1215 = vunpack.c.l.b16 %v1174
      %v1216 = vunpack.c.l.b16 %v1175
      %v1217 = vunpack.c.l.b16 %v1176
      %v1218 = vunpack.c.l.b16 %v1177
      %v1219 = vunpack.c.l.b16 %v1178
      %v1220 = vunpack.c.l.b16 %v1179
      %v1221 = vunpack.c.l.b16 %v1180
      %v1222 = vunpack.c.l.b16 %v1181
      %v1223 = vunpack.c.l.b16 %v1182
      %v1224 = vunpack.c.l.b16 %v1183
      %v1225 = vunpack.c.l.b16 %v1184
      %v1226 = vunpack.c.l.b16 %v1185
      %v1227 = vpack.c.b16 %v1212, %v1211
      %v1228 = vpack.c.b16 %v1214, %v1213
      %v1229 = vpack.c.b16 %v1216, %v1215
      %v1230 = vpack.c.b16 %v1218, %v1217
      %v1231 = vpack.c.b16 %v1220, %v1219
      %v1232 = vpack.c.b16 %v1222, %v1221
      %v1233 = vpack.c.b16 %v1224, %v1223
      %v1234 = vpack.c.b16 %v1226, %v1225
      %1243 = vmatprep.subr.bf16.mxu0 0
      %1244 = vmatpush1.bf16.msra.mxu0 %v1234
      %1245 = vmatprep.subr.bf16.mxu0 0
      %1246 = vmatpush1.bf16.msra.mxu0 %v1233
      %1247 = vmatprep.subr.bf16.mxu0 0
      %1248 = vmatpush1.bf16.msra.mxu0 %v1232
      %1249 = vmatprep.subr.bf16.mxu0 0
      %1250 = vmatpush1.bf16.msra.mxu0 %v1231
      %1251 = vmatprep.subr.bf16.mxu0 0
      %1252 = vmatpush1.bf16.msra.mxu0 %v1230
      %1253 = vmatprep.subr.bf16.mxu0 0
      %1254 = vmatpush1.bf16.msra.mxu0 %v1229
      %1255 = vmatprep.subr.bf16.mxu0 0
      %1256 = vmatpush1.bf16.msra.mxu0 %v1228
      %1257 = vmatprep.subr.bf16.mxu0 0
      %1258 = vmatpush1.bf16.msra.mxu0 %v1227
      %1259 = vmatprep.subr.bf16.mxu0 0
      %1260 = vmatpush2.bf16.msra.mxu0 0
      %1261 = vmatprep.subr.bf16.mxu0 0
      %1262 = vmatpush2.bf16.msra.mxu0 0
      %1263 = vmatprep.subr.bf16.mxu0 0
      %1264 = vmatpush2.bf16.msra.mxu0 0
      %1265 = vmatprep.subr.bf16.mxu0 0
      %1266 = vmatpush2.bf16.msra.mxu0 0
      %1267 = vmatprep.subr.bf16.mxu0 0
      %1268 = vmatpush2.bf16.msra.mxu0 0
      %1269 = vmatprep.subr.bf16.mxu0 0
      %1270 = vmatpush2.bf16.msra.mxu0 0
      %1271 = vmatprep.subr.bf16.mxu0 0
      %1272 = vmatpush2.bf16.msra.mxu0 0
      %1273 = vmatprep.subr.bf16.mxu0 0
      %1274 = vmatpush2.bf16.msra.mxu0 0
      %1275 = vmatprep.mubr.bf16.mxu0 0
      %1276 = vmatmul.mubr.bf16.gmra.mxu0 %v1193
      %v1277 = vpop.f32.mrf.mxu0
      %v1278 = vadd.f32 0.0, %v1277
      %v1279 = vpop.f32.mrf.mxu0
      %v1280 = vpop.f32.mrf.mxu0
      %v1281 = vpop.f32.mrf.mxu0
      %1282 = vdwg.mxu0
      %v1283 = vadd.f32 %v1168, %v1278
      %v1284 = vld [vmem:[%s2] sm:$0x1]
      %v1286 = vlaneseq
      %v1287 = vshrl.u32 %v1286, 7
      %v1288 = vsub.s32 0, %v1287
      %v1289 = vrot.slane %v1284, %v1288
      %v1291 = vadd.f32 %v1283, %v1289
      %v1292 = vmax.f32 %v1291, 0.0
      %v1293 = vld [vmem:[%s3] sm:$0x1]
      %v1295 = vlaneseq
      %v1296 = vshrl.u32 %v1295, 7
      %v1297 = vsub.s32 0, %v1296
      %v1298 = vrot.slane %v1293, %v1297
      %v1300 = vmul.f32 %v1292, %v1298
      %v1301 = vld [vmem:[%s4] sm:$0x1]
      %v1303 = vlaneseq
      %v1304 = vshrl.u32 %v1303, 7
      %v1305 = vsub.s32 0, %v1304
      %v1306 = vrot.slane %v1301, %v1305
      %v1308 = vadd.f32 %v1300, %v1306
      %v1310 = vrot.slane %v1308, 4
      %vm1312 = vcmask 1043456
      %v1313 = vsel %vm1312, 0.0, %v1310
      %vm1314 = vcmask 1042432
      %v1315 = vsel %vm1314, %v1310, 0.0
      %v1316 = vpack.c.bf16 %v1313, %v1313
      %v1317 = vld [vmem:[%s5] sm:$0xf]
      %v1318 = vld [vmem:[%s5 + $0x4] sm:$0xf]
      %v1319 = vld [vmem:[%s5 + $0x8] sm:$0xf]
      %v1320 = vld [vmem:[%s5 + $0xc] sm:$0xf]
      %v1321 = vld [vmem:[%s5 + $0x10] sm:$0xf]
      %v1322 = vld [vmem:[%s5 + $0x14] sm:$0xf]
      %v1323 = vld [vmem:[%s5 + $0x18] sm:$0xf]
      %v1324 = vld [vmem:[%s5 + $0x1c] sm:$0xf]
      %v1325 = vld [vmem:[%s5 + $0x20] sm:$0xf]
      %v1326 = vld [vmem:[%s5 + $0x24] sm:$0xf]
      %v1327 = vld [vmem:[%s5 + $0x28] sm:$0xf]
      %v1328 = vld [vmem:[%s5 + $0x2c] sm:$0xf]
      %v1329 = vld [vmem:[%s5 + $0x30] sm:$0xf]
      %v1330 = vld [vmem:[%s5 + $0x34] sm:$0xf]
      %v1331 = vld [vmem:[%s5 + $0x38] sm:$0xf]
      %v1332 = vld [vmem:[%s5 + $0x3c] sm:$0xf]
      %v1333 = vpack.c.bf16 %v1315, %v1313
      %s1334 = scalar_lea.vmem %s5, 64
      %v1335 = vld [vmem:[%s1334] sm:$0xf]
      %v1336 = vld [vmem:[%s1334 + $0x4] sm:$0xf]
      %v1337 = vld [vmem:[%s1334 + $0x8] sm:$0xf]
      %v1338 = vld [vmem:[%s1334 + $0xc] sm:$0xf]
      %v1339 = vld [vmem:[%s1334 + $0x10] sm:$0xf]
      %v1340 = vld [vmem:[%s1334 + $0x14] sm:$0xf]
      %v1341 = vld [vmem:[%s1334 + $0x18] sm:$0xf]
      %v1342 = vld [vmem:[%s1334 + $0x1c] sm:$0xf]
      %v1343 = vld [vmem:[%s1334 + $0x20] sm:$0xf]
      %v1344 = vld [vmem:[%s1334 + $0x24] sm:$0xf]
      %v1345 = vld [vmem:[%s1334 + $0x28] sm:$0xf]
      %v1346 = vld [vmem:[%s1334 + $0x2c] sm:$0xf]
      %v1347 = vld [vmem:[%s1334 + $0x30] sm:$0xf]
      %v1348 = vld [vmem:[%s1334 + $0x34] sm:$0xf]
      %v1349 = vld [vmem:[%s1334 + $0x38] sm:$0xf]
      %v1350 = vld [vmem:[%s1334 + $0x3c] sm:$0xf]
      %v1352 = vshrl.u32 %v1333, 16
      %v1354 = vshll.u32 %v1333, 16
      %v1356 = vrot.slane %v1354, 1
      %v1357 = vor.u32 %v1352, %v1356
      %v1375 = vunpack.c.l.b16 %v1335
      %v1376 = vunpack.c.l.b16 %v1336
      %v1377 = vunpack.c.l.b16 %v1337
      %v1378 = vunpack.c.l.b16 %v1338
      %v1379 = vunpack.c.l.b16 %v1339
      %v1380 = vunpack.c.l.b16 %v1340
      %v1381 = vunpack.c.l.b16 %v1341
      %v1382 = vunpack.c.l.b16 %v1342
      %v1383 = vunpack.c.l.b16 %v1343
      %v1384 = vunpack.c.l.b16 %v1344
      %v1385 = vunpack.c.l.b16 %v1345
      %v1386 = vunpack.c.l.b16 %v1346
      %v1387 = vunpack.c.l.b16 %v1347
      %v1388 = vunpack.c.l.b16 %v1348
      %v1389 = vunpack.c.l.b16 %v1349
      %v1390 = vunpack.c.l.b16 %v1350
      %v1391 = vpack.c.b16 %v1376, %v1375
      %v1392 = vpack.c.b16 %v1378, %v1377
      %v1393 = vpack.c.b16 %v1380, %v1379
      %v1394 = vpack.c.b16 %v1382, %v1381
      %v1395 = vpack.c.b16 %v1384, %v1383
      %v1396 = vpack.c.b16 %v1386, %v1385
      %v1397 = vpack.c.b16 %v1388, %v1387
      %v1398 = vpack.c.b16 %v1390, %v1389
      %1407 = vmatprep.subr.bf16.mxu0 0
      %1408 = vmatpush1.bf16.msra.mxu0 %v1398
      %1409 = vmatprep.subr.bf16.mxu0 0
      %1410 = vmatpush1.bf16.msra.mxu0 %v1397
      %1411 = vmatprep.subr.bf16.mxu0 0
      %1412 = vmatpush1.bf16.msra.mxu0 %v1396
      %1413 = vmatprep.subr.bf16.mxu0 0
      %1414 = vmatpush1.bf16.msra.mxu0 %v1395
      %1415 = vmatprep.subr.bf16.mxu0 0
      %1416 = vmatpush1.bf16.msra.mxu0 %v1394
      %1417 = vmatprep.subr.bf16.mxu0 0
      %1418 = vmatpush1.bf16.msra.mxu0 %v1393
      %1419 = vmatprep.subr.bf16.mxu0 0
      %1420 = vmatpush1.bf16.msra.mxu0 %v1392
      %1421 = vmatprep.subr.bf16.mxu0 0
      %1422 = vmatpush1.bf16.msra.mxu0 %v1391
      %1423 = vmatprep.subr.bf16.mxu0 0
      %1424 = vmatpush2.bf16.msra.mxu0 0
      %1425 = vmatprep.subr.bf16.mxu0 0
      %1426 = vmatpush2.bf16.msra.mxu0 0
      %1427 = vmatprep.subr.bf16.mxu0 0
      %1428 = vmatpush2.bf16.msra.mxu0 0
      %1429 = vmatprep.subr.bf16.mxu0 0
      %1430 = vmatpush2.bf16.msra.mxu0 0
      %1431 = vmatprep.subr.bf16.mxu0 0
      %1432 = vmatpush2.bf16.msra.mxu0 0
      %1433 = vmatprep.subr.bf16.mxu0 0
      %1434 = vmatpush2.bf16.msra.mxu0 0
      %1435 = vmatprep.subr.bf16.mxu0 0
      %1436 = vmatpush2.bf16.msra.mxu0 0
      %1437 = vmatprep.subr.bf16.mxu0 0
      %1438 = vmatpush2.bf16.msra.mxu0 0
      %1439 = vmatprep.mubr.bf16.mxu0 0
      %1440 = vmatmul.mubr.bf16.gmra.mxu0 %v1357
      %v1441 = vpop.f32.mrf.mxu0
      %v1442 = vadd.f32 0.0, %v1441
      %v1443 = vpop.f32.mrf.mxu0
      %v1444 = vpop.f32.mrf.mxu0
      %v1445 = vpop.f32.mrf.mxu0
      %1446 = vdwg.mxu0
      %v1463 = vunpack.c.l.b16 %v1317
      %v1464 = vunpack.c.l.b16 %v1318
      %v1465 = vunpack.c.l.b16 %v1319
      %v1466 = vunpack.c.l.b16 %v1320
      %v1467 = vunpack.c.l.b16 %v1321
      %v1468 = vunpack.c.l.b16 %v1322
      %v1469 = vunpack.c.l.b16 %v1323
      %v1470 = vunpack.c.l.b16 %v1324
      %v1471 = vunpack.c.l.b16 %v1325
      %v1472 = vunpack.c.l.b16 %v1326
      %v1473 = vunpack.c.l.b16 %v1327
      %v1474 = vunpack.c.l.b16 %v1328
      %v1475 = vunpack.c.l.b16 %v1329
      %v1476 = vunpack.c.l.b16 %v1330
      %v1477 = vunpack.c.l.b16 %v1331
      %v1478 = vunpack.c.l.b16 %v1332
      %v1479 = vpack.c.b16 %v1464, %v1463
      %v1480 = vpack.c.b16 %v1466, %v1465
      %v1481 = vpack.c.b16 %v1468, %v1467
      %v1482 = vpack.c.b16 %v1470, %v1469
      %v1483 = vpack.c.b16 %v1472, %v1471
      %v1484 = vpack.c.b16 %v1474, %v1473
      %v1485 = vpack.c.b16 %v1476, %v1475
      %v1486 = vpack.c.b16 %v1478, %v1477
      %1495 = vmatprep.subr.bf16.mxu0 0
      %1496 = vmatpush1.bf16.msra.mxu0 %v1486
      %1497 = vmatprep.subr.bf16.mxu0 0
      %1498 = vmatpush1.bf16.msra.mxu0 %v1485
      %1499 = vmatprep.subr.bf16.mxu0 0
      %1500 = vmatpush1.bf16.msra.mxu0 %v1484
      %1501 = vmatprep.subr.bf16.mxu0 0
      %1502 = vmatpush1.bf16.msra.mxu0 %v1483
      %1503 = vmatprep.subr.bf16.mxu0 0
      %1504 = vmatpush1.bf16.msra.mxu0 %v1482
      %1505 = vmatprep.subr.bf16.mxu0 0
      %1506 = vmatpush1.bf16.msra.mxu0 %v1481
      %1507 = vmatprep.subr.bf16.mxu0 0
      %1508 = vmatpush1.bf16.msra.mxu0 %v1480
      %1509 = vmatprep.subr.bf16.mxu0 0
      %1510 = vmatpush1.bf16.msra.mxu0 %v1479
      %1511 = vmatprep.subr.bf16.mxu0 0
      %1512 = vmatpush2.bf16.msra.mxu0 0
      %1513 = vmatprep.subr.bf16.mxu0 0
      %1514 = vmatpush2.bf16.msra.mxu0 0
      %1515 = vmatprep.subr.bf16.mxu0 0
      %1516 = vmatpush2.bf16.msra.mxu0 0
      %1517 = vmatprep.subr.bf16.mxu0 0
      %1518 = vmatpush2.bf16.msra.mxu0 0
      %1519 = vmatprep.subr.bf16.mxu0 0
      %1520 = vmatpush2.bf16.msra.mxu0 0
      %1521 = vmatprep.subr.bf16.mxu0 0
      %1522 = vmatpush2.bf16.msra.mxu0 0
      %1523 = vmatprep.subr.bf16.mxu0 0
      %1524 = vmatpush2.bf16.msra.mxu0 0
      %1525 = vmatprep.subr.bf16.mxu0 0
      %1526 = vmatpush2.bf16.msra.mxu0 0
      %1527 = vmatprep.mubr.bf16.mxu0 0
      %1528 = vmatmul.mubr.bf16.gmra.mxu0 %v1316
      %v1529 = vpop.f32.mrf.mxu0
      %v1530 = vadd.f32 %v1442, %v1529
      %v1531 = vpop.f32.mrf.mxu0
      %v1532 = vpop.f32.mrf.mxu0
      %v1533 = vpop.f32.mrf.mxu0
      %1534 = vdwg.mxu0
      %s1535 = scalar_lea.vmem %s5, 128
      %v1536 = vld [vmem:[%s1535] sm:$0xf]
      %v1537 = vld [vmem:[%s1535 + $0x4] sm:$0xf]
      %v1538 = vld [vmem:[%s1535 + $0x8] sm:$0xf]
      %v1539 = vld [vmem:[%s1535 + $0xc] sm:$0xf]
      %v1540 = vld [vmem:[%s1535 + $0x10] sm:$0xf]
      %v1541 = vld [vmem:[%s1535 + $0x14] sm:$0xf]
      %v1542 = vld [vmem:[%s1535 + $0x18] sm:$0xf]
      %v1543 = vld [vmem:[%s1535 + $0x1c] sm:$0xf]
      %v1544 = vld [vmem:[%s1535 + $0x20] sm:$0xf]
      %v1545 = vld [vmem:[%s1535 + $0x24] sm:$0xf]
      %v1546 = vld [vmem:[%s1535 + $0x28] sm:$0xf]
      %v1547 = vld [vmem:[%s1535 + $0x2c] sm:$0xf]
      %v1548 = vld [vmem:[%s1535 + $0x30] sm:$0xf]
      %v1549 = vld [vmem:[%s1535 + $0x34] sm:$0xf]
      %v1550 = vld [vmem:[%s1535 + $0x38] sm:$0xf]
      %v1551 = vld [vmem:[%s1535 + $0x3c] sm:$0xf]
      %v1553 = vrot.slane %v1333, 1
      %v1571 = vunpack.c.l.b16 %v1536
      %v1572 = vunpack.c.l.b16 %v1537
      %v1573 = vunpack.c.l.b16 %v1538
      %v1574 = vunpack.c.l.b16 %v1539
      %v1575 = vunpack.c.l.b16 %v1540
      %v1576 = vunpack.c.l.b16 %v1541
      %v1577 = vunpack.c.l.b16 %v1542
      %v1578 = vunpack.c.l.b16 %v1543
      %v1579 = vunpack.c.l.b16 %v1544
      %v1580 = vunpack.c.l.b16 %v1545
      %v1581 = vunpack.c.l.b16 %v1546
      %v1582 = vunpack.c.l.b16 %v1547
      %v1583 = vunpack.c.l.b16 %v1548
      %v1584 = vunpack.c.l.b16 %v1549
      %v1585 = vunpack.c.l.b16 %v1550
      %v1586 = vunpack.c.l.b16 %v1551
      %v1587 = vpack.c.b16 %v1572, %v1571
      %v1588 = vpack.c.b16 %v1574, %v1573
      %v1589 = vpack.c.b16 %v1576, %v1575
      %v1590 = vpack.c.b16 %v1578, %v1577
      %v1591 = vpack.c.b16 %v1580, %v1579
      %v1592 = vpack.c.b16 %v1582, %v1581
      %v1593 = vpack.c.b16 %v1584, %v1583
      %v1594 = vpack.c.b16 %v1586, %v1585
      %1603 = vmatprep.subr.bf16.mxu0 0
      %1604 = vmatpush1.bf16.msra.mxu0 %v1594
      %1605 = vmatprep.subr.bf16.mxu0 0
      %1606 = vmatpush1.bf16.msra.mxu0 %v1593
      %1607 = vmatprep.subr.bf16.mxu0 0
      %1608 = vmatpush1.bf16.msra.mxu0 %v1592
      %1609 = vmatprep.subr.bf16.mxu0 0
      %1610 = vmatpush1.bf16.msra.mxu0 %v1591
      %1611 = vmatprep.subr.bf16.mxu0 0
      %1612 = vmatpush1.bf16.msra.mxu0 %v1590
      %1613 = vmatprep.subr.bf16.mxu0 0
      %1614 = vmatpush1.bf16.msra.mxu0 %v1589
      %1615 = vmatprep.subr.bf16.mxu0 0
      %1616 = vmatpush1.bf16.msra.mxu0 %v1588
      %1617 = vmatprep.subr.bf16.mxu0 0
      %1618 = vmatpush1.bf16.msra.mxu0 %v1587
      %1619 = vmatprep.subr.bf16.mxu0 0
      %1620 = vmatpush2.bf16.msra.mxu0 0
      %1621 = vmatprep.subr.bf16.mxu0 0
      %1622 = vmatpush2.bf16.msra.mxu0 0
      %1623 = vmatprep.subr.bf16.mxu0 0
      %1624 = vmatpush2.bf16.msra.mxu0 0
      %1625 = vmatprep.subr.bf16.mxu0 0
      %1626 = vmatpush2.bf16.msra.mxu0 0
      %1627 = vmatprep.subr.bf16.mxu0 0
      %1628 = vmatpush2.bf16.msra.mxu0 0
      %1629 = vmatprep.subr.bf16.mxu0 0
      %1630 = vmatpush2.bf16.msra.mxu0 0
      %1631 = vmatprep.subr.bf16.mxu0 0
      %1632 = vmatpush2.bf16.msra.mxu0 0
      %1633 = vmatprep.subr.bf16.mxu0 0
      %1634 = vmatpush2.bf16.msra.mxu0 0
      %1635 = vmatprep.mubr.bf16.mxu0 0
      %1636 = vmatmul.mubr.bf16.gmra.mxu0 %v1553
      %v1637 = vpop.f32.mrf.mxu0
      %v1638 = vadd.f32 0.0, %v1637
      %v1639 = vpop.f32.mrf.mxu0
      %v1640 = vpop.f32.mrf.mxu0
      %v1641 = vpop.f32.mrf.mxu0
      %1642 = vdwg.mxu0
      %v1643 = vadd.f32 %v1530, %v1638
      %s1644 = scalar_lea.vmem %s5, 192
      %v1645 = vld [vmem:[%s1644] sm:$0xf]
      %v1646 = vld [vmem:[%s1644 + $0x4] sm:$0xf]
      %v1647 = vld [vmem:[%s1644 + $0x8] sm:$0xf]
      %v1648 = vld [vmem:[%s1644 + $0xc] sm:$0xf]
      %v1649 = vld [vmem:[%s1644 + $0x10] sm:$0xf]
      %v1650 = vld [vmem:[%s1644 + $0x14] sm:$0xf]
      %v1651 = vld [vmem:[%s1644 + $0x18] sm:$0xf]
      %v1652 = vld [vmem:[%s1644 + $0x1c] sm:$0xf]
      %v1653 = vld [vmem:[%s1644 + $0x20] sm:$0xf]
      %v1654 = vld [vmem:[%s1644 + $0x24] sm:$0xf]
      %v1655 = vld [vmem:[%s1644 + $0x28] sm:$0xf]
      %v1656 = vld [vmem:[%s1644 + $0x2c] sm:$0xf]
      %v1657 = vld [vmem:[%s1644 + $0x30] sm:$0xf]
      %v1658 = vld [vmem:[%s1644 + $0x34] sm:$0xf]
      %v1659 = vld [vmem:[%s1644 + $0x38] sm:$0xf]
      %v1660 = vld [vmem:[%s1644 + $0x3c] sm:$0xf]
      %v1661 = vrot.slane %v1352, 1
      %v1662 = vrot.slane %v1354, 2
      %v1663 = vor.u32 %v1661, %v1662
      %v1681 = vunpack.c.l.b16 %v1645
      %v1682 = vunpack.c.l.b16 %v1646
      %v1683 = vunpack.c.l.b16 %v1647
      %v1684 = vunpack.c.l.b16 %v1648
      %v1685 = vunpack.c.l.b16 %v1649
      %v1686 = vunpack.c.l.b16 %v1650
      %v1687 = vunpack.c.l.b16 %v1651
      %v1688 = vunpack.c.l.b16 %v1652
      %v1689 = vunpack.c.l.b16 %v1653
      %v1690 = vunpack.c.l.b16 %v1654
      %v1691 = vunpack.c.l.b16 %v1655
      %v1692 = vunpack.c.l.b16 %v1656
      %v1693 = vunpack.c.l.b16 %v1657
      %v1694 = vunpack.c.l.b16 %v1658
      %v1695 = vunpack.c.l.b16 %v1659
      %v1696 = vunpack.c.l.b16 %v1660
      %v1697 = vpack.c.b16 %v1682, %v1681
      %v1698 = vpack.c.b16 %v1684, %v1683
      %v1699 = vpack.c.b16 %v1686, %v1685
      %v1700 = vpack.c.b16 %v1688, %v1687
      %v1701 = vpack.c.b16 %v1690, %v1689
      %v1702 = vpack.c.b16 %v1692, %v1691
      %v1703 = vpack.c.b16 %v1694, %v1693
      %v1704 = vpack.c.b16 %v1696, %v1695
      %1713 = vmatprep.subr.bf16.mxu0 0
      %1714 = vmatpush1.bf16.msra.mxu0 %v1704
      %1715 = vmatprep.subr.bf16.mxu0 0
      %1716 = vmatpush1.bf16.msra.mxu0 %v1703
      %1717 = vmatprep.subr.bf16.mxu0 0
      %1718 = vmatpush1.bf16.msra.mxu0 %v1702
      %1719 = vmatprep.subr.bf16.mxu0 0
      %1720 = vmatpush1.bf16.msra.mxu0 %v1701
      %1721 = vmatprep.subr.bf16.mxu0 0
      %1722 = vmatpush1.bf16.msra.mxu0 %v1700
      %1723 = vmatprep.subr.bf16.mxu0 0
      %1724 = vmatpush1.bf16.msra.mxu0 %v1699
      %1725 = vmatprep.subr.bf16.mxu0 0
      %1726 = vmatpush1.bf16.msra.mxu0 %v1698
      %1727 = vmatprep.subr.bf16.mxu0 0
      %1728 = vmatpush1.bf16.msra.mxu0 %v1697
      %1729 = vmatprep.subr.bf16.mxu0 0
      %1730 = vmatpush2.bf16.msra.mxu0 0
      %1731 = vmatprep.subr.bf16.mxu0 0
      %1732 = vmatpush2.bf16.msra.mxu0 0
      %1733 = vmatprep.subr.bf16.mxu0 0
      %1734 = vmatpush2.bf16.msra.mxu0 0
      %1735 = vmatprep.subr.bf16.mxu0 0
      %1736 = vmatpush2.bf16.msra.mxu0 0
      %1737 = vmatprep.subr.bf16.mxu0 0
      %1738 = vmatpush2.bf16.msra.mxu0 0
      %1739 = vmatprep.subr.bf16.mxu0 0
      %1740 = vmatpush2.bf16.msra.mxu0 0
      %1741 = vmatprep.subr.bf16.mxu0 0
      %1742 = vmatpush2.bf16.msra.mxu0 0
      %1743 = vmatprep.subr.bf16.mxu0 0
      %1744 = vmatpush2.bf16.msra.mxu0 0
      %1745 = vmatprep.mubr.bf16.mxu0 0
      %1746 = vmatmul.mubr.bf16.gmra.mxu0 %v1663
      %v1747 = vpop.f32.mrf.mxu0
      %v1748 = vadd.f32 0.0, %v1747
      %v1749 = vpop.f32.mrf.mxu0
      %v1750 = vpop.f32.mrf.mxu0
      %v1751 = vpop.f32.mrf.mxu0
      %1752 = vdwg.mxu0
      %v1753 = vadd.f32 %v1643, %v1748
      %s1754 = scalar_lea.vmem %s5, 256
      %v1755 = vld [vmem:[%s1754] sm:$0xf]
      %v1756 = vld [vmem:[%s1754 + $0x4] sm:$0xf]
      %v1757 = vld [vmem:[%s1754 + $0x8] sm:$0xf]
      %v1758 = vld [vmem:[%s1754 + $0xc] sm:$0xf]
      %v1759 = vld [vmem:[%s1754 + $0x10] sm:$0xf]
      %v1760 = vld [vmem:[%s1754 + $0x14] sm:$0xf]
      %v1761 = vld [vmem:[%s1754 + $0x18] sm:$0xf]
      %v1762 = vld [vmem:[%s1754 + $0x1c] sm:$0xf]
      %v1763 = vld [vmem:[%s1754 + $0x20] sm:$0xf]
      %v1764 = vld [vmem:[%s1754 + $0x24] sm:$0xf]
      %v1765 = vld [vmem:[%s1754 + $0x28] sm:$0xf]
      %v1766 = vld [vmem:[%s1754 + $0x2c] sm:$0xf]
      %v1767 = vld [vmem:[%s1754 + $0x30] sm:$0xf]
      %v1768 = vld [vmem:[%s1754 + $0x34] sm:$0xf]
      %v1769 = vld [vmem:[%s1754 + $0x38] sm:$0xf]
      %v1770 = vld [vmem:[%s1754 + $0x3c] sm:$0xf]
      %v1771 = vrot.slane %v1333, 2
      %v1789 = vunpack.c.l.b16 %v1755
      %v1790 = vunpack.c.l.b16 %v1756
      %v1791 = vunpack.c.l.b16 %v1757
      %v1792 = vunpack.c.l.b16 %v1758
      %v1793 = vunpack.c.l.b16 %v1759
      %v1794 = vunpack.c.l.b16 %v1760
      %v1795 = vunpack.c.l.b16 %v1761
      %v1796 = vunpack.c.l.b16 %v1762
      %v1797 = vunpack.c.l.b16 %v1763
      %v1798 = vunpack.c.l.b16 %v1764
      %v1799 = vunpack.c.l.b16 %v1765
      %v1800 = vunpack.c.l.b16 %v1766
      %v1801 = vunpack.c.l.b16 %v1767
      %v1802 = vunpack.c.l.b16 %v1768
      %v1803 = vunpack.c.l.b16 %v1769
      %v1804 = vunpack.c.l.b16 %v1770
      %v1805 = vpack.c.b16 %v1790, %v1789
      %v1806 = vpack.c.b16 %v1792, %v1791
      %v1807 = vpack.c.b16 %v1794, %v1793
      %v1808 = vpack.c.b16 %v1796, %v1795
      %v1809 = vpack.c.b16 %v1798, %v1797
      %v1810 = vpack.c.b16 %v1800, %v1799
      %v1811 = vpack.c.b16 %v1802, %v1801
      %v1812 = vpack.c.b16 %v1804, %v1803
      %1821 = vmatprep.subr.bf16.mxu0 0
      %1822 = vmatpush1.bf16.msra.mxu0 %v1812
      %1823 = vmatprep.subr.bf16.mxu0 0
      %1824 = vmatpush1.bf16.msra.mxu0 %v1811
      %1825 = vmatprep.subr.bf16.mxu0 0
      %1826 = vmatpush1.bf16.msra.mxu0 %v1810
      %1827 = vmatprep.subr.bf16.mxu0 0
      %1828 = vmatpush1.bf16.msra.mxu0 %v1809
      %1829 = vmatprep.subr.bf16.mxu0 0
      %1830 = vmatpush1.bf16.msra.mxu0 %v1808
      %1831 = vmatprep.subr.bf16.mxu0 0
      %1832 = vmatpush1.bf16.msra.mxu0 %v1807
      %1833 = vmatprep.subr.bf16.mxu0 0
      %1834 = vmatpush1.bf16.msra.mxu0 %v1806
      %1835 = vmatprep.subr.bf16.mxu0 0
      %1836 = vmatpush1.bf16.msra.mxu0 %v1805
      %1837 = vmatprep.subr.bf16.mxu0 0
      %1838 = vmatpush2.bf16.msra.mxu0 0
      %1839 = vmatprep.subr.bf16.mxu0 0
      %1840 = vmatpush2.bf16.msra.mxu0 0
      %1841 = vmatprep.subr.bf16.mxu0 0
      %1842 = vmatpush2.bf16.msra.mxu0 0
      %1843 = vmatprep.subr.bf16.mxu0 0
      %1844 = vmatpush2.bf16.msra.mxu0 0
      %1845 = vmatprep.subr.bf16.mxu0 0
      %1846 = vmatpush2.bf16.msra.mxu0 0
      %1847 = vmatprep.subr.bf16.mxu0 0
      %1848 = vmatpush2.bf16.msra.mxu0 0
      %1849 = vmatprep.subr.bf16.mxu0 0
      %1850 = vmatpush2.bf16.msra.mxu0 0
      %1851 = vmatprep.subr.bf16.mxu0 0
      %1852 = vmatpush2.bf16.msra.mxu0 0
      %1853 = vmatprep.mubr.bf16.mxu0 0
      %1854 = vmatmul.mubr.bf16.gmra.mxu0 %v1771
      %v1855 = vpop.f32.mrf.mxu0
      %v1856 = vadd.f32 0.0, %v1855
      %v1857 = vpop.f32.mrf.mxu0
      %v1858 = vpop.f32.mrf.mxu0
      %v1859 = vpop.f32.mrf.mxu0
      %1860 = vdwg.mxu0
      %v1861 = vadd.f32 %v1753, %v1856
      %s1862 = scalar_lea.vmem %s5, 320
      %v1863 = vld [vmem:[%s1862] sm:$0xf]
      %v1864 = vld [vmem:[%s1862 + $0x4] sm:$0xf]
      %v1865 = vld [vmem:[%s1862 + $0x8] sm:$0xf]
      %v1866 = vld [vmem:[%s1862 + $0xc] sm:$0xf]
      %v1867 = vld [vmem:[%s1862 + $0x10] sm:$0xf]
      %v1868 = vld [vmem:[%s1862 + $0x14] sm:$0xf]
      %v1869 = vld [vmem:[%s1862 + $0x18] sm:$0xf]
      %v1870 = vld [vmem:[%s1862 + $0x1c] sm:$0xf]
      %v1871 = vld [vmem:[%s1862 + $0x20] sm:$0xf]
      %v1872 = vld [vmem:[%s1862 + $0x24] sm:$0xf]
      %v1873 = vld [vmem:[%s1862 + $0x28] sm:$0xf]
      %v1874 = vld [vmem:[%s1862 + $0x2c] sm:$0xf]
      %v1875 = vld [vmem:[%s1862 + $0x30] sm:$0xf]
      %v1876 = vld [vmem:[%s1862 + $0x34] sm:$0xf]
      %v1877 = vld [vmem:[%s1862 + $0x38] sm:$0xf]
      %v1878 = vld [vmem:[%s1862 + $0x3c] sm:$0xf]
      %v1879 = vrot.slane %v1352, 2
      %v1880 = vrot.slane %v1354, 3
      %v1881 = vor.u32 %v1879, %v1880
      %v1899 = vunpack.c.l.b16 %v1863
      %v1900 = vunpack.c.l.b16 %v1864
      %v1901 = vunpack.c.l.b16 %v1865
      %v1902 = vunpack.c.l.b16 %v1866
      %v1903 = vunpack.c.l.b16 %v1867
      %v1904 = vunpack.c.l.b16 %v1868
      %v1905 = vunpack.c.l.b16 %v1869
      %v1906 = vunpack.c.l.b16 %v1870
      %v1907 = vunpack.c.l.b16 %v1871
      %v1908 = vunpack.c.l.b16 %v1872
      %v1909 = vunpack.c.l.b16 %v1873
      %v1910 = vunpack.c.l.b16 %v1874
      %v1911 = vunpack.c.l.b16 %v1875
      %v1912 = vunpack.c.l.b16 %v1876
      %v1913 = vunpack.c.l.b16 %v1877
      %v1914 = vunpack.c.l.b16 %v1878
      %v1915 = vpack.c.b16 %v1900, %v1899
      %v1916 = vpack.c.b16 %v1902, %v1901
      %v1917 = vpack.c.b16 %v1904, %v1903
      %v1918 = vpack.c.b16 %v1906, %v1905
      %v1919 = vpack.c.b16 %v1908, %v1907
      %v1920 = vpack.c.b16 %v1910, %v1909
      %v1921 = vpack.c.b16 %v1912, %v1911
      %v1922 = vpack.c.b16 %v1914, %v1913
      %1931 = vmatprep.subr.bf16.mxu0 0
      %1932 = vmatpush1.bf16.msra.mxu0 %v1922
      %1933 = vmatprep.subr.bf16.mxu0 0
      %1934 = vmatpush1.bf16.msra.mxu0 %v1921
      %1935 = vmatprep.subr.bf16.mxu0 0
      %1936 = vmatpush1.bf16.msra.mxu0 %v1920
      %1937 = vmatprep.subr.bf16.mxu0 0
      %1938 = vmatpush1.bf16.msra.mxu0 %v1919
      %1939 = vmatprep.subr.bf16.mxu0 0
      %1940 = vmatpush1.bf16.msra.mxu0 %v1918
      %1941 = vmatprep.subr.bf16.mxu0 0
      %1942 = vmatpush1.bf16.msra.mxu0 %v1917
      %1943 = vmatprep.subr.bf16.mxu0 0
      %1944 = vmatpush1.bf16.msra.mxu0 %v1916
      %1945 = vmatprep.subr.bf16.mxu0 0
      %1946 = vmatpush1.bf16.msra.mxu0 %v1915
      %1947 = vmatprep.subr.bf16.mxu0 0
      %1948 = vmatpush2.bf16.msra.mxu0 0
      %1949 = vmatprep.subr.bf16.mxu0 0
      %1950 = vmatpush2.bf16.msra.mxu0 0
      %1951 = vmatprep.subr.bf16.mxu0 0
      %1952 = vmatpush2.bf16.msra.mxu0 0
      %1953 = vmatprep.subr.bf16.mxu0 0
      %1954 = vmatpush2.bf16.msra.mxu0 0
      %1955 = vmatprep.subr.bf16.mxu0 0
      %1956 = vmatpush2.bf16.msra.mxu0 0
      %1957 = vmatprep.subr.bf16.mxu0 0
      %1958 = vmatpush2.bf16.msra.mxu0 0
      %1959 = vmatprep.subr.bf16.mxu0 0
      %1960 = vmatpush2.bf16.msra.mxu0 0
      %1961 = vmatprep.subr.bf16.mxu0 0
      %1962 = vmatpush2.bf16.msra.mxu0 0
      %1963 = vmatprep.mubr.bf16.mxu0 0
      %1964 = vmatmul.mubr.bf16.gmra.mxu0 %v1881
      %v1965 = vpop.f32.mrf.mxu0
      %v1966 = vadd.f32 0.0, %v1965
      %v1967 = vpop.f32.mrf.mxu0
      %v1968 = vpop.f32.mrf.mxu0
      %v1969 = vpop.f32.mrf.mxu0
      %1970 = vdwg.mxu0
      %v1971 = vadd.f32 %v1861, %v1966
      %s1972 = scalar_lea.vmem %s5, 384
      %v1973 = vld [vmem:[%s1972] sm:$0xf]
      %v1974 = vld [vmem:[%s1972 + $0x4] sm:$0xf]
      %v1975 = vld [vmem:[%s1972 + $0x8] sm:$0xf]
      %v1976 = vld [vmem:[%s1972 + $0xc] sm:$0xf]
      %v1977 = vld [vmem:[%s1972 + $0x10] sm:$0xf]
      %v1978 = vld [vmem:[%s1972 + $0x14] sm:$0xf]
      %v1979 = vld [vmem:[%s1972 + $0x18] sm:$0xf]
      %v1980 = vld [vmem:[%s1972 + $0x1c] sm:$0xf]
      %v1981 = vld [vmem:[%s1972 + $0x20] sm:$0xf]
      %v1982 = vld [vmem:[%s1972 + $0x24] sm:$0xf]
      %v1983 = vld [vmem:[%s1972 + $0x28] sm:$0xf]
      %v1984 = vld [vmem:[%s1972 + $0x2c] sm:$0xf]
      %v1985 = vld [vmem:[%s1972 + $0x30] sm:$0xf]
      %v1986 = vld [vmem:[%s1972 + $0x34] sm:$0xf]
      %v1987 = vld [vmem:[%s1972 + $0x38] sm:$0xf]
      %v1988 = vld [vmem:[%s1972 + $0x3c] sm:$0xf]
      %v1989 = vrot.slane %v1333, 3
      %v2007 = vunpack.c.l.b16 %v1973
      %v2008 = vunpack.c.l.b16 %v1974
      %v2009 = vunpack.c.l.b16 %v1975
      %v2010 = vunpack.c.l.b16 %v1976
      %v2011 = vunpack.c.l.b16 %v1977
      %v2012 = vunpack.c.l.b16 %v1978
      %v2013 = vunpack.c.l.b16 %v1979
      %v2014 = vunpack.c.l.b16 %v1980
      %v2015 = vunpack.c.l.b16 %v1981
      %v2016 = vunpack.c.l.b16 %v1982
      %v2017 = vunpack.c.l.b16 %v1983
      %v2018 = vunpack.c.l.b16 %v1984
      %v2019 = vunpack.c.l.b16 %v1985
      %v2020 = vunpack.c.l.b16 %v1986
      %v2021 = vunpack.c.l.b16 %v1987
      %v2022 = vunpack.c.l.b16 %v1988
      %v2023 = vpack.c.b16 %v2008, %v2007
      %v2024 = vpack.c.b16 %v2010, %v2009
      %v2025 = vpack.c.b16 %v2012, %v2011
      %v2026 = vpack.c.b16 %v2014, %v2013
      %v2027 = vpack.c.b16 %v2016, %v2015
      %v2028 = vpack.c.b16 %v2018, %v2017
      %v2029 = vpack.c.b16 %v2020, %v2019
      %v2030 = vpack.c.b16 %v2022, %v2021
      %2039 = vmatprep.subr.bf16.mxu0 0
      %2040 = vmatpush1.bf16.msra.mxu0 %v2030
      %2041 = vmatprep.subr.bf16.mxu0 0
      %2042 = vmatpush1.bf16.msra.mxu0 %v2029
      %2043 = vmatprep.subr.bf16.mxu0 0
      %2044 = vmatpush1.bf16.msra.mxu0 %v2028
      %2045 = vmatprep.subr.bf16.mxu0 0
      %2046 = vmatpush1.bf16.msra.mxu0 %v2027
      %2047 = vmatprep.subr.bf16.mxu0 0
      %2048 = vmatpush1.bf16.msra.mxu0 %v2026
      %2049 = vmatprep.subr.bf16.mxu0 0
      %2050 = vmatpush1.bf16.msra.mxu0 %v2025
      %2051 = vmatprep.subr.bf16.mxu0 0
      %2052 = vmatpush1.bf16.msra.mxu0 %v2024
      %2053 = vmatprep.subr.bf16.mxu0 0
      %2054 = vmatpush1.bf16.msra.mxu0 %v2023
      %2055 = vmatprep.subr.bf16.mxu0 0
      %2056 = vmatpush2.bf16.msra.mxu0 0
      %2057 = vmatprep.subr.bf16.mxu0 0
      %2058 = vmatpush2.bf16.msra.mxu0 0
      %2059 = vmatprep.subr.bf16.mxu0 0
      %2060 = vmatpush2.bf16.msra.mxu0 0
      %2061 = vmatprep.subr.bf16.mxu0 0
      %2062 = vmatpush2.bf16.msra.mxu0 0
      %2063 = vmatprep.subr.bf16.mxu0 0
      %2064 = vmatpush2.bf16.msra.mxu0 0
      %2065 = vmatprep.subr.bf16.mxu0 0
      %2066 = vmatpush2.bf16.msra.mxu0 0
      %2067 = vmatprep.subr.bf16.mxu0 0
      %2068 = vmatpush2.bf16.msra.mxu0 0
      %2069 = vmatprep.subr.bf16.mxu0 0
      %2070 = vmatpush2.bf16.msra.mxu0 0
      %2071 = vmatprep.mubr.bf16.mxu0 0
      %2072 = vmatmul.mubr.bf16.gmra.mxu0 %v1989
      %v2073 = vpop.f32.mrf.mxu0
      %v2074 = vadd.f32 0.0, %v2073
      %v2075 = vpop.f32.mrf.mxu0
      %v2076 = vpop.f32.mrf.mxu0
      %v2077 = vpop.f32.mrf.mxu0
      %2078 = vdwg.mxu0
      %v2079 = vadd.f32 %v1971, %v2074
      %s2080 = scalar_lea.vmem %s5, 448
      %v2081 = vld [vmem:[%s2080] sm:$0xf]
      %v2082 = vld [vmem:[%s2080 + $0x4] sm:$0xf]
      %v2083 = vld [vmem:[%s2080 + $0x8] sm:$0xf]
      %v2084 = vld [vmem:[%s2080 + $0xc] sm:$0xf]
      %v2085 = vld [vmem:[%s2080 + $0x10] sm:$0xf]
      %v2086 = vld [vmem:[%s2080 + $0x14] sm:$0xf]
      %v2087 = vld [vmem:[%s2080 + $0x18] sm:$0xf]
      %v2088 = vld [vmem:[%s2080 + $0x1c] sm:$0xf]
      %v2089 = vld [vmem:[%s2080 + $0x20] sm:$0xf]
      %v2090 = vld [vmem:[%s2080 + $0x24] sm:$0xf]
      %v2091 = vld [vmem:[%s2080 + $0x28] sm:$0xf]
      %v2092 = vld [vmem:[%s2080 + $0x2c] sm:$0xf]
      %v2093 = vld [vmem:[%s2080 + $0x30] sm:$0xf]
      %v2094 = vld [vmem:[%s2080 + $0x34] sm:$0xf]
      %v2095 = vld [vmem:[%s2080 + $0x38] sm:$0xf]
      %v2096 = vld [vmem:[%s2080 + $0x3c] sm:$0xf]
      %v2097 = vrot.slane %v1352, 3
      %v2098 = vrot.slane %v1354, 4
      %v2099 = vor.u32 %v2097, %v2098
      %v2117 = vunpack.c.l.b16 %v2081
      %v2118 = vunpack.c.l.b16 %v2082
      %v2119 = vunpack.c.l.b16 %v2083
      %v2120 = vunpack.c.l.b16 %v2084
      %v2121 = vunpack.c.l.b16 %v2085
      %v2122 = vunpack.c.l.b16 %v2086
      %v2123 = vunpack.c.l.b16 %v2087
      %v2124 = vunpack.c.l.b16 %v2088
      %v2125 = vunpack.c.l.b16 %v2089
      %v2126 = vunpack.c.l.b16 %v2090
      %v2127 = vunpack.c.l.b16 %v2091
      %v2128 = vunpack.c.l.b16 %v2092
      %v2129 = vunpack.c.l.b16 %v2093
      %v2130 = vunpack.c.l.b16 %v2094
      %v2131 = vunpack.c.l.b16 %v2095
      %v2132 = vunpack.c.l.b16 %v2096
      %v2133 = vpack.c.b16 %v2118, %v2117
      %v2134 = vpack.c.b16 %v2120, %v2119
      %v2135 = vpack.c.b16 %v2122, %v2121
      %v2136 = vpack.c.b16 %v2124, %v2123
      %v2137 = vpack.c.b16 %v2126, %v2125
      %v2138 = vpack.c.b16 %v2128, %v2127
      %v2139 = vpack.c.b16 %v2130, %v2129
      %v2140 = vpack.c.b16 %v2132, %v2131
      %2149 = vmatprep.subr.bf16.mxu0 0
      %2150 = vmatpush1.bf16.msra.mxu0 %v2140
      %2151 = vmatprep.subr.bf16.mxu0 0
      %2152 = vmatpush1.bf16.msra.mxu0 %v2139
      %2153 = vmatprep.subr.bf16.mxu0 0
      %2154 = vmatpush1.bf16.msra.mxu0 %v2138
      %2155 = vmatprep.subr.bf16.mxu0 0
      %2156 = vmatpush1.bf16.msra.mxu0 %v2137
      %2157 = vmatprep.subr.bf16.mxu0 0
      %2158 = vmatpush1.bf16.msra.mxu0 %v2136
      %2159 = vmatprep.subr.bf16.mxu0 0
      %2160 = vmatpush1.bf16.msra.mxu0 %v2135
      %2161 = vmatprep.subr.bf16.mxu0 0
      %2162 = vmatpush1.bf16.msra.mxu0 %v2134
      %2163 = vmatprep.subr.bf16.mxu0 0
      %2164 = vmatpush1.bf16.msra.mxu0 %v2133
      %2165 = vmatprep.subr.bf16.mxu0 0
      %2166 = vmatpush2.bf16.msra.mxu0 0
      %2167 = vmatprep.subr.bf16.mxu0 0
      %2168 = vmatpush2.bf16.msra.mxu0 0
      %2169 = vmatprep.subr.bf16.mxu0 0
      %2170 = vmatpush2.bf16.msra.mxu0 0
      %2171 = vmatprep.subr.bf16.mxu0 0
      %2172 = vmatpush2.bf16.msra.mxu0 0
      %2173 = vmatprep.subr.bf16.mxu0 0
      %2174 = vmatpush2.bf16.msra.mxu0 0
      %2175 = vmatprep.subr.bf16.mxu0 0
      %2176 = vmatpush2.bf16.msra.mxu0 0
      %2177 = vmatprep.subr.bf16.mxu0 0
      %2178 = vmatpush2.bf16.msra.mxu0 0
      %2179 = vmatprep.subr.bf16.mxu0 0
      %2180 = vmatpush2.bf16.msra.mxu0 0
      %2181 = vmatprep.mubr.bf16.mxu0 0
      %2182 = vmatmul.mubr.bf16.gmra.mxu0 %v2099
      %v2183 = vpop.f32.mrf.mxu0
      %v2184 = vadd.f32 0.0, %v2183
      %v2185 = vpop.f32.mrf.mxu0
      %v2186 = vpop.f32.mrf.mxu0
      %v2187 = vpop.f32.mrf.mxu0
      %2188 = vdwg.mxu0
      %v2189 = vadd.f32 %v2079, %v2184
      %v2190 = vld [vmem:[%s6] sm:$0x1]
      %v2192 = vlaneseq
      %v2193 = vshrl.u32 %v2192, 7
      %v2194 = vsub.s32 0, %v2193
      %v2195 = vrot.slane %v2190, %v2194
      %v2197 = vadd.f32 %v2189, %v2195
      %v2198 = vld [vmem:[%s9] sm:$0xf]
      %v2199 = vld [vmem:[%s9 + $0x4] sm:$0xf]
      %v2200 = vld [vmem:[%s9 + $0x8] sm:$0xf]
      %v2201 = vld [vmem:[%s9 + $0xc] sm:$0xf]
      %v2202 = vld [vmem:[%s9 + $0x10] sm:$0xf]
      %v2203 = vld [vmem:[%s9 + $0x14] sm:$0xf]
      %v2204 = vld [vmem:[%s9 + $0x18] sm:$0xf]
      %v2205 = vld [vmem:[%s9 + $0x1c] sm:$0xf]
      %v2206 = vld [vmem:[%s9 + $0x20] sm:$0xf]
      %v2207 = vld [vmem:[%s9 + $0x24] sm:$0xf]
      %v2208 = vld [vmem:[%s9 + $0x28] sm:$0xf]
      %v2209 = vld [vmem:[%s9 + $0x2c] sm:$0xf]
      %v2210 = vld [vmem:[%s9 + $0x30] sm:$0xf]
      %v2211 = vld [vmem:[%s9 + $0x34] sm:$0xf]
      %v2212 = vld [vmem:[%s9 + $0x38] sm:$0xf]
      %v2213 = vld [vmem:[%s9 + $0x3c] sm:$0xf]
      %v2214 = vld [vmem:[%s10] sm:$0x1]
      %v2216 = vlaneseq
      %v2217 = vshrl.u32 %v2216, 7
      %v2218 = vsub.s32 0, %v2217
      %v2219 = vrot.slane %v2214, %v2218
      %v2221 = vrot.slane %v1190, 1
      %v2222 = vor.u32 %v1187, %v2221
      %v2240 = vunpack.c.l.b16 %v2198
      %v2241 = vunpack.c.l.b16 %v2199
      %v2242 = vunpack.c.l.b16 %v2200
      %v2243 = vunpack.c.l.b16 %v2201
      %v2244 = vunpack.c.l.b16 %v2202
      %v2245 = vunpack.c.l.b16 %v2203
      %v2246 = vunpack.c.l.b16 %v2204
      %v2247 = vunpack.c.l.b16 %v2205
      %v2248 = vunpack.c.l.b16 %v2206
      %v2249 = vunpack.c.l.b16 %v2207
      %v2250 = vunpack.c.l.b16 %v2208
      %v2251 = vunpack.c.l.b16 %v2209
      %v2252 = vunpack.c.l.b16 %v2210
      %v2253 = vunpack.c.l.b16 %v2211
      %v2254 = vunpack.c.l.b16 %v2212
      %v2255 = vunpack.c.l.b16 %v2213
      %v2256 = vpack.c.b16 %v2241, %v2240
      %v2257 = vpack.c.b16 %v2243, %v2242
      %v2258 = vpack.c.b16 %v2245, %v2244
      %v2259 = vpack.c.b16 %v2247, %v2246
      %v2260 = vpack.c.b16 %v2249, %v2248
      %v2261 = vpack.c.b16 %v2251, %v2250
      %v2262 = vpack.c.b16 %v2253, %v2252
      %v2263 = vpack.c.b16 %v2255, %v2254
      %2272 = vmatprep.subr.bf16.mxu0 0
      %2273 = vmatpush1.bf16.msra.mxu0 %v2263
      %2274 = vmatprep.subr.bf16.mxu0 0
      %2275 = vmatpush1.bf16.msra.mxu0 %v2262
      %2276 = vmatprep.subr.bf16.mxu0 0
      %2277 = vmatpush1.bf16.msra.mxu0 %v2261
      %2278 = vmatprep.subr.bf16.mxu0 0
      %2279 = vmatpush1.bf16.msra.mxu0 %v2260
      %2280 = vmatprep.subr.bf16.mxu0 0
      %2281 = vmatpush1.bf16.msra.mxu0 %v2259
      %2282 = vmatprep.subr.bf16.mxu0 0
      %2283 = vmatpush1.bf16.msra.mxu0 %v2258
      %2284 = vmatprep.subr.bf16.mxu0 0
      %2285 = vmatpush1.bf16.msra.mxu0 %v2257
      %2286 = vmatprep.subr.bf16.mxu0 0
      %2287 = vmatpush1.bf16.msra.mxu0 %v2256
      %2288 = vmatprep.subr.bf16.mxu0 0
      %2289 = vmatpush2.bf16.msra.mxu0 0
      %2290 = vmatprep.subr.bf16.mxu0 0
      %2291 = vmatpush2.bf16.msra.mxu0 0
      %2292 = vmatprep.subr.bf16.mxu0 0
      %2293 = vmatpush2.bf16.msra.mxu0 0
      %2294 = vmatprep.subr.bf16.mxu0 0
      %2295 = vmatpush2.bf16.msra.mxu0 0
      %2296 = vmatprep.subr.bf16.mxu0 0
      %2297 = vmatpush2.bf16.msra.mxu0 0
      %2298 = vmatprep.subr.bf16.mxu0 0
      %2299 = vmatpush2.bf16.msra.mxu0 0
      %2300 = vmatprep.subr.bf16.mxu0 0
      %2301 = vmatpush2.bf16.msra.mxu0 0
      %2302 = vmatprep.subr.bf16.mxu0 0
      %2303 = vmatpush2.bf16.msra.mxu0 0
      %2304 = vmatprep.mubr.bf16.mxu0 0
      %2305 = vmatmul.mubr.bf16.gmra.mxu0 %v2222
      %v2306 = vpop.f32.mrf.mxu0
      %v2307 = vadd.f32 %v2219, %v2306
      %v2308 = vpop.f32.mrf.mxu0
      %v2309 = vpop.f32.mrf.mxu0
      %v2310 = vpop.f32.mrf.mxu0
      %2311 = vdwg.mxu0
      %v2312 = vadd.f32 %v2197, %v2307
      %v2313 = vmax.f32 %v2312, 0.0
      %v2314 = vld [vmem:[%s7] sm:$0x1]
      %v2316 = vlaneseq
      %v2317 = vshrl.u32 %v2316, 7
      %v2318 = vsub.s32 0, %v2317
      %v2319 = vrot.slane %v2314, %v2318
      %v2321 = vmul.f32 %v2313, %v2319
      %v2322 = vld [vmem:[%s8] sm:$0x1]
      %v2324 = vlaneseq
      %v2325 = vshrl.u32 %v2324, 7
      %v2326 = vsub.s32 0, %v2325
      %v2327 = vrot.slane %v2322, %v2326
      %v2329 = vadd.f32 %v2321, %v2327
      %v2330 = vpack.c.bf16 %v2329, %v2329
      %2331 = vst [vmem:[%s384] sm:$0xf] %v2330
      %p2332 = scmp.lt.s32.totalorder %s22, 31
      %s2333 = scalar_select %p2332, %s22, 31
      %s2334 = smul.addr %s2333, 4
      %s2335 = scalar_lea.vmem %s11, %s2334
      // Predicated region
      $region65: #{_lambda_.9} parent=63 // pred_check
        %p2336 = pneg %p276
      $region66: #{_lambda_.9} parent=63 // pred_check_branch
        %2338 = sbr.rel (%p2336) target = $region68
      $region67: #{_lambda_.9} parent=63 // pred_region
        _
      $region68: #{_lambda_.9} parent=63 // pred_fallthru
        _
    $region64: #{_lambda_.9} parent=5 // pred_fallthru
      _
    %p2339 = scmp.le.s32.totalorder 2, %s17
    // Predicated region
    $region69: #{_lambda_.9} parent=5 // pred_check
      %p2340 = pneg %p2339
    $region70: #{_lambda_.9} parent=5 // pred_check_branch
      %2342 = sbr.rel (%p2340) target = $region72
    $region71: #{_lambda_.9} parent=5 // pred_region
      %s2343 = ssub.s32 %s17, 2
      // Predicated region
      $region73: #{_lambda_.9} parent=71 // pred_check
        %p2344 = pneg %p282
      $region74: #{_lambda_.9} parent=71 // pred_check_branch
        %2346 = sbr.rel (%p2344) target = $region76
      $region75: #{_lambda_.9} parent=71 // pred_region
        %p2347 = scmp.lt.s32.totalorder %s23, 31
        %s2348 = scalar_select %p2347, %s23, 31
        %s2349 = smul.addr %s2348, 4
        %s2350 = scalar_lea.vmem %s11, %s2349
      $region76: #{_lambda_.9} parent=71 // pred_fallthru
        _
    $region72: #{_lambda_.9} parent=5 // pred_fallthru
      _
  $region6: #{_lambda_.9} parent=0 // loop_footer
    %s21 = sadd.s32 1, %s17
  $region7: #{_lambda_.9} parent=0 // loop_footer_branch
    %16 = sbr.rel target = $region3
  $region8: #{_lambda_.9} parent=0 // loop_exit
    _

// kernel: _lambda_.13
$region0: #{_lambda_.13}
  #allocation0 [shape = 'u32[]', space=smem, size = 0x4, offset = 0x4, fixed_abs, tag = 'smem constant byte address 0x4 - core index']
  #allocation1 [shape = 'u32[144,128]{1,0:T(1,128)}', space=vmem, size = 0x12000, scoped, tag = 'internal scratch']
  %s0 = inlined_call_operand.vmem [shape: f32[8,4,16], index: 0, kind: input, shape index: {}]
  %s1 = inlined_call_operand.vmem [shape: bf16[16,64], index: 1, kind: input, shape index: {}]
  %s2 = inlined_call_operand.vmem [shape: f32[4,64], index: 2, kind: input, shape index: {}, may-alias: {2,5}]
  %s3 = inlined_call_operand.vmem [shape: f32[1,64], index: 3, kind: input, shape index: {}]
  %s4 = inlined_call_operand.vmem [shape: bf16[16,64], index: 4, kind: input, shape index: {}]
  %s5 = inlined_call_operand.vmem [shape: f32[4,64], index: 5, kind: input, shape index: {}, may-alias: {2,5}]
  %s6 = inlined_call_operand.vmem [shape: f32[1,64], index: 6, kind: input, shape index: {}]
  %s7 = inlined_call_operand.vmem [shape: f32[16,5], index: 7, kind: input, shape index: {}]
  %s8 = inlined_call_operand.vmem [shape: f32[1,5], index: 8, kind: input, shape index: {}]
  %s9 = inlined_call_operand.hbm [shape: f32[2,5], index: 9, kind: output, shape index: {}]
  %s10 = sld [smem:[#allocation0]]
  $region46: #{_lambda_.13} parent=0
    _
  %s12 = ssub.s32 1, %s10
  %s13 = scalar_select 0, %s12, %s10
  $region1: #{_lambda_.13} parent=0
    #allocation2 [shape = 'u8[1024]{0}', space=vmem, size = 0x400, scoped, tag = 'output window, operand 0, single buffered']
    #allocation3 [shape = 's32[1]{0}', space=sflag, size = 0x4, scoped, tag = 'scoped memory for _lambda_.13']
    %14 = vsyncpa [#allocation3], 0
    // Predicated region
    $region2: #{_lambda_.13} parent=1 // pred_check
      _
    $region3: #{_lambda_.13} parent=1 // pred_check_branch
      %16 = sbr.rel (0) target = $region5
    $region4: #{_lambda_.13} parent=1 // pred_region
      _
    $region5: #{_lambda_.13} parent=1 // pred_fallthru
      _
    // Predicated region
    $region6: #{_lambda_.13} parent=1 // pred_check
      _
    $region7: #{_lambda_.13} parent=1 // pred_check_branch
      %18 = sbr.rel (0) target = $region9
    $region8: #{_lambda_.13} parent=1 // pred_region
      _
    $region9: #{_lambda_.13} parent=1 // pred_fallthru
      _
    // Predicated region
    $region10: #{_lambda_.13} parent=1 // pred_check
      _
    $region11: #{_lambda_.13} parent=1 // pred_check_branch
      %20 = sbr.rel (0) target = $region13
    $region12: #{_lambda_.13} parent=1 // pred_region
      _
    $region13: #{_lambda_.13} parent=1 // pred_fallthru
      _
    // Predicated region
    $region14: #{_lambda_.13} parent=1 // pred_check
      _
    $region15: #{_lambda_.13} parent=1 // pred_check_branch
      %22 = sbr.rel (0) target = $region17
    $region16: #{_lambda_.13} parent=1 // pred_region
      _
    $region17: #{_lambda_.13} parent=1 // pred_fallthru
      _
    // Predicated region
    $region18: #{_lambda_.13} parent=1 // pred_check
      _
    $region19: #{_lambda_.13} parent=1 // pred_check_branch
      %24 = sbr.rel (0) target = $region21
    $region20: #{_lambda_.13} parent=1 // pred_region
      _
    $region21: #{_lambda_.13} parent=1 // pred_fallthru
      _
    // Predicated region
    $region22: #{_lambda_.13} parent=1 // pred_check
      _
    $region23: #{_lambda_.13} parent=1 // pred_check_branch
      %26 = sbr.rel (0) target = $region25
    $region24: #{_lambda_.13} parent=1 // pred_region
      _
    $region25: #{_lambda_.13} parent=1 // pred_fallthru
      _
    // Predicated region
    $region26: #{_lambda_.13} parent=1 // pred_check
      _
    $region27: #{_lambda_.13} parent=1 // pred_check_branch
      %28 = sbr.rel (0) target = $region29
    $region28: #{_lambda_.13} parent=1 // pred_region
      _
    $region29: #{_lambda_.13} parent=1 // pred_fallthru
      _
    // Predicated region
    $region30: #{_lambda_.13} parent=1 // pred_check
      _
    $region31: #{_lambda_.13} parent=1 // pred_check_branch
      %30 = sbr.rel (0) target = $region33
    $region32: #{_lambda_.13} parent=1 // pred_region
      _
    $region33: #{_lambda_.13} parent=1 // pred_fallthru
      _
    // Predicated region
    $region34: #{_lambda_.13} parent=1 // pred_check
      _
    $region35: #{_lambda_.13} parent=1 // pred_check_branch
      %32 = sbr.rel (0) target = $region37
    $region36: #{_lambda_.13} parent=1 // pred_region
      _
    $region37: #{_lambda_.13} parent=1 // pred_fallthru
      _
    %v34 = vld [vmem:[%s1] sm:$0xf]
    %v35 = vld [vmem:[%s1 + $0x4] sm:$0xf]
    %v36 = vld [vmem:[%s2] sm:$0xf]
    %v37 = vld [vmem:[%s3] sm:$0x1]
    %v38 = vld [vmem:[%s4] sm:$0xf]
    %v39 = vld [vmem:[%s4 + $0x4] sm:$0xf]
    %v40 = vld [vmem:[%s5] sm:$0xf]
    %v41 = vld [vmem:[%s6] sm:$0x1]
    %v42 = vld [vmem:[%s0] sm:$0xf]
    %v43 = vpack.c.bf16 %v42, %v42
    %v46 = vunpack.c.l.b16 %v34
    %v47 = vunpack.c.l.b16 %v35
    %v48 = vpack.c.b16 %v47, %v46
    %vm50 = vcmask 130048
    %v52 = vsel %vm50, %v43, 0
    %54 = vmatprep.subr.bf16.mxu0 0
    %55 = vmatpush1.bf16.msra.mxu0 0
    %56 = vmatprep.subr.bf16.mxu0 0
    %57 = vmatpush1.bf16.msra.mxu0 0
    %58 = vmatprep.subr.bf16.mxu0 0
    %59 = vmatpush1.bf16.msra.mxu0 0
    %60 = vmatprep.subr.bf16.mxu0 0
    %61 = vmatpush1.bf16.msra.mxu0 0
    %62 = vmatprep.subr.bf16.mxu0 0
    %63 = vmatpush1.bf16.msra.mxu0 0
    %64 = vmatprep.subr.bf16.mxu0 0
    %65 = vmatpush1.bf16.msra.mxu0 0
    %66 = vmatprep.subr.bf16.mxu0 0
    %67 = vmatpush1.bf16.msra.mxu0 0
    %68 = vmatprep.subr.bf16.mxu0 0
    %69 = vmatpush1.bf16.msra.mxu0 %v48
    %70 = vmatprep.subr.bf16.mxu0 0
    %71 = vmatpush2.bf16.msra.mxu0 0
    %72 = vmatprep.subr.bf16.mxu0 0
    %73 = vmatpush2.bf16.msra.mxu0 0
    %74 = vmatprep.subr.bf16.mxu0 0
    %75 = vmatpush2.bf16.msra.mxu0 0
    %76 = vmatprep.subr.bf16.mxu0 0
    %77 = vmatpush2.bf16.msra.mxu0 0
    %78 = vmatprep.subr.bf16.mxu0 0
    %79 = vmatpush2.bf16.msra.mxu0 0
    %80 = vmatprep.subr.bf16.mxu0 0
    %81 = vmatpush2.bf16.msra.mxu0 0
    %82 = vmatprep.subr.bf16.mxu0 0
    %83 = vmatpush2.bf16.msra.mxu0 0
    %84 = vmatprep.subr.bf16.mxu0 0
    %85 = vmatpush2.bf16.msra.mxu0 0
    %86 = vmatprep.mubr.bf16.mxu0 0
    %87 = vmatmul.mubr.bf16.gmra.mxu0 %v52
    %v88 = vpop.f32.mrf.mxu0
    %v89 = vadd.f32 %v36, %v88
    %v90 = vpop.f32.mrf.mxu0
    %v91 = vpop.f32.mrf.mxu0
    %v92 = vpop.f32.mrf.mxu0
    %93 = vdwg.mxu0
    %v94 = vtanh.pop %v89
    %v96 = vlaneseq
    %v97 = vshrl.u32 %v96, 7
    %v98 = vsub.s32 0, %v97
    %v99 = vrot.slane %v37, %v98
    %v101 = vmul.f32 %v94, %v99
    %vm102 = vcmask 519168
    %v103 = vsel %vm102, %v101, 0.0
    %104 = vadd.xlane.f32.xlu0 %v103
    %v105 = vpop.xlane.xlu0 %104
    %vm106 = vcmask 1043456
    %v107 = vsel %vm106, %v105, -inf
    %v108 = vrot.slane %v107, 4
    %v109 = vmax.f32 %v107, %v108
    %v110 = vrot.slane %v109, 2
    %v111 = vmax.f32 %v109, %v110
    %v112 = vrot.slane %v111, 1
    %v113 = vmax.f32 %v111, %v112
    %v114 = vsub.f32 %v105, %v113
    %v115 = vmul.f32 %v114, 1.442695
    %v116 = vpow.pop %v115
    %v117 = vsel %vm106, %v116, 0.0
    %v118 = vrot.slane %v117, 4
    %v119 = vadd.f32 %v117, %v118
    %v120 = vrot.slane %v119, 2
    %v121 = vadd.f32 %v119, %v120
    %v122 = vrot.slane %v121, 1
    %v123 = vadd.f32 %v121, %v122
    %v124 = vrcp.pop %v123
    %v125 = vmul.f32 %v116, %v124
    %v126 = vmul.f32 %v42, %v125
    %vm127 = vcmask 125952
    %v128 = vsel %vm127, %v126, 0.0
    %v129 = vrot.slane %v128, 4
    %v130 = vadd.f32 %v128, %v129
    %v131 = vrot.slane %v130, 2
    %v132 = vadd.f32 %v130, %v131
    %v133 = vrot.slane %v132, 1
    %v134 = vadd.f32 %v132, %v133
    %s135 = scalar_lea.vmem %s0, 4
    %v136 = vld [vmem:[%s135] sm:$0xf]
    %v137 = vpack.c.bf16 %v136, %v136
    %v139 = vsel %vm50, %v137, 0
    %141 = vmatprep.subr.bf16.mxu0 0
    %142 = vmatpush1.bf16.msra.mxu0 0
    %143 = vmatprep.subr.bf16.mxu0 0
    %144 = vmatpush1.bf16.msra.mxu0 0
    %145 = vmatprep.subr.bf16.mxu0 0
    %146 = vmatpush1.bf16.msra.mxu0 0
    %147 = vmatprep.subr.bf16.mxu0 0
    %148 = vmatpush1.bf16.msra.mxu0 0
    %149 = vmatprep.subr.bf16.mxu0 0
    %150 = vmatpush1.bf16.msra.mxu0 0
    %151 = vmatprep.subr.bf16.mxu0 0
    %152 = vmatpush1.bf16.msra.mxu0 0
    %153 = vmatprep.subr.bf16.mxu0 0
    %154 = vmatpush1.bf16.msra.mxu0 0
    %155 = vmatprep.subr.bf16.mxu0 0
    %156 = vmatpush1.bf16.msra.mxu0 %v48
    %157 = vmatprep.subr.bf16.mxu0 0
    %158 = vmatpush2.bf16.msra.mxu0 0
    %159 = vmatprep.subr.bf16.mxu0 0
    %160 = vmatpush2.bf16.msra.mxu0 0
    %161 = vmatprep.subr.bf16.mxu0 0
    %162 = vmatpush2.bf16.msra.mxu0 0
    %163 = vmatprep.subr.bf16.mxu0 0
    %164 = vmatpush2.bf16.msra.mxu0 0
    %165 = vmatprep.subr.bf16.mxu0 0
    %166 = vmatpush2.bf16.msra.mxu0 0
    %167 = vmatprep.subr.bf16.mxu0 0
    %168 = vmatpush2.bf16.msra.mxu0 0
    %169 = vmatprep.subr.bf16.mxu0 0
    %170 = vmatpush2.bf16.msra.mxu0 0
    %171 = vmatprep.subr.bf16.mxu0 0
    %172 = vmatpush2.bf16.msra.mxu0 0
    %173 = vmatprep.mubr.bf16.mxu0 0
    %174 = vmatmul.mubr.bf16.gmra.mxu0 %v139
    %v175 = vpop.f32.mrf.mxu0
    %v176 = vadd.f32 %v36, %v175
    %v177 = vpop.f32.mrf.mxu0
    %v178 = vpop.f32.mrf.mxu0
    %v179 = vpop.f32.mrf.mxu0
    %180 = vdwg.mxu0
    %v181 = vtanh.pop %v176
    %v182 = vmul.f32 %v181, %v99
    %v183 = vsel %vm102, %v182, 0.0
    %184 = vadd.xlane.f32.xlu0 %v183
    %v185 = vpop.xlane.xlu0 %184
    %v186 = vsel %vm106, %v185, -inf
    %v187 = vrot.slane %v186, 4
    %v188 = vmax.f32 %v186, %v187
    %v189 = vrot.slane %v188, 2
    %v190 = vmax.f32 %v188, %v189
    %v191 = vrot.slane %v190, 1
    %v192 = vmax.f32 %v190, %v191
    %v193 = vsub.f32 %v185, %v192
    %v194 = vmul.f32 %v193, 1.442695
    %v195 = vpow.pop %v194
    %v196 = vsel %vm106, %v195, 0.0
    %v197 = vrot.slane %v196, 4
    %v198 = vadd.f32 %v196, %v197
    %v199 = vrot.slane %v198, 2
    %v200 = vadd.f32 %v198, %v199
    %v201 = vrot.slane %v200, 1
    %v202 = vadd.f32 %v200, %v201
    %v203 = vrcp.pop %v202
    %v204 = vmul.f32 %v195, %v203
    %v205 = vmul.f32 %v136, %v204
    %v206 = vsel %vm127, %v205, 0.0
    %v207 = vrot.slane %v206, 4
    %v208 = vadd.f32 %v206, %v207
    %v209 = vrot.slane %v208, 2
    %v210 = vadd.f32 %v208, %v209
    %v211 = vrot.slane %v210, 1
    %v212 = vadd.f32 %v210, %v211
    %s213 = scalar_lea.vmem %s0, 8
    %v214 = vld [vmem:[%s213] sm:$0xf]
    %v215 = vpack.c.bf16 %v214, %v214
    %v217 = vsel %vm50, %v215, 0
    %219 = vmatprep.subr.bf16.mxu0 0
    %220 = vmatpush1.bf16.msra.mxu0 0
    %221 = vmatprep.subr.bf16.mxu0 0
    %222 = vmatpush1.bf16.msra.mxu0 0
    %223 = vmatprep.subr.bf16.mxu0 0
    %224 = vmatpush1.bf16.msra.mxu0 0
    %225 = vmatprep.subr.bf16.mxu0 0
    %226 = vmatpush1.bf16.msra.mxu0 0
    %227 = vmatprep.subr.bf16.mxu0 0
    %228 = vmatpush1.bf16.msra.mxu0 0
    %229 = vmatprep.subr.bf16.mxu0 0
    %230 = vmatpush1.bf16.msra.mxu0 0
    %231 = vmatprep.subr.bf16.mxu0 0
    %232 = vmatpush1.bf16.msra.mxu0 0
    %233 = vmatprep.subr.bf16.mxu0 0
    %234 = vmatpush1.bf16.msra.mxu0 %v48
    %235 = vmatprep.subr.bf16.mxu0 0
    %236 = vmatpush2.bf16.msra.mxu0 0
    %237 = vmatprep.subr.bf16.mxu0 0
    %238 = vmatpush2.bf16.msra.mxu0 0
    %239 = vmatprep.subr.bf16.mxu0 0
    %240 = vmatpush2.bf16.msra.mxu0 0
    %241 = vmatprep.subr.bf16.mxu0 0
    %242 = vmatpush2.bf16.msra.mxu0 0
    %243 = vmatprep.subr.bf16.mxu0 0
    %244 = vmatpush2.bf16.msra.mxu0 0
    %245 = vmatprep.subr.bf16.mxu0 0
    %246 = vmatpush2.bf16.msra.mxu0 0
    %247 = vmatprep.subr.bf16.mxu0 0
    %248 = vmatpush2.bf16.msra.mxu0 0
    %249 = vmatprep.subr.bf16.mxu0 0
    %250 = vmatpush2.bf16.msra.mxu0 0
    %251 = vmatprep.mubr.bf16.mxu0 0
    %252 = vmatmul.mubr.bf16.gmra.mxu0 %v217
    %v253 = vpop.f32.mrf.mxu0
    %v254 = vadd.f32 %v36, %v253
    %v255 = vpop.f32.mrf.mxu0
    %v256 = vpop.f32.mrf.mxu0
    %v257 = vpop.f32.mrf.mxu0
    %258 = vdwg.mxu0
    %v259 = vtanh.pop %v254
    %v260 = vmul.f32 %v259, %v99
    %v261 = vsel %vm102, %v260, 0.0
    %262 = vadd.xlane.f32.xlu0 %v261
    %v263 = vpop.xlane.xlu0 %262
    %v264 = vsel %vm106, %v263, -inf
    %v265 = vrot.slane %v264, 4
    %v266 = vmax.f32 %v264, %v265
    %v267 = vrot.slane %v266, 2
    %v268 = vmax.f32 %v266, %v267
    %v269 = vrot.slane %v268, 1
    %v270 = vmax.f32 %v268, %v269
    %v271 = vsub.f32 %v263, %v270
    %v272 = vmul.f32 %v271, 1.442695
    %v273 = vpow.pop %v272
    %v274 = vsel %vm106, %v273, 0.0
    %v275 = vrot.slane %v274, 4
    %v276 = vadd.f32 %v274, %v275
    %v277 = vrot.slane %v276, 2
    %v278 = vadd.f32 %v276, %v277
    %v279 = vrot.slane %v278, 1
    %v280 = vadd.f32 %v278, %v279
    %v281 = vrcp.pop %v280
    %v282 = vmul.f32 %v273, %v281
    %v283 = vmul.f32 %v214, %v282
    %v284 = vsel %vm127, %v283, 0.0
    %v285 = vrot.slane %v284, 4
    %v286 = vadd.f32 %v284, %v285
    %v287 = vrot.slane %v286, 2
    %v288 = vadd.f32 %v286, %v287
    %v289 = vrot.slane %v288, 1
    %v290 = vadd.f32 %v288, %v289
    %s291 = scalar_lea.vmem %s0, 12
    %v292 = vld [vmem:[%s291] sm:$0xf]
    %v293 = vpack.c.bf16 %v292, %v292
    %v295 = vsel %vm50, %v293, 0
    %297 = vmatprep.subr.bf16.mxu0 0
    %298 = vmatpush1.bf16.msra.mxu0 0
    %299 = vmatprep.subr.bf16.mxu0 0
    %300 = vmatpush1.bf16.msra.mxu0 0
    %301 = vmatprep.subr.bf16.mxu0 0
    %302 = vmatpush1.bf16.msra.mxu0 0
    %303 = vmatprep.subr.bf16.mxu0 0
    %304 = vmatpush1.bf16.msra.mxu0 0
    %305 = vmatprep.subr.bf16.mxu0 0
    %306 = vmatpush1.bf16.msra.mxu0 0
    %307 = vmatprep.subr.bf16.mxu0 0
    %308 = vmatpush1.bf16.msra.mxu0 0
    %309 = vmatprep.subr.bf16.mxu0 0
    %310 = vmatpush1.bf16.msra.mxu0 0
    %311 = vmatprep.subr.bf16.mxu0 0
    %312 = vmatpush1.bf16.msra.mxu0 %v48
    %313 = vmatprep.subr.bf16.mxu0 0
    %314 = vmatpush2.bf16.msra.mxu0 0
    %315 = vmatprep.subr.bf16.mxu0 0
    %316 = vmatpush2.bf16.msra.mxu0 0
    %317 = vmatprep.subr.bf16.mxu0 0
    %318 = vmatpush2.bf16.msra.mxu0 0
    %319 = vmatprep.subr.bf16.mxu0 0
    %320 = vmatpush2.bf16.msra.mxu0 0
    %321 = vmatprep.subr.bf16.mxu0 0
    %322 = vmatpush2.bf16.msra.mxu0 0
    %323 = vmatprep.subr.bf16.mxu0 0
    %324 = vmatpush2.bf16.msra.mxu0 0
    %325 = vmatprep.subr.bf16.mxu0 0
    %326 = vmatpush2.bf16.msra.mxu0 0
    %327 = vmatprep.subr.bf16.mxu0 0
    %328 = vmatpush2.bf16.msra.mxu0 0
    %329 = vmatprep.mubr.bf16.mxu0 0
    %330 = vmatmul.mubr.bf16.gmra.mxu0 %v295
    %v331 = vpop.f32.mrf.mxu0
    %v332 = vadd.f32 %v36, %v331
    %v333 = vpop.f32.mrf.mxu0
    %v334 = vpop.f32.mrf.mxu0
    %v335 = vpop.f32.mrf.mxu0
    %336 = vdwg.mxu0
    %v337 = vtanh.pop %v332
    %v338 = vmul.f32 %v337, %v99
    %v339 = vsel %vm102, %v338, 0.0
    %340 = vadd.xlane.f32.xlu0 %v339
    %v341 = vpop.xlane.xlu0 %340
    %v342 = vsel %vm106, %v341, -inf
    %v343 = vrot.slane %v342, 4
    %v344 = vmax.f32 %v342, %v343
    %v345 = vrot.slane %v344, 2
    %v346 = vmax.f32 %v344, %v345
    %v347 = vrot.slane %v346, 1
    %v348 = vmax.f32 %v346, %v347
    %v349 = vsub.f32 %v341, %v348
    %v350 = vmul.f32 %v349, 1.442695
    %v351 = vpow.pop %v350
    %v352 = vsel %vm106, %v351, 0.0
    %v353 = vrot.slane %v352, 4
    %v354 = vadd.f32 %v352, %v353
    %v355 = vrot.slane %v354, 2
    %v356 = vadd.f32 %v354, %v355
    %v357 = vrot.slane %v356, 1
    %v358 = vadd.f32 %v356, %v357
    %v359 = vrcp.pop %v358
    %v360 = vmul.f32 %v351, %v359
    %v361 = vmul.f32 %v292, %v360
    %v362 = vsel %vm127, %v361, 0.0
    %v363 = vrot.slane %v362, 4
    %v364 = vadd.f32 %v362, %v363
    %v365 = vrot.slane %v364, 2
    %v366 = vadd.f32 %v364, %v365
    %v367 = vrot.slane %v366, 1
    %v368 = vadd.f32 %v366, %v367
    %s369 = scalar_lea.vmem %s0, 16
    %v370 = vld [vmem:[%s369] sm:$0xf]
    %v371 = vpack.c.bf16 %v370, %v370
    %v373 = vsel %vm50, %v371, 0
    %375 = vmatprep.subr.bf16.mxu0 0
    %376 = vmatpush1.bf16.msra.mxu0 0
    %377 = vmatprep.subr.bf16.mxu0 0
    %378 = vmatpush1.bf16.msra.mxu0 0
    %379 = vmatprep.subr.bf16.mxu0 0
    %380 = vmatpush1.bf16.msra.mxu0 0
    %381 = vmatprep.subr.bf16.mxu0 0
    %382 = vmatpush1.bf16.msra.mxu0 0
    %383 = vmatprep.subr.bf16.mxu0 0
    %384 = vmatpush1.bf16.msra.mxu0 0
    %385 = vmatprep.subr.bf16.mxu0 0
    %386 = vmatpush1.bf16.msra.mxu0 0
    %387 = vmatprep.subr.bf16.mxu0 0
    %388 = vmatpush1.bf16.msra.mxu0 0
    %389 = vmatprep.subr.bf16.mxu0 0
    %390 = vmatpush1.bf16.msra.mxu0 %v48
    %391 = vmatprep.subr.bf16.mxu0 0
    %392 = vmatpush2.bf16.msra.mxu0 0
    %393 = vmatprep.subr.bf16.mxu0 0
    %394 = vmatpush2.bf16.msra.mxu0 0
    %395 = vmatprep.subr.bf16.mxu0 0
    %396 = vmatpush2.bf16.msra.mxu0 0
    %397 = vmatprep.subr.bf16.mxu0 0
    %398 = vmatpush2.bf16.msra.mxu0 0
    %399 = vmatprep.subr.bf16.mxu0 0
    %400 = vmatpush2.bf16.msra.mxu0 0
    %401 = vmatprep.subr.bf16.mxu0 0
    %402 = vmatpush2.bf16.msra.mxu0 0
    %403 = vmatprep.subr.bf16.mxu0 0
    %404 = vmatpush2.bf16.msra.mxu0 0
    %405 = vmatprep.subr.bf16.mxu0 0
    %406 = vmatpush2.bf16.msra.mxu0 0
    %407 = vmatprep.mubr.bf16.mxu0 0
    %408 = vmatmul.mubr.bf16.gmra.mxu0 %v373
    %v409 = vpop.f32.mrf.mxu0
    %v410 = vadd.f32 %v36, %v409
    %v411 = vpop.f32.mrf.mxu0
    %v412 = vpop.f32.mrf.mxu0
    %v413 = vpop.f32.mrf.mxu0
    %414 = vdwg.mxu0
    %v415 = vtanh.pop %v410
    %v416 = vmul.f32 %v415, %v99
    %v417 = vsel %vm102, %v416, 0.0
    %418 = vadd.xlane.f32.xlu0 %v417
    %v419 = vpop.xlane.xlu0 %418
    %v420 = vsel %vm106, %v419, -inf
    %v421 = vrot.slane %v420, 4
    %v422 = vmax.f32 %v420, %v421
    %v423 = vrot.slane %v422, 2
    %v424 = vmax.f32 %v422, %v423
    %v425 = vrot.slane %v424, 1
    %v426 = vmax.f32 %v424, %v425
    %v427 = vsub.f32 %v419, %v426
    %v428 = vmul.f32 %v427, 1.442695
    %v429 = vpow.pop %v428
    %v430 = vsel %vm106, %v429, 0.0
    %v431 = vrot.slane %v430, 4
    %v432 = vadd.f32 %v430, %v431
    %v433 = vrot.slane %v432, 2
    %v434 = vadd.f32 %v432, %v433
    %v435 = vrot.slane %v434, 1
    %v436 = vadd.f32 %v434, %v435
    %v437 = vrcp.pop %v436
    %v438 = vmul.f32 %v429, %v437
    %v439 = vmul.f32 %v370, %v438
    %v440 = vsel %vm127, %v439, 0.0
    %v441 = vrot.slane %v440, 4
    %v442 = vadd.f32 %v440, %v441
    %v443 = vrot.slane %v442, 2
    %v444 = vadd.f32 %v442, %v443
    %v445 = vrot.slane %v444, 1
    %v446 = vadd.f32 %v444, %v445
    %s447 = scalar_lea.vmem %s0, 20
    %v448 = vld [vmem:[%s447] sm:$0xf]
    %v449 = vpack.c.bf16 %v448, %v448
    %v451 = vsel %vm50, %v449, 0
    %453 = vmatprep.subr.bf16.mxu0 0
    %454 = vmatpush1.bf16.msra.mxu0 0
    %455 = vmatprep.subr.bf16.mxu0 0
    %456 = vmatpush1.bf16.msra.mxu0 0
    %457 = vmatprep.subr.bf16.mxu0 0
    %458 = vmatpush1.bf16.msra.mxu0 0
    %459 = vmatprep.subr.bf16.mxu0 0
    %460 = vmatpush1.bf16.msra.mxu0 0
    %461 = vmatprep.subr.bf16.mxu0 0
    %462 = vmatpush1.bf16.msra.mxu0 0
    %463 = vmatprep.subr.bf16.mxu0 0
    %464 = vmatpush1.bf16.msra.mxu0 0
    %465 = vmatprep.subr.bf16.mxu0 0
    %466 = vmatpush1.bf16.msra.mxu0 0
    %467 = vmatprep.subr.bf16.mxu0 0
    %468 = vmatpush1.bf16.msra.mxu0 %v48
    %469 = vmatprep.subr.bf16.mxu0 0
    %470 = vmatpush2.bf16.msra.mxu0 0
    %471 = vmatprep.subr.bf16.mxu0 0
    %472 = vmatpush2.bf16.msra.mxu0 0
    %473 = vmatprep.subr.bf16.mxu0 0
    %474 = vmatpush2.bf16.msra.mxu0 0
    %475 = vmatprep.subr.bf16.mxu0 0
    %476 = vmatpush2.bf16.msra.mxu0 0
    %477 = vmatprep.subr.bf16.mxu0 0
    %478 = vmatpush2.bf16.msra.mxu0 0
    %479 = vmatprep.subr.bf16.mxu0 0
    %480 = vmatpush2.bf16.msra.mxu0 0
    %481 = vmatprep.subr.bf16.mxu0 0
    %482 = vmatpush2.bf16.msra.mxu0 0
    %483 = vmatprep.subr.bf16.mxu0 0
    %484 = vmatpush2.bf16.msra.mxu0 0
    %485 = vmatprep.mubr.bf16.mxu0 0
    %486 = vmatmul.mubr.bf16.gmra.mxu0 %v451
    %v487 = vpop.f32.mrf.mxu0
    %v488 = vadd.f32 %v36, %v487
    %v489 = vpop.f32.mrf.mxu0
    %v490 = vpop.f32.mrf.mxu0
    %v491 = vpop.f32.mrf.mxu0
    %492 = vdwg.mxu0
    %v493 = vtanh.pop %v488
    %v494 = vmul.f32 %v493, %v99
    %v495 = vsel %vm102, %v494, 0.0
    %496 = vadd.xlane.f32.xlu0 %v495
    %v497 = vpop.xlane.xlu0 %496
    %v498 = vsel %vm106, %v497, -inf
    %v499 = vrot.slane %v498, 4
    %v500 = vmax.f32 %v498, %v499
    %v501 = vrot.slane %v500, 2
    %v502 = vmax.f32 %v500, %v501
    %v503 = vrot.slane %v502, 1
    %v504 = vmax.f32 %v502, %v503
    %v505 = vsub.f32 %v497, %v504
    %v506 = vmul.f32 %v505, 1.442695
    %v507 = vpow.pop %v506
    %v508 = vsel %vm106, %v507, 0.0
    %v509 = vrot.slane %v508, 4
    %v510 = vadd.f32 %v508, %v509
    %v511 = vrot.slane %v510, 2
    %v512 = vadd.f32 %v510, %v511
    %v513 = vrot.slane %v512, 1
    %v514 = vadd.f32 %v512, %v513
    %v515 = vrcp.pop %v514
    %v516 = vmul.f32 %v507, %v515
    %v517 = vmul.f32 %v448, %v516
    %v518 = vsel %vm127, %v517, 0.0
    %v519 = vrot.slane %v518, 4
    %v520 = vadd.f32 %v518, %v519
    %v521 = vrot.slane %v520, 2
    %v522 = vadd.f32 %v520, %v521
    %v523 = vrot.slane %v522, 1
    %v524 = vadd.f32 %v522, %v523
    %s525 = scalar_lea.vmem %s0, 24
    %v526 = vld [vmem:[%s525] sm:$0xf]
    %v527 = vpack.c.bf16 %v526, %v526
    %v529 = vsel %vm50, %v527, 0
    %531 = vmatprep.subr.bf16.mxu0 0
    %532 = vmatpush1.bf16.msra.mxu0 0
    %533 = vmatprep.subr.bf16.mxu0 0
    %534 = vmatpush1.bf16.msra.mxu0 0
    %535 = vmatprep.subr.bf16.mxu0 0
    %536 = vmatpush1.bf16.msra.mxu0 0
    %537 = vmatprep.subr.bf16.mxu0 0
    %538 = vmatpush1.bf16.msra.mxu0 0
    %539 = vmatprep.subr.bf16.mxu0 0
    %540 = vmatpush1.bf16.msra.mxu0 0
    %541 = vmatprep.subr.bf16.mxu0 0
    %542 = vmatpush1.bf16.msra.mxu0 0
    %543 = vmatprep.subr.bf16.mxu0 0
    %544 = vmatpush1.bf16.msra.mxu0 0
    %545 = vmatprep.subr.bf16.mxu0 0
    %546 = vmatpush1.bf16.msra.mxu0 %v48
    %547 = vmatprep.subr.bf16.mxu0 0
    %548 = vmatpush2.bf16.msra.mxu0 0
    %549 = vmatprep.subr.bf16.mxu0 0
    %550 = vmatpush2.bf16.msra.mxu0 0
    %551 = vmatprep.subr.bf16.mxu0 0
    %552 = vmatpush2.bf16.msra.mxu0 0
    %553 = vmatprep.subr.bf16.mxu0 0
    %554 = vmatpush2.bf16.msra.mxu0 0
    %555 = vmatprep.subr.bf16.mxu0 0
    %556 = vmatpush2.bf16.msra.mxu0 0
    %557 = vmatprep.subr.bf16.mxu0 0
    %558 = vmatpush2.bf16.msra.mxu0 0
    %559 = vmatprep.subr.bf16.mxu0 0
    %560 = vmatpush2.bf16.msra.mxu0 0
    %561 = vmatprep.subr.bf16.mxu0 0
    %562 = vmatpush2.bf16.msra.mxu0 0
    %563 = vmatprep.mubr.bf16.mxu0 0
    %564 = vmatmul.mubr.bf16.gmra.mxu0 %v529
    %v565 = vpop.f32.mrf.mxu0
    %v566 = vadd.f32 %v36, %v565
    %v567 = vpop.f32.mrf.mxu0
    %v568 = vpop.f32.mrf.mxu0
    %v569 = vpop.f32.mrf.mxu0
    %570 = vdwg.mxu0
    %v571 = vtanh.pop %v566
    %v572 = vmul.f32 %v571, %v99
    %v573 = vsel %vm102, %v572, 0.0
    %574 = vadd.xlane.f32.xlu0 %v573
    %v575 = vpop.xlane.xlu0 %574
    %v576 = vsel %vm106, %v575, -inf
    %v577 = vrot.slane %v576, 4
    %v578 = vmax.f32 %v576, %v577
    %v579 = vrot.slane %v578, 2
    %v580 = vmax.f32 %v578, %v579
    %v581 = vrot.slane %v580, 1
    %v582 = vmax.f32 %v580, %v581
    %v583 = vsub.f32 %v575, %v582
    %v584 = vmul.f32 %v583, 1.442695
    %v585 = vpow.pop %v584
    %v586 = vsel %vm106, %v585, 0.0
    %v587 = vrot.slane %v586, 4
    %v588 = vadd.f32 %v586, %v587
    %v589 = vrot.slane %v588, 2
    %v590 = vadd.f32 %v588, %v589
    %v591 = vrot.slane %v590, 1
    %v592 = vadd.f32 %v590, %v591
    %v593 = vrcp.pop %v592
    %v594 = vmul.f32 %v585, %v593
    %v595 = vmul.f32 %v526, %v594
    %v596 = vsel %vm127, %v595, 0.0
    %v597 = vrot.slane %v596, 4
    %v598 = vadd.f32 %v596, %v597
    %v599 = vrot.slane %v598, 2
    %v600 = vadd.f32 %v598, %v599
    %v601 = vrot.slane %v600, 1
    %v602 = vadd.f32 %v600, %v601
    %s603 = scalar_lea.vmem %s0, 28
    %v604 = vld [vmem:[%s603] sm:$0xf]
    %v605 = vpack.c.bf16 %v604, %v604
    %v607 = vsel %vm50, %v605, 0
    %609 = vmatprep.subr.bf16.mxu0 0
    %610 = vmatpush1.bf16.msra.mxu0 0
    %611 = vmatprep.subr.bf16.mxu0 0
    %612 = vmatpush1.bf16.msra.mxu0 0
    %613 = vmatprep.subr.bf16.mxu0 0
    %614 = vmatpush1.bf16.msra.mxu0 0
    %615 = vmatprep.subr.bf16.mxu0 0
    %616 = vmatpush1.bf16.msra.mxu0 0
    %617 = vmatprep.subr.bf16.mxu0 0
    %618 = vmatpush1.bf16.msra.mxu0 0
    %619 = vmatprep.subr.bf16.mxu0 0
    %620 = vmatpush1.bf16.msra.mxu0 0
    %621 = vmatprep.subr.bf16.mxu0 0
    %622 = vmatpush1.bf16.msra.mxu0 0
    %623 = vmatprep.subr.bf16.mxu0 0
    %624 = vmatpush1.bf16.msra.mxu0 %v48
    %625 = vmatprep.subr.bf16.mxu0 0
    %626 = vmatpush2.bf16.msra.mxu0 0
    %627 = vmatprep.subr.bf16.mxu0 0
    %628 = vmatpush2.bf16.msra.mxu0 0
    %629 = vmatprep.subr.bf16.mxu0 0
    %630 = vmatpush2.bf16.msra.mxu0 0
    %631 = vmatprep.subr.bf16.mxu0 0
    %632 = vmatpush2.bf16.msra.mxu0 0
    %633 = vmatprep.subr.bf16.mxu0 0
    %634 = vmatpush2.bf16.msra.mxu0 0
    %635 = vmatprep.subr.bf16.mxu0 0
    %636 = vmatpush2.bf16.msra.mxu0 0
    %637 = vmatprep.subr.bf16.mxu0 0
    %638 = vmatpush2.bf16.msra.mxu0 0
    %639 = vmatprep.subr.bf16.mxu0 0
    %640 = vmatpush2.bf16.msra.mxu0 0
    %641 = vmatprep.mubr.bf16.mxu0 0
    %642 = vmatmul.mubr.bf16.gmra.mxu0 %v607
    %v643 = vpop.f32.mrf.mxu0
    %v644 = vadd.f32 %v36, %v643
    %v645 = vpop.f32.mrf.mxu0
    %v646 = vpop.f32.mrf.mxu0
    %v647 = vpop.f32.mrf.mxu0
    %648 = vdwg.mxu0
    %v649 = vtanh.pop %v644
    %v650 = vmul.f32 %v649, %v99
    %v651 = vsel %vm102, %v650, 0.0
    %652 = vadd.xlane.f32.xlu0 %v651
    %v653 = vpop.xlane.xlu0 %652
    %v654 = vsel %vm106, %v653, -inf
    %v655 = vrot.slane %v654, 4
    %v656 = vmax.f32 %v654, %v655
    %v657 = vrot.slane %v656, 2
    %v658 = vmax.f32 %v656, %v657
    %v659 = vrot.slane %v658, 1
    %v660 = vmax.f32 %v658, %v659
    %v661 = vsub.f32 %v653, %v660
    %v662 = vmul.f32 %v661, 1.442695
    %v663 = vpow.pop %v662
    %v664 = vsel %vm106, %v663, 0.0
    %v665 = vrot.slane %v664, 4
    %v666 = vadd.f32 %v664, %v665
    %v667 = vrot.slane %v666, 2
    %v668 = vadd.f32 %v666, %v667
    %v669 = vrot.slane %v668, 1
    %v670 = vadd.f32 %v668, %v669
    %v671 = vrcp.pop %v670
    %v672 = vmul.f32 %v663, %v671
    %v673 = vmul.f32 %v604, %v672
    %v674 = vsel %vm127, %v673, 0.0
    %v675 = vrot.slane %v674, 4
    %v676 = vadd.f32 %v674, %v675
    %v677 = vrot.slane %v676, 2
    %v678 = vadd.f32 %v676, %v677
    %v679 = vrot.slane %v678, 1
    %v680 = vadd.f32 %v678, %v679
    %vm681 = vcmask 1040384
    %v682 = vsel %vm681, %v134, %v212
    %vm683 = vcmask 1041408
    %v684 = vsel %vm683, %v682, %v290
    %vm685 = vcmask 1042432
    %v686 = vsel %vm685, %v684, %v368
    %v687 = vsel %vm106, %v686, %v446
    %vm688 = vcmask 1044480
    %v689 = vsel %vm688, %v687, %v524
    %vm690 = vcmask 1045504
    %v691 = vsel %vm690, %v689, %v602
    %vm692 = vcmask 1046528
    %v693 = vsel %vm692, %v691, %v680
    %v694 = vpack.c.bf16 %v693, %v693
    %v697 = vunpack.c.l.b16 %v38
    %v698 = vunpack.c.l.b16 %v39
    %v699 = vpack.c.b16 %v698, %v697
    %v702 = vsel %vm50, %v694, 0
    %704 = vmatprep.subr.bf16.mxu0 0
    %705 = vmatpush1.bf16.msra.mxu0 0
    %706 = vmatprep.subr.bf16.mxu0 0
    %707 = vmatpush1.bf16.msra.mxu0 0
    %708 = vmatprep.subr.bf16.mxu0 0
    %709 = vmatpush1.bf16.msra.mxu0 0
    %710 = vmatprep.subr.bf16.mxu0 0
    %711 = vmatpush1.bf16.msra.mxu0 0
    %712 = vmatprep.subr.bf16.mxu0 0
    %713 = vmatpush1.bf16.msra.mxu0 0
    %714 = vmatprep.subr.bf16.mxu0 0
    %715 = vmatpush1.bf16.msra.mxu0 0
    %716 = vmatprep.subr.bf16.mxu0 0
    %717 = vmatpush1.bf16.msra.mxu0 0
    %718 = vmatprep.subr.bf16.mxu0 0
    %719 = vmatpush1.bf16.msra.mxu0 %v699
    %720 = vmatprep.subr.bf16.mxu0 0
    %721 = vmatpush2.bf16.msra.mxu0 0
    %722 = vmatprep.subr.bf16.mxu0 0
    %723 = vmatpush2.bf16.msra.mxu0 0
    %724 = vmatprep.subr.bf16.mxu0 0
    %725 = vmatpush2.bf16.msra.mxu0 0
    %726 = vmatprep.subr.bf16.mxu0 0
    %727 = vmatpush2.bf16.msra.mxu0 0
    %728 = vmatprep.subr.bf16.mxu0 0
    %729 = vmatpush2.bf16.msra.mxu0 0
    %730 = vmatprep.subr.bf16.mxu0 0
    %731 = vmatpush2.bf16.msra.mxu0 0
    %732 = vmatprep.subr.bf16.mxu0 0
    %733 = vmatpush2.bf16.msra.mxu0 0
    %734 = vmatprep.subr.bf16.mxu0 0
    %735 = vmatpush2.bf16.msra.mxu0 0
    %736 = vmatprep.mubr.bf16.mxu0 0
    %737 = vmatmul.mubr.bf16.gmra.mxu0 %v702
    %v738 = vpop.f32.mrf.mxu0
    %v739 = vadd.f32 %v40, %v738
    %v740 = vpop.f32.mrf.mxu0
    %v741 = vpop.f32.mrf.mxu0
    %v742 = vpop.f32.mrf.mxu0
    %743 = vdwg.mxu0
    %v744 = vtanh.pop %v739
    %v746 = vlaneseq
    %v747 = vshrl.u32 %v746, 7
    %v748 = vsub.s32 0, %v747
    %v749 = vrot.slane %v41, %v748
    %v751 = vmul.f32 %v744, %v749
    %v752 = vsel %vm102, %v751, 0.0
    %753 = vadd.xlane.f32.xlu0 %v752
    %v754 = vpop.xlane.xlu0 %753
    %v755 = vsel %vm106, %v754, -inf
    %v756 = vrot.slane %v755, 4
    %v757 = vmax.f32 %v755, %v756
    %v758 = vrot.slane %v757, 2
    %v759 = vmax.f32 %v757, %v758
    %v760 = vrot.slane %v759, 1
    %v761 = vmax.f32 %v759, %v760
    %v762 = vsub.f32 %v754, %v761
    %v763 = vmul.f32 %v762, 1.442695
    %v764 = vpow.pop %v763
    %v765 = vsel %vm106, %v764, 0.0
    %v766 = vrot.slane %v765, 4
    %v767 = vadd.f32 %v765, %v766
    %v768 = vrot.slane %v767, 2
    %v769 = vadd.f32 %v767, %v768
    %v770 = vrot.slane %v769, 1
    %v771 = vadd.f32 %v769, %v770
    %v772 = vrcp.pop %v771
    %v773 = vmul.f32 %v764, %v772
    %v774 = vmul.f32 %v693, %v773
    %v775 = vsel %vm127, %v774, 0.0
    %v776 = vrot.slane %v775, 4
    %v777 = vadd.f32 %v775, %v776
    %v778 = vrot.slane %v777, 2
    %v779 = vadd.f32 %v777, %v778
    %v780 = vrot.slane %v779, 1
    %v781 = vadd.f32 %v779, %v780
    %v783 = vrot.slane %v694, 2
    %v785 = vsel %vm50, %v783, 0
    %787 = vmatprep.subr.bf16.mxu0 0
    %788 = vmatpush1.bf16.msra.mxu0 0
    %789 = vmatprep.subr.bf16.mxu0 0
    %790 = vmatpush1.bf16.msra.mxu0 0
    %791 = vmatprep.subr.bf16.mxu0 0
    %792 = vmatpush1.bf16.msra.mxu0 0
    %793 = vmatprep.subr.bf16.mxu0 0
    %794 = vmatpush1.bf16.msra.mxu0 0
    %795 = vmatprep.subr.bf16.mxu0 0
    %796 = vmatpush1.bf16.msra.mxu0 0
    %797 = vmatprep.subr.bf16.mxu0 0
    %798 = vmatpush1.bf16.msra.mxu0 0
    %799 = vmatprep.subr.bf16.mxu0 0
    %800 = vmatpush1.bf16.msra.mxu0 0
    %801 = vmatprep.subr.bf16.mxu0 0
    %802 = vmatpush1.bf16.msra.mxu0 %v699
    %803 = vmatprep.subr.bf16.mxu0 0
    %804 = vmatpush2.bf16.msra.mxu0 0
    %805 = vmatprep.subr.bf16.mxu0 0
    %806 = vmatpush2.bf16.msra.mxu0 0
    %807 = vmatprep.subr.bf16.mxu0 0
    %808 = vmatpush2.bf16.msra.mxu0 0
    %809 = vmatprep.subr.bf16.mxu0 0
    %810 = vmatpush2.bf16.msra.mxu0 0
    %811 = vmatprep.subr.bf16.mxu0 0
    %812 = vmatpush2.bf16.msra.mxu0 0
    %813 = vmatprep.subr.bf16.mxu0 0
    %814 = vmatpush2.bf16.msra.mxu0 0
    %815 = vmatprep.subr.bf16.mxu0 0
    %816 = vmatpush2.bf16.msra.mxu0 0
    %817 = vmatprep.subr.bf16.mxu0 0
    %818 = vmatpush2.bf16.msra.mxu0 0
    %819 = vmatprep.mubr.bf16.mxu0 0
    %820 = vmatmul.mubr.bf16.gmra.mxu0 %v785
    %v821 = vpop.f32.mrf.mxu0
    %v822 = vadd.f32 %v40, %v821
    %v823 = vpop.f32.mrf.mxu0
    %v824 = vpop.f32.mrf.mxu0
    %v825 = vpop.f32.mrf.mxu0
    %826 = vdwg.mxu0
    %v827 = vtanh.pop %v822
    %v828 = vmul.f32 %v827, %v749
    %v829 = vsel %vm102, %v828, 0.0
    %830 = vadd.xlane.f32.xlu0 %v829
    %v831 = vpop.xlane.xlu0 %830
    %v832 = vsel %vm106, %v831, -inf
    %v833 = vrot.slane %v832, 4
    %v834 = vmax.f32 %v832, %v833
    %v835 = vrot.slane %v834, 2
    %v836 = vmax.f32 %v834, %v835
    %v837 = vrot.slane %v836, 1
    %v838 = vmax.f32 %v836, %v837
    %v839 = vsub.f32 %v831, %v838
    %v840 = vmul.f32 %v839, 1.442695
    %v841 = vpow.pop %v840
    %v842 = vsel %vm106, %v841, 0.0
    %v843 = vrot.slane %v842, 4
    %v844 = vadd.f32 %v842, %v843
    %v845 = vrot.slane %v844, 2
    %v846 = vadd.f32 %v844, %v845
    %v847 = vrot.slane %v846, 1
    %v848 = vadd.f32 %v846, %v847
    %v849 = vrcp.pop %v848
    %v850 = vmul.f32 %v841, %v849
    %v852 = vrot.slane %v850, 4
    %v854 = vmul.f32 %v693, %v852
    %v856 = vrot.slane %v854, 4
    %v858 = vsel %vm127, %v856, 0.0
    %v859 = vrot.slane %v858, 4
    %v860 = vadd.f32 %v858, %v859
    %v861 = vrot.slane %v860, 2
    %v862 = vadd.f32 %v860, %v861
    %v863 = vrot.slane %v862, 1
    %v864 = vadd.f32 %v862, %v863
    %v865 = vsel %vm681, %v781, %v864
    %v866 = vld [vmem:[%s7] sm:$0xff]
    %v867 = vld [vmem:[%s7 + $0x8] sm:$0xff]
    %v868 = vld [vmem:[%s8] sm:$0x1]
    %v870 = vlaneseq
    %v871 = vshrl.u32 %v870, 7
    %v872 = vsub.s32 0, %v871
    %v873 = vrot.slane %v868, %v872
    %v876 = vsel %vm50, %v865, 0
    %878 = vmatprep.subr.mxu0 0.0
    %879 = vmatpush1.msra.mxu0 0.0
    %880 = vmatprep.subr.mxu0 0.0
    %881 = vmatpush1.msra.mxu0 0.0
    %882 = vmatprep.subr.mxu0 0.0
    %883 = vmatpush1.msra.mxu0 0.0
    %884 = vmatprep.subr.mxu0 0.0
    %885 = vmatpush1.msra.mxu0 0.0
    %886 = vmatprep.subr.mxu0 0.0
    %887 = vmatpush1.msra.mxu0 0.0
    %888 = vmatprep.subr.mxu0 0.0
    %889 = vmatpush1.msra.mxu0 0.0
    %890 = vmatprep.subr.mxu0 0.0
    %891 = vmatpush1.msra.mxu0 0.0
    %892 = vmatprep.subr.mxu0 0.0
    %893 = vmatpush1.msra.mxu0 0.0
    %894 = vmatprep.subr.mxu0 0.0
    %895 = vmatpush1.msra.mxu0 0.0
    %896 = vmatprep.subr.mxu0 0.0
    %897 = vmatpush1.msra.mxu0 0.0
    %898 = vmatprep.subr.mxu0 0.0
    %899 = vmatpush1.msra.mxu0 0.0
    %900 = vmatprep.subr.mxu0 0.0
    %901 = vmatpush1.msra.mxu0 0.0
    %902 = vmatprep.subr.mxu0 0.0
    %903 = vmatpush1.msra.mxu0 0.0
    %904 = vmatprep.subr.mxu0 0.0
    %905 = vmatpush1.msra.mxu0 0.0
    %906 = vmatprep.subr.mxu0 0.0
    %907 = vmatpush1.msra.mxu0 %v867
    %908 = vmatprep.subr.mxu0 0.0
    %909 = vmatpush1.msra.mxu0 %v866
    %910 = vmatprep.subr.mxu0 0.0
    %911 = vmatpush2.msra.mxu0 0.0
    %912 = vmatprep.subr.mxu0 0.0
    %913 = vmatpush2.msra.mxu0 0.0
    %914 = vmatprep.subr.mxu0 0.0
    %915 = vmatpush2.msra.mxu0 0.0
    %916 = vmatprep.subr.mxu0 0.0
    %917 = vmatpush2.msra.mxu0 0.0
    %918 = vmatprep.subr.mxu0 0.0
    %919 = vmatpush2.msra.mxu0 0.0
    %920 = vmatprep.subr.mxu0 0.0
    %921 = vmatpush2.msra.mxu0 0.0
    %922 = vmatprep.subr.mxu0 0.0
    %923 = vmatpush2.msra.mxu0 0.0
    %924 = vmatprep.subr.mxu0 0.0
    %925 = vmatpush2.msra.mxu0 0.0
    %926 = vmatprep.subr.mxu0 0.0
    %927 = vmatpush2.msra.mxu0 0.0
    %928 = vmatprep.subr.mxu0 0.0
    %929 = vmatpush2.msra.mxu0 0.0
    %930 = vmatprep.subr.mxu0 0.0
    %931 = vmatpush2.msra.mxu0 0.0
    %932 = vmatprep.subr.mxu0 0.0
    %933 = vmatpush2.msra.mxu0 0.0
    %934 = vmatprep.subr.mxu0 0.0
    %935 = vmatpush2.msra.mxu0 0.0
    %936 = vmatprep.subr.mxu0 0.0
    %937 = vmatpush2.msra.mxu0 0.0
    %938 = vmatprep.subr.mxu0 0.0
    %939 = vmatpush2.msra.mxu0 0.0
    %940 = vmatprep.subr.mxu0 0.0
    %941 = vmatpush2.msra.mxu0 0.0
    %942 = vmatprep.mubr.f32.mxu0 0.0
    %943 = vmatmul.mubr.f32.gmra.mxu0 %v876
    %v944 = vpop.f32.mrf.mxu0
    %v945 = vadd.f32 %v873, %v944
    %v946 = vpop.f32.mrf.mxu0
    %947 = vdwg.mxu0
    %vm948 = vcmask 33792
    %949 = vst.msk [vmem:[#allocation2] sm:$0x3] %vm948, %v945
    // Predicated region
    $region38: #{_lambda_.13} parent=1 // pred_check
      _
    $region39: #{_lambda_.13} parent=1 // pred_check_branch
      %951 = sbr.rel (0) target = $region41
    $region40: #{_lambda_.13} parent=1 // pred_region
      %s953 = ssub.s32 32, 32
      %954 = vsyncadd [#allocation3], %s953
      %s956 = sshll.u32 [#allocation2], 4
      %s957 = int_to_ptr.vmem [resolvable:$true] %s956
      %959 = dma.vmem_to_hbm [thread:$0]  %s957, 32, %s9, [#allocation3]
    $region41: #{_lambda_.13} parent=1 // pred_fallthru
      _
    // Predicated region
    $region42: #{_lambda_.13} parent=1 // pred_check
      _
    $region43: #{_lambda_.13} parent=1 // pred_check_branch
      %961 = sbr.rel (0) target = $region45
    $region44: #{_lambda_.13} parent=1 // pred_region
      %962 = dma.done [#allocation3], 32
    $region45: #{_lambda_.13} parent=1 // pred_fallthru
      _
    %963 = vsyncpa [#allocation3], 1

// kernel: _lambda_.12
$region0: #{_lambda_.12}
  #allocation0 [shape = 'u32[]', space=smem, size = 0x4, offset = 0x4, fixed_abs, tag = 'smem constant byte address 0x4 - core index']
  #allocation1 [shape = 'u32[144,128]{1,0:T(1,128)}', space=vmem, size = 0x12000, scoped, tag = 'internal scratch']
  %s0 = inlined_call_operand.vmem [shape: f32[8,256], index: 0, kind: input, shape index: {}]
  %s1 = inlined_call_operand.vmem [shape: f32[8,32], index: 1, kind: input, shape index: {}]
  %s2 = inlined_call_operand.vmem [shape: f32[8,32], index: 2, kind: input, shape index: {}]
  %s3 = inlined_call_operand.vmem [shape: f32[8,64], index: 3, kind: output, shape index: {}]
  %s4 = sld [smem:[#allocation0]]
  $region22: #{_lambda_.12} parent=0
    _
  %s6 = ssub.s32 1, %s4
  %s7 = scalar_select 0, %s6, %s4
  // Predicated region
  $region2: #{_lambda_.12} parent=0 // pred_check
    _
  $region3: #{_lambda_.12} parent=0 // pred_check_branch
    %9 = sbr.rel (0) target = $region5
  $region4: #{_lambda_.12} parent=0 // pred_region
    _
  $region5: #{_lambda_.12} parent=0 // pred_fallthru
    _
  // Predicated region
  $region6: #{_lambda_.12} parent=0 // pred_check
    _
  $region7: #{_lambda_.12} parent=0 // pred_check_branch
    %11 = sbr.rel (0) target = $region9
  $region8: #{_lambda_.12} parent=0 // pred_region
    _
  $region9: #{_lambda_.12} parent=0 // pred_fallthru
    _
  // Predicated region
  $region10: #{_lambda_.12} parent=0 // pred_check
    _
  $region11: #{_lambda_.12} parent=0 // pred_check_branch
    %13 = sbr.rel (0) target = $region13
  $region12: #{_lambda_.12} parent=0 // pred_region
    _
  $region13: #{_lambda_.12} parent=0 // pred_fallthru
    _
  %v14 = vld [vmem:[%s0] sm:$0xff]
  %v15 = vld [vmem:[%s0 + $0x8] sm:$0xff]
  %v16 = vld [vmem:[%s1] sm:$0xff]
  %v17 = vld [vmem:[%s2] sm:$0xff]
  %vm18 = vcmask 64512
  %v20 = vsel %vm18, 0.0, 0
  %22 = vmatprep.subr.mxu0 0.0
  %23 = vmatpush1.msra.mxu0 0.0
  %24 = vmatprep.subr.mxu0 0.0
  %25 = vmatpush1.msra.mxu0 0.0
  %26 = vmatprep.subr.mxu0 0.0
  %27 = vmatpush1.msra.mxu0 0.0
  %28 = vmatprep.subr.mxu0 0.0
  %29 = vmatpush1.msra.mxu0 0.0
  %30 = vmatprep.subr.mxu0 0.0
  %31 = vmatpush1.msra.mxu0 0.0
  %32 = vmatprep.subr.mxu0 0.0
  %33 = vmatpush1.msra.mxu0 0.0
  %34 = vmatprep.subr.mxu0 0.0
  %35 = vmatpush1.msra.mxu0 0.0
  %36 = vmatprep.subr.mxu0 0.0
  %37 = vmatpush1.msra.mxu0 0.0
  %38 = vmatprep.subr.mxu0 0.0
  %39 = vmatpush1.msra.mxu0 0.0
  %40 = vmatprep.subr.mxu0 0.0
  %41 = vmatpush1.msra.mxu0 0.0
  %42 = vmatprep.subr.mxu0 0.0
  %43 = vmatpush1.msra.mxu0 0.0
  %44 = vmatprep.subr.mxu0 0.0
  %45 = vmatpush1.msra.mxu0 0.0
  %46 = vmatprep.subr.mxu0 0.0
  %47 = vmatpush1.msra.mxu0 0.0
  %48 = vmatprep.subr.mxu0 0.0
  %49 = vmatpush1.msra.mxu0 0.0
  %50 = vmatprep.subr.mxu0 0.0
  %51 = vmatpush1.msra.mxu0 0.0
  %52 = vmatprep.subr.mxu0 0.0
  %53 = vmatpush1.msra.mxu0 %v16
  %54 = vmatprep.subr.mxu0 0.0
  %55 = vmatpush2.msra.mxu0 0.0
  %56 = vmatprep.subr.mxu0 0.0
  %57 = vmatpush2.msra.mxu0 0.0
  %58 = vmatprep.subr.mxu0 0.0
  %59 = vmatpush2.msra.mxu0 0.0
  %60 = vmatprep.subr.mxu0 0.0
  %61 = vmatpush2.msra.mxu0 0.0
  %62 = vmatprep.subr.mxu0 0.0
  %63 = vmatpush2.msra.mxu0 0.0
  %64 = vmatprep.subr.mxu0 0.0
  %65 = vmatpush2.msra.mxu0 0.0
  %66 = vmatprep.subr.mxu0 0.0
  %67 = vmatpush2.msra.mxu0 0.0
  %68 = vmatprep.subr.mxu0 0.0
  %69 = vmatpush2.msra.mxu0 0.0
  %70 = vmatprep.subr.mxu0 0.0
  %71 = vmatpush2.msra.mxu0 0.0
  %72 = vmatprep.subr.mxu0 0.0
  %73 = vmatpush2.msra.mxu0 0.0
  %74 = vmatprep.subr.mxu0 0.0
  %75 = vmatpush2.msra.mxu0 0.0
  %76 = vmatprep.subr.mxu0 0.0
  %77 = vmatpush2.msra.mxu0 0.0
  %78 = vmatprep.subr.mxu0 0.0
  %79 = vmatpush2.msra.mxu0 0.0
  %80 = vmatprep.subr.mxu0 0.0
  %81 = vmatpush2.msra.mxu0 0.0
  %82 = vmatprep.subr.mxu0 0.0
  %83 = vmatpush2.msra.mxu0 0.0
  %84 = vmatprep.subr.mxu0 0.0
  %85 = vmatpush2.msra.mxu0 0.0
  %86 = vmatprep.mubr.f32.mxu0 0.0
  %87 = vmatmul.mubr.f32.gmra.mxu0 %v20
  %v88 = vpop.f32.mrf.mxu0
  %v89 = vadd.f32 0.0, %v88
  %v90 = vpop.f32.mrf.mxu0
  %91 = vdwg.mxu0
  %v92 = vadd.f32 %v14, %v89
  %93 = vmatprep.subr.mxu0 0.0
  %94 = vmatpush1.msra.mxu0 0.0
  %95 = vmatprep.subr.mxu0 0.0
  %96 = vmatpush1.msra.mxu0 0.0
  %97 = vmatprep.subr.mxu0 0.0
  %98 = vmatpush1.msra.mxu0 0.0
  %99 = vmatprep.subr.mxu0 0.0
  %100 = vmatpush1.msra.mxu0 0.0
  %101 = vmatprep.subr.mxu0 0.0
  %102 = vmatpush1.msra.mxu0 0.0
  %103 = vmatprep.subr.mxu0 0.0
  %104 = vmatpush1.msra.mxu0 0.0
  %105 = vmatprep.subr.mxu0 0.0
  %106 = vmatpush1.msra.mxu0 0.0
  %107 = vmatprep.subr.mxu0 0.0
  %108 = vmatpush1.msra.mxu0 0.0
  %109 = vmatprep.subr.mxu0 0.0
  %110 = vmatpush1.msra.mxu0 0.0
  %111 = vmatprep.subr.mxu0 0.0
  %112 = vmatpush1.msra.mxu0 0.0
  %113 = vmatprep.subr.mxu0 0.0
  %114 = vmatpush1.msra.mxu0 0.0
  %115 = vmatprep.subr.mxu0 0.0
  %116 = vmatpush1.msra.mxu0 0.0
  %117 = vmatprep.subr.mxu0 0.0
  %118 = vmatpush1.msra.mxu0 0.0
  %119 = vmatprep.subr.mxu0 0.0
  %120 = vmatpush1.msra.mxu0 0.0
  %121 = vmatprep.subr.mxu0 0.0
  %122 = vmatpush1.msra.mxu0 0.0
  %123 = vmatprep.subr.mxu0 0.0
  %124 = vmatpush1.msra.mxu0 %v17
  %125 = vmatprep.subr.mxu0 0.0
  %126 = vmatpush2.msra.mxu0 0.0
  %127 = vmatprep.subr.mxu0 0.0
  %128 = vmatpush2.msra.mxu0 0.0
  %129 = vmatprep.subr.mxu0 0.0
  %130 = vmatpush2.msra.mxu0 0.0
  %131 = vmatprep.subr.mxu0 0.0
  %132 = vmatpush2.msra.mxu0 0.0
  %133 = vmatprep.subr.mxu0 0.0
  %134 = vmatpush2.msra.mxu0 0.0
  %135 = vmatprep.subr.mxu0 0.0
  %136 = vmatpush2.msra.mxu0 0.0
  %137 = vmatprep.subr.mxu0 0.0
  %138 = vmatpush2.msra.mxu0 0.0
  %139 = vmatprep.subr.mxu0 0.0
  %140 = vmatpush2.msra.mxu0 0.0
  %141 = vmatprep.subr.mxu0 0.0
  %142 = vmatpush2.msra.mxu0 0.0
  %143 = vmatprep.subr.mxu0 0.0
  %144 = vmatpush2.msra.mxu0 0.0
  %145 = vmatprep.subr.mxu0 0.0
  %146 = vmatpush2.msra.mxu0 0.0
  %147 = vmatprep.subr.mxu0 0.0
  %148 = vmatpush2.msra.mxu0 0.0
  %149 = vmatprep.subr.mxu0 0.0
  %150 = vmatpush2.msra.mxu0 0.0
  %151 = vmatprep.subr.mxu0 0.0
  %152 = vmatpush2.msra.mxu0 0.0
  %153 = vmatprep.subr.mxu0 0.0
  %154 = vmatpush2.msra.mxu0 0.0
  %155 = vmatprep.subr.mxu0 0.0
  %156 = vmatpush2.msra.mxu0 0.0
  %157 = vmatprep.mubr.f32.mxu0 0.0
  %158 = vmatmul.mubr.f32.gmra.mxu0 %v20
  %v159 = vpop.f32.mrf.mxu0
  %v160 = vadd.f32 0.0, %v159
  %v161 = vpop.f32.mrf.mxu0
  %162 = vdwg.mxu0
  %164 = vrot.lane.b32.xlu0 %v160, 96
  %v165 = vpop.permute.xlu0 %164
  %v167 = vadd.f32 %v15, %v165
  %v168 = vxor.u32 %v92, 2147483648
  %v169 = vmul.f32 %v168, 1.442695
  %v170 = vpow.pop %v169
  %v171 = vadd.f32 %v170, 1.0
  %v172 = vrcp.pop %v171
  %v173 = vmul.f32 1.0, %v172
  %v174 = vtanh.pop %v92
  %v175 = vmul.f32 %v173, 0.0
  %177 = vrot.lane.b32.xlu0 %v174, 112
  %v178 = vpop.permute.xlu0 %177
  %v180 = vmul.f32 %v173, %v178
  %182 = vrot.lane.b32.xlu0 %v180, 8
  %v183 = vpop.permute.xlu0 %182
  %v185 = vadd.f32 %v175, %v183
  %v186 = vtanh.pop %v185
  %188 = vrot.lane.b32.xlu0 %v186, 16
  %v189 = vpop.permute.xlu0 %188
  %v191 = vmul.f32 %v173, %v189
  %v192 = vxor.u32 %v167, 2147483648
  %v193 = vmul.f32 %v192, 1.442695
  %v194 = vpow.pop %v193
  %v195 = vadd.f32 %v194, 1.0
  %v196 = vrcp.pop %v195
  %v197 = vmul.f32 1.0, %v196
  %v198 = vtanh.pop %v167
  %v199 = vmul.f32 %v197, 0.0
  %201 = vrot.lane.b32.xlu0 %v198, 112
  %v202 = vpop.permute.xlu0 %201
  %v204 = vmul.f32 %v197, %v202
  %206 = vrot.lane.b32.xlu0 %v204, 8
  %v207 = vpop.permute.xlu0 %206
  %v209 = vadd.f32 %v199, %v207
  %v210 = vtanh.pop %v209
  %212 = vrot.lane.b32.xlu0 %v210, 16
  %v213 = vpop.permute.xlu0 %212
  %v215 = vmul.f32 %v197, %v213
  %217 = vrot.lane.b32.xlu0 %v191, 104
  %v218 = vpop.permute.xlu0 %217
  %220 = vst.msk [vmem:[%s3] sm:$0xff] %vm18, %v218
  %222 = vrot.lane.b32.xlu0 %v215, 64
  %v223 = vpop.permute.xlu0 %222
  %vm225 = vcmask 523712
  %226 = vst.msk [vmem:[%s3] sm:$0xff] %vm225, %v223
  %v227 = vsel %vm18, %v218, 0
  %229 = vmatprep.subr.mxu0 0.0
  %230 = vmatpush1.msra.mxu0 0.0
  %231 = vmatprep.subr.mxu0 0.0
  %232 = vmatpush1.msra.mxu0 0.0
  %233 = vmatprep.subr.mxu0 0.0
  %234 = vmatpush1.msra.mxu0 0.0
  %235 = vmatprep.subr.mxu0 0.0
  %236 = vmatpush1.msra.mxu0 0.0
  %237 = vmatprep.subr.mxu0 0.0
  %238 = vmatpush1.msra.mxu0 0.0
  %239 = vmatprep.subr.mxu0 0.0
  %240 = vmatpush1.msra.mxu0 0.0
  %241 = vmatprep.subr.mxu0 0.0
  %242 = vmatpush1.msra.mxu0 0.0
  %243 = vmatprep.subr.mxu0 0.0
  %244 = vmatpush1.msra.mxu0 0.0
  %245 = vmatprep.subr.mxu0 0.0
  %246 = vmatpush1.msra.mxu0 0.0
  %247 = vmatprep.subr.mxu0 0.0
  %248 = vmatpush1.msra.mxu0 0.0
  %249 = vmatprep.subr.mxu0 0.0
  %250 = vmatpush1.msra.mxu0 0.0
  %251 = vmatprep.subr.mxu0 0.0
  %252 = vmatpush1.msra.mxu0 0.0
  %253 = vmatprep.subr.mxu0 0.0
  %254 = vmatpush1.msra.mxu0 0.0
  %255 = vmatprep.subr.mxu0 0.0
  %256 = vmatpush1.msra.mxu0 0.0
  %257 = vmatprep.subr.mxu0 0.0
  %258 = vmatpush1.msra.mxu0 0.0
  %259 = vmatprep.subr.mxu0 0.0
  %260 = vmatpush1.msra.mxu0 %v16
  %261 = vmatprep.subr.mxu0 0.0
  %262 = vmatpush2.msra.mxu0 0.0
  %263 = vmatprep.subr.mxu0 0.0
  %264 = vmatpush2.msra.mxu0 0.0
  %265 = vmatprep.subr.mxu0 0.0
  %266 = vmatpush2.msra.mxu0 0.0
  %267 = vmatprep.subr.mxu0 0.0
  %268 = vmatpush2.msra.mxu0 0.0
  %269 = vmatprep.subr.mxu0 0.0
  %270 = vmatpush2.msra.mxu0 0.0
  %271 = vmatprep.subr.mxu0 0.0
  %272 = vmatpush2.msra.mxu0 0.0
  %273 = vmatprep.subr.mxu0 0.0
  %274 = vmatpush2.msra.mxu0 0.0
  %275 = vmatprep.subr.mxu0 0.0
  %276 = vmatpush2.msra.mxu0 0.0
  %277 = vmatprep.subr.mxu0 0.0
  %278 = vmatpush2.msra.mxu0 0.0
  %279 = vmatprep.subr.mxu0 0.0
  %280 = vmatpush2.msra.mxu0 0.0
  %281 = vmatprep.subr.mxu0 0.0
  %282 = vmatpush2.msra.mxu0 0.0
  %283 = vmatprep.subr.mxu0 0.0
  %284 = vmatpush2.msra.mxu0 0.0
  %285 = vmatprep.subr.mxu0 0.0
  %286 = vmatpush2.msra.mxu0 0.0
  %287 = vmatprep.subr.mxu0 0.0
  %288 = vmatpush2.msra.mxu0 0.0
  %289 = vmatprep.subr.mxu0 0.0
  %290 = vmatpush2.msra.mxu0 0.0
  %291 = vmatprep.subr.mxu0 0.0
  %292 = vmatpush2.msra.mxu0 0.0
  %293 = vmatprep.mubr.f32.mxu0 0.0
  %294 = vmatmul.mubr.f32.gmra.mxu0 %v227
  %v295 = vpop.f32.mrf.mxu0
  %v296 = vadd.f32 0.0, %v295
  %v297 = vpop.f32.mrf.mxu0
  %298 = vdwg.mxu0
  %300 = vrot.lane.b32.xlu0 %v296, 64
  %v301 = vpop.permute.xlu0 %300
  %v303 = vadd.f32 %v14, %v301
  %304 = vrot.lane.b32.xlu0 %v215, 8
  %v305 = vpop.permute.xlu0 %304
  %v306 = vsel %vm18, %v305, 0
  %308 = vmatprep.subr.mxu0 0.0
  %309 = vmatpush1.msra.mxu0 0.0
  %310 = vmatprep.subr.mxu0 0.0
  %311 = vmatpush1.msra.mxu0 0.0
  %312 = vmatprep.subr.mxu0 0.0
  %313 = vmatpush1.msra.mxu0 0.0
  %314 = vmatprep.subr.mxu0 0.0
  %315 = vmatpush1.msra.mxu0 0.0
  %316 = vmatprep.subr.mxu0 0.0
  %317 = vmatpush1.msra.mxu0 0.0
  %318 = vmatprep.subr.mxu0 0.0
  %319 = vmatpush1.msra.mxu0 0.0
  %320 = vmatprep.subr.mxu0 0.0
  %321 = vmatpush1.msra.mxu0 0.0
  %322 = vmatprep.subr.mxu0 0.0
  %323 = vmatpush1.msra.mxu0 0.0
  %324 = vmatprep.subr.mxu0 0.0
  %325 = vmatpush1.msra.mxu0 0.0
  %326 = vmatprep.subr.mxu0 0.0
  %327 = vmatpush1.msra.mxu0 0.0
  %328 = vmatprep.subr.mxu0 0.0
  %329 = vmatpush1.msra.mxu0 0.0
  %330 = vmatprep.subr.mxu0 0.0
  %331 = vmatpush1.msra.mxu0 0.0
  %332 = vmatprep.subr.mxu0 0.0
  %333 = vmatpush1.msra.mxu0 0.0
  %334 = vmatprep.subr.mxu0 0.0
  %335 = vmatpush1.msra.mxu0 0.0
  %336 = vmatprep.subr.mxu0 0.0
  %337 = vmatpush1.msra.mxu0 0.0
  %338 = vmatprep.subr.mxu0 0.0
  %339 = vmatpush1.msra.mxu0 %v17
  %340 = vmatprep.subr.mxu0 0.0
  %341 = vmatpush2.msra.mxu0 0.0
  %342 = vmatprep.subr.mxu0 0.0
  %343 = vmatpush2.msra.mxu0 0.0
  %344 = vmatprep.subr.mxu0 0.0
  %345 = vmatpush2.msra.mxu0 0.0
  %346 = vmatprep.subr.mxu0 0.0
  %347 = vmatpush2.msra.mxu0 0.0
  %348 = vmatprep.subr.mxu0 0.0
  %349 = vmatpush2.msra.mxu0 0.0
  %350 = vmatprep.subr.mxu0 0.0
  %351 = vmatpush2.msra.mxu0 0.0
  %352 = vmatprep.subr.mxu0 0.0
  %353 = vmatpush2.msra.mxu0 0.0
  %354 = vmatprep.subr.mxu0 0.0
  %355 = vmatpush2.msra.mxu0 0.0
  %356 = vmatprep.subr.mxu0 0.0
  %357 = vmatpush2.msra.mxu0 0.0
  %358 = vmatprep.subr.mxu0 0.0
  %359 = vmatpush2.msra.mxu0 0.0
  %360 = vmatprep.subr.mxu0 0.0
  %361 = vmatpush2.msra.mxu0 0.0
  %362 = vmatprep.subr.mxu0 0.0
  %363 = vmatpush2.msra.mxu0 0.0
  %364 = vmatprep.subr.mxu0 0.0
  %365 = vmatpush2.msra.mxu0 0.0
  %366 = vmatprep.subr.mxu0 0.0
  %367 = vmatpush2.msra.mxu0 0.0
  %368 = vmatprep.subr.mxu0 0.0
  %369 = vmatpush2.msra.mxu0 0.0
  %370 = vmatprep.subr.mxu0 0.0
  %371 = vmatpush2.msra.mxu0 0.0
  %372 = vmatprep.mubr.f32.mxu0 0.0
  %373 = vmatmul.mubr.f32.gmra.mxu0 %v306
  %v374 = vpop.f32.mrf.mxu0
  %v375 = vadd.f32 0.0, %v374
  %v376 = vpop.f32.mrf.mxu0
  %377 = vdwg.mxu0
  %379 = vrot.lane.b32.xlu0 %v375, 32
  %v380 = vpop.permute.xlu0 %379
  %v382 = vadd.f32 %v15, %v380
  %v383 = vxor.u32 %v303, 2147483648
  %v384 = vmul.f32 %v383, 1.442695
  %v385 = vpow.pop %v384
  %v386 = vadd.f32 %v385, 1.0
  %v387 = vrcp.pop %v386
  %v388 = vmul.f32 1.0, %v387
  %v389 = vtanh.pop %v303
  %391 = vrot.lane.b32.xlu0 %v185, 64
  %v392 = vpop.permute.xlu0 %391
  %v394 = vmul.f32 %v388, %v392
  %396 = vrot.lane.b32.xlu0 %v389, 112
  %v397 = vpop.permute.xlu0 %396
  %v399 = vmul.f32 %v388, %v397
  %401 = vrot.lane.b32.xlu0 %v399, 8
  %v402 = vpop.permute.xlu0 %401
  %v404 = vadd.f32 %v394, %v402
  %v405 = vtanh.pop %v404
  %407 = vrot.lane.b32.xlu0 %v405, 16
  %v408 = vpop.permute.xlu0 %407
  %v410 = vmul.f32 %v388, %v408
  %v411 = vxor.u32 %v382, 2147483648
  %v412 = vmul.f32 %v411, 1.442695
  %v413 = vpow.pop %v412
  %v414 = vadd.f32 %v413, 1.0
  %v415 = vrcp.pop %v414
  %v416 = vmul.f32 1.0, %v415
  %v417 = vtanh.pop %v382
  %419 = vrot.lane.b32.xlu0 %v209, 64
  %v420 = vpop.permute.xlu0 %419
  %v422 = vmul.f32 %v416, %v420
  %424 = vrot.lane.b32.xlu0 %v417, 112
  %v425 = vpop.permute.xlu0 %424
  %v427 = vmul.f32 %v416, %v425
  %429 = vrot.lane.b32.xlu0 %v427, 8
  %v430 = vpop.permute.xlu0 %429
  %v432 = vadd.f32 %v422, %v430
  %v433 = vtanh.pop %v432
  %435 = vrot.lane.b32.xlu0 %v433, 16
  %v436 = vpop.permute.xlu0 %435
  %v438 = vmul.f32 %v416, %v436
  %440 = vrot.lane.b32.xlu0 %v410, 56
  %v441 = vpop.permute.xlu0 %440
  %vm443 = vcmask 195712
  %444 = vst.msk [vmem:[%s3] sm:$0xff] %vm443, %v441
  %446 = vrot.lane.b32.xlu0 %v438, 112
  %v447 = vpop.permute.xlu0 %446
  %vm449 = vcmask 392512
  %450 = vst.msk [vmem:[%s3] sm:$0xff] %vm449, %v447
  %451 = vrot.lane.b32.xlu0 %v410, 40
  %v452 = vpop.permute.xlu0 %451
  %v453 = vsel %vm18, %v452, 0
  %455 = vmatprep.subr.mxu0 0.0
  %456 = vmatpush1.msra.mxu0 0.0
  %457 = vmatprep.subr.mxu0 0.0
  %458 = vmatpush1.msra.mxu0 0.0
  %459 = vmatprep.subr.mxu0 0.0
  %460 = vmatpush1.msra.mxu0 0.0
  %461 = vmatprep.subr.mxu0 0.0
  %462 = vmatpush1.msra.mxu0 0.0
  %463 = vmatprep.subr.mxu0 0.0
  %464 = vmatpush1.msra.mxu0 0.0
  %465 = vmatprep.subr.mxu0 0.0
  %466 = vmatpush1.msra.mxu0 0.0
  %467 = vmatprep.subr.mxu0 0.0
  %468 = vmatpush1.msra.mxu0 0.0
  %469 = vmatprep.subr.mxu0 0.0
  %470 = vmatpush1.msra.mxu0 0.0
  %471 = vmatprep.subr.mxu0 0.0
  %472 = vmatpush1.msra.mxu0 0.0
  %473 = vmatprep.subr.mxu0 0.0
  %474 = vmatpush1.msra.mxu0 0.0
  %475 = vmatprep.subr.mxu0 0.0
  %476 = vmatpush1.msra.mxu0 0.0
  %477 = vmatprep.subr.mxu0 0.0
  %478 = vmatpush1.msra.mxu0 0.0
  %479 = vmatprep.subr.mxu0 0.0
  %480 = vmatpush1.msra.mxu0 0.0
  %481 = vmatprep.subr.mxu0 0.0
  %482 = vmatpush1.msra.mxu0 0.0
  %483 = vmatprep.subr.mxu0 0.0
  %484 = vmatpush1.msra.mxu0 0.0
  %485 = vmatprep.subr.mxu0 0.0
  %486 = vmatpush1.msra.mxu0 %v16
  %487 = vmatprep.subr.mxu0 0.0
  %488 = vmatpush2.msra.mxu0 0.0
  %489 = vmatprep.subr.mxu0 0.0
  %490 = vmatpush2.msra.mxu0 0.0
  %491 = vmatprep.subr.mxu0 0.0
  %492 = vmatpush2.msra.mxu0 0.0
  %493 = vmatprep.subr.mxu0 0.0
  %494 = vmatpush2.msra.mxu0 0.0
  %495 = vmatprep.subr.mxu0 0.0
  %496 = vmatpush2.msra.mxu0 0.0
  %497 = vmatprep.subr.mxu0 0.0
  %498 = vmatpush2.msra.mxu0 0.0
  %499 = vmatprep.subr.mxu0 0.0
  %500 = vmatpush2.msra.mxu0 0.0
  %501 = vmatprep.subr.mxu0 0.0
  %502 = vmatpush2.msra.mxu0 0.0
  %503 = vmatprep.subr.mxu0 0.0
  %504 = vmatpush2.msra.mxu0 0.0
  %505 = vmatprep.subr.mxu0 0.0
  %506 = vmatpush2.msra.mxu0 0.0
  %507 = vmatprep.subr.mxu0 0.0
  %508 = vmatpush2.msra.mxu0 0.0
  %509 = vmatprep.subr.mxu0 0.0
  %510 = vmatpush2.msra.mxu0 0.0
  %511 = vmatprep.subr.mxu0 0.0
  %512 = vmatpush2.msra.mxu0 0.0
  %513 = vmatprep.subr.mxu0 0.0
  %514 = vmatpush2.msra.mxu0 0.0
  %515 = vmatprep.subr.mxu0 0.0
  %516 = vmatpush2.msra.mxu0 0.0
  %517 = vmatprep.subr.mxu0 0.0
  %518 = vmatpush2.msra.mxu0 0.0
  %519 = vmatprep.mubr.f32.mxu0 0.0
  %520 = vmatmul.mubr.f32.gmra.mxu0 %v453
  %v521 = vpop.f32.mrf.mxu0
  %v522 = vadd.f32 0.0, %v521
  %v523 = vpop.f32.mrf.mxu0
  %524 = vdwg.mxu0
  %v525 = vadd.f32 %v15, %v522
  %526 = vrot.lane.b32.xlu0 %v438, 72
  %v527 = vpop.permute.xlu0 %526
  %v528 = vsel %vm18, %v527, 0
  %530 = vmatprep.subr.mxu0 0.0
  %531 = vmatpush1.msra.mxu0 0.0
  %532 = vmatprep.subr.mxu0 0.0
  %533 = vmatpush1.msra.mxu0 0.0
  %534 = vmatprep.subr.mxu0 0.0
  %535 = vmatpush1.msra.mxu0 0.0
  %536 = vmatprep.subr.mxu0 0.0
  %537 = vmatpush1.msra.mxu0 0.0
  %538 = vmatprep.subr.mxu0 0.0
  %539 = vmatpush1.msra.mxu0 0.0
  %540 = vmatprep.subr.mxu0 0.0
  %541 = vmatpush1.msra.mxu0 0.0
  %542 = vmatprep.subr.mxu0 0.0
  %543 = vmatpush1.msra.mxu0 0.0
  %544 = vmatprep.subr.mxu0 0.0
  %545 = vmatpush1.msra.mxu0 0.0
  %546 = vmatprep.subr.mxu0 0.0
  %547 = vmatpush1.msra.mxu0 0.0
  %548 = vmatprep.subr.mxu0 0.0
  %549 = vmatpush1.msra.mxu0 0.0
  %550 = vmatprep.subr.mxu0 0.0
  %551 = vmatpush1.msra.mxu0 0.0
  %552 = vmatprep.subr.mxu0 0.0
  %553 = vmatpush1.msra.mxu0 0.0
  %554 = vmatprep.subr.mxu0 0.0
  %555 = vmatpush1.msra.mxu0 0.0
  %556 = vmatprep.subr.mxu0 0.0
  %557 = vmatpush1.msra.mxu0 0.0
  %558 = vmatprep.subr.mxu0 0.0
  %559 = vmatpush1.msra.mxu0 0.0
  %560 = vmatprep.subr.mxu0 0.0
  %561 = vmatpush1.msra.mxu0 %v17
  %562 = vmatprep.subr.mxu0 0.0
  %563 = vmatpush2.msra.mxu0 0.0
  %564 = vmatprep.subr.mxu0 0.0
  %565 = vmatpush2.msra.mxu0 0.0
  %566 = vmatprep.subr.mxu0 0.0
  %567 = vmatpush2.msra.mxu0 0.0
  %568 = vmatprep.subr.mxu0 0.0
  %569 = vmatpush2.msra.mxu0 0.0
  %570 = vmatprep.subr.mxu0 0.0
  %571 = vmatpush2.msra.mxu0 0.0
  %572 = vmatprep.subr.mxu0 0.0
  %573 = vmatpush2.msra.mxu0 0.0
  %574 = vmatprep.subr.mxu0 0.0
  %575 = vmatpush2.msra.mxu0 0.0
  %576 = vmatprep.subr.mxu0 0.0
  %577 = vmatpush2.msra.mxu0 0.0
  %578 = vmatprep.subr.mxu0 0.0
  %579 = vmatpush2.msra.mxu0 0.0
  %580 = vmatprep.subr.mxu0 0.0
  %581 = vmatpush2.msra.mxu0 0.0
  %582 = vmatprep.subr.mxu0 0.0
  %583 = vmatpush2.msra.mxu0 0.0
  %584 = vmatprep.subr.mxu0 0.0
  %585 = vmatpush2.msra.mxu0 0.0
  %586 = vmatprep.subr.mxu0 0.0
  %587 = vmatpush2.msra.mxu0 0.0
  %588 = vmatprep.subr.mxu0 0.0
  %589 = vmatpush2.msra.mxu0 0.0
  %590 = vmatprep.subr.mxu0 0.0
  %591 = vmatpush2.msra.mxu0 0.0
  %592 = vmatprep.subr.mxu0 0.0
  %593 = vmatpush2.msra.mxu0 0.0
  %594 = vmatprep.mubr.f32.mxu0 0.0
  %595 = vmatmul.mubr.f32.gmra.mxu0 %v528
  %v596 = vpop.f32.mrf.mxu0
  %v597 = vadd.f32 0.0, %v596
  %v598 = vpop.f32.mrf.mxu0
  %599 = vdwg.mxu0
  %601 = vrot.lane.b32.xlu0 %v597, 96
  %v602 = vpop.permute.xlu0 %601
  %v604 = vadd.f32 %v14, %v602
  %v605 = vxor.u32 %v525, 2147483648
  %v606 = vmul.f32 %v605, 1.442695
  %v607 = vpow.pop %v606
  %v608 = vadd.f32 %v607, 1.0
  %v609 = vrcp.pop %v608
  %v610 = vmul.f32 1.0, %v609
  %v611 = vtanh.pop %v525
  %613 = vrot.lane.b32.xlu0 %v404, 64
  %v614 = vpop.permute.xlu0 %613
  %v616 = vmul.f32 %v610, %v614
  %618 = vrot.lane.b32.xlu0 %v611, 112
  %v619 = vpop.permute.xlu0 %618
  %v621 = vmul.f32 %v610, %v619
  %623 = vrot.lane.b32.xlu0 %v621, 8
  %v624 = vpop.permute.xlu0 %623
  %v626 = vadd.f32 %v616, %v624
  %v627 = vtanh.pop %v626
  %629 = vrot.lane.b32.xlu0 %v627, 16
  %v630 = vpop.permute.xlu0 %629
  %v632 = vmul.f32 %v610, %v630
  %v633 = vxor.u32 %v604, 2147483648
  %v634 = vmul.f32 %v633, 1.442695
  %v635 = vpow.pop %v634
  %v636 = vadd.f32 %v635, 1.0
  %v637 = vrcp.pop %v636
  %v638 = vmul.f32 1.0, %v637
  %v639 = vtanh.pop %v604
  %641 = vrot.lane.b32.xlu0 %v432, 64
  %v642 = vpop.permute.xlu0 %641
  %v644 = vmul.f32 %v638, %v642
  %646 = vrot.lane.b32.xlu0 %v639, 112
  %v647 = vpop.permute.xlu0 %646
  %v649 = vmul.f32 %v638, %v647
  %651 = vrot.lane.b32.xlu0 %v649, 8
  %v652 = vpop.permute.xlu0 %651
  %v654 = vadd.f32 %v644, %v652
  %v655 = vtanh.pop %v654
  %657 = vrot.lane.b32.xlu0 %v655, 16
  %v658 = vpop.permute.xlu0 %657
  %v660 = vmul.f32 %v638, %v658
  %662 = vrot.lane.b32.xlu0 %v632, 8
  %v663 = vpop.permute.xlu0 %662
  %vm665 = vcmask 326912
  %666 = vst.msk [vmem:[%s3] sm:$0xff] %vm665, %v663
  %668 = vrot.lane.b32.xlu0 %v660, 32
  %v669 = vpop.permute.xlu0 %668
  %vm671 = vcmask 261312
  %672 = vst.msk [vmem:[%s3] sm:$0xff] %vm671, %v669
  %673 = vrot.lane.b32.xlu0 %v632, 104
  %v674 = vpop.permute.xlu0 %673
  %v675 = vsel %vm18, %v674, 0
  %677 = vmatprep.subr.mxu0 0.0
  %678 = vmatpush1.msra.mxu0 0.0
  %679 = vmatprep.subr.mxu0 0.0
  %680 = vmatpush1.msra.mxu0 0.0
  %681 = vmatprep.subr.mxu0 0.0
  %682 = vmatpush1.msra.mxu0 0.0
  %683 = vmatprep.subr.mxu0 0.0
  %684 = vmatpush1.msra.mxu0 0.0
  %685 = vmatprep.subr.mxu0 0.0
  %686 = vmatpush1.msra.mxu0 0.0
  %687 = vmatprep.subr.mxu0 0.0
  %688 = vmatpush1.msra.mxu0 0.0
  %689 = vmatprep.subr.mxu0 0.0
  %690 = vmatpush1.msra.mxu0 0.0
  %691 = vmatprep.subr.mxu0 0.0
  %692 = vmatpush1.msra.mxu0 0.0
  %693 = vmatprep.subr.mxu0 0.0
  %694 = vmatpush1.msra.mxu0 0.0
  %695 = vmatprep.subr.mxu0 0.0
  %696 = vmatpush1.msra.mxu0 0.0
  %697 = vmatprep.subr.mxu0 0.0
  %698 = vmatpush1.msra.mxu0 0.0
  %699 = vmatprep.subr.mxu0 0.0
  %700 = vmatpush1.msra.mxu0 0.0
  %701 = vmatprep.subr.mxu0 0.0
  %702 = vmatpush1.msra.mxu0 0.0
  %703 = vmatprep.subr.mxu0 0.0
  %704 = vmatpush1.msra.mxu0 0.0
  %705 = vmatprep.subr.mxu0 0.0
  %706 = vmatpush1.msra.mxu0 0.0
  %707 = vmatprep.subr.mxu0 0.0
  %708 = vmatpush1.msra.mxu0 %v16
  %709 = vmatprep.subr.mxu0 0.0
  %710 = vmatpush2.msra.mxu0 0.0
  %711 = vmatprep.subr.mxu0 0.0
  %712 = vmatpush2.msra.mxu0 0.0
  %713 = vmatprep.subr.mxu0 0.0
  %714 = vmatpush2.msra.mxu0 0.0
  %715 = vmatprep.subr.mxu0 0.0
  %716 = vmatpush2.msra.mxu0 0.0
  %717 = vmatprep.subr.mxu0 0.0
  %718 = vmatpush2.msra.mxu0 0.0
  %719 = vmatprep.subr.mxu0 0.0
  %720 = vmatpush2.msra.mxu0 0.0
  %721 = vmatprep.subr.mxu0 0.0
  %722 = vmatpush2.msra.mxu0 0.0
  %723 = vmatprep.subr.mxu0 0.0
  %724 = vmatpush2.msra.mxu0 0.0
  %725 = vmatprep.subr.mxu0 0.0
  %726 = vmatpush2.msra.mxu0 0.0
  %727 = vmatprep.subr.mxu0 0.0
  %728 = vmatpush2.msra.mxu0 0.0
  %729 = vmatprep.subr.mxu0 0.0
  %730 = vmatpush2.msra.mxu0 0.0
  %731 = vmatprep.subr.mxu0 0.0
  %732 = vmatpush2.msra.mxu0 0.0
  %733 = vmatprep.subr.mxu0 0.0
  %734 = vmatpush2.msra.mxu0 0.0
  %735 = vmatprep.subr.mxu0 0.0
  %736 = vmatpush2.msra.mxu0 0.0
  %737 = vmatprep.subr.mxu0 0.0
  %738 = vmatpush2.msra.mxu0 0.0
  %739 = vmatprep.subr.mxu0 0.0
  %740 = vmatpush2.msra.mxu0 0.0
  %741 = vmatprep.mubr.f32.mxu0 0.0
  %742 = vmatmul.mubr.f32.gmra.mxu0 %v675
  %v743 = vpop.f32.mrf.mxu0
  %v744 = vadd.f32 0.0, %v743
  %v745 = vpop.f32.mrf.mxu0
  %746 = vdwg.mxu0
  %748 = vrot.lane.b32.xlu0 %v744, 64
  %v749 = vpop.permute.xlu0 %748
  %v751 = vadd.f32 %v15, %v749
  %752 = vrot.lane.b32.xlu0 %v660, 8
  %v753 = vpop.permute.xlu0 %752
  %v754 = vsel %vm18, %v753, 0
  %756 = vmatprep.subr.mxu0 0.0
  %757 = vmatpush1.msra.mxu0 0.0
  %758 = vmatprep.subr.mxu0 0.0
  %759 = vmatpush1.msra.mxu0 0.0
  %760 = vmatprep.subr.mxu0 0.0
  %761 = vmatpush1.msra.mxu0 0.0
  %762 = vmatprep.subr.mxu0 0.0
  %763 = vmatpush1.msra.mxu0 0.0
  %764 = vmatprep.subr.mxu0 0.0
  %765 = vmatpush1.msra.mxu0 0.0
  %766 = vmatprep.subr.mxu0 0.0
  %767 = vmatpush1.msra.mxu0 0.0
  %768 = vmatprep.subr.mxu0 0.0
  %769 = vmatpush1.msra.mxu0 0.0
  %770 = vmatprep.subr.mxu0 0.0
  %771 = vmatpush1.msra.mxu0 0.0
  %772 = vmatprep.subr.mxu0 0.0
  %773 = vmatpush1.msra.mxu0 0.0
  %774 = vmatprep.subr.mxu0 0.0
  %775 = vmatpush1.msra.mxu0 0.0
  %776 = vmatprep.subr.mxu0 0.0
  %777 = vmatpush1.msra.mxu0 0.0
  %778 = vmatprep.subr.mxu0 0.0
  %779 = vmatpush1.msra.mxu0 0.0
  %780 = vmatprep.subr.mxu0 0.0
  %781 = vmatpush1.msra.mxu0 0.0
  %782 = vmatprep.subr.mxu0 0.0
  %783 = vmatpush1.msra.mxu0 0.0
  %784 = vmatprep.subr.mxu0 0.0
  %785 = vmatpush1.msra.mxu0 0.0
  %786 = vmatprep.subr.mxu0 0.0
  %787 = vmatpush1.msra.mxu0 %v17
  %788 = vmatprep.subr.mxu0 0.0
  %789 = vmatpush2.msra.mxu0 0.0
  %790 = vmatprep.subr.mxu0 0.0
  %791 = vmatpush2.msra.mxu0 0.0
  %792 = vmatprep.subr.mxu0 0.0
  %793 = vmatpush2.msra.mxu0 0.0
  %794 = vmatprep.subr.mxu0 0.0
  %795 = vmatpush2.msra.mxu0 0.0
  %796 = vmatprep.subr.mxu0 0.0
  %797 = vmatpush2.msra.mxu0 0.0
  %798 = vmatprep.subr.mxu0 0.0
  %799 = vmatpush2.msra.mxu0 0.0
  %800 = vmatprep.subr.mxu0 0.0
  %801 = vmatpush2.msra.mxu0 0.0
  %802 = vmatprep.subr.mxu0 0.0
  %803 = vmatpush2.msra.mxu0 0.0
  %804 = vmatprep.subr.mxu0 0.0
  %805 = vmatpush2.msra.mxu0 0.0
  %806 = vmatprep.subr.mxu0 0.0
  %807 = vmatpush2.msra.mxu0 0.0
  %808 = vmatprep.subr.mxu0 0.0
  %809 = vmatpush2.msra.mxu0 0.0
  %810 = vmatprep.subr.mxu0 0.0
  %811 = vmatpush2.msra.mxu0 0.0
  %812 = vmatprep.subr.mxu0 0.0
  %813 = vmatpush2.msra.mxu0 0.0
  %814 = vmatprep.subr.mxu0 0.0
  %815 = vmatpush2.msra.mxu0 0.0
  %816 = vmatprep.subr.mxu0 0.0
  %817 = vmatpush2.msra.mxu0 0.0
  %818 = vmatprep.subr.mxu0 0.0
  %819 = vmatpush2.msra.mxu0 0.0
  %820 = vmatprep.mubr.f32.mxu0 0.0
  %821 = vmatmul.mubr.f32.gmra.mxu0 %v754
  %v822 = vpop.f32.mrf.mxu0
  %v823 = vadd.f32 0.0, %v822
  %v824 = vpop.f32.mrf.mxu0
  %825 = vdwg.mxu0
  %827 = vrot.lane.b32.xlu0 %v823, 32
  %v828 = vpop.permute.xlu0 %827
  %v830 = vadd.f32 %v14, %v828
  %v831 = vxor.u32 %v751, 2147483648
  %v832 = vmul.f32 %v831, 1.442695
  %v833 = vpow.pop %v832
  %v834 = vadd.f32 %v833, 1.0
  %v835 = vrcp.pop %v834
  %v836 = vmul.f32 1.0, %v835
  %v837 = vtanh.pop %v751
  %839 = vrot.lane.b32.xlu0 %v626, 64
  %v840 = vpop.permute.xlu0 %839
  %v842 = vmul.f32 %v836, %v840
  %844 = vrot.lane.b32.xlu0 %v837, 112
  %v845 = vpop.permute.xlu0 %844
  %v847 = vmul.f32 %v836, %v845
  %849 = vrot.lane.b32.xlu0 %v847, 8
  %v850 = vpop.permute.xlu0 %849
  %v852 = vadd.f32 %v842, %v850
  %v853 = vtanh.pop %v852
  %855 = vrot.lane.b32.xlu0 %v853, 16
  %v856 = vpop.permute.xlu0 %855
  %v858 = vmul.f32 %v836, %v856
  %v859 = vxor.u32 %v830, 2147483648
  %v860 = vmul.f32 %v859, 1.442695
  %v861 = vpow.pop %v860
  %v862 = vadd.f32 %v861, 1.0
  %v863 = vrcp.pop %v862
  %v864 = vmul.f32 1.0, %v863
  %v865 = vtanh.pop %v830
  %867 = vrot.lane.b32.xlu0 %v654, 64
  %v868 = vpop.permute.xlu0 %867
  %v870 = vmul.f32 %v864, %v868
  %872 = vrot.lane.b32.xlu0 %v865, 112
  %v873 = vpop.permute.xlu0 %872
  %v875 = vmul.f32 %v864, %v873
  %877 = vrot.lane.b32.xlu0 %v875, 8
  %v878 = vpop.permute.xlu0 %877
  %v880 = vadd.f32 %v870, %v878
  %v881 = vtanh.pop %v880
  %883 = vrot.lane.b32.xlu0 %v881, 16
  %v884 = vpop.permute.xlu0 %883
  %v886 = vmul.f32 %v864, %v884
  %888 = vrot.lane.b32.xlu0 %v858, 88
  %v889 = vpop.permute.xlu0 %888
  %vm891 = vcmask 458112
  %892 = vst.msk [vmem:[%s3] sm:$0xff] %vm891, %v889
  %894 = vrot.lane.b32.xlu0 %v886, 80
  %v895 = vpop.permute.xlu0 %894
  %vm897 = vcmask 130112
  %898 = vst.msk [vmem:[%s3] sm:$0xff] %vm897, %v895
  // Predicated region
  $region14: #{_lambda_.12} parent=0 // pred_check
    _
  $region15: #{_lambda_.12} parent=0 // pred_check_branch
    %900 = sbr.rel (0) target = $region17
  $region16: #{_lambda_.12} parent=0 // pred_region
    _
  $region17: #{_lambda_.12} parent=0 // pred_fallthru
    _
  // Predicated region
  $region18: #{_lambda_.12} parent=0 // pred_check
    _
  $region19: #{_lambda_.12} parent=0 // pred_check_branch
    %902 = sbr.rel (0) target = $region21
  $region20: #{_lambda_.12} parent=0 // pred_region
    _
  $region21: #{_lambda_.12} parent=0 // pred_fallthru
    _

</llo_original>
